<compile_context>
chip_gen: v5e
topology: v5e:2x2
jax: 0.10.0
libtpu: 0.0.40
codegen_flags: <defaults>
</compile_context>

<pallas_src>
import jax
import jax.numpy as jnp
from jax.experimental import pallas as pl
from jax.experimental.pallas import tpu as pltpu

# ---- small "opt" hyper-parameters (module-consistent, small shapes) ---------
LATENT_DIM = 8
N_CLASSES = 4
CODE_DIM = 2
IMG_SIZE = 16
CHANNELS = 1
INIT_SIZE = IMG_SIZE // 4                  # 4
INPUT_DIM = LATENT_DIM + N_CLASSES + CODE_DIM
BATCH = 2

C0 = 128                                   # l1 / conv1 channels
C1 = 64                                    # conv2 channels
H0 = INIT_SIZE                             # 4   (spatial after l1)
H1 = 2 * INIT_SIZE                         # 8   (after first upsample)
H2 = IMG_SIZE                              # 16  (after second upsample)
S0 = H0 * H0


# ------------------------- in-kernel helper functions ------------------------
def _bn_act(x, g, b, *, eps, slope=None):
    """BatchNorm over rows (= N*H*W) with channels on lanes; optional LeakyReLU.

    Batch statistics, biased variance (PyTorch train-mode normalization)."""
    mean = jnp.mean(x, axis=0, keepdims=True)
    var = jnp.mean((x - mean) * (x - mean), axis=0, keepdims=True)
    y = (x - mean) * jax.lax.rsqrt(var + eps)
    y = y * g + b
    if slope is not None:
        y = jnp.where(y >= 0.0, y, slope * y)
    return y


def _zero_border(dst_ref):
    """Zero only the 1-pixel border of a (B, Hp, Wp, C) padded scratch."""
    B, Hp, Wp, C = dst_ref.shape
    dst_ref[:, 0:1, :, :] = jnp.zeros((B, 1, Wp, C), jnp.float32)
    dst_ref[:, Hp - 1:Hp, :, :] = jnp.zeros((B, 1, Wp, C), jnp.float32)
    dst_ref[:, :, 0:1, :] = jnp.zeros((B, Hp, 1, C), jnp.float32)
    dst_ref[:, :, Wp - 1:Wp, :] = jnp.zeros((B, Hp, 1, C), jnp.float32)


def _upsample2x_pad_store(a, dst_ref):
    """Nearest 2x upsample of a (B,H,W,C) value fused with the 3x3-conv zero
    padding; result written into dst_ref of shape (B, 2H+2, 2W+2, C).

    Every dst element is written exactly once (border zeros + interior)."""
    B, H, W, C = a.shape
    _zero_border(dst_ref)
    # H-duplication via leading-dim broadcast + leading-dim merge (layout no-op).
    up_h = jnp.broadcast_to(a[:, :, None, :, :], (B, H, 2, W, C))
    up_h = up_h.reshape(B, 2 * H, W, C)
    # W-duplication: destination columns (2j+1, 2j+2) are contiguous, so each
    # source column needs only ONE 2-wide store (sublane broadcast of the pair).
    for j in range(W):
        pair = jnp.broadcast_to(up_h[:, :, j:j + 1, :], (B, 2 * H, 2, C))
        dst_ref[:, 1:2 * H + 1, 2 * j + 1:2 * j + 3, :] = pair


# ------------------------------- fused kernel --------------------------------
def _generator_kernel(x_ref, w1_ref, b1_ref, g0_ref, be0_ref,
                      c1w_hbm, bc1_ref, g1_ref, be1_ref,
                      c2w_hbm, bc2_ref, g2_ref, be2_ref,
                      w3_ref, b3_ref,
                      out_ref,
                      a0_ref, p1_ref, p2_ref, p3_ref,
                      w1s_ref, w2s_ref, dma_sem):
    B = x_ref.shape[0]

    # ---- kick off the big conv-weight DMAs; they overlap l1/BN0/upsample work.
    c1_copy = pltpu.make_async_copy(c1w_hbm, w1s_ref, dma_sem.at[0])
    c2_copy = pltpu.make_async_copy(c2w_hbm, w2s_ref, dma_sem.at[1])
    c1_copy.start()
    c2_copy.start()

    # ---- l1: Linear(INPUT_DIM -> 128*init^2); columns pre-permuted so the
    #      output is already flattened NHWC (lane index = s*128 + c).
    y = jnp.dot(x_ref[...], w1_ref[...], preferred_element_type=jnp.float32)
    y = y + b1_ref[...]                                     # (B, S0*C0)
    # Small lane->sublane relayout via 128-wide slices (16 tiny stores).
    for s in range(S0):
        a0_ref[:, s, :] = y[:, s * C0:(s + 1) * C0]
    a0 = a0_ref[...].reshape(B * S0, C0)                    # rows = (b, h, w)

    # ---- BN(128, eps=1e-5)
    a0 = _bn_act(a0, g0_ref[...], be0_ref[...], eps=1e-5)

    # ---- Upsample x2 + pad
    _upsample2x_pad_store(a0.reshape(B, H0, H0, C0), p1_ref)

    # ---- Conv1: tap-wise accumulation (9 x (128,128)@(128,128) bf16 dots)
    c1_copy.wait()
    acc1 = jnp.zeros((B * H1 * H1, C0), jnp.float32)
    t = 0
    for kh in range(3):
        for kw in range(3):
            tap = p1_ref[:, kh:kh + H1, kw:kw + H1, :]
            tap = tap.reshape(B * H1 * H1, C0).astype(jnp.bfloat16)
            acc1 = acc1 + jnp.dot(tap, w1s_ref[t],
                                  preferred_element_type=jnp.float32)
            t += 1
    o1 = _bn_act(acc1 + bc1_ref[...], g1_ref[...], be1_ref[...],
                 eps=0.8, slope=0.2)

    # ---- Upsample x2 + pad
    _upsample2x_pad_store(o1.reshape(B, H1, H1, C0), p2_ref)

    # ---- Conv2: tap-wise accumulation (9 x (512,128)@(128,64) bf16 dots)
    c2_copy.wait()
    acc2 = jnp.zeros((B * H2 * H2, C1), jnp.float32)
    t = 0
    for kh in range(3):
        for kw in range(3):
            tap = p2_ref[:, kh:kh + H2, kw:kw + H2, :]
            tap = tap.reshape(B * H2 * H2, C0).astype(jnp.bfloat16)
            acc2 = acc2 + jnp.dot(tap, w2s_ref[t],
                                  preferred_element_type=jnp.float32)
            t += 1
    o2 = _bn_act(acc2 + bc2_ref[...], g2_ref[...], be2_ref[...],
                 eps=0.8, slope=0.2)

    # ---- Conv3 (64 -> 1): pad, 9 shifted VPU MACs, cross-lane reduce, tanh.
    _zero_border(p3_ref)
    p3_ref[:, 1:H2 + 1, 1:H2 + 1, :] = o2.reshape(B, H2, H2, C1)
    w3 = w3_ref[...]                                        # (9, C1)
    acc3 = jnp.zeros((B * H2 * H2, C1), jnp.float32)
    t = 0
    for kh in range(3):
        for kw in range(3):
            tap = p3_ref[:, kh:kh + H2, kw:kw + H2, :].reshape(B * H2 * H2, C1)
            acc3 = acc3 + tap * w3[t:t + 1, :]
            t += 1
    o3 = jnp.sum(acc3, axis=-1, keepdims=True) + b3_ref[...]   # (B*H2*H2, 1)
    out_ref[...] = jnp.tanh(o3)


# ------------------------------ parameter setup ------------------------------
def init_params(key):
    """PyTorch-equivalent layouts: l1 (in,out); convs HWIO; 1-D biases / BN."""
    ks = jax.random.split(key, 14)
    s = 0.05
    d_out = 128 * INIT_SIZE ** 2
    return {
        "l1_w": s * jax.random.normal(ks[0], (INPUT_DIM, d_out), jnp.float32),
        "l1_b": s * jax.random.normal(ks[1], (d_out,), jnp.float32),
        "bn0_g": 1.0 + 0.1 * jax.random.normal(ks[2], (128,), jnp.float32),
        "bn0_b": 0.1 * jax.random.normal(ks[3], (128,), jnp.float32),
        "conv1_w": s * jax.random.normal(ks[4], (3, 3, 128, 128), jnp.float32),
        "conv1_b": s * jax.random.normal(ks[5], (128,), jnp.float32),
        "bn1_g": 1.0 + 0.1 * jax.random.normal(ks[6], (128,), jnp.float32),
        "bn1_b": 0.1 * jax.random.normal(ks[7], (128,), jnp.float32),
        "conv2_w": s * jax.random.normal(ks[8], (3, 3, 128, 64), jnp.float32),
        "conv2_b": s * jax.random.normal(ks[9], (64,), jnp.float32),
        "bn2_g": 1.0 + 0.1 * jax.random.normal(ks[10], (64,), jnp.float32),
        "bn2_b": 0.1 * jax.random.normal(ks[11], (64,), jnp.float32),
        "conv3_w": s * jax.random.normal(ks[12], (3, 3, 64, CHANNELS), jnp.float32),
        "conv3_b": s * jax.random.normal(ks[13], (CHANNELS,), jnp.float32),
    }


def prepare_params(p):
    """One-time (offline) repacking into kernel-ready layouts."""
    j = jnp.arange(128 * S0)
    # NHWC-flat column s*128+c takes PyTorch NCHW-flat column c*S0+s.
    perm = (j % 128) * S0 + j // 128
    return {
        "l1_w": p["l1_w"][:, perm],
        "l1_b": p["l1_b"][perm][None, :],
        "bn0_g": p["bn0_g"][None, :], "bn0_b": p["bn0_b"][None, :],
        # Tap-major bf16 conv weights: (kh*3+kw, Cin, Cout).
        "c1_w": p["conv1_w"].reshape(9, C0, C0).astype(jnp.bfloat16),
        "c1_b": p["conv1_b"][None, :],
        "bn1_g": p["bn1_g"][None, :], "bn1_b": p["bn1_b"][None, :],
        "c2_w": p["conv2_w"].reshape(9, C0, C1).astype(jnp.bfloat16),
        "c2_b": p["conv2_b"][None, :],
        "bn2_g": p["bn2_g"][None, :], "bn2_b": p["bn2_b"][None, :],
        # CHANNELS == 1: fold the trivial out-channel dim -> (9, 64) f32.
        "c3_w": p["conv3_w"].reshape(9, C1),
        "c3_b": p["conv3_b"].reshape(1, 1),
    }


# ------------------------------- forward pass --------------------------------
def _full_block(shape):
    zeros = (0,) * len(shape)
    return pl.BlockSpec(shape, lambda i, _z=zeros: _z)


@jax.jit
def generator_forward(kp, noise, labels, code):
    gen_input = jnp.concatenate([noise, labels, code], axis=-1)   # (B, INPUT_DIM)
    B = gen_input.shape[0]

    operands = (gen_input,
                kp["l1_w"], kp["l1_b"], kp["bn0_g"], kp["bn0_b"],
                kp["c1_w"], kp["c1_b"], kp["bn1_g"], kp["bn1_b"],
                kp["c2_w"], kp["c2_b"], kp["bn2_g"], kp["bn2_b"],
                kp["c3_w"], kp["c3_b"])

    # conv1/conv2 weights stay in HBM (indices 5 and 9) and are DMA'd manually
    # inside the kernel so their transfer overlaps earlier compute.
    in_specs = []
    for idx, o in enumerate(operands):
        if idx in (5, 9):
            in_specs.append(pl.BlockSpec(memory_space=pl.ANY))
        else:
            in_specs.append(_full_block(o.shape))

    out_shape = jax.ShapeDtypeStruct((B * IMG_SIZE * IMG_SIZE, CHANNELS),
                                     jnp.float32)

    out_flat = pl.pallas_call(
        _generator_kernel,
        out_shape=out_shape,
        grid=(1,),
        in_specs=in_specs,
        out_specs=_full_block(out_shape.shape),
        scratch_shapes=[
            pltpu.VMEM((B, S0, C0), jnp.float32),              # l1 -> NHWC
            pltpu.VMEM((B, H1 + 2, H1 + 2, C0), jnp.float32),  # up1 + pad
            pltpu.VMEM((B, H2 + 2, H2 + 2, C0), jnp.float32),  # up2 + pad
            pltpu.VMEM((B, H2 + 2, H2 + 2, C1), jnp.float32),  # pad for conv3
            pltpu.VMEM((9, C0, C0), jnp.bfloat16),             # conv1 weights
            pltpu.VMEM((9, C0, C1), jnp.bfloat16),             # conv2 weights
            pltpu.SemaphoreType.DMA((2,)),
        ],
        compiler_params=pltpu.CompilerParams(
            dimension_semantics=("arbitrary",),
            vmem_limit_bytes=32 * 1024 * 1024),
    )(*operands)

    # rows ordered (b, h, w) -> NCHW image.
    img = out_flat.reshape(B, IMG_SIZE, IMG_SIZE, CHANNELS).transpose(0, 3, 1, 2)
    return img


# ------------------------ pure-JAX reference (for checking) ------------------
def reference_forward(p, noise, labels, code):
    hi = jax.lax.Precision.HIGHEST
    x = jnp.concatenate([noise, labels, code], axis=-1)
    out = jnp.dot(x, p["l1_w"], precision=hi) + p["l1_b"]
    B = out.shape[0]
    out = out.reshape(B, 128, INIT_SIZE, INIT_SIZE).transpose(0, 2, 3, 1)  # NHWC

    def bn(x, g, b, eps, slope=None):
        m = x.mean(axis=(0, 1, 2), keepdims=True)
        v = ((x - m) ** 2).mean(axis=(0, 1, 2), keepdims=True)
        y = (x - m) / jnp.sqrt(v + eps) * g + b
        if slope is not None:
            y = jnp.where(y >= 0, y, slope * y)
        return y

    def up2(x):
        return jnp.repeat(jnp.repeat(x, 2, axis=1), 2, axis=2)

    def conv(x, w, b):
        return jax.lax.conv_general_dilated(
            x, w, (1, 1), "SAME",
            dimension_numbers=("NHWC", "HWIO", "NHWC"), precision=hi) + b

    out = bn(out, p["bn0_g"], p["bn0_b"], 1e-5)
    out = up2(out)
    out = bn(conv(out, p["conv1_w"], p["conv1_b"]),
             p["bn1_g"], p["bn1_b"], 0.8, 0.2)
    out = up2(out)
    out = bn(conv(out, p["conv2_w"], p["conv2_b"]),
             p["bn2_g"], p["bn2_b"], 0.8, 0.2)
    img = jnp.tanh(conv(out, p["conv3_w"], p["conv3_b"]))
    return img.transpose(0, 3, 1, 2)                               # NCHW


# ----------------------------------- main -------------------------------------
if __name__ == "__main__":
    key = jax.random.PRNGKey(0)
    k_param, k_noise, k_label, k_code = jax.random.split(key, 4)

    params = init_params(k_param)
    kparams = prepare_params(params)

    noise = jax.random.normal(k_noise, (BATCH, LATENT_DIM), jnp.float32)
    label_idx = jax.random.randint(k_label, (BATCH,), 0, N_CLASSES)
    labels = jax.nn.one_hot(label_idx, N_CLASSES, dtype=jnp.float32)
    code = jax.random.uniform(k_code, (BATCH, CODE_DIM), jnp.float32,
                              minval=-1.0, maxval=1.0)

    img = generator_forward(kparams, noise, labels, code)
    jax.block_until_ready(img)

    assert img.shape == (BATCH, CHANNELS, IMG_SIZE, IMG_SIZE), img.shape
    assert bool(jnp.all(jnp.isfinite(img)))
    assert bool(jnp.all(jnp.abs(img) <= 1.0))      # tanh output range

    ref = reference_forward(params, noise, labels, code)
    err = float(jnp.max(jnp.abs(img - ref)))
    mean_err = float(jnp.mean(jnp.abs(img - ref)))
    # bf16 conv1/conv2 inputs (f32 accumulation + f32 BN epilogues) vs an
    # f32-HIGHEST reference: tolerance relaxed from the all-f32 5e-3 check.
    assert err < 3e-2, f"max abs err vs reference: {err}"
    assert mean_err < 5e-3, f"mean abs err vs reference: {mean_err}"

    print("KERNEL_OK")
</pallas_src>

<mosaic_0001>
module attributes {stable_mosaic.version = 11 : i64} {
  func.func @_generator_kernel(%arg0: i32, %arg1: memref<2x14xf32, #tpu.memory_space<vmem>>, %arg2: memref<14x2048xf32, #tpu.memory_space<vmem>>, %arg3: memref<1x2048xf32, #tpu.memory_space<vmem>>, %arg4: memref<1x128xf32, #tpu.memory_space<vmem>>, %arg5: memref<1x128xf32, #tpu.memory_space<vmem>>, %arg6: memref<9x128x128xbf16, #tpu.memory_space<any>>, %arg7: memref<1x128xf32, #tpu.memory_space<vmem>>, %arg8: memref<1x128xf32, #tpu.memory_space<vmem>>, %arg9: memref<1x128xf32, #tpu.memory_space<vmem>>, %arg10: memref<9x128x64xbf16, #tpu.memory_space<any>>, %arg11: memref<1x64xf32, #tpu.memory_space<vmem>>, %arg12: memref<1x64xf32, #tpu.memory_space<vmem>>, %arg13: memref<1x64xf32, #tpu.memory_space<vmem>>, %arg14: memref<9x64xf32, #tpu.memory_space<vmem>>, %arg15: memref<1x1xf32, #tpu.memory_space<vmem>>, %arg16: memref<512x1xf32, #tpu.memory_space<vmem>>, %arg17: memref<2x16x128xf32, #tpu.memory_space<vmem>>, %arg18: memref<2x10x10x128xf32, #tpu.memory_space<vmem>>, %arg19: memref<2x18x18x128xf32, #tpu.memory_space<vmem>>, %arg20: memref<2x18x18x64xf32, #tpu.memory_space<vmem>>, %arg21: memref<9x128x128xbf16, #tpu.memory_space<vmem>>, %arg22: memref<9x128x64xbf16, #tpu.memory_space<vmem>>, %arg23: memref<2x!tpu.dma_semaphore, #tpu.memory_space<semaphore_mem>>) attributes {dimension_semantics = [#tpu.dimension_semantics<arbitrary>], iteration_bounds = array<i64: 1>, scalar_prefetch = 0 : i64, scratch_operands = 7 : i64, tpu.core_type = #tpu.core_type<tc>, window_params = [{pipeline_mode = #tpu.pipeline_mode<synchronous>, transform_indices = @transform_0, window_bounds = array<i64: 2, 14>}, {pipeline_mode = #tpu.pipeline_mode<synchronous>, transform_indices = @transform_1, window_bounds = array<i64: 14, 2048>}, {pipeline_mode = #tpu.pipeline_mode<synchronous>, transform_indices = @transform_2, window_bounds = array<i64: 1, 2048>}, {pipeline_mode = #tpu.pipeline_mode<synchronous>, transform_indices = @transform_3, window_bounds = array<i64: 1, 128>}, {pipeline_mode = #tpu.pipeline_mode<synchronous>, transform_indices = @transform_4, window_bounds = array<i64: 1, 128>}, {}, {pipeline_mode = #tpu.pipeline_mode<synchronous>, transform_indices = @transform_6, window_bounds = array<i64: 1, 128>}, {pipeline_mode = #tpu.pipeline_mode<synchronous>, transform_indices = @transform_7, window_bounds = array<i64: 1, 128>}, {pipeline_mode = #tpu.pipeline_mode<synchronous>, transform_indices = @transform_8, window_bounds = array<i64: 1, 128>}, {}, {pipeline_mode = #tpu.pipeline_mode<synchronous>, transform_indices = @transform_10, window_bounds = array<i64: 1, 64>}, {pipeline_mode = #tpu.pipeline_mode<synchronous>, transform_indices = @transform_11, window_bounds = array<i64: 1, 64>}, {pipeline_mode = #tpu.pipeline_mode<synchronous>, transform_indices = @transform_12, window_bounds = array<i64: 1, 64>}, {pipeline_mode = #tpu.pipeline_mode<synchronous>, transform_indices = @transform_13, window_bounds = array<i64: 9, 64>}, {pipeline_mode = #tpu.pipeline_mode<synchronous>, transform_indices = @transform_14, window_bounds = array<i64: 1, 1>}, {pipeline_mode = #tpu.pipeline_mode<synchronous>, transform_indices = @transform_15, window_bounds = array<i64: 512, 1>}]} {
    %c0_i32 = arith.constant 0 : i32
    %0 = tpu.memref_slice %arg23[%c0_i32] : memref<2x!tpu.dma_semaphore, #tpu.memory_space<semaphore_mem>> -> memref<1x!tpu.dma_semaphore, #tpu.memory_space<semaphore_mem>>
    %1 = tpu.memref_squeeze %0 : memref<1x!tpu.dma_semaphore, #tpu.memory_space<semaphore_mem>> -> memref<!tpu.dma_semaphore, #tpu.memory_space<semaphore_mem>>
    tpu.enqueue_dma source(%arg6 : memref<9x128x128xbf16, #tpu.memory_space<any>>) target(%arg21 : memref<9x128x128xbf16, #tpu.memory_space<vmem>>) target_semaphore(%1 : memref<!tpu.dma_semaphore, #tpu.memory_space<semaphore_mem>>)
    %c1_i32 = arith.constant 1 : i32
    %2 = tpu.memref_slice %arg23[%c1_i32] : memref<2x!tpu.dma_semaphore, #tpu.memory_space<semaphore_mem>> -> memref<1x!tpu.dma_semaphore, #tpu.memory_space<semaphore_mem>>
    %3 = tpu.memref_squeeze %2 : memref<1x!tpu.dma_semaphore, #tpu.memory_space<semaphore_mem>> -> memref<!tpu.dma_semaphore, #tpu.memory_space<semaphore_mem>>
    tpu.enqueue_dma source(%arg10 : memref<9x128x64xbf16, #tpu.memory_space<any>>) target(%arg22 : memref<9x128x64xbf16, #tpu.memory_space<vmem>>) target_semaphore(%3 : memref<!tpu.dma_semaphore, #tpu.memory_space<semaphore_mem>>)
    %c0 = arith.constant 0 : index
    %c0_0 = arith.constant 0 : index
    %4 = vector.load %arg1[%c0, %c0_0] : memref<2x14xf32, #tpu.memory_space<vmem>>, vector<2x14xf32>
    %c0_1 = arith.constant 0 : index
    %c0_2 = arith.constant 0 : index
    %5 = vector.load %arg2[%c0_1, %c0_2] : memref<14x2048xf32, #tpu.memory_space<vmem>>, vector<14x2048xf32>
    %cst = arith.constant dense<0.000000e+00> : vector<2x2048xf32>
    %6 = tpu.matmul %4, %5, %cst {dimension_numbers = #tpu.dot_dimension_numbers<[1], [0], [0], [1], [0, 0, 1, 1], [], []>} : vector<2x14xf32>, vector<14x2048xf32>, vector<2x2048xf32> -> vector<2x2048xf32>
    %c0_3 = arith.constant 0 : index
    %c0_4 = arith.constant 0 : index
    %7 = vector.load %arg3[%c0_3, %c0_4] : memref<1x2048xf32, #tpu.memory_space<vmem>>, vector<1x2048xf32>
    %8 = vector.broadcast %7 : vector<1x2048xf32> to vector<2x2048xf32>
    %9 = arith.addf %6, %8 : vector<2x2048xf32>
    %10 = vector.extract_strided_slice %9 {offsets = [0, 0], sizes = [2, 128], strides = [1, 1]} : vector<2x2048xf32> to vector<2x128xf32>
    %c0_5 = arith.constant 0 : index
    %c0_6 = arith.constant 0 : index
    %c0_7 = arith.constant 0 : index
    %11 = vector.load %arg17[%c0_5, %c0_6, %c0_7] : memref<2x16x128xf32, #tpu.memory_space<vmem>>, vector<2x1x128xf32>
    %12 = vector.shape_cast %11 : vector<2x1x128xf32> to vector<2x128xf32>
    %13 = vector.shape_cast %10 : vector<2x128xf32> to vector<2x1x128xf32>
    tpu.vector_store %arg17[%c0_5, %c0_6, %c0_7], %13 {strides = array<i32>} : memref<2x16x128xf32, #tpu.memory_space<vmem>>, vector<2x1x128xf32>,
    %14 = vector.extract_strided_slice %9 {offsets = [0, 128], sizes = [2, 128], strides = [1, 1]} : vector<2x2048xf32> to vector<2x128xf32>
    %c0_8 = arith.constant 0 : index
    %c1 = arith.constant 1 : index
    %c0_9 = arith.constant 0 : index
    %15 = vector.load %arg17[%c0_8, %c1, %c0_9] : memref<2x16x128xf32, #tpu.memory_space<vmem>>, vector<2x1x128xf32>
    %16 = vector.shape_cast %15 : vector<2x1x128xf32> to vector<2x128xf32>
    %17 = vector.shape_cast %14 : vector<2x128xf32> to vector<2x1x128xf32>
    tpu.vector_store %arg17[%c0_8, %c1, %c0_9], %17 {strides = array<i32>} : memref<2x16x128xf32, #tpu.memory_space<vmem>>, vector<2x1x128xf32>,
    %18 = vector.extract_strided_slice %9 {offsets = [0, 256], sizes = [2, 128], strides = [1, 1]} : vector<2x2048xf32> to vector<2x128xf32>
    %c0_10 = arith.constant 0 : index
    %c2 = arith.constant 2 : index
    %c0_11 = arith.constant 0 : index
    %19 = vector.load %arg17[%c0_10, %c2, %c0_11] : memref<2x16x128xf32, #tpu.memory_space<vmem>>, vector<2x1x128xf32>
    %20 = vector.shape_cast %19 : vector<2x1x128xf32> to vector<2x128xf32>
    %21 = vector.shape_cast %18 : vector<2x128xf32> to vector<2x1x128xf32>
    tpu.vector_store %arg17[%c0_10, %c2, %c0_11], %21 {strides = array<i32>} : memref<2x16x128xf32, #tpu.memory_space<vmem>>, vector<2x1x128xf32>,
    %22 = vector.extract_strided_slice %9 {offsets = [0, 384], sizes = [2, 128], strides = [1, 1]} : vector<2x2048xf32> to vector<2x128xf32>
    %c0_12 = arith.constant 0 : index
    %c3 = arith.constant 3 : index
    %c0_13 = arith.constant 0 : index
    %23 = vector.load %arg17[%c0_12, %c3, %c0_13] : memref<2x16x128xf32, #tpu.memory_space<vmem>>, vector<2x1x128xf32>
    %24 = vector.shape_cast %23 : vector<2x1x128xf32> to vector<2x128xf32>
    %25 = vector.shape_cast %22 : vector<2x128xf32> to vector<2x1x128xf32>
    tpu.vector_store %arg17[%c0_12, %c3, %c0_13], %25 {strides = array<i32>} : memref<2x16x128xf32, #tpu.memory_space<vmem>>, vector<2x1x128xf32>,
    %26 = vector.extract_strided_slice %9 {offsets = [0, 512], sizes = [2, 128], strides = [1, 1]} : vector<2x2048xf32> to vector<2x128xf32>
    %c0_14 = arith.constant 0 : index
    %c4 = arith.constant 4 : index
    %c0_15 = arith.constant 0 : index
    %27 = vector.load %arg17[%c0_14, %c4, %c0_15] : memref<2x16x128xf32, #tpu.memory_space<vmem>>, vector<2x1x128xf32>
    %28 = vector.shape_cast %27 : vector<2x1x128xf32> to vector<2x128xf32>
    %29 = vector.shape_cast %26 : vector<2x128xf32> to vector<2x1x128xf32>
    tpu.vector_store %arg17[%c0_14, %c4, %c0_15], %29 {strides = array<i32>} : memref<2x16x128xf32, #tpu.memory_space<vmem>>, vector<2x1x128xf32>,
    %30 = vector.extract_strided_slice %9 {offsets = [0, 640], sizes = [2, 128], strides = [1, 1]} : vector<2x2048xf32> to vector<2x128xf32>
    %c0_16 = arith.constant 0 : index
    %c5 = arith.constant 5 : index
    %c0_17 = arith.constant 0 : index
    %31 = vector.load %arg17[%c0_16, %c5, %c0_17] : memref<2x16x128xf32, #tpu.memory_space<vmem>>, vector<2x1x128xf32>
    %32 = vector.shape_cast %31 : vector<2x1x128xf32> to vector<2x128xf32>
    %33 = vector.shape_cast %30 : vector<2x128xf32> to vector<2x1x128xf32>
    tpu.vector_store %arg17[%c0_16, %c5, %c0_17], %33 {strides = array<i32>} : memref<2x16x128xf32, #tpu.memory_space<vmem>>, vector<2x1x128xf32>,
    %34 = vector.extract_strided_slice %9 {offsets = [0, 768], sizes = [2, 128], strides = [1, 1]} : vector<2x2048xf32> to vector<2x128xf32>
    %c0_18 = arith.constant 0 : index
    %c6 = arith.constant 6 : index
    %c0_19 = arith.constant 0 : index
    %35 = vector.load %arg17[%c0_18, %c6, %c0_19] : memref<2x16x128xf32, #tpu.memory_space<vmem>>, vector<2x1x128xf32>
    %36 = vector.shape_cast %35 : vector<2x1x128xf32> to vector<2x128xf32>
    %37 = vector.shape_cast %34 : vector<2x128xf32> to vector<2x1x128xf32>
    tpu.vector_store %arg17[%c0_18, %c6, %c0_19], %37 {strides = array<i32>} : memref<2x16x128xf32, #tpu.memory_space<vmem>>, vector<2x1x128xf32>,
    %38 = vector.extract_strided_slice %9 {offsets = [0, 896], sizes = [2, 128], strides = [1, 1]} : vector<2x2048xf32> to vector<2x128xf32>
    %c0_20 = arith.constant 0 : index
    %c7 = arith.constant 7 : index
    %c0_21 = arith.constant 0 : index
    %39 = vector.load %arg17[%c0_20, %c7, %c0_21] : memref<2x16x128xf32, #tpu.memory_space<vmem>>, vector<2x1x128xf32>
    %40 = vector.shape_cast %39 : vector<2x1x128xf32> to vector<2x128xf32>
    %41 = vector.shape_cast %38 : vector<2x128xf32> to vector<2x1x128xf32>
    tpu.vector_store %arg17[%c0_20, %c7, %c0_21], %41 {strides = array<i32>} : memref<2x16x128xf32, #tpu.memory_space<vmem>>, vector<2x1x128xf32>,
    %42 = vector.extract_strided_slice %9 {offsets = [0, 1024], sizes = [2, 128], strides = [1, 1]} : vector<2x2048xf32> to vector<2x128xf32>
    %c0_22 = arith.constant 0 : index
    %c8 = arith.constant 8 : index
    %c0_23 = arith.constant 0 : index
    %43 = vector.load %arg17[%c0_22, %c8, %c0_23] : memref<2x16x128xf32, #tpu.memory_space<vmem>>, vector<2x1x128xf32>
    %44 = vector.shape_cast %43 : vector<2x1x128xf32> to vector<2x128xf32>
    %45 = vector.shape_cast %42 : vector<2x128xf32> to vector<2x1x128xf32>
    tpu.vector_store %arg17[%c0_22, %c8, %c0_23], %45 {strides = array<i32>} : memref<2x16x128xf32, #tpu.memory_space<vmem>>, vector<2x1x128xf32>,
    %46 = vector.extract_strided_slice %9 {offsets = [0, 1152], sizes = [2, 128], strides = [1, 1]} : vector<2x2048xf32> to vector<2x128xf32>
    %c0_24 = arith.constant 0 : index
    %c9 = arith.constant 9 : index
    %c0_25 = arith.constant 0 : index
    %47 = vector.load %arg17[%c0_24, %c9, %c0_25] : memref<2x16x128xf32, #tpu.memory_space<vmem>>, vector<2x1x128xf32>
    %48 = vector.shape_cast %47 : vector<2x1x128xf32> to vector<2x128xf32>
    %49 = vector.shape_cast %46 : vector<2x128xf32> to vector<2x1x128xf32>
    tpu.vector_store %arg17[%c0_24, %c9, %c0_25], %49 {strides = array<i32>} : memref<2x16x128xf32, #tpu.memory_space<vmem>>, vector<2x1x128xf32>,
    %50 = vector.extract_strided_slice %9 {offsets = [0, 1280], sizes = [2, 128], strides = [1, 1]} : vector<2x2048xf32> to vector<2x128xf32>
    %c0_26 = arith.constant 0 : index
    %c10 = arith.constant 10 : index
    %c0_27 = arith.constant 0 : index
    %51 = vector.load %arg17[%c0_26, %c10, %c0_27] : memref<2x16x128xf32, #tpu.memory_space<vmem>>, vector<2x1x128xf32>
    %52 = vector.shape_cast %51 : vector<2x1x128xf32> to vector<2x128xf32>
    %53 = vector.shape_cast %50 : vector<2x128xf32> to vector<2x1x128xf32>
    tpu.vector_store %arg17[%c0_26, %c10, %c0_27], %53 {strides = array<i32>} : memref<2x16x128xf32, #tpu.memory_space<vmem>>, vector<2x1x128xf32>,
    %54 = vector.extract_strided_slice %9 {offsets = [0, 1408], sizes = [2, 128], strides = [1, 1]} : vector<2x2048xf32> to vector<2x128xf32>
    %c0_28 = arith.constant 0 : index
    %c11 = arith.constant 11 : index
    %c0_29 = arith.constant 0 : index
    %55 = vector.load %arg17[%c0_28, %c11, %c0_29] : memref<2x16x128xf32, #tpu.memory_space<vmem>>, vector<2x1x128xf32>
    %56 = vector.shape_cast %55 : vector<2x1x128xf32> to vector<2x128xf32>
    %57 = vector.shape_cast %54 : vector<2x128xf32> to vector<2x1x128xf32>
    tpu.vector_store %arg17[%c0_28, %c11, %c0_29], %57 {strides = array<i32>} : memref<2x16x128xf32, #tpu.memory_space<vmem>>, vector<2x1x128xf32>,
    %58 = vector.extract_strided_slice %9 {offsets = [0, 1536], sizes = [2, 128], strides = [1, 1]} : vector<2x2048xf32> to vector<2x128xf32>
    %c0_30 = arith.constant 0 : index
    %c12 = arith.constant 12 : index
    %c0_31 = arith.constant 0 : index
    %59 = vector.load %arg17[%c0_30, %c12, %c0_31] : memref<2x16x128xf32, #tpu.memory_space<vmem>>, vector<2x1x128xf32>
    %60 = vector.shape_cast %59 : vector<2x1x128xf32> to vector<2x128xf32>
    %61 = vector.shape_cast %58 : vector<2x128xf32> to vector<2x1x128xf32>
    tpu.vector_store %arg17[%c0_30, %c12, %c0_31], %61 {strides = array<i32>} : memref<2x16x128xf32, #tpu.memory_space<vmem>>, vector<2x1x128xf32>,
    %62 = vector.extract_strided_slice %9 {offsets = [0, 1664], sizes = [2, 128], strides = [1, 1]} : vector<2x2048xf32> to vector<2x128xf32>
    %c0_32 = arith.constant 0 : index
    %c13 = arith.constant 13 : index
    %c0_33 = arith.constant 0 : index
    %63 = vector.load %arg17[%c0_32, %c13, %c0_33] : memref<2x16x128xf32, #tpu.memory_space<vmem>>, vector<2x1x128xf32>
    %64 = vector.shape_cast %63 : vector<2x1x128xf32> to vector<2x128xf32>
    %65 = vector.shape_cast %62 : vector<2x128xf32> to vector<2x1x128xf32>
    tpu.vector_store %arg17[%c0_32, %c13, %c0_33], %65 {strides = array<i32>} : memref<2x16x128xf32, #tpu.memory_space<vmem>>, vector<2x1x128xf32>,
    %66 = vector.extract_strided_slice %9 {offsets = [0, 1792], sizes = [2, 128], strides = [1, 1]} : vector<2x2048xf32> to vector<2x128xf32>
    %c0_34 = arith.constant 0 : index
    %c14 = arith.constant 14 : index
    %c0_35 = arith.constant 0 : index
    %67 = vector.load %arg17[%c0_34, %c14, %c0_35] : memref<2x16x128xf32, #tpu.memory_space<vmem>>, vector<2x1x128xf32>
    %68 = vector.shape_cast %67 : vector<2x1x128xf32> to vector<2x128xf32>
    %69 = vector.shape_cast %66 : vector<2x128xf32> to vector<2x1x128xf32>
    tpu.vector_store %arg17[%c0_34, %c14, %c0_35], %69 {strides = array<i32>} : memref<2x16x128xf32, #tpu.memory_space<vmem>>, vector<2x1x128xf32>,
    %70 = vector.extract_strided_slice %9 {offsets = [0, 1920], sizes = [2, 128], strides = [1, 1]} : vector<2x2048xf32> to vector<2x128xf32>
    %c0_36 = arith.constant 0 : index
    %c15 = arith.constant 15 : index
    %c0_37 = arith.constant 0 : index
    %71 = vector.load %arg17[%c0_36, %c15, %c0_37] : memref<2x16x128xf32, #tpu.memory_space<vmem>>, vector<2x1x128xf32>
    %72 = vector.shape_cast %71 : vector<2x1x128xf32> to vector<2x128xf32>
    %73 = vector.shape_cast %70 : vector<2x128xf32> to vector<2x1x128xf32>
    tpu.vector_store %arg17[%c0_36, %c15, %c0_37], %73 {strides = array<i32>} : memref<2x16x128xf32, #tpu.memory_space<vmem>>, vector<2x1x128xf32>,
    %c0_38 = arith.constant 0 : index
    %c0_39 = arith.constant 0 : index
    %c0_40 = arith.constant 0 : index
    %74 = vector.load %arg17[%c0_38, %c0_39, %c0_40] : memref<2x16x128xf32, #tpu.memory_space<vmem>>, vector<2x16x128xf32>
    %75 = vector.shape_cast %74 : vector<2x16x128xf32> to vector<32x128xf32>
    %c0_41 = arith.constant 0 : index
    %c0_42 = arith.constant 0 : index
    %76 = vector.load %arg4[%c0_41, %c0_42] : memref<1x128xf32, #tpu.memory_space<vmem>>, vector<1x128xf32>
    %c0_43 = arith.constant 0 : index
    %c0_44 = arith.constant 0 : index
    %77 = vector.load %arg5[%c0_43, %c0_44] : memref<1x128xf32, #tpu.memory_space<vmem>>, vector<1x128xf32>
    %cst_45 = arith.constant dense<0.000000e+00> : vector<128xf32>
    %78 = vector.multi_reduction <add>, %75, %cst_45 [0] : vector<32x128xf32> to vector<128xf32>
    %79 = vector.shape_cast %78 : vector<128xf32> to vector<1x128xf32>
    %cst_46 = arith.constant 3.200000e+01 : f32
    %80 = vector.broadcast %cst_46 : f32 to vector<1x128xf32>
    %81 = arith.divf %79, %80 : vector<1x128xf32>
    %82 = vector.broadcast %81 : vector<1x128xf32> to vector<32x128xf32>
    %83 = arith.subf %75, %82 : vector<32x128xf32>
    %84 = vector.broadcast %81 : vector<1x128xf32> to vector<32x128xf32>
    %85 = arith.subf %75, %84 : vector<32x128xf32>
    %86 = arith.mulf %83, %85 : vector<32x128xf32>
    %cst_47 = arith.constant dense<0.000000e+00> : vector<128xf32>
    %87 = vector.multi_reduction <add>, %86, %cst_47 [0] : vector<32x128xf32> to vector<128xf32>
    %88 = vector.shape_cast %87 : vector<128xf32> to vector<1x128xf32>
    %cst_48 = arith.constant 3.200000e+01 : f32
    %89 = vector.broadcast %cst_48 : f32 to vector<1x128xf32>
    %90 = arith.divf %88, %89 : vector<1x128xf32>
    %91 = vector.broadcast %81 : vector<1x128xf32> to vector<32x128xf32>
    %92 = arith.subf %75, %91 : vector<32x128xf32>
    %cst_49 = arith.constant 9.99999974E-6 : f32
    %93 = vector.broadcast %cst_49 : f32 to vector<1x128xf32>
    %94 = arith.addf %90, %93 : vector<1x128xf32>
    %95 = math.rsqrt %94 : vector<1x128xf32>
    %96 = vector.broadcast %95 : vector<1x128xf32> to vector<32x128xf32>
    %97 = arith.mulf %92, %96 : vector<32x128xf32>
    %98 = vector.broadcast %76 : vector<1x128xf32> to vector<32x128xf32>
    %99 = arith.mulf %97, %98 : vector<32x128xf32>
    %100 = vector.broadcast %77 : vector<1x128xf32> to vector<32x128xf32>
    %101 = arith.addf %99, %100 : vector<32x128xf32>
    %102 = vector.shape_cast %101 : vector<32x128xf32> to vector<2x4x4x128xf32>
    %cst_50 = arith.constant 0.000000e+00 : f32
    %103 = vector.broadcast %cst_50 : f32 to vector<2x1x10x128xf32>
    %c0_51 = arith.constant 0 : index
    %c0_52 = arith.constant 0 : index
    %c0_53 = arith.constant 0 : index
    %c0_54 = arith.constant 0 : index
    %104 = vector.load %arg18[%c0_51, %c0_52, %c0_53, %c0_54] : memref<2x10x10x128xf32, #tpu.memory_space<vmem>>, vector<2x1x10x128xf32>
    tpu.vector_store %arg18[%c0_51, %c0_52, %c0_53, %c0_54], %103 {strides = array<i32>} : memref<2x10x10x128xf32, #tpu.memory_space<vmem>>, vector<2x1x10x128xf32>,
    %cst_55 = arith.constant 0.000000e+00 : f32
    %105 = vector.broadcast %cst_55 : f32 to vector<2x1x10x128xf32>
    %c0_56 = arith.constant 0 : index
    %c9_57 = arith.constant 9 : index
    %c0_58 = arith.constant 0 : index
    %c0_59 = arith.constant 0 : index
    %106 = vector.load %arg18[%c0_56, %c9_57, %c0_58, %c0_59] : memref<2x10x10x128xf32, #tpu.memory_space<vmem>>, vector<2x1x10x128xf32>
    tpu.vector_store %arg18[%c0_56, %c9_57, %c0_58, %c0_59], %105 {strides = array<i32>} : memref<2x10x10x128xf32, #tpu.memory_space<vmem>>, vector<2x1x10x128xf32>,
    %cst_60 = arith.constant 0.000000e+00 : f32
    %107 = vector.broadcast %cst_60 : f32 to vector<2x10x1x128xf32>
    %c0_61 = arith.constant 0 : index
    %c0_62 = arith.constant 0 : index
    %c0_63 = arith.constant 0 : index
    %c0_64 = arith.constant 0 : index
    %108 = vector.load %arg18[%c0_61, %c0_62, %c0_63, %c0_64] : memref<2x10x10x128xf32, #tpu.memory_space<vmem>>, vector<2x10x1x128xf32>
    tpu.vector_store %arg18[%c0_61, %c0_62, %c0_63, %c0_64], %107 {strides = array<i32>} : memref<2x10x10x128xf32, #tpu.memory_space<vmem>>, vector<2x10x1x128xf32>,
    %cst_65 = arith.constant 0.000000e+00 : f32
    %109 = vector.broadcast %cst_65 : f32 to vector<2x10x1x128xf32>
    %c0_66 = arith.constant 0 : index
    %c0_67 = arith.constant 0 : index
    %c9_68 = arith.constant 9 : index
    %c0_69 = arith.constant 0 : index
    %110 = vector.load %arg18[%c0_66, %c0_67, %c9_68, %c0_69] : memref<2x10x10x128xf32, #tpu.memory_space<vmem>>, vector<2x10x1x128xf32>
    tpu.vector_store %arg18[%c0_66, %c0_67, %c9_68, %c0_69], %109 {strides = array<i32>} : memref<2x10x10x128xf32, #tpu.memory_space<vmem>>, vector<2x10x1x128xf32>,
    %111 = vector.shape_cast %102 : vector<2x4x4x128xf32> to vector<2x4x1x4x128xf32>
    %112 = vector.shape_cast %111 : vector<2x4x1x4x128xf32> to vector<2x4x1x4x128xf32>
    %113 = vector.broadcast %112 : vector<2x4x1x4x128xf32> to vector<2x4x2x4x128xf32>
    %114 = vector.shape_cast %113 : vector<2x4x2x4x128xf32> to vector<2x8x4x128xf32>
    %115 = vector.extract_strided_slice %114 {offsets = [0, 0, 0, 0], sizes = [2, 8, 1, 128], strides = [1, 1, 1, 1]} : vector<2x8x4x128xf32> to vector<2x8x1x128xf32>
    %116 = vector.shape_cast %115 : vector<2x8x1x128xf32> to vector<2x8x1x128xf32>
    %117 = vector.broadcast %116 : vector<2x8x1x128xf32> to vector<2x8x2x128xf32>
    %c0_70 = arith.constant 0 : index
    %c1_71 = arith.constant 1 : index
    %c1_72 = arith.constant 1 : index
    %c0_73 = arith.constant 0 : index
    %118 = vector.load %arg18[%c0_70, %c1_71, %c1_72, %c0_73] : memref<2x10x10x128xf32, #tpu.memory_space<vmem>>, vector<2x8x2x128xf32>
    tpu.vector_store %arg18[%c0_70, %c1_71, %c1_72, %c0_73], %117 {strides = array<i32>} : memref<2x10x10x128xf32, #tpu.memory_space<vmem>>, vector<2x8x2x128xf32>,
    %119 = vector.extract_strided_slice %114 {offsets = [0, 0, 1, 0], sizes = [2, 8, 1, 128], strides = [1, 1, 1, 1]} : vector<2x8x4x128xf32> to vector<2x8x1x128xf32>
    %120 = vector.shape_cast %119 : vector<2x8x1x128xf32> to vector<2x8x1x128xf32>
    %121 = vector.broadcast %120 : vector<2x8x1x128xf32> to vector<2x8x2x128xf32>
    %c0_74 = arith.constant 0 : index
    %c1_75 = arith.constant 1 : index
    %c3_76 = arith.constant 3 : index
    %c0_77 = arith.constant 0 : index
    %122 = vector.load %arg18[%c0_74, %c1_75, %c3_76, %c0_77] : memref<2x10x10x128xf32, #tpu.memory_space<vmem>>, vector<2x8x2x128xf32>
    tpu.vector_store %arg18[%c0_74, %c1_75, %c3_76, %c0_77], %121 {strides = array<i32>} : memref<2x10x10x128xf32, #tpu.memory_space<vmem>>, vector<2x8x2x128xf32>,
    %123 = vector.extract_strided_slice %114 {offsets = [0, 0, 2, 0], sizes = [2, 8, 1, 128], strides = [1, 1, 1, 1]} : vector<2x8x4x128xf32> to vector<2x8x1x128xf32>
    %124 = vector.shape_cast %123 : vector<2x8x1x128xf32> to vector<2x8x1x128xf32>
    %125 = vector.broadcast %124 : vector<2x8x1x128xf32> to vector<2x8x2x128xf32>
    %c0_78 = arith.constant 0 : index
    %c1_79 = arith.constant 1 : index
    %c5_80 = arith.constant 5 : index
    %c0_81 = arith.constant 0 : index
    %126 = vector.load %arg18[%c0_78, %c1_79, %c5_80, %c0_81] : memref<2x10x10x128xf32, #tpu.memory_space<vmem>>, vector<2x8x2x128xf32>
    tpu.vector_store %arg18[%c0_78, %c1_79, %c5_80, %c0_81], %125 {strides = array<i32>} : memref<2x10x10x128xf32, #tpu.memory_space<vmem>>, vector<2x8x2x128xf32>,
    %127 = vector.extract_strided_slice %114 {offsets = [0, 0, 3, 0], sizes = [2, 8, 1, 128], strides = [1, 1, 1, 1]} : vector<2x8x4x128xf32> to vector<2x8x1x128xf32>
    %128 = vector.shape_cast %127 : vector<2x8x1x128xf32> to vector<2x8x1x128xf32>
    %129 = vector.broadcast %128 : vector<2x8x1x128xf32> to vector<2x8x2x128xf32>
    %c0_82 = arith.constant 0 : index
    %c1_83 = arith.constant 1 : index
    %c7_84 = arith.constant 7 : index
    %c0_85 = arith.constant 0 : index
    %130 = vector.load %arg18[%c0_82, %c1_83, %c7_84, %c0_85] : memref<2x10x10x128xf32, #tpu.memory_space<vmem>>, vector<2x8x2x128xf32>
    tpu.vector_store %arg18[%c0_82, %c1_83, %c7_84, %c0_85], %129 {strides = array<i32>} : memref<2x10x10x128xf32, #tpu.memory_space<vmem>>, vector<2x8x2x128xf32>,
    %c0_i32_86 = arith.constant 0 : i32
    %131 = tpu.memref_slice %arg23[%c0_i32_86] : memref<2x!tpu.dma_semaphore, #tpu.memory_space<semaphore_mem>> -> memref<1x!tpu.dma_semaphore, #tpu.memory_space<semaphore_mem>>
    %132 = tpu.memref_squeeze %131 : memref<1x!tpu.dma_semaphore, #tpu.memory_space<semaphore_mem>> -> memref<!tpu.dma_semaphore, #tpu.memory_space<semaphore_mem>>
    tpu.wait_dma2 semaphore(%132 : memref<!tpu.dma_semaphore, #tpu.memory_space<semaphore_mem>>) src(%arg6 : memref<9x128x128xbf16, #tpu.memory_space<any>>) dst(%arg21 : memref<9x128x128xbf16, #tpu.memory_space<vmem>>)
    %cst_87 = arith.constant 0.000000e+00 : f32
    %133 = vector.broadcast %cst_87 : f32 to vector<128x128xf32>
    %c0_88 = arith.constant 0 : index
    %c0_89 = arith.constant 0 : index
    %c0_90 = arith.constant 0 : index
    %c0_91 = arith.constant 0 : index
    %134 = vector.load %arg18[%c0_88, %c0_89, %c0_90, %c0_91] : memref<2x10x10x128xf32, #tpu.memory_space<vmem>>, vector<2x8x8x128xf32>
    %135 = vector.shape_cast %134 : vector<2x8x8x128xf32> to vector<128x128xf32>
    %136 = arith.truncf %135 : vector<128x128xf32> to vector<128x128xbf16>
    %c0_92 = arith.constant 0 : index
    %c0_93 = arith.constant 0 : index
    %c0_94 = arith.constant 0 : index
    %137 = vector.load %arg21[%c0_92, %c0_93, %c0_94] : memref<9x128x128xbf16, #tpu.memory_space<vmem>>, vector<1x128x128xbf16>
    %138 = vector.shape_cast %137 : vector<1x128x128xbf16> to vector<128x128xbf16>
    %cst_95 = arith.constant dense<0.000000e+00> : vector<128x128xf32>
    %139 = tpu.matmul %136, %138, %cst_95 {dimension_numbers = #tpu.dot_dimension_numbers<[1], [0], [0], [1], [0, 0, 1, 1], [], []>} : vector<128x128xbf16>, vector<128x128xbf16>, vector<128x128xf32> -> vector<128x128xf32>
    %140 = arith.addf %133, %139 : vector<128x128xf32>
    %c0_96 = arith.constant 0 : index
    %c0_97 = arith.constant 0 : index
    %c1_98 = arith.constant 1 : index
    %c0_99 = arith.constant 0 : index
    %141 = vector.load %arg18[%c0_96, %c0_97, %c1_98, %c0_99] : memref<2x10x10x128xf32, #tpu.memory_space<vmem>>, vector<2x8x8x128xf32>
    %142 = vector.shape_cast %141 : vector<2x8x8x128xf32> to vector<128x128xf32>
    %143 = arith.truncf %142 : vector<128x128xf32> to vector<128x128xbf16>
    %c1_100 = arith.constant 1 : index
    %c0_101 = arith.constant 0 : index
    %c0_102 = arith.constant 0 : index
    %144 = vector.load %arg21[%c1_100, %c0_101, %c0_102] : memref<9x128x128xbf16, #tpu.memory_space<vmem>>, vector<1x128x128xbf16>
    %145 = vector.shape_cast %144 : vector<1x128x128xbf16> to vector<128x128xbf16>
    %cst_103 = arith.constant dense<0.000000e+00> : vector<128x128xf32>
    %146 = tpu.matmul %143, %145, %cst_103 {dimension_numbers = #tpu.dot_dimension_numbers<[1], [0], [0], [1], [0, 0, 1, 1], [], []>} : vector<128x128xbf16>, vector<128x128xbf16>, vector<128x128xf32> -> vector<128x128xf32>
    %147 = arith.addf %140, %146 : vector<128x128xf32>
    %c0_104 = arith.constant 0 : index
    %c0_105 = arith.constant 0 : index
    %c2_106 = arith.constant 2 : index
    %c0_107 = arith.constant 0 : index
    %148 = vector.load %arg18[%c0_104, %c0_105, %c2_106, %c0_107] : memref<2x10x10x128xf32, #tpu.memory_space<vmem>>, vector<2x8x8x128xf32>
    %149 = vector.shape_cast %148 : vector<2x8x8x128xf32> to vector<128x128xf32>
    %150 = arith.truncf %149 : vector<128x128xf32> to vector<128x128xbf16>
    %c2_108 = arith.constant 2 : index
    %c0_109 = arith.constant 0 : index
    %c0_110 = arith.constant 0 : index
    %151 = vector.load %arg21[%c2_108, %c0_109, %c0_110] : memref<9x128x128xbf16, #tpu.memory_space<vmem>>, vector<1x128x128xbf16>
    %152 = vector.shape_cast %151 : vector<1x128x128xbf16> to vector<128x128xbf16>
    %cst_111 = arith.constant dense<0.000000e+00> : vector<128x128xf32>
    %153 = tpu.matmul %150, %152, %cst_111 {dimension_numbers = #tpu.dot_dimension_numbers<[1], [0], [0], [1], [0, 0, 1, 1], [], []>} : vector<128x128xbf16>, vector<128x128xbf16>, vector<128x128xf32> -> vector<128x128xf32>
    %154 = arith.addf %147, %153 : vector<128x128xf32>
    %c0_112 = arith.constant 0 : index
    %c1_113 = arith.constant 1 : index
    %c0_114 = arith.constant 0 : index
    %c0_115 = arith.constant 0 : index
    %155 = vector.load %arg18[%c0_112, %c1_113, %c0_114, %c0_115] : memref<2x10x10x128xf32, #tpu.memory_space<vmem>>, vector<2x8x8x128xf32>
    %156 = vector.shape_cast %155 : vector<2x8x8x128xf32> to vector<128x128xf32>
    %157 = arith.truncf %156 : vector<128x128xf32> to vector<128x128xbf16>
    %c3_116 = arith.constant 3 : index
    %c0_117 = arith.constant 0 : index
    %c0_118 = arith.constant 0 : index
    %158 = vector.load %arg21[%c3_116, %c0_117, %c0_118] : memref<9x128x128xbf16, #tpu.memory_space<vmem>>, vector<1x128x128xbf16>
    %159 = vector.shape_cast %158 : vector<1x128x128xbf16> to vector<128x128xbf16>
    %cst_119 = arith.constant dense<0.000000e+00> : vector<128x128xf32>
    %160 = tpu.matmul %157, %159, %cst_119 {dimension_numbers = #tpu.dot_dimension_numbers<[1], [0], [0], [1], [0, 0, 1, 1], [], []>} : vector<128x128xbf16>, vector<128x128xbf16>, vector<128x128xf32> -> vector<128x128xf32>
    %161 = arith.addf %154, %160 : vector<128x128xf32>
    %c0_120 = arith.constant 0 : index
    %c1_121 = arith.constant 1 : index
    %c1_122 = arith.constant 1 : index
    %c0_123 = arith.constant 0 : index
    %162 = vector.load %arg18[%c0_120, %c1_121, %c1_122, %c0_123] : memref<2x10x10x128xf32, #tpu.memory_space<vmem>>, vector<2x8x8x128xf32>
    %163 = vector.shape_cast %162 : vector<2x8x8x128xf32> to vector<128x128xf32>
    %164 = arith.truncf %163 : vector<128x128xf32> to vector<128x128xbf16>
    %c4_124 = arith.constant 4 : index
    %c0_125 = arith.constant 0 : index
    %c0_126 = arith.constant 0 : index
    %165 = vector.load %arg21[%c4_124, %c0_125, %c0_126] : memref<9x128x128xbf16, #tpu.memory_space<vmem>>, vector<1x128x128xbf16>
    %166 = vector.shape_cast %165 : vector<1x128x128xbf16> to vector<128x128xbf16>
    %cst_127 = arith.constant dense<0.000000e+00> : vector<128x128xf32>
    %167 = tpu.matmul %164, %166, %cst_127 {dimension_numbers = #tpu.dot_dimension_numbers<[1], [0], [0], [1], [0, 0, 1, 1], [], []>} : vector<128x128xbf16>, vector<128x128xbf16>, vector<128x128xf32> -> vector<128x128xf32>
    %168 = arith.addf %161, %167 : vector<128x128xf32>
    %c0_128 = arith.constant 0 : index
    %c1_129 = arith.constant 1 : index
    %c2_130 = arith.constant 2 : index
    %c0_131 = arith.constant 0 : index
    %169 = vector.load %arg18[%c0_128, %c1_129, %c2_130, %c0_131] : memref<2x10x10x128xf32, #tpu.memory_space<vmem>>, vector<2x8x8x128xf32>
    %170 = vector.shape_cast %169 : vector<2x8x8x128xf32> to vector<128x128xf32>
    %171 = arith.truncf %170 : vector<128x128xf32> to vector<128x128xbf16>
    %c5_132 = arith.constant 5 : index
    %c0_133 = arith.constant 0 : index
    %c0_134 = arith.constant 0 : index
    %172 = vector.load %arg21[%c5_132, %c0_133, %c0_134] : memref<9x128x128xbf16, #tpu.memory_space<vmem>>, vector<1x128x128xbf16>
    %173 = vector.shape_cast %172 : vector<1x128x128xbf16> to vector<128x128xbf16>
    %cst_135 = arith.constant dense<0.000000e+00> : vector<128x128xf32>
    %174 = tpu.matmul %171, %173, %cst_135 {dimension_numbers = #tpu.dot_dimension_numbers<[1], [0], [0], [1], [0, 0, 1, 1], [], []>} : vector<128x128xbf16>, vector<128x128xbf16>, vector<128x128xf32> -> vector<128x128xf32>
    %175 = arith.addf %168, %174 : vector<128x128xf32>
    %c0_136 = arith.constant 0 : index
    %c2_137 = arith.constant 2 : index
    %c0_138 = arith.constant 0 : index
    %c0_139 = arith.constant 0 : index
    %176 = vector.load %arg18[%c0_136, %c2_137, %c0_138, %c0_139] : memref<2x10x10x128xf32, #tpu.memory_space<vmem>>, vector<2x8x8x128xf32>
    %177 = vector.shape_cast %176 : vector<2x8x8x128xf32> to vector<128x128xf32>
    %178 = arith.truncf %177 : vector<128x128xf32> to vector<128x128xbf16>
    %c6_140 = arith.constant 6 : index
    %c0_141 = arith.constant 0 : index
    %c0_142 = arith.constant 0 : index
    %179 = vector.load %arg21[%c6_140, %c0_141, %c0_142] : memref<9x128x128xbf16, #tpu.memory_space<vmem>>, vector<1x128x128xbf16>
    %180 = vector.shape_cast %179 : vector<1x128x128xbf16> to vector<128x128xbf16>
    %cst_143 = arith.constant dense<0.000000e+00> : vector<128x128xf32>
    %181 = tpu.matmul %178, %180, %cst_143 {dimension_numbers = #tpu.dot_dimension_numbers<[1], [0], [0], [1], [0, 0, 1, 1], [], []>} : vector<128x128xbf16>, vector<128x128xbf16>, vector<128x128xf32> -> vector<128x128xf32>
    %182 = arith.addf %175, %181 : vector<128x128xf32>
    %c0_144 = arith.constant 0 : index
    %c2_145 = arith.constant 2 : index
    %c1_146 = arith.constant 1 : index
    %c0_147 = arith.constant 0 : index
    %183 = vector.load %arg18[%c0_144, %c2_145, %c1_146, %c0_147] : memref<2x10x10x128xf32, #tpu.memory_space<vmem>>, vector<2x8x8x128xf32>
    %184 = vector.shape_cast %183 : vector<2x8x8x128xf32> to vector<128x128xf32>
    %185 = arith.truncf %184 : vector<128x128xf32> to vector<128x128xbf16>
    %c7_148 = arith.constant 7 : index
    %c0_149 = arith.constant 0 : index
    %c0_150 = arith.constant 0 : index
    %186 = vector.load %arg21[%c7_148, %c0_149, %c0_150] : memref<9x128x128xbf16, #tpu.memory_space<vmem>>, vector<1x128x128xbf16>
    %187 = vector.shape_cast %186 : vector<1x128x128xbf16> to vector<128x128xbf16>
    %cst_151 = arith.constant dense<0.000000e+00> : vector<128x128xf32>
    %188 = tpu.matmul %185, %187, %cst_151 {dimension_numbers = #tpu.dot_dimension_numbers<[1], [0], [0], [1], [0, 0, 1, 1], [], []>} : vector<128x128xbf16>, vector<128x128xbf16>, vector<128x128xf32> -> vector<128x128xf32>
    %189 = arith.addf %182, %188 : vector<128x128xf32>
    %c0_152 = arith.constant 0 : index
    %c2_153 = arith.constant 2 : index
    %c2_154 = arith.constant 2 : index
    %c0_155 = arith.constant 0 : index
    %190 = vector.load %arg18[%c0_152, %c2_153, %c2_154, %c0_155] : memref<2x10x10x128xf32, #tpu.memory_space<vmem>>, vector<2x8x8x128xf32>
    %191 = vector.shape_cast %190 : vector<2x8x8x128xf32> to vector<128x128xf32>
    %192 = arith.truncf %191 : vector<128x128xf32> to vector<128x128xbf16>
    %c8_156 = arith.constant 8 : index
    %c0_157 = arith.constant 0 : index
    %c0_158 = arith.constant 0 : index
    %193 = vector.load %arg21[%c8_156, %c0_157, %c0_158] : memref<9x128x128xbf16, #tpu.memory_space<vmem>>, vector<1x128x128xbf16>
    %194 = vector.shape_cast %193 : vector<1x128x128xbf16> to vector<128x128xbf16>
    %cst_159 = arith.constant dense<0.000000e+00> : vector<128x128xf32>
    %195 = tpu.matmul %192, %194, %cst_159 {dimension_numbers = #tpu.dot_dimension_numbers<[1], [0], [0], [1], [0, 0, 1, 1], [], []>} : vector<128x128xbf16>, vector<128x128xbf16>, vector<128x128xf32> -> vector<128x128xf32>
    %196 = arith.addf %189, %195 : vector<128x128xf32>
    %c0_160 = arith.constant 0 : index
    %c0_161 = arith.constant 0 : index
    %197 = vector.load %arg7[%c0_160, %c0_161] : memref<1x128xf32, #tpu.memory_space<vmem>>, vector<1x128xf32>
    %198 = vector.broadcast %197 : vector<1x128xf32> to vector<128x128xf32>
    %199 = arith.addf %196, %198 : vector<128x128xf32>
    %c0_162 = arith.constant 0 : index
    %c0_163 = arith.constant 0 : index
    %200 = vector.load %arg8[%c0_162, %c0_163] : memref<1x128xf32, #tpu.memory_space<vmem>>, vector<1x128xf32>
    %c0_164 = arith.constant 0 : index
    %c0_165 = arith.constant 0 : index
    %201 = vector.load %arg9[%c0_164, %c0_165] : memref<1x128xf32, #tpu.memory_space<vmem>>, vector<1x128xf32>
    %cst_166 = arith.constant dense<0.000000e+00> : vector<128xf32>
    %202 = vector.multi_reduction <add>, %199, %cst_166 [0] : vector<128x128xf32> to vector<128xf32>
    %203 = vector.shape_cast %202 : vector<128xf32> to vector<1x128xf32>
    %cst_167 = arith.constant 1.280000e+02 : f32
    %204 = vector.broadcast %cst_167 : f32 to vector<1x128xf32>
    %205 = arith.divf %203, %204 : vector<1x128xf32>
    %206 = vector.broadcast %205 : vector<1x128xf32> to vector<128x128xf32>
    %207 = arith.subf %199, %206 : vector<128x128xf32>
    %208 = vector.broadcast %205 : vector<1x128xf32> to vector<128x128xf32>
    %209 = arith.subf %199, %208 : vector<128x128xf32>
    %210 = arith.mulf %207, %209 : vector<128x128xf32>
    %cst_168 = arith.constant dense<0.000000e+00> : vector<128xf32>
    %211 = vector.multi_reduction <add>, %210, %cst_168 [0] : vector<128x128xf32> to vector<128xf32>
    %212 = vector.shape_cast %211 : vector<128xf32> to vector<1x128xf32>
    %cst_169 = arith.constant 1.280000e+02 : f32
    %213 = vector.broadcast %cst_169 : f32 to vector<1x128xf32>
    %214 = arith.divf %212, %213 : vector<1x128xf32>
    %215 = vector.broadcast %205 : vector<1x128xf32> to vector<128x128xf32>
    %216 = arith.subf %199, %215 : vector<128x128xf32>
    %cst_170 = arith.constant 8.000000e-01 : f32
    %217 = vector.broadcast %cst_170 : f32 to vector<1x128xf32>
    %218 = arith.addf %214, %217 : vector<1x128xf32>
    %219 = math.rsqrt %218 : vector<1x128xf32>
    %220 = vector.broadcast %219 : vector<1x128xf32> to vector<128x128xf32>
    %221 = arith.mulf %216, %220 : vector<128x128xf32>
    %222 = vector.broadcast %200 : vector<1x128xf32> to vector<128x128xf32>
    %223 = arith.mulf %221, %222 : vector<128x128xf32>
    %224 = vector.broadcast %201 : vector<1x128xf32> to vector<128x128xf32>
    %225 = arith.addf %223, %224 : vector<128x128xf32>
    %cst_171 = arith.constant 0.000000e+00 : f32
    %226 = vector.broadcast %cst_171 : f32 to vector<128x128xf32>
    %227 = arith.cmpf oge, %225, %226 : vector<128x128xf32>
    %cst_172 = arith.constant 2.000000e-01 : f32
    %228 = vector.broadcast %cst_172 : f32 to vector<128x128xf32>
    %229 = arith.mulf %228, %225 : vector<128x128xf32>
    %230 = arith.select %227, %225, %229 : vector<128x128xi1>, vector<128x128xf32>
    %231 = vector.shape_cast %230 : vector<128x128xf32> to vector<2x8x8x128xf32>
    %cst_173 = arith.constant 0.000000e+00 : f32
    %232 = vector.broadcast %cst_173 : f32 to vector<2x1x18x128xf32>
    %c0_174 = arith.constant 0 : index
    %c0_175 = arith.constant 0 : index
    %c0_176 = arith.constant 0 : index
    %c0_177 = arith.constant 0 : index
    %233 = vector.load %arg19[%c0_174, %c0_175, %c0_176, %c0_177] : memref<2x18x18x128xf32, #tpu.memory_space<vmem>>, vector<2x1x18x128xf32>
    tpu.vector_store %arg19[%c0_174, %c0_175, %c0_176, %c0_177], %232 {strides = array<i32>} : memref<2x18x18x128xf32, #tpu.memory_space<vmem>>, vector<2x1x18x128xf32>,
    %cst_178 = arith.constant 0.000000e+00 : f32
    %234 = vector.broadcast %cst_178 : f32 to vector<2x1x18x128xf32>
    %c0_179 = arith.constant 0 : index
    %c17 = arith.constant 17 : index
    %c0_180 = arith.constant 0 : index
    %c0_181 = arith.constant 0 : index
    %235 = vector.load %arg19[%c0_179, %c17, %c0_180, %c0_181] : memref<2x18x18x128xf32, #tpu.memory_space<vmem>>, vector<2x1x18x128xf32>
    tpu.vector_store %arg19[%c0_179, %c17, %c0_180, %c0_181], %234 {strides = array<i32>} : memref<2x18x18x128xf32, #tpu.memory_space<vmem>>, vector<2x1x18x128xf32>,
    %cst_182 = arith.constant 0.000000e+00 : f32
    %236 = vector.broadcast %cst_182 : f32 to vector<2x18x1x128xf32>
    %c0_183 = arith.constant 0 : index
    %c0_184 = arith.constant 0 : index
    %c0_185 = arith.constant 0 : index
    %c0_186 = arith.constant 0 : index
    %237 = vector.load %arg19[%c0_183, %c0_184, %c0_185, %c0_186] : memref<2x18x18x128xf32, #tpu.memory_space<vmem>>, vector<2x18x1x128xf32>
    tpu.vector_store %arg19[%c0_183, %c0_184, %c0_185, %c0_186], %236 {strides = array<i32>} : memref<2x18x18x128xf32, #tpu.memory_space<vmem>>, vector<2x18x1x128xf32>,
    %cst_187 = arith.constant 0.000000e+00 : f32
    %238 = vector.broadcast %cst_187 : f32 to vector<2x18x1x128xf32>
    %c0_188 = arith.constant 0 : index
    %c0_189 = arith.constant 0 : index
    %c17_190 = arith.constant 17 : index
    %c0_191 = arith.constant 0 : index
    %239 = vector.load %arg19[%c0_188, %c0_189, %c17_190, %c0_191] : memref<2x18x18x128xf32, #tpu.memory_space<vmem>>, vector<2x18x1x128xf32>
    tpu.vector_store %arg19[%c0_188, %c0_189, %c17_190, %c0_191], %238 {strides = array<i32>} : memref<2x18x18x128xf32, #tpu.memory_space<vmem>>, vector<2x18x1x128xf32>,
    %240 = vector.shape_cast %231 : vector<2x8x8x128xf32> to vector<2x8x1x8x128xf32>
    %241 = vector.shape_cast %240 : vector<2x8x1x8x128xf32> to vector<2x8x1x8x128xf32>
    %242 = vector.broadcast %241 : vector<2x8x1x8x128xf32> to vector<2x8x2x8x128xf32>
    %243 = vector.shape_cast %242 : vector<2x8x2x8x128xf32> to vector<2x16x8x128xf32>
    %244 = vector.extract_strided_slice %243 {offsets = [0, 0, 0, 0], sizes = [2, 16, 1, 128], strides = [1, 1, 1, 1]} : vector<2x16x8x128xf32> to vector<2x16x1x128xf32>
    %245 = vector.shape_cast %244 : vector<2x16x1x128xf32> to vector<2x16x1x128xf32>
    %246 = vector.broadcast %245 : vector<2x16x1x128xf32> to vector<2x16x2x128xf32>
    %c0_192 = arith.constant 0 : index
    %c1_193 = arith.constant 1 : index
    %c1_194 = arith.constant 1 : index
    %c0_195 = arith.constant 0 : index
    %247 = vector.load %arg19[%c0_192, %c1_193, %c1_194, %c0_195] : memref<2x18x18x128xf32, #tpu.memory_space<vmem>>, vector<2x16x2x128xf32>
    tpu.vector_store %arg19[%c0_192, %c1_193, %c1_194, %c0_195], %246 {strides = array<i32>} : memref<2x18x18x128xf32, #tpu.memory_space<vmem>>, vector<2x16x2x128xf32>,
    %248 = vector.extract_strided_slice %243 {offsets = [0, 0, 1, 0], sizes = [2, 16, 1, 128], strides = [1, 1, 1, 1]} : vector<2x16x8x128xf32> to vector<2x16x1x128xf32>
    %249 = vector.shape_cast %248 : vector<2x16x1x128xf32> to vector<2x16x1x128xf32>
    %250 = vector.broadcast %249 : vector<2x16x1x128xf32> to vector<2x16x2x128xf32>
    %c0_196 = arith.constant 0 : index
    %c1_197 = arith.constant 1 : index
    %c3_198 = arith.constant 3 : index
    %c0_199 = arith.constant 0 : index
    %251 = vector.load %arg19[%c0_196, %c1_197, %c3_198, %c0_199] : memref<2x18x18x128xf32, #tpu.memory_space<vmem>>, vector<2x16x2x128xf32>
    tpu.vector_store %arg19[%c0_196, %c1_197, %c3_198, %c0_199], %250 {strides = array<i32>} : memref<2x18x18x128xf32, #tpu.memory_space<vmem>>, vector<2x16x2x128xf32>,
    %252 = vector.extract_strided_slice %243 {offsets = [0, 0, 2, 0], sizes = [2, 16, 1, 128], strides = [1, 1, 1, 1]} : vector<2x16x8x128xf32> to vector<2x16x1x128xf32>
    %253 = vector.shape_cast %252 : vector<2x16x1x128xf32> to vector<2x16x1x128xf32>
    %254 = vector.broadcast %253 : vector<2x16x1x128xf32> to vector<2x16x2x128xf32>
    %c0_200 = arith.constant 0 : index
    %c1_201 = arith.constant 1 : index
    %c5_202 = arith.constant 5 : index
    %c0_203 = arith.constant 0 : index
    %255 = vector.load %arg19[%c0_200, %c1_201, %c5_202, %c0_203] : memref<2x18x18x128xf32, #tpu.memory_space<vmem>>, vector<2x16x2x128xf32>
    tpu.vector_store %arg19[%c0_200, %c1_201, %c5_202, %c0_203], %254 {strides = array<i32>} : memref<2x18x18x128xf32, #tpu.memory_space<vmem>>, vector<2x16x2x128xf32>,
    %256 = vector.extract_strided_slice %243 {offsets = [0, 0, 3, 0], sizes = [2, 16, 1, 128], strides = [1, 1, 1, 1]} : vector<2x16x8x128xf32> to vector<2x16x1x128xf32>
    %257 = vector.shape_cast %256 : vector<2x16x1x128xf32> to vector<2x16x1x128xf32>
    %258 = vector.broadcast %257 : vector<2x16x1x128xf32> to vector<2x16x2x128xf32>
    %c0_204 = arith.constant 0 : index
    %c1_205 = arith.constant 1 : index
    %c7_206 = arith.constant 7 : index
    %c0_207 = arith.constant 0 : index
    %259 = vector.load %arg19[%c0_204, %c1_205, %c7_206, %c0_207] : memref<2x18x18x128xf32, #tpu.memory_space<vmem>>, vector<2x16x2x128xf32>
    tpu.vector_store %arg19[%c0_204, %c1_205, %c7_206, %c0_207], %258 {strides = array<i32>} : memref<2x18x18x128xf32, #tpu.memory_space<vmem>>, vector<2x16x2x128xf32>,
    %260 = vector.extract_strided_slice %243 {offsets = [0, 0, 4, 0], sizes = [2, 16, 1, 128], strides = [1, 1, 1, 1]} : vector<2x16x8x128xf32> to vector<2x16x1x128xf32>
    %261 = vector.shape_cast %260 : vector<2x16x1x128xf32> to vector<2x16x1x128xf32>
    %262 = vector.broadcast %261 : vector<2x16x1x128xf32> to vector<2x16x2x128xf32>
    %c0_208 = arith.constant 0 : index
    %c1_209 = arith.constant 1 : index
    %c9_210 = arith.constant 9 : index
    %c0_211 = arith.constant 0 : index
    %263 = vector.load %arg19[%c0_208, %c1_209, %c9_210, %c0_211] : memref<2x18x18x128xf32, #tpu.memory_space<vmem>>, vector<2x16x2x128xf32>
    tpu.vector_store %arg19[%c0_208, %c1_209, %c9_210, %c0_211], %262 {strides = array<i32>} : memref<2x18x18x128xf32, #tpu.memory_space<vmem>>, vector<2x16x2x128xf32>,
    %264 = vector.extract_strided_slice %243 {offsets = [0, 0, 5, 0], sizes = [2, 16, 1, 128], strides = [1, 1, 1, 1]} : vector<2x16x8x128xf32> to vector<2x16x1x128xf32>
    %265 = vector.shape_cast %264 : vector<2x16x1x128xf32> to vector<2x16x1x128xf32>
    %266 = vector.broadcast %265 : vector<2x16x1x128xf32> to vector<2x16x2x128xf32>
    %c0_212 = arith.constant 0 : index
    %c1_213 = arith.constant 1 : index
    %c11_214 = arith.constant 11 : index
    %c0_215 = arith.constant 0 : index
    %267 = vector.load %arg19[%c0_212, %c1_213, %c11_214, %c0_215] : memref<2x18x18x128xf32, #tpu.memory_space<vmem>>, vector<2x16x2x128xf32>
    tpu.vector_store %arg19[%c0_212, %c1_213, %c11_214, %c0_215], %266 {strides = array<i32>} : memref<2x18x18x128xf32, #tpu.memory_space<vmem>>, vector<2x16x2x128xf32>,
    %268 = vector.extract_strided_slice %243 {offsets = [0, 0, 6, 0], sizes = [2, 16, 1, 128], strides = [1, 1, 1, 1]} : vector<2x16x8x128xf32> to vector<2x16x1x128xf32>
    %269 = vector.shape_cast %268 : vector<2x16x1x128xf32> to vector<2x16x1x128xf32>
    %270 = vector.broadcast %269 : vector<2x16x1x128xf32> to vector<2x16x2x128xf32>
    %c0_216 = arith.constant 0 : index
    %c1_217 = arith.constant 1 : index
    %c13_218 = arith.constant 13 : index
    %c0_219 = arith.constant 0 : index
    %271 = vector.load %arg19[%c0_216, %c1_217, %c13_218, %c0_219] : memref<2x18x18x128xf32, #tpu.memory_space<vmem>>, vector<2x16x2x128xf32>
    tpu.vector_store %arg19[%c0_216, %c1_217, %c13_218, %c0_219], %270 {strides = array<i32>} : memref<2x18x18x128xf32, #tpu.memory_space<vmem>>, vector<2x16x2x128xf32>,
    %272 = vector.extract_strided_slice %243 {offsets = [0, 0, 7, 0], sizes = [2, 16, 1, 128], strides = [1, 1, 1, 1]} : vector<2x16x8x128xf32> to vector<2x16x1x128xf32>
    %273 = vector.shape_cast %272 : vector<2x16x1x128xf32> to vector<2x16x1x128xf32>
    %274 = vector.broadcast %273 : vector<2x16x1x128xf32> to vector<2x16x2x128xf32>
    %c0_220 = arith.constant 0 : index
    %c1_221 = arith.constant 1 : index
    %c15_222 = arith.constant 15 : index
    %c0_223 = arith.constant 0 : index
    %275 = vector.load %arg19[%c0_220, %c1_221, %c15_222, %c0_223] : memref<2x18x18x128xf32, #tpu.memory_space<vmem>>, vector<2x16x2x128xf32>
    tpu.vector_store %arg19[%c0_220, %c1_221, %c15_222, %c0_223], %274 {strides = array<i32>} : memref<2x18x18x128xf32, #tpu.memory_space<vmem>>, vector<2x16x2x128xf32>,
    %c1_i32_224 = arith.constant 1 : i32
    %276 = tpu.memref_slice %arg23[%c1_i32_224] : memref<2x!tpu.dma_semaphore, #tpu.memory_space<semaphore_mem>> -> memref<1x!tpu.dma_semaphore, #tpu.memory_space<semaphore_mem>>
    %277 = tpu.memref_squeeze %276 : memref<1x!tpu.dma_semaphore, #tpu.memory_space<semaphore_mem>> -> memref<!tpu.dma_semaphore, #tpu.memory_space<semaphore_mem>>
    tpu.wait_dma2 semaphore(%277 : memref<!tpu.dma_semaphore, #tpu.memory_space<semaphore_mem>>) src(%arg10 : memref<9x128x64xbf16, #tpu.memory_space<any>>) dst(%arg22 : memref<9x128x64xbf16, #tpu.memory_space<vmem>>)
    %cst_225 = arith.constant 0.000000e+00 : f32
    %278 = vector.broadcast %cst_225 : f32 to vector<512x64xf32>
    %c0_226 = arith.constant 0 : index
    %c0_227 = arith.constant 0 : index
    %c0_228 = arith.constant 0 : index
    %c0_229 = arith.constant 0 : index
    %279 = vector.load %arg19[%c0_226, %c0_227, %c0_228, %c0_229] : memref<2x18x18x128xf32, #tpu.memory_space<vmem>>, vector<2x16x16x128xf32>
    %280 = vector.shape_cast %279 : vector<2x16x16x128xf32> to vector<512x128xf32>
    %281 = arith.truncf %280 : vector<512x128xf32> to vector<512x128xbf16>
    %c0_230 = arith.constant 0 : index
    %c0_231 = arith.constant 0 : index
    %c0_232 = arith.constant 0 : index
    %282 = vector.load %arg22[%c0_230, %c0_231, %c0_232] : memref<9x128x64xbf16, #tpu.memory_space<vmem>>, vector<1x128x64xbf16>
    %283 = vector.shape_cast %282 : vector<1x128x64xbf16> to vector<128x64xbf16>
    %cst_233 = arith.constant dense<0.000000e+00> : vector<512x64xf32>
    %284 = tpu.matmul %281, %283, %cst_233 {dimension_numbers = #tpu.dot_dimension_numbers<[1], [0], [0], [1], [0, 0, 1, 1], [], []>} : vector<512x128xbf16>, vector<128x64xbf16>, vector<512x64xf32> -> vector<512x64xf32>
    %285 = arith.addf %278, %284 : vector<512x64xf32>
    %c0_234 = arith.constant 0 : index
    %c0_235 = arith.constant 0 : index
    %c1_236 = arith.constant 1 : index
    %c0_237 = arith.constant 0 : index
    %286 = vector.load %arg19[%c0_234, %c0_235, %c1_236, %c0_237] : memref<2x18x18x128xf32, #tpu.memory_space<vmem>>, vector<2x16x16x128xf32>
    %287 = vector.shape_cast %286 : vector<2x16x16x128xf32> to vector<512x128xf32>
    %288 = arith.truncf %287 : vector<512x128xf32> to vector<512x128xbf16>
    %c1_238 = arith.constant 1 : index
    %c0_239 = arith.constant 0 : index
    %c0_240 = arith.constant 0 : index
    %289 = vector.load %arg22[%c1_238, %c0_239, %c0_240] : memref<9x128x64xbf16, #tpu.memory_space<vmem>>, vector<1x128x64xbf16>
    %290 = vector.shape_cast %289 : vector<1x128x64xbf16> to vector<128x64xbf16>
    %cst_241 = arith.constant dense<0.000000e+00> : vector<512x64xf32>
    %291 = tpu.matmul %288, %290, %cst_241 {dimension_numbers = #tpu.dot_dimension_numbers<[1], [0], [0], [1], [0, 0, 1, 1], [], []>} : vector<512x128xbf16>, vector<128x64xbf16>, vector<512x64xf32> -> vector<512x64xf32>
    %292 = arith.addf %285, %291 : vector<512x64xf32>
    %c0_242 = arith.constant 0 : index
    %c0_243 = arith.constant 0 : index
    %c2_244 = arith.constant 2 : index
    %c0_245 = arith.constant 0 : index
    %293 = vector.load %arg19[%c0_242, %c0_243, %c2_244, %c0_245] : memref<2x18x18x128xf32, #tpu.memory_space<vmem>>, vector<2x16x16x128xf32>
    %294 = vector.shape_cast %293 : vector<2x16x16x128xf32> to vector<512x128xf32>
    %295 = arith.truncf %294 : vector<512x128xf32> to vector<512x128xbf16>
    %c2_246 = arith.constant 2 : index
    %c0_247 = arith.constant 0 : index
    %c0_248 = arith.constant 0 : index
    %296 = vector.load %arg22[%c2_246, %c0_247, %c0_248] : memref<9x128x64xbf16, #tpu.memory_space<vmem>>, vector<1x128x64xbf16>
    %297 = vector.shape_cast %296 : vector<1x128x64xbf16> to vector<128x64xbf16>
    %cst_249 = arith.constant dense<0.000000e+00> : vector<512x64xf32>
    %298 = tpu.matmul %295, %297, %cst_249 {dimension_numbers = #tpu.dot_dimension_numbers<[1], [0], [0], [1], [0, 0, 1, 1], [], []>} : vector<512x128xbf16>, vector<128x64xbf16>, vector<512x64xf32> -> vector<512x64xf32>
    %299 = arith.addf %292, %298 : vector<512x64xf32>
    %c0_250 = arith.constant 0 : index
    %c1_251 = arith.constant 1 : index
    %c0_252 = arith.constant 0 : index
    %c0_253 = arith.constant 0 : index
    %300 = vector.load %arg19[%c0_250, %c1_251, %c0_252, %c0_253] : memref<2x18x18x128xf32, #tpu.memory_space<vmem>>, vector<2x16x16x128xf32>
    %301 = vector.shape_cast %300 : vector<2x16x16x128xf32> to vector<512x128xf32>
    %302 = arith.truncf %301 : vector<512x128xf32> to vector<512x128xbf16>
    %c3_254 = arith.constant 3 : index
    %c0_255 = arith.constant 0 : index
    %c0_256 = arith.constant 0 : index
    %303 = vector.load %arg22[%c3_254, %c0_255, %c0_256] : memref<9x128x64xbf16, #tpu.memory_space<vmem>>, vector<1x128x64xbf16>
    %304 = vector.shape_cast %303 : vector<1x128x64xbf16> to vector<128x64xbf16>
    %cst_257 = arith.constant dense<0.000000e+00> : vector<512x64xf32>
    %305 = tpu.matmul %302, %304, %cst_257 {dimension_numbers = #tpu.dot_dimension_numbers<[1], [0], [0], [1], [0, 0, 1, 1], [], []>} : vector<512x128xbf16>, vector<128x64xbf16>, vector<512x64xf32> -> vector<512x64xf32>
    %306 = arith.addf %299, %305 : vector<512x64xf32>
    %c0_258 = arith.constant 0 : index
    %c1_259 = arith.constant 1 : index
    %c1_260 = arith.constant 1 : index
    %c0_261 = arith.constant 0 : index
    %307 = vector.load %arg19[%c0_258, %c1_259, %c1_260, %c0_261] : memref<2x18x18x128xf32, #tpu.memory_space<vmem>>, vector<2x16x16x128xf32>
    %308 = vector.shape_cast %307 : vector<2x16x16x128xf32> to vector<512x128xf32>
    %309 = arith.truncf %308 : vector<512x128xf32> to vector<512x128xbf16>
    %c4_262 = arith.constant 4 : index
    %c0_263 = arith.constant 0 : index
    %c0_264 = arith.constant 0 : index
    %310 = vector.load %arg22[%c4_262, %c0_263, %c0_264] : memref<9x128x64xbf16, #tpu.memory_space<vmem>>, vector<1x128x64xbf16>
    %311 = vector.shape_cast %310 : vector<1x128x64xbf16> to vector<128x64xbf16>
    %cst_265 = arith.constant dense<0.000000e+00> : vector<512x64xf32>
    %312 = tpu.matmul %309, %311, %cst_265 {dimension_numbers = #tpu.dot_dimension_numbers<[1], [0], [0], [1], [0, 0, 1, 1], [], []>} : vector<512x128xbf16>, vector<128x64xbf16>, vector<512x64xf32> -> vector<512x64xf32>
    %313 = arith.addf %306, %312 : vector<512x64xf32>
    %c0_266 = arith.constant 0 : index
    %c1_267 = arith.constant 1 : index
    %c2_268 = arith.constant 2 : index
    %c0_269 = arith.constant 0 : index
    %314 = vector.load %arg19[%c0_266, %c1_267, %c2_268, %c0_269] : memref<2x18x18x128xf32, #tpu.memory_space<vmem>>, vector<2x16x16x128xf32>
    %315 = vector.shape_cast %314 : vector<2x16x16x128xf32> to vector<512x128xf32>
    %316 = arith.truncf %315 : vector<512x128xf32> to vector<512x128xbf16>
    %c5_270 = arith.constant 5 : index
    %c0_271 = arith.constant 0 : index
    %c0_272 = arith.constant 0 : index
    %317 = vector.load %arg22[%c5_270, %c0_271, %c0_272] : memref<9x128x64xbf16, #tpu.memory_space<vmem>>, vector<1x128x64xbf16>
    %318 = vector.shape_cast %317 : vector<1x128x64xbf16> to vector<128x64xbf16>
    %cst_273 = arith.constant dense<0.000000e+00> : vector<512x64xf32>
    %319 = tpu.matmul %316, %318, %cst_273 {dimension_numbers = #tpu.dot_dimension_numbers<[1], [0], [0], [1], [0, 0, 1, 1], [], []>} : vector<512x128xbf16>, vector<128x64xbf16>, vector<512x64xf32> -> vector<512x64xf32>
    %320 = arith.addf %313, %319 : vector<512x64xf32>
    %c0_274 = arith.constant 0 : index
    %c2_275 = arith.constant 2 : index
    %c0_276 = arith.constant 0 : index
    %c0_277 = arith.constant 0 : index
    %321 = vector.load %arg19[%c0_274, %c2_275, %c0_276, %c0_277] : memref<2x18x18x128xf32, #tpu.memory_space<vmem>>, vector<2x16x16x128xf32>
    %322 = vector.shape_cast %321 : vector<2x16x16x128xf32> to vector<512x128xf32>
    %323 = arith.truncf %322 : vector<512x128xf32> to vector<512x128xbf16>
    %c6_278 = arith.constant 6 : index
    %c0_279 = arith.constant 0 : index
    %c0_280 = arith.constant 0 : index
    %324 = vector.load %arg22[%c6_278, %c0_279, %c0_280] : memref<9x128x64xbf16, #tpu.memory_space<vmem>>, vector<1x128x64xbf16>
    %325 = vector.shape_cast %324 : vector<1x128x64xbf16> to vector<128x64xbf16>
    %cst_281 = arith.constant dense<0.000000e+00> : vector<512x64xf32>
    %326 = tpu.matmul %323, %325, %cst_281 {dimension_numbers = #tpu.dot_dimension_numbers<[1], [0], [0], [1], [0, 0, 1, 1], [], []>} : vector<512x128xbf16>, vector<128x64xbf16>, vector<512x64xf32> -> vector<512x64xf32>
    %327 = arith.addf %320, %326 : vector<512x64xf32>
    %c0_282 = arith.constant 0 : index
    %c2_283 = arith.constant 2 : index
    %c1_284 = arith.constant 1 : index
    %c0_285 = arith.constant 0 : index
    %328 = vector.load %arg19[%c0_282, %c2_283, %c1_284, %c0_285] : memref<2x18x18x128xf32, #tpu.memory_space<vmem>>, vector<2x16x16x128xf32>
    %329 = vector.shape_cast %328 : vector<2x16x16x128xf32> to vector<512x128xf32>
    %330 = arith.truncf %329 : vector<512x128xf32> to vector<512x128xbf16>
    %c7_286 = arith.constant 7 : index
    %c0_287 = arith.constant 0 : index
    %c0_288 = arith.constant 0 : index
    %331 = vector.load %arg22[%c7_286, %c0_287, %c0_288] : memref<9x128x64xbf16, #tpu.memory_space<vmem>>, vector<1x128x64xbf16>
    %332 = vector.shape_cast %331 : vector<1x128x64xbf16> to vector<128x64xbf16>
    %cst_289 = arith.constant dense<0.000000e+00> : vector<512x64xf32>
    %333 = tpu.matmul %330, %332, %cst_289 {dimension_numbers = #tpu.dot_dimension_numbers<[1], [0], [0], [1], [0, 0, 1, 1], [], []>} : vector<512x128xbf16>, vector<128x64xbf16>, vector<512x64xf32> -> vector<512x64xf32>
    %334 = arith.addf %327, %333 : vector<512x64xf32>
    %c0_290 = arith.constant 0 : index
    %c2_291 = arith.constant 2 : index
    %c2_292 = arith.constant 2 : index
    %c0_293 = arith.constant 0 : index
    %335 = vector.load %arg19[%c0_290, %c2_291, %c2_292, %c0_293] : memref<2x18x18x128xf32, #tpu.memory_space<vmem>>, vector<2x16x16x128xf32>
    %336 = vector.shape_cast %335 : vector<2x16x16x128xf32> to vector<512x128xf32>
    %337 = arith.truncf %336 : vector<512x128xf32> to vector<512x128xbf16>
    %c8_294 = arith.constant 8 : index
    %c0_295 = arith.constant 0 : index
    %c0_296 = arith.constant 0 : index
    %338 = vector.load %arg22[%c8_294, %c0_295, %c0_296] : memref<9x128x64xbf16, #tpu.memory_space<vmem>>, vector<1x128x64xbf16>
    %339 = vector.shape_cast %338 : vector<1x128x64xbf16> to vector<128x64xbf16>
    %cst_297 = arith.constant dense<0.000000e+00> : vector<512x64xf32>
    %340 = tpu.matmul %337, %339, %cst_297 {dimension_numbers = #tpu.dot_dimension_numbers<[1], [0], [0], [1], [0, 0, 1, 1], [], []>} : vector<512x128xbf16>, vector<128x64xbf16>, vector<512x64xf32> -> vector<512x64xf32>
    %341 = arith.addf %334, %340 : vector<512x64xf32>
    %c0_298 = arith.constant 0 : index
    %c0_299 = arith.constant 0 : index
    %342 = vector.load %arg11[%c0_298, %c0_299] : memref<1x64xf32, #tpu.memory_space<vmem>>, vector<1x64xf32>
    %343 = vector.broadcast %342 : vector<1x64xf32> to vector<512x64xf32>
    %344 = arith.addf %341, %343 : vector<512x64xf32>
    %c0_300 = arith.constant 0 : index
    %c0_301 = arith.constant 0 : index
    %345 = vector.load %arg12[%c0_300, %c0_301] : memref<1x64xf32, #tpu.memory_space<vmem>>, vector<1x64xf32>
    %c0_302 = arith.constant 0 : index
    %c0_303 = arith.constant 0 : index
    %346 = vector.load %arg13[%c0_302, %c0_303] : memref<1x64xf32, #tpu.memory_space<vmem>>, vector<1x64xf32>
    %cst_304 = arith.constant dense<0.000000e+00> : vector<64xf32>
    %347 = vector.multi_reduction <add>, %344, %cst_304 [0] : vector<512x64xf32> to vector<64xf32>
    %348 = vector.shape_cast %347 : vector<64xf32> to vector<1x64xf32>
    %cst_305 = arith.constant 5.120000e+02 : f32
    %349 = vector.broadcast %cst_305 : f32 to vector<1x64xf32>
    %350 = arith.divf %348, %349 : vector<1x64xf32>
    %351 = vector.broadcast %350 : vector<1x64xf32> to vector<512x64xf32>
    %352 = arith.subf %344, %351 : vector<512x64xf32>
    %353 = vector.broadcast %350 : vector<1x64xf32> to vector<512x64xf32>
    %354 = arith.subf %344, %353 : vector<512x64xf32>
    %355 = arith.mulf %352, %354 : vector<512x64xf32>
    %cst_306 = arith.constant dense<0.000000e+00> : vector<64xf32>
    %356 = vector.multi_reduction <add>, %355, %cst_306 [0] : vector<512x64xf32> to vector<64xf32>
    %357 = vector.shape_cast %356 : vector<64xf32> to vector<1x64xf32>
    %cst_307 = arith.constant 5.120000e+02 : f32
    %358 = vector.broadcast %cst_307 : f32 to vector<1x64xf32>
    %359 = arith.divf %357, %358 : vector<1x64xf32>
    %360 = vector.broadcast %350 : vector<1x64xf32> to vector<512x64xf32>
    %361 = arith.subf %344, %360 : vector<512x64xf32>
    %cst_308 = arith.constant 8.000000e-01 : f32
    %362 = vector.broadcast %cst_308 : f32 to vector<1x64xf32>
    %363 = arith.addf %359, %362 : vector<1x64xf32>
    %364 = math.rsqrt %363 : vector<1x64xf32>
    %365 = vector.broadcast %364 : vector<1x64xf32> to vector<512x64xf32>
    %366 = arith.mulf %361, %365 : vector<512x64xf32>
    %367 = vector.broadcast %345 : vector<1x64xf32> to vector<512x64xf32>
    %368 = arith.mulf %366, %367 : vector<512x64xf32>
    %369 = vector.broadcast %346 : vector<1x64xf32> to vector<512x64xf32>
    %370 = arith.addf %368, %369 : vector<512x64xf32>
    %cst_309 = arith.constant 0.000000e+00 : f32
    %371 = vector.broadcast %cst_309 : f32 to vector<512x64xf32>
    %372 = arith.cmpf oge, %370, %371 : vector<512x64xf32>
    %cst_310 = arith.constant 2.000000e-01 : f32
    %373 = vector.broadcast %cst_310 : f32 to vector<512x64xf32>
    %374 = arith.mulf %373, %370 : vector<512x64xf32>
    %375 = arith.select %372, %370, %374 : vector<512x64xi1>, vector<512x64xf32>
    %cst_311 = arith.constant 0.000000e+00 : f32
    %376 = vector.broadcast %cst_311 : f32 to vector<2x1x18x64xf32>
    %c0_312 = arith.constant 0 : index
    %c0_313 = arith.constant 0 : index
    %c0_314 = arith.constant 0 : index
    %c0_315 = arith.constant 0 : index
    %377 = vector.load %arg20[%c0_312, %c0_313, %c0_314, %c0_315] : memref<2x18x18x64xf32, #tpu.memory_space<vmem>>, vector<2x1x18x64xf32>
    tpu.vector_store %arg20[%c0_312, %c0_313, %c0_314, %c0_315], %376 {strides = array<i32>} : memref<2x18x18x64xf32, #tpu.memory_space<vmem>>, vector<2x1x18x64xf32>,
    %cst_316 = arith.constant 0.000000e+00 : f32
    %378 = vector.broadcast %cst_316 : f32 to vector<2x1x18x64xf32>
    %c0_317 = arith.constant 0 : index
    %c17_318 = arith.constant 17 : index
    %c0_319 = arith.constant 0 : index
    %c0_320 = arith.constant 0 : index
    %379 = vector.load %arg20[%c0_317, %c17_318, %c0_319, %c0_320] : memref<2x18x18x64xf32, #tpu.memory_space<vmem>>, vector<2x1x18x64xf32>
    tpu.vector_store %arg20[%c0_317, %c17_318, %c0_319, %c0_320], %378 {strides = array<i32>} : memref<2x18x18x64xf32, #tpu.memory_space<vmem>>, vector<2x1x18x64xf32>,
    %cst_321 = arith.constant 0.000000e+00 : f32
    %380 = vector.broadcast %cst_321 : f32 to vector<2x18x1x64xf32>
    %c0_322 = arith.constant 0 : index
    %c0_323 = arith.constant 0 : index
    %c0_324 = arith.constant 0 : index
    %c0_325 = arith.constant 0 : index
    %381 = vector.load %arg20[%c0_322, %c0_323, %c0_324, %c0_325] : memref<2x18x18x64xf32, #tpu.memory_space<vmem>>, vector<2x18x1x64xf32>
    tpu.vector_store %arg20[%c0_322, %c0_323, %c0_324, %c0_325], %380 {strides = array<i32>} : memref<2x18x18x64xf32, #tpu.memory_space<vmem>>, vector<2x18x1x64xf32>,
    %cst_326 = arith.constant 0.000000e+00 : f32
    %382 = vector.broadcast %cst_326 : f32 to vector<2x18x1x64xf32>
    %c0_327 = arith.constant 0 : index
    %c0_328 = arith.constant 0 : index
    %c17_329 = arith.constant 17 : index
    %c0_330 = arith.constant 0 : index
    %383 = vector.load %arg20[%c0_327, %c0_328, %c17_329, %c0_330] : memref<2x18x18x64xf32, #tpu.memory_space<vmem>>, vector<2x18x1x64xf32>
    tpu.vector_store %arg20[%c0_327, %c0_328, %c17_329, %c0_330], %382 {strides = array<i32>} : memref<2x18x18x64xf32, #tpu.memory_space<vmem>>, vector<2x18x1x64xf32>,
    %384 = vector.shape_cast %375 : vector<512x64xf32> to vector<2x16x16x64xf32>
    %c0_331 = arith.constant 0 : index
    %c1_332 = arith.constant 1 : index
    %c1_333 = arith.constant 1 : index
    %c0_334 = arith.constant 0 : index
    %385 = vector.load %arg20[%c0_331, %c1_332, %c1_333, %c0_334] : memref<2x18x18x64xf32, #tpu.memory_space<vmem>>, vector<2x16x16x64xf32>
    tpu.vector_store %arg20[%c0_331, %c1_332, %c1_333, %c0_334], %384 {strides = array<i32>} : memref<2x18x18x64xf32, #tpu.memory_space<vmem>>, vector<2x16x16x64xf32>,
    %c0_335 = arith.constant 0 : index
    %c0_336 = arith.constant 0 : index
    %386 = vector.load %arg14[%c0_335, %c0_336] : memref<9x64xf32, #tpu.memory_space<vmem>>, vector<9x64xf32>
    %cst_337 = arith.constant 0.000000e+00 : f32
    %387 = vector.broadcast %cst_337 : f32 to vector<512x64xf32>
    %c0_338 = arith.constant 0 : index
    %c0_339 = arith.constant 0 : index
    %c0_340 = arith.constant 0 : index
    %c0_341 = arith.constant 0 : index
    %388 = vector.load %arg20[%c0_338, %c0_339, %c0_340, %c0_341] : memref<2x18x18x64xf32, #tpu.memory_space<vmem>>, vector<2x16x16x64xf32>
    %389 = vector.shape_cast %388 : vector<2x16x16x64xf32> to vector<512x64xf32>
    %390 = vector.extract_strided_slice %386 {offsets = [0, 0], sizes = [1, 64], strides = [1, 1]} : vector<9x64xf32> to vector<1x64xf32>
    %391 = vector.broadcast %390 : vector<1x64xf32> to vector<512x64xf32>
    %392 = arith.mulf %389, %391 : vector<512x64xf32>
    %393 = arith.addf %387, %392 : vector<512x64xf32>
    %c0_342 = arith.constant 0 : index
    %c0_343 = arith.constant 0 : index
    %c1_344 = arith.constant 1 : index
    %c0_345 = arith.constant 0 : index
    %394 = vector.load %arg20[%c0_342, %c0_343, %c1_344, %c0_345] : memref<2x18x18x64xf32, #tpu.memory_space<vmem>>, vector<2x16x16x64xf32>
    %395 = vector.shape_cast %394 : vector<2x16x16x64xf32> to vector<512x64xf32>
    %396 = vector.extract_strided_slice %386 {offsets = [1, 0], sizes = [1, 64], strides = [1, 1]} : vector<9x64xf32> to vector<1x64xf32>
    %397 = vector.broadcast %396 : vector<1x64xf32> to vector<512x64xf32>
    %398 = arith.mulf %395, %397 : vector<512x64xf32>
    %399 = arith.addf %393, %398 : vector<512x64xf32>
    %c0_346 = arith.constant 0 : index
    %c0_347 = arith.constant 0 : index
    %c2_348 = arith.constant 2 : index
    %c0_349 = arith.constant 0 : index
    %400 = vector.load %arg20[%c0_346, %c0_347, %c2_348, %c0_349] : memref<2x18x18x64xf32, #tpu.memory_space<vmem>>, vector<2x16x16x64xf32>
    %401 = vector.shape_cast %400 : vector<2x16x16x64xf32> to vector<512x64xf32>
    %402 = vector.extract_strided_slice %386 {offsets = [2, 0], sizes = [1, 64], strides = [1, 1]} : vector<9x64xf32> to vector<1x64xf32>
    %403 = vector.broadcast %402 : vector<1x64xf32> to vector<512x64xf32>
    %404 = arith.mulf %401, %403 : vector<512x64xf32>
    %405 = arith.addf %399, %404 : vector<512x64xf32>
    %c0_350 = arith.constant 0 : index
    %c1_351 = arith.constant 1 : index
    %c0_352 = arith.constant 0 : index
    %c0_353 = arith.constant 0 : index
    %406 = vector.load %arg20[%c0_350, %c1_351, %c0_352, %c0_353] : memref<2x18x18x64xf32, #tpu.memory_space<vmem>>, vector<2x16x16x64xf32>
    %407 = vector.shape_cast %406 : vector<2x16x16x64xf32> to vector<512x64xf32>
    %408 = vector.extract_strided_slice %386 {offsets = [3, 0], sizes = [1, 64], strides = [1, 1]} : vector<9x64xf32> to vector<1x64xf32>
    %409 = vector.broadcast %408 : vector<1x64xf32> to vector<512x64xf32>
    %410 = arith.mulf %407, %409 : vector<512x64xf32>
    %411 = arith.addf %405, %410 : vector<512x64xf32>
    %c0_354 = arith.constant 0 : index
    %c1_355 = arith.constant 1 : index
    %c1_356 = arith.constant 1 : index
    %c0_357 = arith.constant 0 : index
    %412 = vector.load %arg20[%c0_354, %c1_355, %c1_356, %c0_357] : memref<2x18x18x64xf32, #tpu.memory_space<vmem>>, vector<2x16x16x64xf32>
    %413 = vector.shape_cast %412 : vector<2x16x16x64xf32> to vector<512x64xf32>
    %414 = vector.extract_strided_slice %386 {offsets = [4, 0], sizes = [1, 64], strides = [1, 1]} : vector<9x64xf32> to vector<1x64xf32>
    %415 = vector.broadcast %414 : vector<1x64xf32> to vector<512x64xf32>
    %416 = arith.mulf %413, %415 : vector<512x64xf32>
    %417 = arith.addf %411, %416 : vector<512x64xf32>
    %c0_358 = arith.constant 0 : index
    %c1_359 = arith.constant 1 : index
    %c2_360 = arith.constant 2 : index
    %c0_361 = arith.constant 0 : index
    %418 = vector.load %arg20[%c0_358, %c1_359, %c2_360, %c0_361] : memref<2x18x18x64xf32, #tpu.memory_space<vmem>>, vector<2x16x16x64xf32>
    %419 = vector.shape_cast %418 : vector<2x16x16x64xf32> to vector<512x64xf32>
    %420 = vector.extract_strided_slice %386 {offsets = [5, 0], sizes = [1, 64], strides = [1, 1]} : vector<9x64xf32> to vector<1x64xf32>
    %421 = vector.broadcast %420 : vector<1x64xf32> to vector<512x64xf32>
    %422 = arith.mulf %419, %421 : vector<512x64xf32>
    %423 = arith.addf %417, %422 : vector<512x64xf32>
    %c0_362 = arith.constant 0 : index
    %c2_363 = arith.constant 2 : index
    %c0_364 = arith.constant 0 : index
    %c0_365 = arith.constant 0 : index
    %424 = vector.load %arg20[%c0_362, %c2_363, %c0_364, %c0_365] : memref<2x18x18x64xf32, #tpu.memory_space<vmem>>, vector<2x16x16x64xf32>
    %425 = vector.shape_cast %424 : vector<2x16x16x64xf32> to vector<512x64xf32>
    %426 = vector.extract_strided_slice %386 {offsets = [6, 0], sizes = [1, 64], strides = [1, 1]} : vector<9x64xf32> to vector<1x64xf32>
    %427 = vector.broadcast %426 : vector<1x64xf32> to vector<512x64xf32>
    %428 = arith.mulf %425, %427 : vector<512x64xf32>
    %429 = arith.addf %423, %428 : vector<512x64xf32>
    %c0_366 = arith.constant 0 : index
    %c2_367 = arith.constant 2 : index
    %c1_368 = arith.constant 1 : index
    %c0_369 = arith.constant 0 : index
    %430 = vector.load %arg20[%c0_366, %c2_367, %c1_368, %c0_369] : memref<2x18x18x64xf32, #tpu.memory_space<vmem>>, vector<2x16x16x64xf32>
    %431 = vector.shape_cast %430 : vector<2x16x16x64xf32> to vector<512x64xf32>
    %432 = vector.extract_strided_slice %386 {offsets = [7, 0], sizes = [1, 64], strides = [1, 1]} : vector<9x64xf32> to vector<1x64xf32>
    %433 = vector.broadcast %432 : vector<1x64xf32> to vector<512x64xf32>
    %434 = arith.mulf %431, %433 : vector<512x64xf32>
    %435 = arith.addf %429, %434 : vector<512x64xf32>
    %c0_370 = arith.constant 0 : index
    %c2_371 = arith.constant 2 : index
    %c2_372 = arith.constant 2 : index
    %c0_373 = arith.constant 0 : index
    %436 = vector.load %arg20[%c0_370, %c2_371, %c2_372, %c0_373] : memref<2x18x18x64xf32, #tpu.memory_space<vmem>>, vector<2x16x16x64xf32>
    %437 = vector.shape_cast %436 : vector<2x16x16x64xf32> to vector<512x64xf32>
    %438 = vector.extract_strided_slice %386 {offsets = [8, 0], sizes = [1, 64], strides = [1, 1]} : vector<9x64xf32> to vector<1x64xf32>
    %439 = vector.broadcast %438 : vector<1x64xf32> to vector<512x64xf32>
    %440 = arith.mulf %437, %439 : vector<512x64xf32>
    %441 = arith.addf %435, %440 : vector<512x64xf32>
    %cst_374 = arith.constant dense<0.000000e+00> : vector<512xf32>
    %442 = vector.multi_reduction <add>, %441, %cst_374 [1] : vector<512x64xf32> to vector<512xf32>
    %443 = vector.shape_cast %442 : vector<512xf32> to vector<512x1xf32>
    %c0_375 = arith.constant 0 : index
    %c0_376 = arith.constant 0 : index
    %444 = vector.load %arg15[%c0_375, %c0_376] : memref<1x1xf32, #tpu.memory_space<vmem>>, vector<1x1xf32>
    %445 = vector.broadcast %444 : vector<1x1xf32> to vector<512x1xf32>
    %446 = arith.addf %443, %445 : vector<512x1xf32>
    %447 = math.tanh %446 : vector<512x1xf32>
    %c0_377 = arith.constant 0 : index
    %c0_378 = arith.constant 0 : index
    %448 = vector.load %arg16[%c0_377, %c0_378] : memref<512x1xf32, #tpu.memory_space<vmem>>, vector<512x1xf32>
    tpu.vector_store %arg16[%c0_377, %c0_378], %447 {strides = array<i32>} : memref<512x1xf32, #tpu.memory_space<vmem>>, vector<512x1xf32>,
    return
  }
  func.func @transform_0(%arg0: i32) -> (i32, i32) {
    %c0_i32 = arith.constant 0 : i32
    %c0_i32_0 = arith.constant 0 : i32
    %c0_i32_1 = arith.constant 0 : i32
    return %c0_i32, %c0_i32_0 : i32, i32
  }
  func.func @transform_1(%arg0: i32) -> (i32, i32) {
    %c0_i32 = arith.constant 0 : i32
    %c0_i32_0 = arith.constant 0 : i32
    %c0_i32_1 = arith.constant 0 : i32
    return %c0_i32, %c0_i32_0 : i32, i32
  }
  func.func @transform_2(%arg0: i32) -> (i32, i32) {
    %c0_i32 = arith.constant 0 : i32
    %c0_i32_0 = arith.constant 0 : i32
    %c0_i32_1 = arith.constant 0 : i32
    return %c0_i32, %c0_i32_0 : i32, i32
  }
  func.func @transform_3(%arg0: i32) -> (i32, i32) {
    %c0_i32 = arith.constant 0 : i32
    %c0_i32_0 = arith.constant 0 : i32
    %c0_i32_1 = arith.constant 0 : i32
    return %c0_i32, %c0_i32_0 : i32, i32
  }
  func.func @transform_4(%arg0: i32) -> (i32, i32) {
    %c0_i32 = arith.constant 0 : i32
    %c0_i32_0 = arith.constant 0 : i32
    %c0_i32_1 = arith.constant 0 : i32
    return %c0_i32, %c0_i32_0 : i32, i32
  }
  func.func @transform_6(%arg0: i32) -> (i32, i32) {
    %c0_i32 = arith.constant 0 : i32
    %c0_i32_0 = arith.constant 0 : i32
    %c0_i32_1 = arith.constant 0 : i32
    return %c0_i32, %c0_i32_0 : i32, i32
  }
  func.func @transform_7(%arg0: i32) -> (i32, i32) {
    %c0_i32 = arith.constant 0 : i32
    %c0_i32_0 = arith.constant 0 : i32
    %c0_i32_1 = arith.constant 0 : i32
    return %c0_i32, %c0_i32_0 : i32, i32
  }
  func.func @transform_8(%arg0: i32) -> (i32, i32) {
    %c0_i32 = arith.constant 0 : i32
    %c0_i32_0 = arith.constant 0 : i32
    %c0_i32_1 = arith.constant 0 : i32
    return %c0_i32, %c0_i32_0 : i32, i32
  }
  func.func @transform_10(%arg0: i32) -> (i32, i32) {
    %c0_i32 = arith.constant 0 : i32
    %c0_i32_0 = arith.constant 0 : i32
    %c0_i32_1 = arith.constant 0 : i32
    return %c0_i32, %c0_i32_0 : i32, i32
  }
  func.func @transform_11(%arg0: i32) -> (i32, i32) {
    %c0_i32 = arith.constant 0 : i32
    %c0_i32_0 = arith.constant 0 : i32
    %c0_i32_1 = arith.constant 0 : i32
    return %c0_i32, %c0_i32_0 : i32, i32
  }
  func.func @transform_12(%arg0: i32) -> (i32, i32) {
    %c0_i32 = arith.constant 0 : i32
    %c0_i32_0 = arith.constant 0 : i32
    %c0_i32_1 = arith.constant 0 : i32
    return %c0_i32, %c0_i32_0 : i32, i32
  }
  func.func @transform_13(%arg0: i32) -> (i32, i32) {
    %c0_i32 = arith.constant 0 : i32
    %c0_i32_0 = arith.constant 0 : i32
    %c0_i32_1 = arith.constant 0 : i32
    return %c0_i32, %c0_i32_0 : i32, i32
  }
  func.func @transform_14(%arg0: i32) -> (i32, i32) {
    %c0_i32 = arith.constant 0 : i32
    %c0_i32_0 = arith.constant 0 : i32
    %c0_i32_1 = arith.constant 0 : i32
    return %c0_i32, %c0_i32_0 : i32, i32
  }
  func.func @transform_15(%arg0: i32) -> (i32, i32) {
    %c0_i32 = arith.constant 0 : i32
    %c0_i32_0 = arith.constant 0 : i32
    %c0_i32_1 = arith.constant 0 : i32
    return %c0_i32, %c0_i32_0 : i32, i32
  }
}

</mosaic_0001>

<llo_original>
// kernel: generator_forward.1
$region0: #{generator_forward.1}
  #allocation0 [shape = 'u32[]', space=smem, size = 0x4, offset = 0x4, fixed_abs, tag = 'smem constant byte address 0x4 - core index']
  #allocation1 [shape = 'u32[72,128]{1,0:T(1,128)}', space=vmem, size = 0x9000, scoped, tag = 'internal scratch']
  #allocation2 [shape = 'f32[2,16,128]{2,1,0:T(8,128)}', space=vmem, size = 0x4000, scoped, tag = 'scratch operand']
  #allocation3 [shape = 'f32[2,10,10,128]{3,2,1,0:T(8,128)}', space=vmem, size = 0x28000, scoped, tag = 'scratch operand']
  #allocation4 [shape = 'f32[2,18,18,128]{3,2,1,0:T(8,128)}', space=vmem, size = 0x6c000, scoped, tag = 'scratch operand']
  #allocation5 [shape = 'f32[2,18,18,64]{3,2,1,0:T(8,128)}', space=vmem, size = 0x6c000, scoped, tag = 'scratch operand']
  #allocation6 [shape = 'bf16[9,128,128]{2,1,0:T(8,128)(2,1)}', space=vmem, size = 0x48000, scoped, tag = 'scratch operand']
  #allocation7 [shape = 'bf16[9,128,64]{2,1,0:T(8,128)(2,1)}', space=vmem, size = 0x48000, scoped, tag = 'scratch operand']
  #allocation8 [shape = 's32[2]{0}', space=sflag, size = 0x8, scoped, tag = 'scratch operand']
  #allocation9 [shape = 'f32[1,1]{1,0:T(1,128)S(1)}', space=vmem, size = 0x200, scoped, tag = 'scoped memory for generator_forward.1']
  #allocation10 [shape = 's32[]', space=sflag, size = 0x4, offset = 0, fixed_abs, tag = 'sflag constant byte address 0x0 - dummy sync flag']
  #allocation11 [shape = 's32[]', space=sflag, size = 0x4, offset = 0, fixed_abs, tag = 'sflag constant byte address 0x0 - dummy sync flag']
  %s0 = inlined_call_operand.vmem [shape: f32[2,14], index: 0, kind: input, shape index: {}]
  %s1 = inlined_call_operand.vmem [shape: f32[14,2048], index: 1, kind: input, shape index: {}]
  %s2 = inlined_call_operand.vmem [shape: f32[1,2048], index: 2, kind: input, shape index: {}]
  %s3 = inlined_call_operand.vmem [shape: f32[1,128], index: 3, kind: input, shape index: {}]
  %s4 = inlined_call_operand.vmem [shape: f32[1,128], index: 4, kind: input, shape index: {}]
  %s5 = inlined_call_operand.vmem [shape: bf16[9,128,128], index: 5, kind: input, shape index: {}]
  %s6 = inlined_call_operand.vmem [shape: f32[1,128], index: 6, kind: input, shape index: {}]
  %s7 = inlined_call_operand.vmem [shape: f32[1,128], index: 7, kind: input, shape index: {}]
  %s8 = inlined_call_operand.vmem [shape: f32[1,128], index: 8, kind: input, shape index: {}]
  %s9 = inlined_call_operand.vmem [shape: bf16[9,128,64], index: 9, kind: input, shape index: {}]
  %s10 = inlined_call_operand.vmem [shape: f32[1,64], index: 10, kind: input, shape index: {}]
  %s11 = inlined_call_operand.vmem [shape: f32[1,64], index: 11, kind: input, shape index: {}]
  %s12 = inlined_call_operand.vmem [shape: f32[1,64], index: 12, kind: input, shape index: {}]
  %s13 = inlined_call_operand.vmem [shape: f32[9,64], index: 13, kind: input, shape index: {}]
  %s14 = inlined_call_operand.<no memory space> [shape: f32[1,1], index: 14, kind: input, shape index: {}]
  %s15 = inlined_call_operand.vmem [shape: f32[512,1], index: 15, kind: output, shape index: {}]
  %s16 = sld [smem:[#allocation0]]
  $region100: #{generator_forward.1} parent=0
    _
  %s18 = ssub.s32 1, %s16
  %s19 = scalar_select 0, %s18, %s16
  %v20 = vstv %s14
  %21 = vst [vmem:[#allocation9] sm:$0x1] %v20
  // Predicated region
  $region2: #{generator_forward.1} parent=0 // pred_check
    _
  $region3: #{generator_forward.1} parent=0 // pred_check_branch
    %23 = sbr.rel (0) target = $region5
  $region4: #{generator_forward.1} parent=0 // pred_region
    _
  $region5: #{generator_forward.1} parent=0 // pred_fallthru
    _
  // Predicated region
  $region6: #{generator_forward.1} parent=0 // pred_check
    _
  $region7: #{generator_forward.1} parent=0 // pred_check_branch
    %25 = sbr.rel (0) target = $region9
  $region8: #{generator_forward.1} parent=0 // pred_region
    _
  $region9: #{generator_forward.1} parent=0 // pred_fallthru
    _
  // Predicated region
  $region10: #{generator_forward.1} parent=0 // pred_check
    _
  $region11: #{generator_forward.1} parent=0 // pred_check_branch
    %27 = sbr.rel (0) target = $region13
  $region12: #{generator_forward.1} parent=0 // pred_region
    _
  $region13: #{generator_forward.1} parent=0 // pred_fallthru
    _
  // Predicated region
  $region14: #{generator_forward.1} parent=0 // pred_check
    _
  $region15: #{generator_forward.1} parent=0 // pred_check_branch
    %29 = sbr.rel (0) target = $region17
  $region16: #{generator_forward.1} parent=0 // pred_region
    _
  $region17: #{generator_forward.1} parent=0 // pred_fallthru
    _
  // Predicated region
  $region18: #{generator_forward.1} parent=0 // pred_check
    _
  $region19: #{generator_forward.1} parent=0 // pred_check_branch
    %31 = sbr.rel (0) target = $region21
  $region20: #{generator_forward.1} parent=0 // pred_region
    _
  $region21: #{generator_forward.1} parent=0 // pred_fallthru
    _
  // Predicated region
  $region22: #{generator_forward.1} parent=0 // pred_check
    _
  $region23: #{generator_forward.1} parent=0 // pred_check_branch
    %33 = sbr.rel (0) target = $region25
  $region24: #{generator_forward.1} parent=0 // pred_region
    _
  $region25: #{generator_forward.1} parent=0 // pred_fallthru
    _
  // Predicated region
  $region26: #{generator_forward.1} parent=0 // pred_check
    _
  $region27: #{generator_forward.1} parent=0 // pred_check_branch
    %35 = sbr.rel (0) target = $region29
  $region28: #{generator_forward.1} parent=0 // pred_region
    _
  $region29: #{generator_forward.1} parent=0 // pred_fallthru
    _
  // Predicated region
  $region30: #{generator_forward.1} parent=0 // pred_check
    _
  $region31: #{generator_forward.1} parent=0 // pred_check_branch
    %37 = sbr.rel (0) target = $region33
  $region32: #{generator_forward.1} parent=0 // pred_region
    _
  $region33: #{generator_forward.1} parent=0 // pred_fallthru
    _
  // Predicated region
  $region34: #{generator_forward.1} parent=0 // pred_check
    _
  $region35: #{generator_forward.1} parent=0 // pred_check_branch
    %39 = sbr.rel (0) target = $region37
  $region36: #{generator_forward.1} parent=0 // pred_region
    _
  $region37: #{generator_forward.1} parent=0 // pred_fallthru
    _
  // Predicated region
  $region38: #{generator_forward.1} parent=0 // pred_check
    _
  $region39: #{generator_forward.1} parent=0 // pred_check_branch
    %41 = sbr.rel (0) target = $region41
  $region40: #{generator_forward.1} parent=0 // pred_region
    _
  $region41: #{generator_forward.1} parent=0 // pred_fallthru
    _
  // Predicated region
  $region42: #{generator_forward.1} parent=0 // pred_check
    _
  $region43: #{generator_forward.1} parent=0 // pred_check_branch
    %43 = sbr.rel (0) target = $region45
  $region44: #{generator_forward.1} parent=0 // pred_region
    _
  $region45: #{generator_forward.1} parent=0 // pred_fallthru
    _
  // Predicated region
  $region46: #{generator_forward.1} parent=0 // pred_check
    _
  $region47: #{generator_forward.1} parent=0 // pred_check_branch
    %45 = sbr.rel (0) target = $region49
  $region48: #{generator_forward.1} parent=0 // pred_region
    _
  $region49: #{generator_forward.1} parent=0 // pred_fallthru
    _
  // Predicated region
  $region50: #{generator_forward.1} parent=0 // pred_check
    _
  $region51: #{generator_forward.1} parent=0 // pred_check_branch
    %47 = sbr.rel (0) target = $region53
  $region52: #{generator_forward.1} parent=0 // pred_region
    _
  $region53: #{generator_forward.1} parent=0 // pred_fallthru
    _
  // Predicated region
  $region54: #{generator_forward.1} parent=0 // pred_check
    _
  $region55: #{generator_forward.1} parent=0 // pred_check_branch
    %49 = sbr.rel (0) target = $region57
  $region56: #{generator_forward.1} parent=0 // pred_region
    loop: start=0, step=1, limit=1
    $region58: #{generator_forward.1} parent=56 // loop_pre_header
      _
    $region59: #{generator_forward.1} parent=56 // loop_header
      %s51 = sphi 0, %s55
      %p52 = scmp.ge.s32.totalorder %s51, 1
      %s56 = sphi %s5, %s5
      %s57 = sphi [#allocation6], [#allocation6]
    $region60: #{generator_forward.1} parent=56 // loop_header_branch
      %54 = sbr.rel (%p52) target = $region64
    $region61: #{generator_forward.1} parent=56 // loop_body
      %v58 = vld [vmem:[%s56] sm:$0xff]
      %59 = vst [vmem:[%s57] sm:$0xff] %v58
      %v60 = vld [vmem:[%s56 + $0x8] sm:$0xff]
      %61 = vst [vmem:[%s57 + $0x8] sm:$0xff] %v60
      %v62 = vld [vmem:[%s56 + $0x10] sm:$0xff]
      %63 = vst [vmem:[%s57 + $0x10] sm:$0xff] %v62
      %v64 = vld [vmem:[%s56 + $0x18] sm:$0xff]
      %65 = vst [vmem:[%s57 + $0x18] sm:$0xff] %v64
      %v66 = vld [vmem:[%s56 + $0x20] sm:$0xff]
      %67 = vst [vmem:[%s57 + $0x20] sm:$0xff] %v66
      %v68 = vld [vmem:[%s56 + $0x28] sm:$0xff]
      %69 = vst [vmem:[%s57 + $0x28] sm:$0xff] %v68
      %v70 = vld [vmem:[%s56 + $0x30] sm:$0xff]
      %71 = vst [vmem:[%s57 + $0x30] sm:$0xff] %v70
      %v72 = vld [vmem:[%s56 + $0x38] sm:$0xff]
      %73 = vst [vmem:[%s57 + $0x38] sm:$0xff] %v72
      %v74 = vld [vmem:[%s56 + $0x40] sm:$0xff]
      %75 = vst [vmem:[%s57 + $0x40] sm:$0xff] %v74
      %v76 = vld [vmem:[%s56 + $0x48] sm:$0xff]
      %77 = vst [vmem:[%s57 + $0x48] sm:$0xff] %v76
      %v78 = vld [vmem:[%s56 + $0x50] sm:$0xff]
      %79 = vst [vmem:[%s57 + $0x50] sm:$0xff] %v78
      %v80 = vld [vmem:[%s56 + $0x58] sm:$0xff]
      %81 = vst [vmem:[%s57 + $0x58] sm:$0xff] %v80
      %v82 = vld [vmem:[%s56 + $0x60] sm:$0xff]
      %83 = vst [vmem:[%s57 + $0x60] sm:$0xff] %v82
      %v84 = vld [vmem:[%s56 + $0x68] sm:$0xff]
      %85 = vst [vmem:[%s57 + $0x68] sm:$0xff] %v84
      %v86 = vld [vmem:[%s56 + $0x70] sm:$0xff]
      %87 = vst [vmem:[%s57 + $0x70] sm:$0xff] %v86
      %v88 = vld [vmem:[%s56 + $0x78] sm:$0xff]
      %89 = vst [vmem:[%s57 + $0x78] sm:$0xff] %v88
      %v90 = vld [vmem:[%s56 + $0x80] sm:$0xff]
      %91 = vst [vmem:[%s57 + $0x80] sm:$0xff] %v90
      %v92 = vld [vmem:[%s56 + $0x88] sm:$0xff]
      %93 = vst [vmem:[%s57 + $0x88] sm:$0xff] %v92
      %v94 = vld [vmem:[%s56 + $0x90] sm:$0xff]
      %95 = vst [vmem:[%s57 + $0x90] sm:$0xff] %v94
      %v96 = vld [vmem:[%s56 + $0x98] sm:$0xff]
      %97 = vst [vmem:[%s57 + $0x98] sm:$0xff] %v96
      %v98 = vld [vmem:[%s56 + $0xa0] sm:$0xff]
      %99 = vst [vmem:[%s57 + $0xa0] sm:$0xff] %v98
      %v100 = vld [vmem:[%s56 + $0xa8] sm:$0xff]
      %101 = vst [vmem:[%s57 + $0xa8] sm:$0xff] %v100
      %v102 = vld [vmem:[%s56 + $0xb0] sm:$0xff]
      %103 = vst [vmem:[%s57 + $0xb0] sm:$0xff] %v102
      %v104 = vld [vmem:[%s56 + $0xb8] sm:$0xff]
      %105 = vst [vmem:[%s57 + $0xb8] sm:$0xff] %v104
      %v106 = vld [vmem:[%s56 + $0xc0] sm:$0xff]
      %107 = vst [vmem:[%s57 + $0xc0] sm:$0xff] %v106
      %v108 = vld [vmem:[%s56 + $0xc8] sm:$0xff]
      %109 = vst [vmem:[%s57 + $0xc8] sm:$0xff] %v108
      %v110 = vld [vmem:[%s56 + $0xd0] sm:$0xff]
      %111 = vst [vmem:[%s57 + $0xd0] sm:$0xff] %v110
      %v112 = vld [vmem:[%s56 + $0xd8] sm:$0xff]
      %113 = vst [vmem:[%s57 + $0xd8] sm:$0xff] %v112
      %v114 = vld [vmem:[%s56 + $0xe0] sm:$0xff]
      %115 = vst [vmem:[%s57 + $0xe0] sm:$0xff] %v114
      %v116 = vld [vmem:[%s56 + $0xe8] sm:$0xff]
      %117 = vst [vmem:[%s57 + $0xe8] sm:$0xff] %v116
      %v118 = vld [vmem:[%s56 + $0xf0] sm:$0xff]
      %119 = vst [vmem:[%s57 + $0xf0] sm:$0xff] %v118
      %v120 = vld [vmem:[%s56 + $0xf8] sm:$0xff]
      %121 = vst [vmem:[%s57 + $0xf8] sm:$0xff] %v120
      %v122 = vld [vmem:[%s56 + $0x100] sm:$0xff]
      %123 = vst [vmem:[%s57 + $0x100] sm:$0xff] %v122
      %v124 = vld [vmem:[%s56 + $0x108] sm:$0xff]
      %125 = vst [vmem:[%s57 + $0x108] sm:$0xff] %v124
      %v126 = vld [vmem:[%s56 + $0x110] sm:$0xff]
      %127 = vst [vmem:[%s57 + $0x110] sm:$0xff] %v126
      %v128 = vld [vmem:[%s56 + $0x118] sm:$0xff]
      %129 = vst [vmem:[%s57 + $0x118] sm:$0xff] %v128
      %v130 = vld [vmem:[%s56 + $0x120] sm:$0xff]
      %131 = vst [vmem:[%s57 + $0x120] sm:$0xff] %v130
      %v132 = vld [vmem:[%s56 + $0x128] sm:$0xff]
      %133 = vst [vmem:[%s57 + $0x128] sm:$0xff] %v132
      %v134 = vld [vmem:[%s56 + $0x130] sm:$0xff]
      %135 = vst [vmem:[%s57 + $0x130] sm:$0xff] %v134
      %v136 = vld [vmem:[%s56 + $0x138] sm:$0xff]
      %137 = vst [vmem:[%s57 + $0x138] sm:$0xff] %v136
      %v138 = vld [vmem:[%s56 + $0x140] sm:$0xff]
      %139 = vst [vmem:[%s57 + $0x140] sm:$0xff] %v138
      %v140 = vld [vmem:[%s56 + $0x148] sm:$0xff]
      %141 = vst [vmem:[%s57 + $0x148] sm:$0xff] %v140
      %v142 = vld [vmem:[%s56 + $0x150] sm:$0xff]
      %143 = vst [vmem:[%s57 + $0x150] sm:$0xff] %v142
      %v144 = vld [vmem:[%s56 + $0x158] sm:$0xff]
      %145 = vst [vmem:[%s57 + $0x158] sm:$0xff] %v144
      %v146 = vld [vmem:[%s56 + $0x160] sm:$0xff]
      %147 = vst [vmem:[%s57 + $0x160] sm:$0xff] %v146
      %v148 = vld [vmem:[%s56 + $0x168] sm:$0xff]
      %149 = vst [vmem:[%s57 + $0x168] sm:$0xff] %v148
      %v150 = vld [vmem:[%s56 + $0x170] sm:$0xff]
      %151 = vst [vmem:[%s57 + $0x170] sm:$0xff] %v150
      %v152 = vld [vmem:[%s56 + $0x178] sm:$0xff]
      %153 = vst [vmem:[%s57 + $0x178] sm:$0xff] %v152
      %v154 = vld [vmem:[%s56 + $0x180] sm:$0xff]
      %155 = vst [vmem:[%s57 + $0x180] sm:$0xff] %v154
      %v156 = vld [vmem:[%s56 + $0x188] sm:$0xff]
      %157 = vst [vmem:[%s57 + $0x188] sm:$0xff] %v156
      %v158 = vld [vmem:[%s56 + $0x190] sm:$0xff]
      %159 = vst [vmem:[%s57 + $0x190] sm:$0xff] %v158
      %v160 = vld [vmem:[%s56 + $0x198] sm:$0xff]
      %161 = vst [vmem:[%s57 + $0x198] sm:$0xff] %v160
      %v162 = vld [vmem:[%s56 + $0x1a0] sm:$0xff]
      %163 = vst [vmem:[%s57 + $0x1a0] sm:$0xff] %v162
      %v164 = vld [vmem:[%s56 + $0x1a8] sm:$0xff]
      %165 = vst [vmem:[%s57 + $0x1a8] sm:$0xff] %v164
      %v166 = vld [vmem:[%s56 + $0x1b0] sm:$0xff]
      %167 = vst [vmem:[%s57 + $0x1b0] sm:$0xff] %v166
      %v168 = vld [vmem:[%s56 + $0x1b8] sm:$0xff]
      %169 = vst [vmem:[%s57 + $0x1b8] sm:$0xff] %v168
      %v170 = vld [vmem:[%s56 + $0x1c0] sm:$0xff]
      %171 = vst [vmem:[%s57 + $0x1c0] sm:$0xff] %v170
      %v172 = vld [vmem:[%s56 + $0x1c8] sm:$0xff]
      %173 = vst [vmem:[%s57 + $0x1c8] sm:$0xff] %v172
      %v174 = vld [vmem:[%s56 + $0x1d0] sm:$0xff]
      %175 = vst [vmem:[%s57 + $0x1d0] sm:$0xff] %v174
      %v176 = vld [vmem:[%s56 + $0x1d8] sm:$0xff]
      %177 = vst [vmem:[%s57 + $0x1d8] sm:$0xff] %v176
      %v178 = vld [vmem:[%s56 + $0x1e0] sm:$0xff]
      %179 = vst [vmem:[%s57 + $0x1e0] sm:$0xff] %v178
      %v180 = vld [vmem:[%s56 + $0x1e8] sm:$0xff]
      %181 = vst [vmem:[%s57 + $0x1e8] sm:$0xff] %v180
      %v182 = vld [vmem:[%s56 + $0x1f0] sm:$0xff]
      %183 = vst [vmem:[%s57 + $0x1f0] sm:$0xff] %v182
      %v184 = vld [vmem:[%s56 + $0x1f8] sm:$0xff]
      %185 = vst [vmem:[%s57 + $0x1f8] sm:$0xff] %v184
      %v186 = vld [vmem:[%s56 + $0x200] sm:$0xff]
      %187 = vst [vmem:[%s57 + $0x200] sm:$0xff] %v186
      %v188 = vld [vmem:[%s56 + $0x208] sm:$0xff]
      %189 = vst [vmem:[%s57 + $0x208] sm:$0xff] %v188
      %v190 = vld [vmem:[%s56 + $0x210] sm:$0xff]
      %191 = vst [vmem:[%s57 + $0x210] sm:$0xff] %v190
      %v192 = vld [vmem:[%s56 + $0x218] sm:$0xff]
      %193 = vst [vmem:[%s57 + $0x218] sm:$0xff] %v192
      %v194 = vld [vmem:[%s56 + $0x220] sm:$0xff]
      %195 = vst [vmem:[%s57 + $0x220] sm:$0xff] %v194
      %v196 = vld [vmem:[%s56 + $0x228] sm:$0xff]
      %197 = vst [vmem:[%s57 + $0x228] sm:$0xff] %v196
      %v198 = vld [vmem:[%s56 + $0x230] sm:$0xff]
      %199 = vst [vmem:[%s57 + $0x230] sm:$0xff] %v198
      %v200 = vld [vmem:[%s56 + $0x238] sm:$0xff]
      %201 = vst [vmem:[%s57 + $0x238] sm:$0xff] %v200
    $region62: #{generator_forward.1} parent=56 // loop_footer
      %s55 = sadd.s32 1, %s51
    $region63: #{generator_forward.1} parent=56 // loop_footer_branch
      %50 = sbr.rel target = $region59
    $region64: #{generator_forward.1} parent=56 // loop_exit
      _
  $region57: #{generator_forward.1} parent=0 // pred_fallthru
    _
  // Predicated region
  $region65: #{generator_forward.1} parent=0 // pred_check
    _
  $region66: #{generator_forward.1} parent=0 // pred_check_branch
    %203 = sbr.rel target = $region68
  $region67: #{generator_forward.1} parent=0 // pred_region
    _
  $region68: #{generator_forward.1} parent=0 // pred_fallthru
    _
  // Predicated region
  $region69: #{generator_forward.1} parent=0 // pred_check
    _
  $region70: #{generator_forward.1} parent=0 // pred_check_branch
    %206 = sbr.rel (0) target = $region72
  $region71: #{generator_forward.1} parent=0 // pred_region
    %207 = vsyncadd [#allocation8], 9216
  $region72: #{generator_forward.1} parent=0 // pred_fallthru
    _
  %s208 = scalar_lea.sflag [#allocation8], 1
  // Predicated region
  $region73: #{generator_forward.1} parent=0 // pred_check
    _
  $region74: #{generator_forward.1} parent=0 // pred_check_branch
    %210 = sbr.rel (0) target = $region76
  $region75: #{generator_forward.1} parent=0 // pred_region
    loop: start=0, step=1, limit=1
    $region77: #{generator_forward.1} parent=75 // loop_pre_header
      _
    $region78: #{generator_forward.1} parent=75 // loop_header
      %s212 = sphi 0, %s216
      %p213 = scmp.ge.s32.totalorder %s212, 1
      %s217 = sphi %s9, %s9
      %s218 = sphi [#allocation7], [#allocation7]
    $region79: #{generator_forward.1} parent=75 // loop_header_branch
      %215 = sbr.rel (%p213) target = $region83
    $region80: #{generator_forward.1} parent=75 // loop_body
      %v219 = vld [vmem:[%s217] sm:$0xff]
      %220 = vst [vmem:[%s218] sm:$0xff] %v219
      %v221 = vld [vmem:[%s217 + $0x8] sm:$0xff]
      %222 = vst [vmem:[%s218 + $0x8] sm:$0xff] %v221
      %v223 = vld [vmem:[%s217 + $0x10] sm:$0xff]
      %224 = vst [vmem:[%s218 + $0x10] sm:$0xff] %v223
      %v225 = vld [vmem:[%s217 + $0x18] sm:$0xff]
      %226 = vst [vmem:[%s218 + $0x18] sm:$0xff] %v225
      %v227 = vld [vmem:[%s217 + $0x20] sm:$0xff]
      %228 = vst [vmem:[%s218 + $0x20] sm:$0xff] %v227
      %v229 = vld [vmem:[%s217 + $0x28] sm:$0xff]
      %230 = vst [vmem:[%s218 + $0x28] sm:$0xff] %v229
      %v231 = vld [vmem:[%s217 + $0x30] sm:$0xff]
      %232 = vst [vmem:[%s218 + $0x30] sm:$0xff] %v231
      %v233 = vld [vmem:[%s217 + $0x38] sm:$0xff]
      %234 = vst [vmem:[%s218 + $0x38] sm:$0xff] %v233
      %v235 = vld [vmem:[%s217 + $0x40] sm:$0xff]
      %236 = vst [vmem:[%s218 + $0x40] sm:$0xff] %v235
      %v237 = vld [vmem:[%s217 + $0x48] sm:$0xff]
      %238 = vst [vmem:[%s218 + $0x48] sm:$0xff] %v237
      %v239 = vld [vmem:[%s217 + $0x50] sm:$0xff]
      %240 = vst [vmem:[%s218 + $0x50] sm:$0xff] %v239
      %v241 = vld [vmem:[%s217 + $0x58] sm:$0xff]
      %242 = vst [vmem:[%s218 + $0x58] sm:$0xff] %v241
      %v243 = vld [vmem:[%s217 + $0x60] sm:$0xff]
      %244 = vst [vmem:[%s218 + $0x60] sm:$0xff] %v243
      %v245 = vld [vmem:[%s217 + $0x68] sm:$0xff]
      %246 = vst [vmem:[%s218 + $0x68] sm:$0xff] %v245
      %v247 = vld [vmem:[%s217 + $0x70] sm:$0xff]
      %248 = vst [vmem:[%s218 + $0x70] sm:$0xff] %v247
      %v249 = vld [vmem:[%s217 + $0x78] sm:$0xff]
      %250 = vst [vmem:[%s218 + $0x78] sm:$0xff] %v249
      %v251 = vld [vmem:[%s217 + $0x80] sm:$0xff]
      %252 = vst [vmem:[%s218 + $0x80] sm:$0xff] %v251
      %v253 = vld [vmem:[%s217 + $0x88] sm:$0xff]
      %254 = vst [vmem:[%s218 + $0x88] sm:$0xff] %v253
      %v255 = vld [vmem:[%s217 + $0x90] sm:$0xff]
      %256 = vst [vmem:[%s218 + $0x90] sm:$0xff] %v255
      %v257 = vld [vmem:[%s217 + $0x98] sm:$0xff]
      %258 = vst [vmem:[%s218 + $0x98] sm:$0xff] %v257
      %v259 = vld [vmem:[%s217 + $0xa0] sm:$0xff]
      %260 = vst [vmem:[%s218 + $0xa0] sm:$0xff] %v259
      %v261 = vld [vmem:[%s217 + $0xa8] sm:$0xff]
      %262 = vst [vmem:[%s218 + $0xa8] sm:$0xff] %v261
      %v263 = vld [vmem:[%s217 + $0xb0] sm:$0xff]
      %264 = vst [vmem:[%s218 + $0xb0] sm:$0xff] %v263
      %v265 = vld [vmem:[%s217 + $0xb8] sm:$0xff]
      %266 = vst [vmem:[%s218 + $0xb8] sm:$0xff] %v265
      %v267 = vld [vmem:[%s217 + $0xc0] sm:$0xff]
      %268 = vst [vmem:[%s218 + $0xc0] sm:$0xff] %v267
      %v269 = vld [vmem:[%s217 + $0xc8] sm:$0xff]
      %270 = vst [vmem:[%s218 + $0xc8] sm:$0xff] %v269
      %v271 = vld [vmem:[%s217 + $0xd0] sm:$0xff]
      %272 = vst [vmem:[%s218 + $0xd0] sm:$0xff] %v271
      %v273 = vld [vmem:[%s217 + $0xd8] sm:$0xff]
      %274 = vst [vmem:[%s218 + $0xd8] sm:$0xff] %v273
      %v275 = vld [vmem:[%s217 + $0xe0] sm:$0xff]
      %276 = vst [vmem:[%s218 + $0xe0] sm:$0xff] %v275
      %v277 = vld [vmem:[%s217 + $0xe8] sm:$0xff]
      %278 = vst [vmem:[%s218 + $0xe8] sm:$0xff] %v277
      %v279 = vld [vmem:[%s217 + $0xf0] sm:$0xff]
      %280 = vst [vmem:[%s218 + $0xf0] sm:$0xff] %v279
      %v281 = vld [vmem:[%s217 + $0xf8] sm:$0xff]
      %282 = vst [vmem:[%s218 + $0xf8] sm:$0xff] %v281
      %v283 = vld [vmem:[%s217 + $0x100] sm:$0xff]
      %284 = vst [vmem:[%s218 + $0x100] sm:$0xff] %v283
      %v285 = vld [vmem:[%s217 + $0x108] sm:$0xff]
      %286 = vst [vmem:[%s218 + $0x108] sm:$0xff] %v285
      %v287 = vld [vmem:[%s217 + $0x110] sm:$0xff]
      %288 = vst [vmem:[%s218 + $0x110] sm:$0xff] %v287
      %v289 = vld [vmem:[%s217 + $0x118] sm:$0xff]
      %290 = vst [vmem:[%s218 + $0x118] sm:$0xff] %v289
      %v291 = vld [vmem:[%s217 + $0x120] sm:$0xff]
      %292 = vst [vmem:[%s218 + $0x120] sm:$0xff] %v291
      %v293 = vld [vmem:[%s217 + $0x128] sm:$0xff]
      %294 = vst [vmem:[%s218 + $0x128] sm:$0xff] %v293
      %v295 = vld [vmem:[%s217 + $0x130] sm:$0xff]
      %296 = vst [vmem:[%s218 + $0x130] sm:$0xff] %v295
      %v297 = vld [vmem:[%s217 + $0x138] sm:$0xff]
      %298 = vst [vmem:[%s218 + $0x138] sm:$0xff] %v297
      %v299 = vld [vmem:[%s217 + $0x140] sm:$0xff]
      %300 = vst [vmem:[%s218 + $0x140] sm:$0xff] %v299
      %v301 = vld [vmem:[%s217 + $0x148] sm:$0xff]
      %302 = vst [vmem:[%s218 + $0x148] sm:$0xff] %v301
      %v303 = vld [vmem:[%s217 + $0x150] sm:$0xff]
      %304 = vst [vmem:[%s218 + $0x150] sm:$0xff] %v303
      %v305 = vld [vmem:[%s217 + $0x158] sm:$0xff]
      %306 = vst [vmem:[%s218 + $0x158] sm:$0xff] %v305
      %v307 = vld [vmem:[%s217 + $0x160] sm:$0xff]
      %308 = vst [vmem:[%s218 + $0x160] sm:$0xff] %v307
      %v309 = vld [vmem:[%s217 + $0x168] sm:$0xff]
      %310 = vst [vmem:[%s218 + $0x168] sm:$0xff] %v309
      %v311 = vld [vmem:[%s217 + $0x170] sm:$0xff]
      %312 = vst [vmem:[%s218 + $0x170] sm:$0xff] %v311
      %v313 = vld [vmem:[%s217 + $0x178] sm:$0xff]
      %314 = vst [vmem:[%s218 + $0x178] sm:$0xff] %v313
      %v315 = vld [vmem:[%s217 + $0x180] sm:$0xff]
      %316 = vst [vmem:[%s218 + $0x180] sm:$0xff] %v315
      %v317 = vld [vmem:[%s217 + $0x188] sm:$0xff]
      %318 = vst [vmem:[%s218 + $0x188] sm:$0xff] %v317
      %v319 = vld [vmem:[%s217 + $0x190] sm:$0xff]
      %320 = vst [vmem:[%s218 + $0x190] sm:$0xff] %v319
      %v321 = vld [vmem:[%s217 + $0x198] sm:$0xff]
      %322 = vst [vmem:[%s218 + $0x198] sm:$0xff] %v321
      %v323 = vld [vmem:[%s217 + $0x1a0] sm:$0xff]
      %324 = vst [vmem:[%s218 + $0x1a0] sm:$0xff] %v323
      %v325 = vld [vmem:[%s217 + $0x1a8] sm:$0xff]
      %326 = vst [vmem:[%s218 + $0x1a8] sm:$0xff] %v325
      %v327 = vld [vmem:[%s217 + $0x1b0] sm:$0xff]
      %328 = vst [vmem:[%s218 + $0x1b0] sm:$0xff] %v327
      %v329 = vld [vmem:[%s217 + $0x1b8] sm:$0xff]
      %330 = vst [vmem:[%s218 + $0x1b8] sm:$0xff] %v329
      %v331 = vld [vmem:[%s217 + $0x1c0] sm:$0xff]
      %332 = vst [vmem:[%s218 + $0x1c0] sm:$0xff] %v331
      %v333 = vld [vmem:[%s217 + $0x1c8] sm:$0xff]
      %334 = vst [vmem:[%s218 + $0x1c8] sm:$0xff] %v333
      %v335 = vld [vmem:[%s217 + $0x1d0] sm:$0xff]
      %336 = vst [vmem:[%s218 + $0x1d0] sm:$0xff] %v335
      %v337 = vld [vmem:[%s217 + $0x1d8] sm:$0xff]
      %338 = vst [vmem:[%s218 + $0x1d8] sm:$0xff] %v337
      %v339 = vld [vmem:[%s217 + $0x1e0] sm:$0xff]
      %340 = vst [vmem:[%s218 + $0x1e0] sm:$0xff] %v339
      %v341 = vld [vmem:[%s217 + $0x1e8] sm:$0xff]
      %342 = vst [vmem:[%s218 + $0x1e8] sm:$0xff] %v341
      %v343 = vld [vmem:[%s217 + $0x1f0] sm:$0xff]
      %344 = vst [vmem:[%s218 + $0x1f0] sm:$0xff] %v343
      %v345 = vld [vmem:[%s217 + $0x1f8] sm:$0xff]
      %346 = vst [vmem:[%s218 + $0x1f8] sm:$0xff] %v345
      %v347 = vld [vmem:[%s217 + $0x200] sm:$0xff]
      %348 = vst [vmem:[%s218 + $0x200] sm:$0xff] %v347
      %v349 = vld [vmem:[%s217 + $0x208] sm:$0xff]
      %350 = vst [vmem:[%s218 + $0x208] sm:$0xff] %v349
      %v351 = vld [vmem:[%s217 + $0x210] sm:$0xff]
      %352 = vst [vmem:[%s218 + $0x210] sm:$0xff] %v351
      %v353 = vld [vmem:[%s217 + $0x218] sm:$0xff]
      %354 = vst [vmem:[%s218 + $0x218] sm:$0xff] %v353
      %v355 = vld [vmem:[%s217 + $0x220] sm:$0xff]
      %356 = vst [vmem:[%s218 + $0x220] sm:$0xff] %v355
      %v357 = vld [vmem:[%s217 + $0x228] sm:$0xff]
      %358 = vst [vmem:[%s218 + $0x228] sm:$0xff] %v357
      %v359 = vld [vmem:[%s217 + $0x230] sm:$0xff]
      %360 = vst [vmem:[%s218 + $0x230] sm:$0xff] %v359
      %v361 = vld [vmem:[%s217 + $0x238] sm:$0xff]
      %362 = vst [vmem:[%s218 + $0x238] sm:$0xff] %v361
    $region81: #{generator_forward.1} parent=75 // loop_footer
      %s216 = sadd.s32 1, %s212
    $region82: #{generator_forward.1} parent=75 // loop_footer_branch
      %211 = sbr.rel target = $region78
    $region83: #{generator_forward.1} parent=75 // loop_exit
      _
  $region76: #{generator_forward.1} parent=0 // pred_fallthru
    _
  // Predicated region
  $region84: #{generator_forward.1} parent=0 // pred_check
    _
  $region85: #{generator_forward.1} parent=0 // pred_check_branch
    %364 = sbr.rel target = $region87
  $region86: #{generator_forward.1} parent=0 // pred_region
    _
  $region87: #{generator_forward.1} parent=0 // pred_fallthru
    _
  // Predicated region
  $region88: #{generator_forward.1} parent=0 // pred_check
    _
  $region89: #{generator_forward.1} parent=0 // pred_check_branch
    %367 = sbr.rel (0) target = $region91
  $region90: #{generator_forward.1} parent=0 // pred_region
    %368 = vsyncadd %s208, 9216
  $region91: #{generator_forward.1} parent=0 // pred_fallthru
    _
  %v369 = vld [vmem:[%s0] sm:$0x3]
  %v370 = vld [vmem:[%s1] sm:$0xff]
  %v371 = vld [vmem:[%s1 + $0x8] sm:$0xff]
  %v372 = vld [vmem:[%s1 + $0x10] sm:$0xff]
  %v373 = vld [vmem:[%s1 + $0x18] sm:$0xff]
  %v374 = vld [vmem:[%s1 + $0x20] sm:$0xff]
  %v375 = vld [vmem:[%s1 + $0x28] sm:$0xff]
  %v376 = vld [vmem:[%s1 + $0x30] sm:$0xff]
  %v377 = vld [vmem:[%s1 + $0x38] sm:$0xff]
  %v378 = vld [vmem:[%s1 + $0x40] sm:$0xff]
  %v379 = vld [vmem:[%s1 + $0x48] sm:$0xff]
  %v380 = vld [vmem:[%s1 + $0x50] sm:$0xff]
  %v381 = vld [vmem:[%s1 + $0x58] sm:$0xff]
  %v382 = vld [vmem:[%s1 + $0x60] sm:$0xff]
  %v383 = vld [vmem:[%s1 + $0x68] sm:$0xff]
  %v384 = vld [vmem:[%s1 + $0x70] sm:$0xff]
  %v385 = vld [vmem:[%s1 + $0x78] sm:$0xff]
  %v386 = vld [vmem:[%s1 + $0x80] sm:$0x3f]
  %v387 = vld [vmem:[%s1 + $0x88] sm:$0x3f]
  %v388 = vld [vmem:[%s1 + $0x90] sm:$0x3f]
  %v389 = vld [vmem:[%s1 + $0x98] sm:$0x3f]
  %v390 = vld [vmem:[%s1 + $0xa0] sm:$0x3f]
  %v391 = vld [vmem:[%s1 + $0xa8] sm:$0x3f]
  %v392 = vld [vmem:[%s1 + $0xb0] sm:$0x3f]
  %v393 = vld [vmem:[%s1 + $0xb8] sm:$0x3f]
  %v394 = vld [vmem:[%s1 + $0xc0] sm:$0x3f]
  %v395 = vld [vmem:[%s1 + $0xc8] sm:$0x3f]
  %v396 = vld [vmem:[%s1 + $0xd0] sm:$0x3f]
  %v397 = vld [vmem:[%s1 + $0xd8] sm:$0x3f]
  %v398 = vld [vmem:[%s1 + $0xe0] sm:$0x3f]
  %v399 = vld [vmem:[%s1 + $0xe8] sm:$0x3f]
  %v400 = vld [vmem:[%s1 + $0xf0] sm:$0x3f]
  %v401 = vld [vmem:[%s1 + $0xf8] sm:$0x3f]
  %v402 = vld [vmem:[%s2] sm:$0xff]
  %v403 = vld [vmem:[%s2 + $0x8] sm:$0xff]
  %v406 = vperm.slane %v402, 0
  %v407 = vperm.slane %v402, 1
  %v408 = vperm.slane %v402, 2
  %v409 = vperm.slane %v402, 3
  %v410 = vperm.slane %v402, 4
  %v411 = vperm.slane %v402, 5
  %v412 = vperm.slane %v402, 6
  %v413 = vperm.slane %v402, 7
  %v414 = vperm.slane %v403, 0
  %v415 = vperm.slane %v403, 1
  %v416 = vperm.slane %v403, 2
  %v417 = vperm.slane %v403, 3
  %v418 = vperm.slane %v403, 4
  %v419 = vperm.slane %v403, 5
  %v420 = vperm.slane %v403, 6
  %v421 = vperm.slane %v403, 7
  %vm438 = vcmask 113664
  %v440 = vsel %vm438, %v369, 0
  %vm442 = vcmask 1045504
  %v444 = vsel %vm442, %v386, 0
  %v447 = vsel %vm442, %v387, 0
  %v450 = vsel %vm442, %v388, 0
  %v453 = vsel %vm442, %v389, 0
  %v456 = vsel %vm442, %v390, 0
  %v459 = vsel %vm442, %v391, 0
  %v462 = vsel %vm442, %v392, 0
  %v465 = vsel %vm442, %v393, 0
  %v468 = vsel %vm442, %v394, 0
  %v471 = vsel %vm442, %v395, 0
  %v474 = vsel %vm442, %v396, 0
  %v477 = vsel %vm442, %v397, 0
  %v480 = vsel %vm442, %v398, 0
  %v483 = vsel %vm442, %v399, 0
  %v486 = vsel %vm442, %v400, 0
  %v489 = vsel %vm442, %v401, 0
  %491 = vmatpush.msra.mxu0 0.0
  %492 = vmatpush.msra.mxu0 0.0
  %493 = vmatpush.msra.mxu0 0.0
  %494 = vmatpush.msra.mxu0 0.0
  %495 = vmatpush.msra.mxu0 0.0
  %496 = vmatpush.msra.mxu0 0.0
  %497 = vmatpush.msra.mxu0 0.0
  %498 = vmatpush.msra.mxu0 0.0
  %499 = vmatpush.msra.mxu0 0.0
  %500 = vmatpush.msra.mxu0 0.0
  %501 = vmatpush.msra.mxu0 0.0
  %502 = vmatpush.msra.mxu0 0.0
  %503 = vmatpush.msra.mxu0 0.0
  %504 = vmatpush.msra.mxu0 0.0
  %505 = vmatpush.msra.mxu0 %v444
  %506 = vmatpush.msra.mxu0 %v370
  %507 = vmatmul.f32.gmra.mxu0 %v440
  %v508 = vpop.f32.mrf.mxu0
  %v509 = vadd.f32 %v406, %v508
  %510 = vdwg.mxu0
  %511 = vmatpush.msra.mxu0 0.0
  %512 = vmatpush.msra.mxu0 0.0
  %513 = vmatpush.msra.mxu0 0.0
  %514 = vmatpush.msra.mxu0 0.0
  %515 = vmatpush.msra.mxu0 0.0
  %516 = vmatpush.msra.mxu0 0.0
  %517 = vmatpush.msra.mxu0 0.0
  %518 = vmatpush.msra.mxu0 0.0
  %519 = vmatpush.msra.mxu0 0.0
  %520 = vmatpush.msra.mxu0 0.0
  %521 = vmatpush.msra.mxu0 0.0
  %522 = vmatpush.msra.mxu0 0.0
  %523 = vmatpush.msra.mxu0 0.0
  %524 = vmatpush.msra.mxu0 0.0
  %525 = vmatpush.msra.mxu0 %v447
  %526 = vmatpush.msra.mxu0 %v371
  %527 = vmatmul.f32.gmra.mxu0 %v440
  %v528 = vpop.f32.mrf.mxu0
  %v529 = vadd.f32 %v407, %v528
  %530 = vdwg.mxu0
  %531 = vmatpush.msra.mxu0 0.0
  %532 = vmatpush.msra.mxu0 0.0
  %533 = vmatpush.msra.mxu0 0.0
  %534 = vmatpush.msra.mxu0 0.0
  %535 = vmatpush.msra.mxu0 0.0
  %536 = vmatpush.msra.mxu0 0.0
  %537 = vmatpush.msra.mxu0 0.0
  %538 = vmatpush.msra.mxu0 0.0
  %539 = vmatpush.msra.mxu0 0.0
  %540 = vmatpush.msra.mxu0 0.0
  %541 = vmatpush.msra.mxu0 0.0
  %542 = vmatpush.msra.mxu0 0.0
  %543 = vmatpush.msra.mxu0 0.0
  %544 = vmatpush.msra.mxu0 0.0
  %545 = vmatpush.msra.mxu0 %v450
  %546 = vmatpush.msra.mxu0 %v372
  %547 = vmatmul.f32.gmra.mxu0 %v440
  %v548 = vpop.f32.mrf.mxu0
  %v549 = vadd.f32 %v408, %v548
  %550 = vdwg.mxu0
  %551 = vmatpush.msra.mxu0 0.0
  %552 = vmatpush.msra.mxu0 0.0
  %553 = vmatpush.msra.mxu0 0.0
  %554 = vmatpush.msra.mxu0 0.0
  %555 = vmatpush.msra.mxu0 0.0
  %556 = vmatpush.msra.mxu0 0.0
  %557 = vmatpush.msra.mxu0 0.0
  %558 = vmatpush.msra.mxu0 0.0
  %559 = vmatpush.msra.mxu0 0.0
  %560 = vmatpush.msra.mxu0 0.0
  %561 = vmatpush.msra.mxu0 0.0
  %562 = vmatpush.msra.mxu0 0.0
  %563 = vmatpush.msra.mxu0 0.0
  %564 = vmatpush.msra.mxu0 0.0
  %565 = vmatpush.msra.mxu0 %v453
  %566 = vmatpush.msra.mxu0 %v373
  %567 = vmatmul.f32.gmra.mxu0 %v440
  %v568 = vpop.f32.mrf.mxu0
  %v569 = vadd.f32 %v409, %v568
  %570 = vdwg.mxu0
  %571 = vmatpush.msra.mxu0 0.0
  %572 = vmatpush.msra.mxu0 0.0
  %573 = vmatpush.msra.mxu0 0.0
  %574 = vmatpush.msra.mxu0 0.0
  %575 = vmatpush.msra.mxu0 0.0
  %576 = vmatpush.msra.mxu0 0.0
  %577 = vmatpush.msra.mxu0 0.0
  %578 = vmatpush.msra.mxu0 0.0
  %579 = vmatpush.msra.mxu0 0.0
  %580 = vmatpush.msra.mxu0 0.0
  %581 = vmatpush.msra.mxu0 0.0
  %582 = vmatpush.msra.mxu0 0.0
  %583 = vmatpush.msra.mxu0 0.0
  %584 = vmatpush.msra.mxu0 0.0
  %585 = vmatpush.msra.mxu0 %v456
  %586 = vmatpush.msra.mxu0 %v374
  %587 = vmatmul.f32.gmra.mxu0 %v440
  %v588 = vpop.f32.mrf.mxu0
  %v589 = vadd.f32 %v410, %v588
  %590 = vdwg.mxu0
  %591 = vmatpush.msra.mxu0 0.0
  %592 = vmatpush.msra.mxu0 0.0
  %593 = vmatpush.msra.mxu0 0.0
  %594 = vmatpush.msra.mxu0 0.0
  %595 = vmatpush.msra.mxu0 0.0
  %596 = vmatpush.msra.mxu0 0.0
  %597 = vmatpush.msra.mxu0 0.0
  %598 = vmatpush.msra.mxu0 0.0
  %599 = vmatpush.msra.mxu0 0.0
  %600 = vmatpush.msra.mxu0 0.0
  %601 = vmatpush.msra.mxu0 0.0
  %602 = vmatpush.msra.mxu0 0.0
  %603 = vmatpush.msra.mxu0 0.0
  %604 = vmatpush.msra.mxu0 0.0
  %605 = vmatpush.msra.mxu0 %v459
  %606 = vmatpush.msra.mxu0 %v375
  %607 = vmatmul.f32.gmra.mxu0 %v440
  %v608 = vpop.f32.mrf.mxu0
  %v609 = vadd.f32 %v411, %v608
  %610 = vdwg.mxu0
  %611 = vmatpush.msra.mxu0 0.0
  %612 = vmatpush.msra.mxu0 0.0
  %613 = vmatpush.msra.mxu0 0.0
  %614 = vmatpush.msra.mxu0 0.0
  %615 = vmatpush.msra.mxu0 0.0
  %616 = vmatpush.msra.mxu0 0.0
  %617 = vmatpush.msra.mxu0 0.0
  %618 = vmatpush.msra.mxu0 0.0
  %619 = vmatpush.msra.mxu0 0.0
  %620 = vmatpush.msra.mxu0 0.0
  %621 = vmatpush.msra.mxu0 0.0
  %622 = vmatpush.msra.mxu0 0.0
  %623 = vmatpush.msra.mxu0 0.0
  %624 = vmatpush.msra.mxu0 0.0
  %625 = vmatpush.msra.mxu0 %v462
  %626 = vmatpush.msra.mxu0 %v376
  %627 = vmatmul.f32.gmra.mxu0 %v440
  %v628 = vpop.f32.mrf.mxu0
  %v629 = vadd.f32 %v412, %v628
  %630 = vdwg.mxu0
  %631 = vmatpush.msra.mxu0 0.0
  %632 = vmatpush.msra.mxu0 0.0
  %633 = vmatpush.msra.mxu0 0.0
  %634 = vmatpush.msra.mxu0 0.0
  %635 = vmatpush.msra.mxu0 0.0
  %636 = vmatpush.msra.mxu0 0.0
  %637 = vmatpush.msra.mxu0 0.0
  %638 = vmatpush.msra.mxu0 0.0
  %639 = vmatpush.msra.mxu0 0.0
  %640 = vmatpush.msra.mxu0 0.0
  %641 = vmatpush.msra.mxu0 0.0
  %642 = vmatpush.msra.mxu0 0.0
  %643 = vmatpush.msra.mxu0 0.0
  %644 = vmatpush.msra.mxu0 0.0
  %645 = vmatpush.msra.mxu0 %v465
  %646 = vmatpush.msra.mxu0 %v377
  %647 = vmatmul.f32.gmra.mxu0 %v440
  %v648 = vpop.f32.mrf.mxu0
  %v649 = vadd.f32 %v413, %v648
  %650 = vdwg.mxu0
  %651 = vmatpush.msra.mxu0 0.0
  %652 = vmatpush.msra.mxu0 0.0
  %653 = vmatpush.msra.mxu0 0.0
  %654 = vmatpush.msra.mxu0 0.0
  %655 = vmatpush.msra.mxu0 0.0
  %656 = vmatpush.msra.mxu0 0.0
  %657 = vmatpush.msra.mxu0 0.0
  %658 = vmatpush.msra.mxu0 0.0
  %659 = vmatpush.msra.mxu0 0.0
  %660 = vmatpush.msra.mxu0 0.0
  %661 = vmatpush.msra.mxu0 0.0
  %662 = vmatpush.msra.mxu0 0.0
  %663 = vmatpush.msra.mxu0 0.0
  %664 = vmatpush.msra.mxu0 0.0
  %665 = vmatpush.msra.mxu0 %v468
  %666 = vmatpush.msra.mxu0 %v378
  %667 = vmatmul.f32.gmra.mxu0 %v440
  %v668 = vpop.f32.mrf.mxu0
  %v669 = vadd.f32 %v414, %v668
  %670 = vdwg.mxu0
  %671 = vmatpush.msra.mxu0 0.0
  %672 = vmatpush.msra.mxu0 0.0
  %673 = vmatpush.msra.mxu0 0.0
  %674 = vmatpush.msra.mxu0 0.0
  %675 = vmatpush.msra.mxu0 0.0
  %676 = vmatpush.msra.mxu0 0.0
  %677 = vmatpush.msra.mxu0 0.0
  %678 = vmatpush.msra.mxu0 0.0
  %679 = vmatpush.msra.mxu0 0.0
  %680 = vmatpush.msra.mxu0 0.0
  %681 = vmatpush.msra.mxu0 0.0
  %682 = vmatpush.msra.mxu0 0.0
  %683 = vmatpush.msra.mxu0 0.0
  %684 = vmatpush.msra.mxu0 0.0
  %685 = vmatpush.msra.mxu0 %v471
  %686 = vmatpush.msra.mxu0 %v379
  %687 = vmatmul.f32.gmra.mxu0 %v440
  %v688 = vpop.f32.mrf.mxu0
  %v689 = vadd.f32 %v415, %v688
  %690 = vdwg.mxu0
  %691 = vmatpush.msra.mxu0 0.0
  %692 = vmatpush.msra.mxu0 0.0
  %693 = vmatpush.msra.mxu0 0.0
  %694 = vmatpush.msra.mxu0 0.0
  %695 = vmatpush.msra.mxu0 0.0
  %696 = vmatpush.msra.mxu0 0.0
  %697 = vmatpush.msra.mxu0 0.0
  %698 = vmatpush.msra.mxu0 0.0
  %699 = vmatpush.msra.mxu0 0.0
  %700 = vmatpush.msra.mxu0 0.0
  %701 = vmatpush.msra.mxu0 0.0
  %702 = vmatpush.msra.mxu0 0.0
  %703 = vmatpush.msra.mxu0 0.0
  %704 = vmatpush.msra.mxu0 0.0
  %705 = vmatpush.msra.mxu0 %v474
  %706 = vmatpush.msra.mxu0 %v380
  %707 = vmatmul.f32.gmra.mxu0 %v440
  %v708 = vpop.f32.mrf.mxu0
  %v709 = vadd.f32 %v416, %v708
  %710 = vdwg.mxu0
  %711 = vmatpush.msra.mxu0 0.0
  %712 = vmatpush.msra.mxu0 0.0
  %713 = vmatpush.msra.mxu0 0.0
  %714 = vmatpush.msra.mxu0 0.0
  %715 = vmatpush.msra.mxu0 0.0
  %716 = vmatpush.msra.mxu0 0.0
  %717 = vmatpush.msra.mxu0 0.0
  %718 = vmatpush.msra.mxu0 0.0
  %719 = vmatpush.msra.mxu0 0.0
  %720 = vmatpush.msra.mxu0 0.0
  %721 = vmatpush.msra.mxu0 0.0
  %722 = vmatpush.msra.mxu0 0.0
  %723 = vmatpush.msra.mxu0 0.0
  %724 = vmatpush.msra.mxu0 0.0
  %725 = vmatpush.msra.mxu0 %v477
  %726 = vmatpush.msra.mxu0 %v381
  %727 = vmatmul.f32.gmra.mxu0 %v440
  %v728 = vpop.f32.mrf.mxu0
  %v729 = vadd.f32 %v417, %v728
  %730 = vdwg.mxu0
  %731 = vmatpush.msra.mxu0 0.0
  %732 = vmatpush.msra.mxu0 0.0
  %733 = vmatpush.msra.mxu0 0.0
  %734 = vmatpush.msra.mxu0 0.0
  %735 = vmatpush.msra.mxu0 0.0
  %736 = vmatpush.msra.mxu0 0.0
  %737 = vmatpush.msra.mxu0 0.0
  %738 = vmatpush.msra.mxu0 0.0
  %739 = vmatpush.msra.mxu0 0.0
  %740 = vmatpush.msra.mxu0 0.0
  %741 = vmatpush.msra.mxu0 0.0
  %742 = vmatpush.msra.mxu0 0.0
  %743 = vmatpush.msra.mxu0 0.0
  %744 = vmatpush.msra.mxu0 0.0
  %745 = vmatpush.msra.mxu0 %v480
  %746 = vmatpush.msra.mxu0 %v382
  %747 = vmatmul.f32.gmra.mxu0 %v440
  %v748 = vpop.f32.mrf.mxu0
  %v749 = vadd.f32 %v418, %v748
  %750 = vdwg.mxu0
  %751 = vmatpush.msra.mxu0 0.0
  %752 = vmatpush.msra.mxu0 0.0
  %753 = vmatpush.msra.mxu0 0.0
  %754 = vmatpush.msra.mxu0 0.0
  %755 = vmatpush.msra.mxu0 0.0
  %756 = vmatpush.msra.mxu0 0.0
  %757 = vmatpush.msra.mxu0 0.0
  %758 = vmatpush.msra.mxu0 0.0
  %759 = vmatpush.msra.mxu0 0.0
  %760 = vmatpush.msra.mxu0 0.0
  %761 = vmatpush.msra.mxu0 0.0
  %762 = vmatpush.msra.mxu0 0.0
  %763 = vmatpush.msra.mxu0 0.0
  %764 = vmatpush.msra.mxu0 0.0
  %765 = vmatpush.msra.mxu0 %v483
  %766 = vmatpush.msra.mxu0 %v383
  %767 = vmatmul.f32.gmra.mxu0 %v440
  %v768 = vpop.f32.mrf.mxu0
  %v769 = vadd.f32 %v419, %v768
  %770 = vdwg.mxu0
  %771 = vmatpush.msra.mxu0 0.0
  %772 = vmatpush.msra.mxu0 0.0
  %773 = vmatpush.msra.mxu0 0.0
  %774 = vmatpush.msra.mxu0 0.0
  %775 = vmatpush.msra.mxu0 0.0
  %776 = vmatpush.msra.mxu0 0.0
  %777 = vmatpush.msra.mxu0 0.0
  %778 = vmatpush.msra.mxu0 0.0
  %779 = vmatpush.msra.mxu0 0.0
  %780 = vmatpush.msra.mxu0 0.0
  %781 = vmatpush.msra.mxu0 0.0
  %782 = vmatpush.msra.mxu0 0.0
  %783 = vmatpush.msra.mxu0 0.0
  %784 = vmatpush.msra.mxu0 0.0
  %785 = vmatpush.msra.mxu0 %v486
  %786 = vmatpush.msra.mxu0 %v384
  %787 = vmatmul.f32.gmra.mxu0 %v440
  %v788 = vpop.f32.mrf.mxu0
  %v789 = vadd.f32 %v420, %v788
  %790 = vdwg.mxu0
  %791 = vmatpush.msra.mxu0 0.0
  %792 = vmatpush.msra.mxu0 0.0
  %793 = vmatpush.msra.mxu0 0.0
  %794 = vmatpush.msra.mxu0 0.0
  %795 = vmatpush.msra.mxu0 0.0
  %796 = vmatpush.msra.mxu0 0.0
  %797 = vmatpush.msra.mxu0 0.0
  %798 = vmatpush.msra.mxu0 0.0
  %799 = vmatpush.msra.mxu0 0.0
  %800 = vmatpush.msra.mxu0 0.0
  %801 = vmatpush.msra.mxu0 0.0
  %802 = vmatpush.msra.mxu0 0.0
  %803 = vmatpush.msra.mxu0 0.0
  %804 = vmatpush.msra.mxu0 0.0
  %805 = vmatpush.msra.mxu0 %v489
  %806 = vmatpush.msra.mxu0 %v385
  %807 = vmatmul.f32.gmra.mxu0 %v440
  %v808 = vpop.f32.mrf.mxu0
  %v809 = vadd.f32 %v421, %v808
  %810 = vdwg.mxu0
  %v812 = vrot.slane %v509, 1
  %814 = vst [vmem:[#allocation2] sm:$0x1] %v509
  %815 = vst [vmem:[#allocation2 + $0x10] sm:$0x1] %v812
  %v817 = vrot.slane %v529, 1
  %819 = vst [vmem:[#allocation2 + $0x1] sm:$0x1] %v529
  %820 = vst [vmem:[#allocation2 + $0x11] sm:$0x1] %v817
  %v822 = vrot.slane %v549, 1
  %824 = vst [vmem:[#allocation2 + $0x2] sm:$0x1] %v549
  %825 = vst [vmem:[#allocation2 + $0x12] sm:$0x1] %v822
  %v827 = vrot.slane %v569, 1
  %829 = vst [vmem:[#allocation2 + $0x3] sm:$0x1] %v569
  %830 = vst [vmem:[#allocation2 + $0x13] sm:$0x1] %v827
  %v832 = vrot.slane %v589, 1
  %834 = vst [vmem:[#allocation2 + $0x4] sm:$0x1] %v589
  %835 = vst [vmem:[#allocation2 + $0x14] sm:$0x1] %v832
  %v837 = vrot.slane %v609, 1
  %839 = vst [vmem:[#allocation2 + $0x5] sm:$0x1] %v609
  %840 = vst [vmem:[#allocation2 + $0x15] sm:$0x1] %v837
  %v842 = vrot.slane %v629, 1
  %844 = vst [vmem:[#allocation2 + $0x6] sm:$0x1] %v629
  %845 = vst [vmem:[#allocation2 + $0x16] sm:$0x1] %v842
  %v847 = vrot.slane %v649, 1
  %849 = vst [vmem:[#allocation2 + $0x7] sm:$0x1] %v649
  %850 = vst [vmem:[#allocation2 + $0x17] sm:$0x1] %v847
  %v852 = vrot.slane %v669, 1
  %854 = vst [vmem:[#allocation2 + $0x8] sm:$0x1] %v669
  %855 = vst [vmem:[#allocation2 + $0x18] sm:$0x1] %v852
  %v857 = vrot.slane %v689, 1
  %859 = vst [vmem:[#allocation2 + $0x9] sm:$0x1] %v689
  %860 = vst [vmem:[#allocation2 + $0x19] sm:$0x1] %v857
  %v862 = vrot.slane %v709, 1
  %864 = vst [vmem:[#allocation2 + $0xa] sm:$0x1] %v709
  %865 = vst [vmem:[#allocation2 + $0x1a] sm:$0x1] %v862
  %v867 = vrot.slane %v729, 1
  %869 = vst [vmem:[#allocation2 + $0xb] sm:$0x1] %v729
  %870 = vst [vmem:[#allocation2 + $0x1b] sm:$0x1] %v867
  %v872 = vrot.slane %v749, 1
  %874 = vst [vmem:[#allocation2 + $0xc] sm:$0x1] %v749
  %875 = vst [vmem:[#allocation2 + $0x1c] sm:$0x1] %v872
  %v877 = vrot.slane %v769, 1
  %879 = vst [vmem:[#allocation2 + $0xd] sm:$0x1] %v769
  %880 = vst [vmem:[#allocation2 + $0x1d] sm:$0x1] %v877
  %v882 = vrot.slane %v789, 1
  %884 = vst [vmem:[#allocation2 + $0xe] sm:$0x1] %v789
  %885 = vst [vmem:[#allocation2 + $0x1e] sm:$0x1] %v882
  %v887 = vrot.slane %v809, 1
  %889 = vst [vmem:[#allocation2 + $0xf] sm:$0x1] %v809
  %890 = vst [vmem:[#allocation2 + $0x1f] sm:$0x1] %v887
  %v891 = vld [vmem:[#allocation2] sm:$0xff]
  %v892 = vld [vmem:[#allocation2 + $0x8] sm:$0xff]
  %v893 = vld [vmem:[#allocation2 + $0x10] sm:$0xff]
  %v894 = vld [vmem:[#allocation2 + $0x18] sm:$0xff]
  %v895 = vld [vmem:[%s3] sm:$0x1]
  %v896 = vld [vmem:[%s4] sm:$0x1]
  %v897 = vadd.f32 %v891, %v892
  %v898 = vadd.f32 %v897, %v893
  %v899 = vadd.f32 %v898, %v894
  %v900 = vrot.slane %v899, 4
  %v901 = vadd.f32 %v899, %v900
  %v902 = vrot.slane %v901, 2
  %v903 = vadd.f32 %v901, %v902
  %v904 = vrot.slane %v903, 1
  %v905 = vadd.f32 %v903, %v904
  %v906 = vrcp.pop 32.0
  %v907 = vmul.f32 32.0, %v906
  %v908 = vsub.f32 1.0, %v907
  %v909 = vmul.f32 %v906, %v908
  %v910 = vadd.f32 %v906, %v909
  %vm911 = vweird.f32 %v906
  %v912 = vsel %vm911, %v906, %v910
  %v913 = vmul.f32 %v905, %v912
  %v914 = vsub.f32 %v891, %v913
  %v915 = vsub.f32 %v892, %v913
  %v916 = vsub.f32 %v893, %v913
  %v917 = vsub.f32 %v894, %v913
  %v918 = vmul.f32 %v914, %v914
  %v919 = vmul.f32 %v915, %v915
  %v920 = vmul.f32 %v916, %v916
  %v921 = vmul.f32 %v917, %v917
  %v922 = vadd.f32 %v918, %v919
  %v923 = vadd.f32 %v922, %v920
  %v924 = vadd.f32 %v923, %v921
  %v925 = vrot.slane %v924, 4
  %v926 = vadd.f32 %v924, %v925
  %v927 = vrot.slane %v926, 2
  %v928 = vadd.f32 %v926, %v927
  %v929 = vrot.slane %v928, 1
  %v930 = vadd.f32 %v928, %v929
  %v931 = vmul.f32 %v930, %v912
  %v932 = vadd.f32 %v931, 1e-05
  %v933 = vrsqrt.pop %v932
  %v934 = vmul.f32 %v933, %v932
  %v935 = vmul.f32 %v934, %v933
  %v936 = vmul.f32 0.5, %v935
  %v937 = vsub.f32 1.5, %v936
  %v938 = vmul.f32 %v933, %v937
  %vm939 = vweird.f32 %v932
  %vm940 = vweird.f32 %v933
  %vm941 = vmor %vm939, %vm940
  %v942 = vsel %vm941, %v933, %v938
  %v943 = vmul.f32 %v914, %v942
  %v944 = vmul.f32 %v915, %v942
  %v945 = vmul.f32 %v916, %v942
  %v946 = vmul.f32 %v917, %v942
  %v948 = vperm.slane %v895, 0
  %v950 = vmul.f32 %v943, %v948
  %v951 = vmul.f32 %v944, %v948
  %v952 = vmul.f32 %v945, %v948
  %v953 = vmul.f32 %v946, %v948
  %v955 = vperm.slane %v896, 0
  %v957 = vadd.f32 %v950, %v955
  %v958 = vadd.f32 %v951, %v955
  %v959 = vadd.f32 %v952, %v955
  %v960 = vadd.f32 %v953, %v955
  %961 = vst [vmem:[#allocation3] sm:$0xff] 0.0
  %962 = vst [vmem:[#allocation3 + $0x8] sm:$0x3] 0.0
  %963 = vst [vmem:[#allocation3 + $0xa0] sm:$0xff] 0.0
  %964 = vst [vmem:[#allocation3 + $0xa8] sm:$0x3] 0.0
  %s965 = scalar_lea.vmem [#allocation3], 144
  %966 = vst [vmem:[%s965] sm:$0xff] 0.0
  %967 = vst [vmem:[%s965 + $0x8] sm:$0x3] 0.0
  %968 = vst [vmem:[%s965 + $0xa0] sm:$0xff] 0.0
  %969 = vst [vmem:[%s965 + $0xa8] sm:$0x3] 0.0
  %970 = vst [vmem:[#allocation3] sm:$0x1] 0.0
  %971 = vst [vmem:[#allocation3 + $0x10] sm:$0x1] 0.0
  %972 = vst [vmem:[#allocation3 + $0x20] sm:$0x1] 0.0
  %973 = vst [vmem:[#allocation3 + $0x30] sm:$0x1] 0.0
  %974 = vst [vmem:[#allocation3 + $0x40] sm:$0x1] 0.0
  %975 = vst [vmem:[#allocation3 + $0x50] sm:$0x1] 0.0
  %976 = vst [vmem:[#allocation3 + $0x60] sm:$0x1] 0.0
  %977 = vst [vmem:[#allocation3 + $0x70] sm:$0x1] 0.0
  %978 = vst [vmem:[#allocation3 + $0x80] sm:$0x1] 0.0
  %979 = vst [vmem:[#allocation3 + $0x90] sm:$0x1] 0.0
  %980 = vst [vmem:[#allocation3 + $0xa0] sm:$0x1] 0.0
  %981 = vst [vmem:[#allocation3 + $0xb0] sm:$0x1] 0.0
  %982 = vst [vmem:[#allocation3 + $0xc0] sm:$0x1] 0.0
  %983 = vst [vmem:[#allocation3 + $0xd0] sm:$0x1] 0.0
  %984 = vst [vmem:[#allocation3 + $0xe0] sm:$0x1] 0.0
  %985 = vst [vmem:[#allocation3 + $0xf0] sm:$0x1] 0.0
  %986 = vst [vmem:[#allocation3 + $0x100] sm:$0x1] 0.0
  %987 = vst [vmem:[#allocation3 + $0x110] sm:$0x1] 0.0
  %988 = vst [vmem:[#allocation3 + $0x120] sm:$0x1] 0.0
  %989 = vst [vmem:[#allocation3 + $0x130] sm:$0x1] 0.0
  %990 = vst [vmem:[#allocation3 + $0x9] sm:$0x1] 0.0
  %991 = vst [vmem:[#allocation3 + $0x19] sm:$0x1] 0.0
  %992 = vst [vmem:[#allocation3 + $0x29] sm:$0x1] 0.0
  %993 = vst [vmem:[#allocation3 + $0x39] sm:$0x1] 0.0
  %994 = vst [vmem:[#allocation3 + $0x49] sm:$0x1] 0.0
  %995 = vst [vmem:[#allocation3 + $0x59] sm:$0x1] 0.0
  %996 = vst [vmem:[#allocation3 + $0x69] sm:$0x1] 0.0
  %997 = vst [vmem:[#allocation3 + $0x79] sm:$0x1] 0.0
  %998 = vst [vmem:[#allocation3 + $0x89] sm:$0x1] 0.0
  %999 = vst [vmem:[#allocation3 + $0x99] sm:$0x1] 0.0
  %1000 = vst [vmem:[#allocation3 + $0xa9] sm:$0x1] 0.0
  %1001 = vst [vmem:[#allocation3 + $0xb9] sm:$0x1] 0.0
  %1002 = vst [vmem:[#allocation3 + $0xc9] sm:$0x1] 0.0
  %1003 = vst [vmem:[#allocation3 + $0xd9] sm:$0x1] 0.0
  %1004 = vst [vmem:[#allocation3 + $0xe9] sm:$0x1] 0.0
  %1005 = vst [vmem:[#allocation3 + $0xf9] sm:$0x1] 0.0
  %1006 = vst [vmem:[#allocation3 + $0x109] sm:$0x1] 0.0
  %1007 = vst [vmem:[#allocation3 + $0x119] sm:$0x1] 0.0
  %1008 = vst [vmem:[#allocation3 + $0x129] sm:$0x1] 0.0
  %1009 = vst [vmem:[#allocation3 + $0x139] sm:$0x1] 0.0
  %v1014 = vrot.slane %v957, 4
  %v1015 = vrot.slane %v958, 4
  %v1016 = vrot.slane %v959, 4
  %v1017 = vrot.slane %v960, 4
  %v1022 = vperm.slane %v957, 0
  %v1023 = vperm.slane %v1014, 0
  %v1024 = vperm.slane %v958, 0
  %v1025 = vperm.slane %v1015, 0
  %v1026 = vperm.slane %v959, 0
  %v1027 = vperm.slane %v1016, 0
  %v1028 = vperm.slane %v960, 0
  %v1029 = vperm.slane %v1017, 0
  %s1030 = scalar_lea.vmem [#allocation3], 16
  %1031 = vst [vmem:[%s1030 + $0x1] sm:$0x3] %v1022
  %1032 = vst [vmem:[%s1030 + $0x11] sm:$0x3] %v1022
  %1033 = vst [vmem:[%s1030 + $0x21] sm:$0x3] %v1023
  %1034 = vst [vmem:[%s1030 + $0x31] sm:$0x3] %v1023
  %1035 = vst [vmem:[%s1030 + $0x41] sm:$0x3] %v1024
  %1036 = vst [vmem:[%s1030 + $0x51] sm:$0x3] %v1024
  %1037 = vst [vmem:[%s1030 + $0x61] sm:$0x3] %v1025
  %1038 = vst [vmem:[%s1030 + $0x71] sm:$0x3] %v1025
  %1039 = vst [vmem:[%s1030 + $0xa1] sm:$0x3] %v1026
  %1040 = vst [vmem:[%s1030 + $0xb1] sm:$0x3] %v1026
  %1041 = vst [vmem:[%s1030 + $0xc1] sm:$0x3] %v1027
  %1042 = vst [vmem:[%s1030 + $0xd1] sm:$0x3] %v1027
  %1043 = vst [vmem:[%s1030 + $0xe1] sm:$0x3] %v1028
  %1044 = vst [vmem:[%s1030 + $0xf1] sm:$0x3] %v1028
  %1045 = vst [vmem:[%s1030 + $0x101] sm:$0x3] %v1029
  %1046 = vst [vmem:[%s1030 + $0x111] sm:$0x3] %v1029
  %v1047 = vperm.slane %v957, 1
  %v1048 = vperm.slane %v1014, 1
  %v1049 = vperm.slane %v958, 1
  %v1050 = vperm.slane %v1015, 1
  %v1051 = vperm.slane %v959, 1
  %v1052 = vperm.slane %v1016, 1
  %v1053 = vperm.slane %v960, 1
  %v1054 = vperm.slane %v1017, 1
  %1055 = vst [vmem:[%s1030 + $0x3] sm:$0x3] %v1047
  %1056 = vst [vmem:[%s1030 + $0x13] sm:$0x3] %v1047
  %1057 = vst [vmem:[%s1030 + $0x23] sm:$0x3] %v1048
  %1058 = vst [vmem:[%s1030 + $0x33] sm:$0x3] %v1048
  %1059 = vst [vmem:[%s1030 + $0x43] sm:$0x3] %v1049
  %1060 = vst [vmem:[%s1030 + $0x53] sm:$0x3] %v1049
  %1061 = vst [vmem:[%s1030 + $0x63] sm:$0x3] %v1050
  %1062 = vst [vmem:[%s1030 + $0x73] sm:$0x3] %v1050
  %1063 = vst [vmem:[%s1030 + $0xa3] sm:$0x3] %v1051
  %1064 = vst [vmem:[%s1030 + $0xb3] sm:$0x3] %v1051
  %1065 = vst [vmem:[%s1030 + $0xc3] sm:$0x3] %v1052
  %1066 = vst [vmem:[%s1030 + $0xd3] sm:$0x3] %v1052
  %1067 = vst [vmem:[%s1030 + $0xe3] sm:$0x3] %v1053
  %1068 = vst [vmem:[%s1030 + $0xf3] sm:$0x3] %v1053
  %1069 = vst [vmem:[%s1030 + $0x103] sm:$0x3] %v1054
  %1070 = vst [vmem:[%s1030 + $0x113] sm:$0x3] %v1054
  %v1071 = vperm.slane %v957, 2
  %v1072 = vperm.slane %v1014, 2
  %v1073 = vperm.slane %v958, 2
  %v1074 = vperm.slane %v1015, 2
  %v1075 = vperm.slane %v959, 2
  %v1076 = vperm.slane %v1016, 2
  %v1077 = vperm.slane %v960, 2
  %v1078 = vperm.slane %v1017, 2
  %1079 = vst [vmem:[%s1030 + $0x5] sm:$0x3] %v1071
  %1080 = vst [vmem:[%s1030 + $0x15] sm:$0x3] %v1071
  %1081 = vst [vmem:[%s1030 + $0x25] sm:$0x3] %v1072
  %1082 = vst [vmem:[%s1030 + $0x35] sm:$0x3] %v1072
  %1083 = vst [vmem:[%s1030 + $0x45] sm:$0x3] %v1073
  %1084 = vst [vmem:[%s1030 + $0x55] sm:$0x3] %v1073
  %1085 = vst [vmem:[%s1030 + $0x65] sm:$0x3] %v1074
  %1086 = vst [vmem:[%s1030 + $0x75] sm:$0x3] %v1074
  %1087 = vst [vmem:[%s1030 + $0xa5] sm:$0x3] %v1075
  %1088 = vst [vmem:[%s1030 + $0xb5] sm:$0x3] %v1075
  %1089 = vst [vmem:[%s1030 + $0xc5] sm:$0x3] %v1076
  %1090 = vst [vmem:[%s1030 + $0xd5] sm:$0x3] %v1076
  %1091 = vst [vmem:[%s1030 + $0xe5] sm:$0x3] %v1077
  %1092 = vst [vmem:[%s1030 + $0xf5] sm:$0x3] %v1077
  %1093 = vst [vmem:[%s1030 + $0x105] sm:$0x3] %v1078
  %1094 = vst [vmem:[%s1030 + $0x115] sm:$0x3] %v1078
  %v1095 = vperm.slane %v957, 3
  %v1096 = vperm.slane %v1014, 3
  %v1097 = vperm.slane %v958, 3
  %v1098 = vperm.slane %v1015, 3
  %v1099 = vperm.slane %v959, 3
  %v1100 = vperm.slane %v1016, 3
  %v1101 = vperm.slane %v960, 3
  %v1102 = vperm.slane %v1017, 3
  %1103 = vst [vmem:[%s1030 + $0x7] sm:$0x3] %v1095
  %1104 = vst [vmem:[%s1030 + $0x17] sm:$0x3] %v1095
  %1105 = vst [vmem:[%s1030 + $0x27] sm:$0x3] %v1096
  %1106 = vst [vmem:[%s1030 + $0x37] sm:$0x3] %v1096
  %1107 = vst [vmem:[%s1030 + $0x47] sm:$0x3] %v1097
  %1108 = vst [vmem:[%s1030 + $0x57] sm:$0x3] %v1097
  %1109 = vst [vmem:[%s1030 + $0x67] sm:$0x3] %v1098
  %1110 = vst [vmem:[%s1030 + $0x77] sm:$0x3] %v1098
  %1111 = vst [vmem:[%s1030 + $0xa7] sm:$0x3] %v1099
  %1112 = vst [vmem:[%s1030 + $0xb7] sm:$0x3] %v1099
  %1113 = vst [vmem:[%s1030 + $0xc7] sm:$0x3] %v1100
  %1114 = vst [vmem:[%s1030 + $0xd7] sm:$0x3] %v1100
  %1115 = vst [vmem:[%s1030 + $0xe7] sm:$0x3] %v1101
  %1116 = vst [vmem:[%s1030 + $0xf7] sm:$0x3] %v1101
  %1117 = vst [vmem:[%s1030 + $0x107] sm:$0x3] %v1102
  %1118 = vst [vmem:[%s1030 + $0x117] sm:$0x3] %v1102
  %s1119 = smul.u32 4, 9
  %s1120 = smul.u32 %s1119, 16
  %s1121 = smul.u32 %s1120, 1
  %s1122 = sshll.u32 %s1121, 4
  %1123 = dma.done [#allocation8], %s1122
  %v1124 = vld [vmem:[#allocation3] sm:$0xff]
  %v1125 = vld [vmem:[#allocation3 + $0x10] sm:$0xff]
  %v1126 = vld [vmem:[#allocation3 + $0x20] sm:$0xff]
  %v1127 = vld [vmem:[#allocation3 + $0x30] sm:$0xff]
  %v1128 = vld [vmem:[#allocation3 + $0x40] sm:$0xff]
  %v1129 = vld [vmem:[#allocation3 + $0x50] sm:$0xff]
  %v1130 = vld [vmem:[#allocation3 + $0x60] sm:$0xff]
  %v1131 = vld [vmem:[#allocation3 + $0x70] sm:$0xff]
  %v1132 = vld [vmem:[#allocation3 + $0xa0] sm:$0xff]
  %v1133 = vld [vmem:[#allocation3 + $0xb0] sm:$0xff]
  %v1134 = vld [vmem:[#allocation3 + $0xc0] sm:$0xff]
  %v1135 = vld [vmem:[#allocation3 + $0xd0] sm:$0xff]
  %v1136 = vld [vmem:[#allocation3 + $0xe0] sm:$0xff]
  %v1137 = vld [vmem:[#allocation3 + $0xf0] sm:$0xff]
  %v1138 = vld [vmem:[#allocation3 + $0x100] sm:$0xff]
  %v1139 = vld [vmem:[#allocation3 + $0x110] sm:$0xff]
  %v1140 = vpack.c.bf16 %v1125, %v1124
  %v1141 = vpack.c.bf16 %v1127, %v1126
  %v1142 = vpack.c.bf16 %v1129, %v1128
  %v1143 = vpack.c.bf16 %v1131, %v1130
  %v1144 = vpack.c.bf16 %v1133, %v1132
  %v1145 = vpack.c.bf16 %v1135, %v1134
  %v1146 = vpack.c.bf16 %v1137, %v1136
  %v1147 = vpack.c.bf16 %v1139, %v1138
  %v1148 = vld [vmem:[#allocation6] sm:$0xf]
  %v1149 = vld [vmem:[#allocation6 + $0x4] sm:$0xf]
  %v1150 = vld [vmem:[#allocation6 + $0x8] sm:$0xf]
  %v1151 = vld [vmem:[#allocation6 + $0xc] sm:$0xf]
  %v1152 = vld [vmem:[#allocation6 + $0x10] sm:$0xf]
  %v1153 = vld [vmem:[#allocation6 + $0x14] sm:$0xf]
  %v1154 = vld [vmem:[#allocation6 + $0x18] sm:$0xf]
  %v1155 = vld [vmem:[#allocation6 + $0x1c] sm:$0xf]
  %v1156 = vld [vmem:[#allocation6 + $0x20] sm:$0xf]
  %v1157 = vld [vmem:[#allocation6 + $0x24] sm:$0xf]
  %v1158 = vld [vmem:[#allocation6 + $0x28] sm:$0xf]
  %v1159 = vld [vmem:[#allocation6 + $0x2c] sm:$0xf]
  %v1160 = vld [vmem:[#allocation6 + $0x30] sm:$0xf]
  %v1161 = vld [vmem:[#allocation6 + $0x34] sm:$0xf]
  %v1162 = vld [vmem:[#allocation6 + $0x38] sm:$0xf]
  %v1163 = vld [vmem:[#allocation6 + $0x3c] sm:$0xf]
  %v1164 = vld [vmem:[#allocation3 + $0x1] sm:$0xff]
  %v1165 = vld [vmem:[#allocation3 + $0x11] sm:$0xff]
  %v1166 = vld [vmem:[#allocation3 + $0x21] sm:$0xff]
  %v1167 = vld [vmem:[#allocation3 + $0x31] sm:$0xff]
  %v1168 = vld [vmem:[#allocation3 + $0x41] sm:$0xff]
  %v1169 = vld [vmem:[#allocation3 + $0x51] sm:$0xff]
  %v1170 = vld [vmem:[#allocation3 + $0x61] sm:$0xff]
  %v1171 = vld [vmem:[#allocation3 + $0x71] sm:$0xff]
  %v1172 = vld [vmem:[#allocation3 + $0xa1] sm:$0xff]
  %v1173 = vld [vmem:[#allocation3 + $0xb1] sm:$0xff]
  %v1174 = vld [vmem:[#allocation3 + $0xc1] sm:$0xff]
  %v1175 = vld [vmem:[#allocation3 + $0xd1] sm:$0xff]
  %v1176 = vld [vmem:[#allocation3 + $0xe1] sm:$0xff]
  %v1177 = vld [vmem:[#allocation3 + $0xf1] sm:$0xff]
  %v1178 = vld [vmem:[#allocation3 + $0x101] sm:$0xff]
  %v1179 = vld [vmem:[#allocation3 + $0x111] sm:$0xff]
  %v1180 = vpack.c.bf16 %v1165, %v1164
  %v1181 = vpack.c.bf16 %v1167, %v1166
  %v1182 = vpack.c.bf16 %v1169, %v1168
  %v1183 = vpack.c.bf16 %v1171, %v1170
  %v1184 = vpack.c.bf16 %v1173, %v1172
  %v1185 = vpack.c.bf16 %v1175, %v1174
  %v1186 = vpack.c.bf16 %v1177, %v1176
  %v1187 = vpack.c.bf16 %v1179, %v1178
  %s1188 = scalar_lea.vmem [#allocation6], 64
  %v1189 = vld [vmem:[%s1188] sm:$0xf]
  %v1190 = vld [vmem:[%s1188 + $0x4] sm:$0xf]
  %v1191 = vld [vmem:[%s1188 + $0x8] sm:$0xf]
  %v1192 = vld [vmem:[%s1188 + $0xc] sm:$0xf]
  %v1193 = vld [vmem:[%s1188 + $0x10] sm:$0xf]
  %v1194 = vld [vmem:[%s1188 + $0x14] sm:$0xf]
  %v1195 = vld [vmem:[%s1188 + $0x18] sm:$0xf]
  %v1196 = vld [vmem:[%s1188 + $0x1c] sm:$0xf]
  %v1197 = vld [vmem:[%s1188 + $0x20] sm:$0xf]
  %v1198 = vld [vmem:[%s1188 + $0x24] sm:$0xf]
  %v1199 = vld [vmem:[%s1188 + $0x28] sm:$0xf]
  %v1200 = vld [vmem:[%s1188 + $0x2c] sm:$0xf]
  %v1201 = vld [vmem:[%s1188 + $0x30] sm:$0xf]
  %v1202 = vld [vmem:[%s1188 + $0x34] sm:$0xf]
  %v1203 = vld [vmem:[%s1188 + $0x38] sm:$0xf]
  %v1204 = vld [vmem:[%s1188 + $0x3c] sm:$0xf]
  %v1221 = vunpack.c.l.b16 %v1189
  %v1222 = vunpack.c.l.b16 %v1190
  %v1223 = vunpack.c.l.b16 %v1191
  %v1224 = vunpack.c.l.b16 %v1192
  %v1225 = vunpack.c.l.b16 %v1193
  %v1226 = vunpack.c.l.b16 %v1194
  %v1227 = vunpack.c.l.b16 %v1195
  %v1228 = vunpack.c.l.b16 %v1196
  %v1229 = vunpack.c.l.b16 %v1197
  %v1230 = vunpack.c.l.b16 %v1198
  %v1231 = vunpack.c.l.b16 %v1199
  %v1232 = vunpack.c.l.b16 %v1200
  %v1233 = vunpack.c.l.b16 %v1201
  %v1234 = vunpack.c.l.b16 %v1202
  %v1235 = vunpack.c.l.b16 %v1203
  %v1236 = vunpack.c.l.b16 %v1204
  %v1237 = vpack.c.b16 %v1222, %v1221
  %v1238 = vpack.c.b16 %v1224, %v1223
  %v1239 = vpack.c.b16 %v1226, %v1225
  %v1240 = vpack.c.b16 %v1228, %v1227
  %v1241 = vpack.c.b16 %v1230, %v1229
  %v1242 = vpack.c.b16 %v1232, %v1231
  %v1243 = vpack.c.b16 %v1234, %v1233
  %v1244 = vpack.c.b16 %v1236, %v1235
  %1253 = vmatpush.bf16.msra.mxu0 %v1244
  %1254 = vmatpush.bf16.msra.mxu0 %v1243
  %1255 = vmatpush.bf16.msra.mxu0 %v1242
  %1256 = vmatpush.bf16.msra.mxu0 %v1241
  %1257 = vmatpush.bf16.msra.mxu0 %v1240
  %1258 = vmatpush.bf16.msra.mxu0 %v1239
  %1259 = vmatpush.bf16.msra.mxu0 %v1238
  %1260 = vmatpush.bf16.msra.mxu0 %v1237
  %1261 = vmatmul.bf16.gmra.mxu0 %v1180
  %v1262 = vpop.f32.mrf.mxu0
  %v1263 = vadd.f32 0.0, %v1262
  %v1264 = vpop.f32.mrf.mxu0
  %v1265 = vadd.f32 0.0, %v1264
  %1266 = vmatmul.bf16.gmra.mxu0 %v1181
  %v1267 = vpop.f32.mrf.mxu0
  %v1268 = vadd.f32 0.0, %v1267
  %v1269 = vpop.f32.mrf.mxu0
  %v1270 = vadd.f32 0.0, %v1269
  %1271 = vmatmul.bf16.gmra.mxu0 %v1182
  %v1272 = vpop.f32.mrf.mxu0
  %v1273 = vadd.f32 0.0, %v1272
  %v1274 = vpop.f32.mrf.mxu0
  %v1275 = vadd.f32 0.0, %v1274
  %1276 = vmatmul.bf16.gmra.mxu0 %v1183
  %v1277 = vpop.f32.mrf.mxu0
  %v1278 = vadd.f32 0.0, %v1277
  %v1279 = vpop.f32.mrf.mxu0
  %v1280 = vadd.f32 0.0, %v1279
  %1281 = vmatmul.bf16.gmra.mxu0 %v1184
  %v1282 = vpop.f32.mrf.mxu0
  %v1283 = vadd.f32 0.0, %v1282
  %v1284 = vpop.f32.mrf.mxu0
  %v1285 = vadd.f32 0.0, %v1284
  %1286 = vmatmul.bf16.gmra.mxu0 %v1185
  %v1287 = vpop.f32.mrf.mxu0
  %v1288 = vadd.f32 0.0, %v1287
  %v1289 = vpop.f32.mrf.mxu0
  %v1290 = vadd.f32 0.0, %v1289
  %1291 = vmatmul.bf16.gmra.mxu0 %v1186
  %v1292 = vpop.f32.mrf.mxu0
  %v1293 = vadd.f32 0.0, %v1292
  %v1294 = vpop.f32.mrf.mxu0
  %v1295 = vadd.f32 0.0, %v1294
  %1296 = vmatmul.bf16.gmra.mxu0 %v1187
  %v1297 = vpop.f32.mrf.mxu0
  %v1298 = vadd.f32 0.0, %v1297
  %v1299 = vpop.f32.mrf.mxu0
  %v1300 = vadd.f32 0.0, %v1299
  %1301 = vdwg.mxu0
  %v1318 = vunpack.c.l.b16 %v1148
  %v1319 = vunpack.c.l.b16 %v1149
  %v1320 = vunpack.c.l.b16 %v1150
  %v1321 = vunpack.c.l.b16 %v1151
  %v1322 = vunpack.c.l.b16 %v1152
  %v1323 = vunpack.c.l.b16 %v1153
  %v1324 = vunpack.c.l.b16 %v1154
  %v1325 = vunpack.c.l.b16 %v1155
  %v1326 = vunpack.c.l.b16 %v1156
  %v1327 = vunpack.c.l.b16 %v1157
  %v1328 = vunpack.c.l.b16 %v1158
  %v1329 = vunpack.c.l.b16 %v1159
  %v1330 = vunpack.c.l.b16 %v1160
  %v1331 = vunpack.c.l.b16 %v1161
  %v1332 = vunpack.c.l.b16 %v1162
  %v1333 = vunpack.c.l.b16 %v1163
  %v1334 = vpack.c.b16 %v1319, %v1318
  %v1335 = vpack.c.b16 %v1321, %v1320
  %v1336 = vpack.c.b16 %v1323, %v1322
  %v1337 = vpack.c.b16 %v1325, %v1324
  %v1338 = vpack.c.b16 %v1327, %v1326
  %v1339 = vpack.c.b16 %v1329, %v1328
  %v1340 = vpack.c.b16 %v1331, %v1330
  %v1341 = vpack.c.b16 %v1333, %v1332
  %1350 = vmatpush.bf16.msra.mxu0 %v1341
  %1351 = vmatpush.bf16.msra.mxu0 %v1340
  %1352 = vmatpush.bf16.msra.mxu0 %v1339
  %1353 = vmatpush.bf16.msra.mxu0 %v1338
  %1354 = vmatpush.bf16.msra.mxu0 %v1337
  %1355 = vmatpush.bf16.msra.mxu0 %v1336
  %1356 = vmatpush.bf16.msra.mxu0 %v1335
  %1357 = vmatpush.bf16.msra.mxu0 %v1334
  %1358 = vmatmul.bf16.gmra.mxu0 %v1140
  %v1359 = vpop.f32.mrf.mxu0
  %v1360 = vadd.f32 %v1263, %v1359
  %v1361 = vpop.f32.mrf.mxu0
  %v1362 = vadd.f32 %v1265, %v1361
  %1363 = vmatmul.bf16.gmra.mxu0 %v1141
  %v1364 = vpop.f32.mrf.mxu0
  %v1365 = vadd.f32 %v1268, %v1364
  %v1366 = vpop.f32.mrf.mxu0
  %v1367 = vadd.f32 %v1270, %v1366
  %1368 = vmatmul.bf16.gmra.mxu0 %v1142
  %v1369 = vpop.f32.mrf.mxu0
  %v1370 = vadd.f32 %v1273, %v1369
  %v1371 = vpop.f32.mrf.mxu0
  %v1372 = vadd.f32 %v1275, %v1371
  %1373 = vmatmul.bf16.gmra.mxu0 %v1143
  %v1374 = vpop.f32.mrf.mxu0
  %v1375 = vadd.f32 %v1278, %v1374
  %v1376 = vpop.f32.mrf.mxu0
  %v1377 = vadd.f32 %v1280, %v1376
  %1378 = vmatmul.bf16.gmra.mxu0 %v1144
  %v1379 = vpop.f32.mrf.mxu0
  %v1380 = vadd.f32 %v1283, %v1379
  %v1381 = vpop.f32.mrf.mxu0
  %v1382 = vadd.f32 %v1285, %v1381
  %1383 = vmatmul.bf16.gmra.mxu0 %v1145
  %v1384 = vpop.f32.mrf.mxu0
  %v1385 = vadd.f32 %v1288, %v1384
  %v1386 = vpop.f32.mrf.mxu0
  %v1387 = vadd.f32 %v1290, %v1386
  %1388 = vmatmul.bf16.gmra.mxu0 %v1146
  %v1389 = vpop.f32.mrf.mxu0
  %v1390 = vadd.f32 %v1293, %v1389
  %v1391 = vpop.f32.mrf.mxu0
  %v1392 = vadd.f32 %v1295, %v1391
  %1393 = vmatmul.bf16.gmra.mxu0 %v1147
  %v1394 = vpop.f32.mrf.mxu0
  %v1395 = vadd.f32 %v1298, %v1394
  %v1396 = vpop.f32.mrf.mxu0
  %v1397 = vadd.f32 %v1300, %v1396
  %1398 = vdwg.mxu0
  %v1399 = vld [vmem:[#allocation3 + $0x2] sm:$0xff]
  %v1400 = vld [vmem:[#allocation3 + $0x12] sm:$0xff]
  %v1401 = vld [vmem:[#allocation3 + $0x22] sm:$0xff]
  %v1402 = vld [vmem:[#allocation3 + $0x32] sm:$0xff]
  %v1403 = vld [vmem:[#allocation3 + $0x42] sm:$0xff]
  %v1404 = vld [vmem:[#allocation3 + $0x52] sm:$0xff]
  %v1405 = vld [vmem:[#allocation3 + $0x62] sm:$0xff]
  %v1406 = vld [vmem:[#allocation3 + $0x72] sm:$0xff]
  %v1407 = vld [vmem:[#allocation3 + $0xa2] sm:$0xff]
  %v1408 = vld [vmem:[#allocation3 + $0xb2] sm:$0xff]
  %v1409 = vld [vmem:[#allocation3 + $0xc2] sm:$0xff]
  %v1410 = vld [vmem:[#allocation3 + $0xd2] sm:$0xff]
  %v1411 = vld [vmem:[#allocation3 + $0xe2] sm:$0xff]
  %v1412 = vld [vmem:[#allocation3 + $0xf2] sm:$0xff]
  %v1413 = vld [vmem:[#allocation3 + $0x102] sm:$0xff]
  %v1414 = vld [vmem:[#allocation3 + $0x112] sm:$0xff]
  %v1415 = vpack.c.bf16 %v1400, %v1399
  %v1416 = vpack.c.bf16 %v1402, %v1401
  %v1417 = vpack.c.bf16 %v1404, %v1403
  %v1418 = vpack.c.bf16 %v1406, %v1405
  %v1419 = vpack.c.bf16 %v1408, %v1407
  %v1420 = vpack.c.bf16 %v1410, %v1409
  %v1421 = vpack.c.bf16 %v1412, %v1411
  %v1422 = vpack.c.bf16 %v1414, %v1413
  %s1423 = scalar_lea.vmem [#allocation6], 128
  %v1424 = vld [vmem:[%s1423] sm:$0xf]
  %v1425 = vld [vmem:[%s1423 + $0x4] sm:$0xf]
  %v1426 = vld [vmem:[%s1423 + $0x8] sm:$0xf]
  %v1427 = vld [vmem:[%s1423 + $0xc] sm:$0xf]
  %v1428 = vld [vmem:[%s1423 + $0x10] sm:$0xf]
  %v1429 = vld [vmem:[%s1423 + $0x14] sm:$0xf]
  %v1430 = vld [vmem:[%s1423 + $0x18] sm:$0xf]
  %v1431 = vld [vmem:[%s1423 + $0x1c] sm:$0xf]
  %v1432 = vld [vmem:[%s1423 + $0x20] sm:$0xf]
  %v1433 = vld [vmem:[%s1423 + $0x24] sm:$0xf]
  %v1434 = vld [vmem:[%s1423 + $0x28] sm:$0xf]
  %v1435 = vld [vmem:[%s1423 + $0x2c] sm:$0xf]
  %v1436 = vld [vmem:[%s1423 + $0x30] sm:$0xf]
  %v1437 = vld [vmem:[%s1423 + $0x34] sm:$0xf]
  %v1438 = vld [vmem:[%s1423 + $0x38] sm:$0xf]
  %v1439 = vld [vmem:[%s1423 + $0x3c] sm:$0xf]
  %v1456 = vunpack.c.l.b16 %v1424
  %v1457 = vunpack.c.l.b16 %v1425
  %v1458 = vunpack.c.l.b16 %v1426
  %v1459 = vunpack.c.l.b16 %v1427
  %v1460 = vunpack.c.l.b16 %v1428
  %v1461 = vunpack.c.l.b16 %v1429
  %v1462 = vunpack.c.l.b16 %v1430
  %v1463 = vunpack.c.l.b16 %v1431
  %v1464 = vunpack.c.l.b16 %v1432
  %v1465 = vunpack.c.l.b16 %v1433
  %v1466 = vunpack.c.l.b16 %v1434
  %v1467 = vunpack.c.l.b16 %v1435
  %v1468 = vunpack.c.l.b16 %v1436
  %v1469 = vunpack.c.l.b16 %v1437
  %v1470 = vunpack.c.l.b16 %v1438
  %v1471 = vunpack.c.l.b16 %v1439
  %v1472 = vpack.c.b16 %v1457, %v1456
  %v1473 = vpack.c.b16 %v1459, %v1458
  %v1474 = vpack.c.b16 %v1461, %v1460
  %v1475 = vpack.c.b16 %v1463, %v1462
  %v1476 = vpack.c.b16 %v1465, %v1464
  %v1477 = vpack.c.b16 %v1467, %v1466
  %v1478 = vpack.c.b16 %v1469, %v1468
  %v1479 = vpack.c.b16 %v1471, %v1470
  %1488 = vmatpush.bf16.msra.mxu0 %v1479
  %1489 = vmatpush.bf16.msra.mxu0 %v1478
  %1490 = vmatpush.bf16.msra.mxu0 %v1477
  %1491 = vmatpush.bf16.msra.mxu0 %v1476
  %1492 = vmatpush.bf16.msra.mxu0 %v1475
  %1493 = vmatpush.bf16.msra.mxu0 %v1474
  %1494 = vmatpush.bf16.msra.mxu0 %v1473
  %1495 = vmatpush.bf16.msra.mxu0 %v1472
  %1496 = vmatmul.bf16.gmra.mxu0 %v1415
  %v1497 = vpop.f32.mrf.mxu0
  %v1498 = vadd.f32 0.0, %v1497
  %v1499 = vpop.f32.mrf.mxu0
  %v1500 = vadd.f32 0.0, %v1499
  %1501 = vmatmul.bf16.gmra.mxu0 %v1416
  %v1502 = vpop.f32.mrf.mxu0
  %v1503 = vadd.f32 0.0, %v1502
  %v1504 = vpop.f32.mrf.mxu0
  %v1505 = vadd.f32 0.0, %v1504
  %1506 = vmatmul.bf16.gmra.mxu0 %v1417
  %v1507 = vpop.f32.mrf.mxu0
  %v1508 = vadd.f32 0.0, %v1507
  %v1509 = vpop.f32.mrf.mxu0
  %v1510 = vadd.f32 0.0, %v1509
  %1511 = vmatmul.bf16.gmra.mxu0 %v1418
  %v1512 = vpop.f32.mrf.mxu0
  %v1513 = vadd.f32 0.0, %v1512
  %v1514 = vpop.f32.mrf.mxu0
  %v1515 = vadd.f32 0.0, %v1514
  %1516 = vmatmul.bf16.gmra.mxu0 %v1419
  %v1517 = vpop.f32.mrf.mxu0
  %v1518 = vadd.f32 0.0, %v1517
  %v1519 = vpop.f32.mrf.mxu0
  %v1520 = vadd.f32 0.0, %v1519
  %1521 = vmatmul.bf16.gmra.mxu0 %v1420
  %v1522 = vpop.f32.mrf.mxu0
  %v1523 = vadd.f32 0.0, %v1522
  %v1524 = vpop.f32.mrf.mxu0
  %v1525 = vadd.f32 0.0, %v1524
  %1526 = vmatmul.bf16.gmra.mxu0 %v1421
  %v1527 = vpop.f32.mrf.mxu0
  %v1528 = vadd.f32 0.0, %v1527
  %v1529 = vpop.f32.mrf.mxu0
  %v1530 = vadd.f32 0.0, %v1529
  %1531 = vmatmul.bf16.gmra.mxu0 %v1422
  %v1532 = vpop.f32.mrf.mxu0
  %v1533 = vadd.f32 0.0, %v1532
  %v1534 = vpop.f32.mrf.mxu0
  %v1535 = vadd.f32 0.0, %v1534
  %1536 = vdwg.mxu0
  %v1537 = vadd.f32 %v1360, %v1498
  %v1538 = vadd.f32 %v1362, %v1500
  %v1539 = vadd.f32 %v1365, %v1503
  %v1540 = vadd.f32 %v1367, %v1505
  %v1541 = vadd.f32 %v1370, %v1508
  %v1542 = vadd.f32 %v1372, %v1510
  %v1543 = vadd.f32 %v1375, %v1513
  %v1544 = vadd.f32 %v1377, %v1515
  %v1545 = vadd.f32 %v1380, %v1518
  %v1546 = vadd.f32 %v1382, %v1520
  %v1547 = vadd.f32 %v1385, %v1523
  %v1548 = vadd.f32 %v1387, %v1525
  %v1549 = vadd.f32 %v1390, %v1528
  %v1550 = vadd.f32 %v1392, %v1530
  %v1551 = vadd.f32 %v1395, %v1533
  %v1552 = vadd.f32 %v1397, %v1535
  %v1553 = vld [vmem:[%s1030] sm:$0xff]
  %v1554 = vld [vmem:[%s1030 + $0x10] sm:$0xff]
  %v1555 = vld [vmem:[%s1030 + $0x20] sm:$0xff]
  %v1556 = vld [vmem:[%s1030 + $0x30] sm:$0xff]
  %v1557 = vld [vmem:[%s1030 + $0x40] sm:$0xff]
  %v1558 = vld [vmem:[%s1030 + $0x50] sm:$0xff]
  %v1559 = vld [vmem:[%s1030 + $0x60] sm:$0xff]
  %v1560 = vld [vmem:[%s1030 + $0x70] sm:$0xff]
  %v1561 = vld [vmem:[%s1030 + $0xa0] sm:$0xff]
  %v1562 = vld [vmem:[%s1030 + $0xb0] sm:$0xff]
  %v1563 = vld [vmem:[%s1030 + $0xc0] sm:$0xff]
  %v1564 = vld [vmem:[%s1030 + $0xd0] sm:$0xff]
  %v1565 = vld [vmem:[%s1030 + $0xe0] sm:$0xff]
  %v1566 = vld [vmem:[%s1030 + $0xf0] sm:$0xff]
  %v1567 = vld [vmem:[%s1030 + $0x100] sm:$0xff]
  %v1568 = vld [vmem:[%s1030 + $0x110] sm:$0xff]
  %v1569 = vpack.c.bf16 %v1554, %v1553
  %v1570 = vpack.c.bf16 %v1556, %v1555
  %v1571 = vpack.c.bf16 %v1558, %v1557
  %v1572 = vpack.c.bf16 %v1560, %v1559
  %v1573 = vpack.c.bf16 %v1562, %v1561
  %v1574 = vpack.c.bf16 %v1564, %v1563
  %v1575 = vpack.c.bf16 %v1566, %v1565
  %v1576 = vpack.c.bf16 %v1568, %v1567
  %s1577 = scalar_lea.vmem [#allocation6], 192
  %v1578 = vld [vmem:[%s1577] sm:$0xf]
  %v1579 = vld [vmem:[%s1577 + $0x4] sm:$0xf]
  %v1580 = vld [vmem:[%s1577 + $0x8] sm:$0xf]
  %v1581 = vld [vmem:[%s1577 + $0xc] sm:$0xf]
  %v1582 = vld [vmem:[%s1577 + $0x10] sm:$0xf]
  %v1583 = vld [vmem:[%s1577 + $0x14] sm:$0xf]
  %v1584 = vld [vmem:[%s1577 + $0x18] sm:$0xf]
  %v1585 = vld [vmem:[%s1577 + $0x1c] sm:$0xf]
  %v1586 = vld [vmem:[%s1577 + $0x20] sm:$0xf]
  %v1587 = vld [vmem:[%s1577 + $0x24] sm:$0xf]
  %v1588 = vld [vmem:[%s1577 + $0x28] sm:$0xf]
  %v1589 = vld [vmem:[%s1577 + $0x2c] sm:$0xf]
  %v1590 = vld [vmem:[%s1577 + $0x30] sm:$0xf]
  %v1591 = vld [vmem:[%s1577 + $0x34] sm:$0xf]
  %v1592 = vld [vmem:[%s1577 + $0x38] sm:$0xf]
  %v1593 = vld [vmem:[%s1577 + $0x3c] sm:$0xf]
  %v1610 = vunpack.c.l.b16 %v1578
  %v1611 = vunpack.c.l.b16 %v1579
  %v1612 = vunpack.c.l.b16 %v1580
  %v1613 = vunpack.c.l.b16 %v1581
  %v1614 = vunpack.c.l.b16 %v1582
  %v1615 = vunpack.c.l.b16 %v1583
  %v1616 = vunpack.c.l.b16 %v1584
  %v1617 = vunpack.c.l.b16 %v1585
  %v1618 = vunpack.c.l.b16 %v1586
  %v1619 = vunpack.c.l.b16 %v1587
  %v1620 = vunpack.c.l.b16 %v1588
  %v1621 = vunpack.c.l.b16 %v1589
  %v1622 = vunpack.c.l.b16 %v1590
  %v1623 = vunpack.c.l.b16 %v1591
  %v1624 = vunpack.c.l.b16 %v1592
  %v1625 = vunpack.c.l.b16 %v1593
  %v1626 = vpack.c.b16 %v1611, %v1610
  %v1627 = vpack.c.b16 %v1613, %v1612
  %v1628 = vpack.c.b16 %v1615, %v1614
  %v1629 = vpack.c.b16 %v1617, %v1616
  %v1630 = vpack.c.b16 %v1619, %v1618
  %v1631 = vpack.c.b16 %v1621, %v1620
  %v1632 = vpack.c.b16 %v1623, %v1622
  %v1633 = vpack.c.b16 %v1625, %v1624
  %1642 = vmatpush.bf16.msra.mxu0 %v1633
  %1643 = vmatpush.bf16.msra.mxu0 %v1632
  %1644 = vmatpush.bf16.msra.mxu0 %v1631
  %1645 = vmatpush.bf16.msra.mxu0 %v1630
  %1646 = vmatpush.bf16.msra.mxu0 %v1629
  %1647 = vmatpush.bf16.msra.mxu0 %v1628
  %1648 = vmatpush.bf16.msra.mxu0 %v1627
  %1649 = vmatpush.bf16.msra.mxu0 %v1626
  %1650 = vmatmul.bf16.gmra.mxu0 %v1569
  %v1651 = vpop.f32.mrf.mxu0
  %v1652 = vadd.f32 0.0, %v1651
  %v1653 = vpop.f32.mrf.mxu0
  %v1654 = vadd.f32 0.0, %v1653
  %1655 = vmatmul.bf16.gmra.mxu0 %v1570
  %v1656 = vpop.f32.mrf.mxu0
  %v1657 = vadd.f32 0.0, %v1656
  %v1658 = vpop.f32.mrf.mxu0
  %v1659 = vadd.f32 0.0, %v1658
  %1660 = vmatmul.bf16.gmra.mxu0 %v1571
  %v1661 = vpop.f32.mrf.mxu0
  %v1662 = vadd.f32 0.0, %v1661
  %v1663 = vpop.f32.mrf.mxu0
  %v1664 = vadd.f32 0.0, %v1663
  %1665 = vmatmul.bf16.gmra.mxu0 %v1572
  %v1666 = vpop.f32.mrf.mxu0
  %v1667 = vadd.f32 0.0, %v1666
  %v1668 = vpop.f32.mrf.mxu0
  %v1669 = vadd.f32 0.0, %v1668
  %1670 = vmatmul.bf16.gmra.mxu0 %v1573
  %v1671 = vpop.f32.mrf.mxu0
  %v1672 = vadd.f32 0.0, %v1671
  %v1673 = vpop.f32.mrf.mxu0
  %v1674 = vadd.f32 0.0, %v1673
  %1675 = vmatmul.bf16.gmra.mxu0 %v1574
  %v1676 = vpop.f32.mrf.mxu0
  %v1677 = vadd.f32 0.0, %v1676
  %v1678 = vpop.f32.mrf.mxu0
  %v1679 = vadd.f32 0.0, %v1678
  %1680 = vmatmul.bf16.gmra.mxu0 %v1575
  %v1681 = vpop.f32.mrf.mxu0
  %v1682 = vadd.f32 0.0, %v1681
  %v1683 = vpop.f32.mrf.mxu0
  %v1684 = vadd.f32 0.0, %v1683
  %1685 = vmatmul.bf16.gmra.mxu0 %v1576
  %v1686 = vpop.f32.mrf.mxu0
  %v1687 = vadd.f32 0.0, %v1686
  %v1688 = vpop.f32.mrf.mxu0
  %v1689 = vadd.f32 0.0, %v1688
  %1690 = vdwg.mxu0
  %v1691 = vadd.f32 %v1537, %v1652
  %v1692 = vadd.f32 %v1538, %v1654
  %v1693 = vadd.f32 %v1539, %v1657
  %v1694 = vadd.f32 %v1540, %v1659
  %v1695 = vadd.f32 %v1541, %v1662
  %v1696 = vadd.f32 %v1542, %v1664
  %v1697 = vadd.f32 %v1543, %v1667
  %v1698 = vadd.f32 %v1544, %v1669
  %v1699 = vadd.f32 %v1545, %v1672
  %v1700 = vadd.f32 %v1546, %v1674
  %v1701 = vadd.f32 %v1547, %v1677
  %v1702 = vadd.f32 %v1548, %v1679
  %v1703 = vadd.f32 %v1549, %v1682
  %v1704 = vadd.f32 %v1550, %v1684
  %v1705 = vadd.f32 %v1551, %v1687
  %v1706 = vadd.f32 %v1552, %v1689
  %v1707 = vld [vmem:[%s1030 + $0x1] sm:$0xff]
  %v1708 = vld [vmem:[%s1030 + $0x11] sm:$0xff]
  %v1709 = vld [vmem:[%s1030 + $0x21] sm:$0xff]
  %v1710 = vld [vmem:[%s1030 + $0x31] sm:$0xff]
  %v1711 = vld [vmem:[%s1030 + $0x41] sm:$0xff]
  %v1712 = vld [vmem:[%s1030 + $0x51] sm:$0xff]
  %v1713 = vld [vmem:[%s1030 + $0x61] sm:$0xff]
  %v1714 = vld [vmem:[%s1030 + $0x71] sm:$0xff]
  %v1715 = vld [vmem:[%s1030 + $0xa1] sm:$0xff]
  %v1716 = vld [vmem:[%s1030 + $0xb1] sm:$0xff]
  %v1717 = vld [vmem:[%s1030 + $0xc1] sm:$0xff]
  %v1718 = vld [vmem:[%s1030 + $0xd1] sm:$0xff]
  %v1719 = vld [vmem:[%s1030 + $0xe1] sm:$0xff]
  %v1720 = vld [vmem:[%s1030 + $0xf1] sm:$0xff]
  %v1721 = vld [vmem:[%s1030 + $0x101] sm:$0xff]
  %v1722 = vld [vmem:[%s1030 + $0x111] sm:$0xff]
  %v1723 = vpack.c.bf16 %v1708, %v1707
  %v1724 = vpack.c.bf16 %v1710, %v1709
  %v1725 = vpack.c.bf16 %v1712, %v1711
  %v1726 = vpack.c.bf16 %v1714, %v1713
  %v1727 = vpack.c.bf16 %v1716, %v1715
  %v1728 = vpack.c.bf16 %v1718, %v1717
  %v1729 = vpack.c.bf16 %v1720, %v1719
  %v1730 = vpack.c.bf16 %v1722, %v1721
  %s1731 = scalar_lea.vmem [#allocation6], 256
  %v1732 = vld [vmem:[%s1731] sm:$0xf]
  %v1733 = vld [vmem:[%s1731 + $0x4] sm:$0xf]
  %v1734 = vld [vmem:[%s1731 + $0x8] sm:$0xf]
  %v1735 = vld [vmem:[%s1731 + $0xc] sm:$0xf]
  %v1736 = vld [vmem:[%s1731 + $0x10] sm:$0xf]
  %v1737 = vld [vmem:[%s1731 + $0x14] sm:$0xf]
  %v1738 = vld [vmem:[%s1731 + $0x18] sm:$0xf]
  %v1739 = vld [vmem:[%s1731 + $0x1c] sm:$0xf]
  %v1740 = vld [vmem:[%s1731 + $0x20] sm:$0xf]
  %v1741 = vld [vmem:[%s1731 + $0x24] sm:$0xf]
  %v1742 = vld [vmem:[%s1731 + $0x28] sm:$0xf]
  %v1743 = vld [vmem:[%s1731 + $0x2c] sm:$0xf]
  %v1744 = vld [vmem:[%s1731 + $0x30] sm:$0xf]
  %v1745 = vld [vmem:[%s1731 + $0x34] sm:$0xf]
  %v1746 = vld [vmem:[%s1731 + $0x38] sm:$0xf]
  %v1747 = vld [vmem:[%s1731 + $0x3c] sm:$0xf]
  %v1764 = vunpack.c.l.b16 %v1732
  %v1765 = vunpack.c.l.b16 %v1733
  %v1766 = vunpack.c.l.b16 %v1734
  %v1767 = vunpack.c.l.b16 %v1735
  %v1768 = vunpack.c.l.b16 %v1736
  %v1769 = vunpack.c.l.b16 %v1737
  %v1770 = vunpack.c.l.b16 %v1738
  %v1771 = vunpack.c.l.b16 %v1739
  %v1772 = vunpack.c.l.b16 %v1740
  %v1773 = vunpack.c.l.b16 %v1741
  %v1774 = vunpack.c.l.b16 %v1742
  %v1775 = vunpack.c.l.b16 %v1743
  %v1776 = vunpack.c.l.b16 %v1744
  %v1777 = vunpack.c.l.b16 %v1745
  %v1778 = vunpack.c.l.b16 %v1746
  %v1779 = vunpack.c.l.b16 %v1747
  %v1780 = vpack.c.b16 %v1765, %v1764
  %v1781 = vpack.c.b16 %v1767, %v1766
  %v1782 = vpack.c.b16 %v1769, %v1768
  %v1783 = vpack.c.b16 %v1771, %v1770
  %v1784 = vpack.c.b16 %v1773, %v1772
  %v1785 = vpack.c.b16 %v1775, %v1774
  %v1786 = vpack.c.b16 %v1777, %v1776
  %v1787 = vpack.c.b16 %v1779, %v1778
  %1796 = vmatpush.bf16.msra.mxu0 %v1787
  %1797 = vmatpush.bf16.msra.mxu0 %v1786
  %1798 = vmatpush.bf16.msra.mxu0 %v1785
  %1799 = vmatpush.bf16.msra.mxu0 %v1784
  %1800 = vmatpush.bf16.msra.mxu0 %v1783
  %1801 = vmatpush.bf16.msra.mxu0 %v1782
  %1802 = vmatpush.bf16.msra.mxu0 %v1781
  %1803 = vmatpush.bf16.msra.mxu0 %v1780
  %1804 = vmatmul.bf16.gmra.mxu0 %v1723
  %v1805 = vpop.f32.mrf.mxu0
  %v1806 = vadd.f32 0.0, %v1805
  %v1807 = vpop.f32.mrf.mxu0
  %v1808 = vadd.f32 0.0, %v1807
  %1809 = vmatmul.bf16.gmra.mxu0 %v1724
  %v1810 = vpop.f32.mrf.mxu0
  %v1811 = vadd.f32 0.0, %v1810
  %v1812 = vpop.f32.mrf.mxu0
  %v1813 = vadd.f32 0.0, %v1812
  %1814 = vmatmul.bf16.gmra.mxu0 %v1725
  %v1815 = vpop.f32.mrf.mxu0
  %v1816 = vadd.f32 0.0, %v1815
  %v1817 = vpop.f32.mrf.mxu0
  %v1818 = vadd.f32 0.0, %v1817
  %1819 = vmatmul.bf16.gmra.mxu0 %v1726
  %v1820 = vpop.f32.mrf.mxu0
  %v1821 = vadd.f32 0.0, %v1820
  %v1822 = vpop.f32.mrf.mxu0
  %v1823 = vadd.f32 0.0, %v1822
  %1824 = vmatmul.bf16.gmra.mxu0 %v1727
  %v1825 = vpop.f32.mrf.mxu0
  %v1826 = vadd.f32 0.0, %v1825
  %v1827 = vpop.f32.mrf.mxu0
  %v1828 = vadd.f32 0.0, %v1827
  %1829 = vmatmul.bf16.gmra.mxu0 %v1728
  %v1830 = vpop.f32.mrf.mxu0
  %v1831 = vadd.f32 0.0, %v1830
  %v1832 = vpop.f32.mrf.mxu0
  %v1833 = vadd.f32 0.0, %v1832
  %1834 = vmatmul.bf16.gmra.mxu0 %v1729
  %v1835 = vpop.f32.mrf.mxu0
  %v1836 = vadd.f32 0.0, %v1835
  %v1837 = vpop.f32.mrf.mxu0
  %v1838 = vadd.f32 0.0, %v1837
  %1839 = vmatmul.bf16.gmra.mxu0 %v1730
  %v1840 = vpop.f32.mrf.mxu0
  %v1841 = vadd.f32 0.0, %v1840
  %v1842 = vpop.f32.mrf.mxu0
  %v1843 = vadd.f32 0.0, %v1842
  %1844 = vdwg.mxu0
  %v1845 = vadd.f32 %v1691, %v1806
  %v1846 = vadd.f32 %v1692, %v1808
  %v1847 = vadd.f32 %v1693, %v1811
  %v1848 = vadd.f32 %v1694, %v1813
  %v1849 = vadd.f32 %v1695, %v1816
  %v1850 = vadd.f32 %v1696, %v1818
  %v1851 = vadd.f32 %v1697, %v1821
  %v1852 = vadd.f32 %v1698, %v1823
  %v1853 = vadd.f32 %v1699, %v1826
  %v1854 = vadd.f32 %v1700, %v1828
  %v1855 = vadd.f32 %v1701, %v1831
  %v1856 = vadd.f32 %v1702, %v1833
  %v1857 = vadd.f32 %v1703, %v1836
  %v1858 = vadd.f32 %v1704, %v1838
  %v1859 = vadd.f32 %v1705, %v1841
  %v1860 = vadd.f32 %v1706, %v1843
  %v1861 = vld [vmem:[%s1030 + $0x2] sm:$0xff]
  %v1862 = vld [vmem:[%s1030 + $0x12] sm:$0xff]
  %v1863 = vld [vmem:[%s1030 + $0x22] sm:$0xff]
  %v1864 = vld [vmem:[%s1030 + $0x32] sm:$0xff]
  %v1865 = vld [vmem:[%s1030 + $0x42] sm:$0xff]
  %v1866 = vld [vmem:[%s1030 + $0x52] sm:$0xff]
  %v1867 = vld [vmem:[%s1030 + $0x62] sm:$0xff]
  %v1868 = vld [vmem:[%s1030 + $0x72] sm:$0xff]
  %v1869 = vld [vmem:[%s1030 + $0xa2] sm:$0xff]
  %v1870 = vld [vmem:[%s1030 + $0xb2] sm:$0xff]
  %v1871 = vld [vmem:[%s1030 + $0xc2] sm:$0xff]
  %v1872 = vld [vmem:[%s1030 + $0xd2] sm:$0xff]
  %v1873 = vld [vmem:[%s1030 + $0xe2] sm:$0xff]
  %v1874 = vld [vmem:[%s1030 + $0xf2] sm:$0xff]
  %v1875 = vld [vmem:[%s1030 + $0x102] sm:$0xff]
  %v1876 = vld [vmem:[%s1030 + $0x112] sm:$0xff]
  %v1877 = vpack.c.bf16 %v1862, %v1861
  %v1878 = vpack.c.bf16 %v1864, %v1863
  %v1879 = vpack.c.bf16 %v1866, %v1865
  %v1880 = vpack.c.bf16 %v1868, %v1867
  %v1881 = vpack.c.bf16 %v1870, %v1869
  %v1882 = vpack.c.bf16 %v1872, %v1871
  %v1883 = vpack.c.bf16 %v1874, %v1873
  %v1884 = vpack.c.bf16 %v1876, %v1875
  %s1885 = scalar_lea.vmem [#allocation6], 320
  %v1886 = vld [vmem:[%s1885] sm:$0xf]
  %v1887 = vld [vmem:[%s1885 + $0x4] sm:$0xf]
  %v1888 = vld [vmem:[%s1885 + $0x8] sm:$0xf]
  %v1889 = vld [vmem:[%s1885 + $0xc] sm:$0xf]
  %v1890 = vld [vmem:[%s1885 + $0x10] sm:$0xf]
  %v1891 = vld [vmem:[%s1885 + $0x14] sm:$0xf]
  %v1892 = vld [vmem:[%s1885 + $0x18] sm:$0xf]
  %v1893 = vld [vmem:[%s1885 + $0x1c] sm:$0xf]
  %v1894 = vld [vmem:[%s1885 + $0x20] sm:$0xf]
  %v1895 = vld [vmem:[%s1885 + $0x24] sm:$0xf]
  %v1896 = vld [vmem:[%s1885 + $0x28] sm:$0xf]
  %v1897 = vld [vmem:[%s1885 + $0x2c] sm:$0xf]
  %v1898 = vld [vmem:[%s1885 + $0x30] sm:$0xf]
  %v1899 = vld [vmem:[%s1885 + $0x34] sm:$0xf]
  %v1900 = vld [vmem:[%s1885 + $0x38] sm:$0xf]
  %v1901 = vld [vmem:[%s1885 + $0x3c] sm:$0xf]
  %v1918 = vunpack.c.l.b16 %v1886
  %v1919 = vunpack.c.l.b16 %v1887
  %v1920 = vunpack.c.l.b16 %v1888
  %v1921 = vunpack.c.l.b16 %v1889
  %v1922 = vunpack.c.l.b16 %v1890
  %v1923 = vunpack.c.l.b16 %v1891
  %v1924 = vunpack.c.l.b16 %v1892
  %v1925 = vunpack.c.l.b16 %v1893
  %v1926 = vunpack.c.l.b16 %v1894
  %v1927 = vunpack.c.l.b16 %v1895
  %v1928 = vunpack.c.l.b16 %v1896
  %v1929 = vunpack.c.l.b16 %v1897
  %v1930 = vunpack.c.l.b16 %v1898
  %v1931 = vunpack.c.l.b16 %v1899
  %v1932 = vunpack.c.l.b16 %v1900
  %v1933 = vunpack.c.l.b16 %v1901
  %v1934 = vpack.c.b16 %v1919, %v1918
  %v1935 = vpack.c.b16 %v1921, %v1920
  %v1936 = vpack.c.b16 %v1923, %v1922
  %v1937 = vpack.c.b16 %v1925, %v1924
  %v1938 = vpack.c.b16 %v1927, %v1926
  %v1939 = vpack.c.b16 %v1929, %v1928
  %v1940 = vpack.c.b16 %v1931, %v1930
  %v1941 = vpack.c.b16 %v1933, %v1932
  %1950 = vmatpush.bf16.msra.mxu0 %v1941
  %1951 = vmatpush.bf16.msra.mxu0 %v1940
  %1952 = vmatpush.bf16.msra.mxu0 %v1939
  %1953 = vmatpush.bf16.msra.mxu0 %v1938
  %1954 = vmatpush.bf16.msra.mxu0 %v1937
  %1955 = vmatpush.bf16.msra.mxu0 %v1936
  %1956 = vmatpush.bf16.msra.mxu0 %v1935
  %1957 = vmatpush.bf16.msra.mxu0 %v1934
  %1958 = vmatmul.bf16.gmra.mxu0 %v1877
  %v1959 = vpop.f32.mrf.mxu0
  %v1960 = vadd.f32 0.0, %v1959
  %v1961 = vpop.f32.mrf.mxu0
  %v1962 = vadd.f32 0.0, %v1961
  %1963 = vmatmul.bf16.gmra.mxu0 %v1878
  %v1964 = vpop.f32.mrf.mxu0
  %v1965 = vadd.f32 0.0, %v1964
  %v1966 = vpop.f32.mrf.mxu0
  %v1967 = vadd.f32 0.0, %v1966
  %1968 = vmatmul.bf16.gmra.mxu0 %v1879
  %v1969 = vpop.f32.mrf.mxu0
  %v1970 = vadd.f32 0.0, %v1969
  %v1971 = vpop.f32.mrf.mxu0
  %v1972 = vadd.f32 0.0, %v1971
  %1973 = vmatmul.bf16.gmra.mxu0 %v1880
  %v1974 = vpop.f32.mrf.mxu0
  %v1975 = vadd.f32 0.0, %v1974
  %v1976 = vpop.f32.mrf.mxu0
  %v1977 = vadd.f32 0.0, %v1976
  %1978 = vmatmul.bf16.gmra.mxu0 %v1881
  %v1979 = vpop.f32.mrf.mxu0
  %v1980 = vadd.f32 0.0, %v1979
  %v1981 = vpop.f32.mrf.mxu0
  %v1982 = vadd.f32 0.0, %v1981
  %1983 = vmatmul.bf16.gmra.mxu0 %v1882
  %v1984 = vpop.f32.mrf.mxu0
  %v1985 = vadd.f32 0.0, %v1984
  %v1986 = vpop.f32.mrf.mxu0
  %v1987 = vadd.f32 0.0, %v1986
  %1988 = vmatmul.bf16.gmra.mxu0 %v1883
  %v1989 = vpop.f32.mrf.mxu0
  %v1990 = vadd.f32 0.0, %v1989
  %v1991 = vpop.f32.mrf.mxu0
  %v1992 = vadd.f32 0.0, %v1991
  %1993 = vmatmul.bf16.gmra.mxu0 %v1884
  %v1994 = vpop.f32.mrf.mxu0
  %v1995 = vadd.f32 0.0, %v1994
  %v1996 = vpop.f32.mrf.mxu0
  %v1997 = vadd.f32 0.0, %v1996
  %1998 = vdwg.mxu0
  %v1999 = vadd.f32 %v1845, %v1960
  %v2000 = vadd.f32 %v1846, %v1962
  %v2001 = vadd.f32 %v1847, %v1965
  %v2002 = vadd.f32 %v1848, %v1967
  %v2003 = vadd.f32 %v1849, %v1970
  %v2004 = vadd.f32 %v1850, %v1972
  %v2005 = vadd.f32 %v1851, %v1975
  %v2006 = vadd.f32 %v1852, %v1977
  %v2007 = vadd.f32 %v1853, %v1980
  %v2008 = vadd.f32 %v1854, %v1982
  %v2009 = vadd.f32 %v1855, %v1985
  %v2010 = vadd.f32 %v1856, %v1987
  %v2011 = vadd.f32 %v1857, %v1990
  %v2012 = vadd.f32 %v1858, %v1992
  %v2013 = vadd.f32 %v1859, %v1995
  %v2014 = vadd.f32 %v1860, %v1997
  %s2015 = scalar_lea.vmem [#allocation3], 32
  %v2016 = vld [vmem:[%s2015] sm:$0xff]
  %v2017 = vld [vmem:[%s2015 + $0x10] sm:$0xff]
  %v2018 = vld [vmem:[%s2015 + $0x20] sm:$0xff]
  %v2019 = vld [vmem:[%s2015 + $0x30] sm:$0xff]
  %v2020 = vld [vmem:[%s2015 + $0x40] sm:$0xff]
  %v2021 = vld [vmem:[%s2015 + $0x50] sm:$0xff]
  %v2022 = vld [vmem:[%s2015 + $0x60] sm:$0xff]
  %v2023 = vld [vmem:[%s2015 + $0x70] sm:$0xff]
  %v2024 = vld [vmem:[%s2015 + $0xa0] sm:$0xff]
  %v2025 = vld [vmem:[%s2015 + $0xb0] sm:$0xff]
  %v2026 = vld [vmem:[%s2015 + $0xc0] sm:$0xff]
  %v2027 = vld [vmem:[%s2015 + $0xd0] sm:$0xff]
  %v2028 = vld [vmem:[%s2015 + $0xe0] sm:$0xff]
  %v2029 = vld [vmem:[%s2015 + $0xf0] sm:$0xff]
  %v2030 = vld [vmem:[%s2015 + $0x100] sm:$0xff]
  %v2031 = vld [vmem:[%s2015 + $0x110] sm:$0xff]
  %v2032 = vpack.c.bf16 %v2017, %v2016
  %v2033 = vpack.c.bf16 %v2019, %v2018
  %v2034 = vpack.c.bf16 %v2021, %v2020
  %v2035 = vpack.c.bf16 %v2023, %v2022
  %v2036 = vpack.c.bf16 %v2025, %v2024
  %v2037 = vpack.c.bf16 %v2027, %v2026
  %v2038 = vpack.c.bf16 %v2029, %v2028
  %v2039 = vpack.c.bf16 %v2031, %v2030
  %s2040 = scalar_lea.vmem [#allocation6], 384
  %v2041 = vld [vmem:[%s2040] sm:$0xf]
  %v2042 = vld [vmem:[%s2040 + $0x4] sm:$0xf]
  %v2043 = vld [vmem:[%s2040 + $0x8] sm:$0xf]
  %v2044 = vld [vmem:[%s2040 + $0xc] sm:$0xf]
  %v2045 = vld [vmem:[%s2040 + $0x10] sm:$0xf]
  %v2046 = vld [vmem:[%s2040 + $0x14] sm:$0xf]
  %v2047 = vld [vmem:[%s2040 + $0x18] sm:$0xf]
  %v2048 = vld [vmem:[%s2040 + $0x1c] sm:$0xf]
  %v2049 = vld [vmem:[%s2040 + $0x20] sm:$0xf]
  %v2050 = vld [vmem:[%s2040 + $0x24] sm:$0xf]
  %v2051 = vld [vmem:[%s2040 + $0x28] sm:$0xf]
  %v2052 = vld [vmem:[%s2040 + $0x2c] sm:$0xf]
  %v2053 = vld [vmem:[%s2040 + $0x30] sm:$0xf]
  %v2054 = vld [vmem:[%s2040 + $0x34] sm:$0xf]
  %v2055 = vld [vmem:[%s2040 + $0x38] sm:$0xf]
  %v2056 = vld [vmem:[%s2040 + $0x3c] sm:$0xf]
  %v2073 = vunpack.c.l.b16 %v2041
  %v2074 = vunpack.c.l.b16 %v2042
  %v2075 = vunpack.c.l.b16 %v2043
  %v2076 = vunpack.c.l.b16 %v2044
  %v2077 = vunpack.c.l.b16 %v2045
  %v2078 = vunpack.c.l.b16 %v2046
  %v2079 = vunpack.c.l.b16 %v2047
  %v2080 = vunpack.c.l.b16 %v2048
  %v2081 = vunpack.c.l.b16 %v2049
  %v2082 = vunpack.c.l.b16 %v2050
  %v2083 = vunpack.c.l.b16 %v2051
  %v2084 = vunpack.c.l.b16 %v2052
  %v2085 = vunpack.c.l.b16 %v2053
  %v2086 = vunpack.c.l.b16 %v2054
  %v2087 = vunpack.c.l.b16 %v2055
  %v2088 = vunpack.c.l.b16 %v2056
  %v2089 = vpack.c.b16 %v2074, %v2073
  %v2090 = vpack.c.b16 %v2076, %v2075
  %v2091 = vpack.c.b16 %v2078, %v2077
  %v2092 = vpack.c.b16 %v2080, %v2079
  %v2093 = vpack.c.b16 %v2082, %v2081
  %v2094 = vpack.c.b16 %v2084, %v2083
  %v2095 = vpack.c.b16 %v2086, %v2085
  %v2096 = vpack.c.b16 %v2088, %v2087
  %2105 = vmatpush.bf16.msra.mxu0 %v2096
  %2106 = vmatpush.bf16.msra.mxu0 %v2095
  %2107 = vmatpush.bf16.msra.mxu0 %v2094
  %2108 = vmatpush.bf16.msra.mxu0 %v2093
  %2109 = vmatpush.bf16.msra.mxu0 %v2092
  %2110 = vmatpush.bf16.msra.mxu0 %v2091
  %2111 = vmatpush.bf16.msra.mxu0 %v2090
  %2112 = vmatpush.bf16.msra.mxu0 %v2089
  %2113 = vmatmul.bf16.gmra.mxu0 %v2032
  %v2114 = vpop.f32.mrf.mxu0
  %v2115 = vadd.f32 0.0, %v2114
  %v2116 = vpop.f32.mrf.mxu0
  %v2117 = vadd.f32 0.0, %v2116
  %2118 = vmatmul.bf16.gmra.mxu0 %v2033
  %v2119 = vpop.f32.mrf.mxu0
  %v2120 = vadd.f32 0.0, %v2119
  %v2121 = vpop.f32.mrf.mxu0
  %v2122 = vadd.f32 0.0, %v2121
  %2123 = vmatmul.bf16.gmra.mxu0 %v2034
  %v2124 = vpop.f32.mrf.mxu0
  %v2125 = vadd.f32 0.0, %v2124
  %v2126 = vpop.f32.mrf.mxu0
  %v2127 = vadd.f32 0.0, %v2126
  %2128 = vmatmul.bf16.gmra.mxu0 %v2035
  %v2129 = vpop.f32.mrf.mxu0
  %v2130 = vadd.f32 0.0, %v2129
  %v2131 = vpop.f32.mrf.mxu0
  %v2132 = vadd.f32 0.0, %v2131
  %2133 = vmatmul.bf16.gmra.mxu0 %v2036
  %v2134 = vpop.f32.mrf.mxu0
  %v2135 = vadd.f32 0.0, %v2134
  %v2136 = vpop.f32.mrf.mxu0
  %v2137 = vadd.f32 0.0, %v2136
  %2138 = vmatmul.bf16.gmra.mxu0 %v2037
  %v2139 = vpop.f32.mrf.mxu0
  %v2140 = vadd.f32 0.0, %v2139
  %v2141 = vpop.f32.mrf.mxu0
  %v2142 = vadd.f32 0.0, %v2141
  %2143 = vmatmul.bf16.gmra.mxu0 %v2038
  %v2144 = vpop.f32.mrf.mxu0
  %v2145 = vadd.f32 0.0, %v2144
  %v2146 = vpop.f32.mrf.mxu0
  %v2147 = vadd.f32 0.0, %v2146
  %2148 = vmatmul.bf16.gmra.mxu0 %v2039
  %v2149 = vpop.f32.mrf.mxu0
  %v2150 = vadd.f32 0.0, %v2149
  %v2151 = vpop.f32.mrf.mxu0
  %v2152 = vadd.f32 0.0, %v2151
  %2153 = vdwg.mxu0
  %v2154 = vadd.f32 %v1999, %v2115
  %v2155 = vadd.f32 %v2000, %v2117
  %v2156 = vadd.f32 %v2001, %v2120
  %v2157 = vadd.f32 %v2002, %v2122
  %v2158 = vadd.f32 %v2003, %v2125
  %v2159 = vadd.f32 %v2004, %v2127
  %v2160 = vadd.f32 %v2005, %v2130
  %v2161 = vadd.f32 %v2006, %v2132
  %v2162 = vadd.f32 %v2007, %v2135
  %v2163 = vadd.f32 %v2008, %v2137
  %v2164 = vadd.f32 %v2009, %v2140
  %v2165 = vadd.f32 %v2010, %v2142
  %v2166 = vadd.f32 %v2011, %v2145
  %v2167 = vadd.f32 %v2012, %v2147
  %v2168 = vadd.f32 %v2013, %v2150
  %v2169 = vadd.f32 %v2014, %v2152
  %v2170 = vld [vmem:[%s2015 + $0x1] sm:$0xff]
  %v2171 = vld [vmem:[%s2015 + $0x11] sm:$0xff]
  %v2172 = vld [vmem:[%s2015 + $0x21] sm:$0xff]
  %v2173 = vld [vmem:[%s2015 + $0x31] sm:$0xff]
  %v2174 = vld [vmem:[%s2015 + $0x41] sm:$0xff]
  %v2175 = vld [vmem:[%s2015 + $0x51] sm:$0xff]
  %v2176 = vld [vmem:[%s2015 + $0x61] sm:$0xff]
  %v2177 = vld [vmem:[%s2015 + $0x71] sm:$0xff]
  %v2178 = vld [vmem:[%s2015 + $0xa1] sm:$0xff]
  %v2179 = vld [vmem:[%s2015 + $0xb1] sm:$0xff]
  %v2180 = vld [vmem:[%s2015 + $0xc1] sm:$0xff]
  %v2181 = vld [vmem:[%s2015 + $0xd1] sm:$0xff]
  %v2182 = vld [vmem:[%s2015 + $0xe1] sm:$0xff]
  %v2183 = vld [vmem:[%s2015 + $0xf1] sm:$0xff]
  %v2184 = vld [vmem:[%s2015 + $0x101] sm:$0xff]
  %v2185 = vld [vmem:[%s2015 + $0x111] sm:$0xff]
  %v2186 = vpack.c.bf16 %v2171, %v2170
  %v2187 = vpack.c.bf16 %v2173, %v2172
  %v2188 = vpack.c.bf16 %v2175, %v2174
  %v2189 = vpack.c.bf16 %v2177, %v2176
  %v2190 = vpack.c.bf16 %v2179, %v2178
  %v2191 = vpack.c.bf16 %v2181, %v2180
  %v2192 = vpack.c.bf16 %v2183, %v2182
  %v2193 = vpack.c.bf16 %v2185, %v2184
  %s2194 = scalar_lea.vmem [#allocation6], 448
  %v2195 = vld [vmem:[%s2194] sm:$0xf]
  %v2196 = vld [vmem:[%s2194 + $0x4] sm:$0xf]
  %v2197 = vld [vmem:[%s2194 + $0x8] sm:$0xf]
  %v2198 = vld [vmem:[%s2194 + $0xc] sm:$0xf]
  %v2199 = vld [vmem:[%s2194 + $0x10] sm:$0xf]
  %v2200 = vld [vmem:[%s2194 + $0x14] sm:$0xf]
  %v2201 = vld [vmem:[%s2194 + $0x18] sm:$0xf]
  %v2202 = vld [vmem:[%s2194 + $0x1c] sm:$0xf]
  %v2203 = vld [vmem:[%s2194 + $0x20] sm:$0xf]
  %v2204 = vld [vmem:[%s2194 + $0x24] sm:$0xf]
  %v2205 = vld [vmem:[%s2194 + $0x28] sm:$0xf]
  %v2206 = vld [vmem:[%s2194 + $0x2c] sm:$0xf]
  %v2207 = vld [vmem:[%s2194 + $0x30] sm:$0xf]
  %v2208 = vld [vmem:[%s2194 + $0x34] sm:$0xf]
  %v2209 = vld [vmem:[%s2194 + $0x38] sm:$0xf]
  %v2210 = vld [vmem:[%s2194 + $0x3c] sm:$0xf]
  %v2227 = vunpack.c.l.b16 %v2195
  %v2228 = vunpack.c.l.b16 %v2196
  %v2229 = vunpack.c.l.b16 %v2197
  %v2230 = vunpack.c.l.b16 %v2198
  %v2231 = vunpack.c.l.b16 %v2199
  %v2232 = vunpack.c.l.b16 %v2200
  %v2233 = vunpack.c.l.b16 %v2201
  %v2234 = vunpack.c.l.b16 %v2202
  %v2235 = vunpack.c.l.b16 %v2203
  %v2236 = vunpack.c.l.b16 %v2204
  %v2237 = vunpack.c.l.b16 %v2205
  %v2238 = vunpack.c.l.b16 %v2206
  %v2239 = vunpack.c.l.b16 %v2207
  %v2240 = vunpack.c.l.b16 %v2208
  %v2241 = vunpack.c.l.b16 %v2209
  %v2242 = vunpack.c.l.b16 %v2210
  %v2243 = vpack.c.b16 %v2228, %v2227
  %v2244 = vpack.c.b16 %v2230, %v2229
  %v2245 = vpack.c.b16 %v2232, %v2231
  %v2246 = vpack.c.b16 %v2234, %v2233
  %v2247 = vpack.c.b16 %v2236, %v2235
  %v2248 = vpack.c.b16 %v2238, %v2237
  %v2249 = vpack.c.b16 %v2240, %v2239
  %v2250 = vpack.c.b16 %v2242, %v2241
  %2259 = vmatpush.bf16.msra.mxu0 %v2250
  %2260 = vmatpush.bf16.msra.mxu0 %v2249
  %2261 = vmatpush.bf16.msra.mxu0 %v2248
  %2262 = vmatpush.bf16.msra.mxu0 %v2247
  %2263 = vmatpush.bf16.msra.mxu0 %v2246
  %2264 = vmatpush.bf16.msra.mxu0 %v2245
  %2265 = vmatpush.bf16.msra.mxu0 %v2244
  %2266 = vmatpush.bf16.msra.mxu0 %v2243
  %2267 = vmatmul.bf16.gmra.mxu0 %v2186
  %v2268 = vpop.f32.mrf.mxu0
  %v2269 = vadd.f32 0.0, %v2268
  %v2270 = vpop.f32.mrf.mxu0
  %v2271 = vadd.f32 0.0, %v2270
  %2272 = vmatmul.bf16.gmra.mxu0 %v2187
  %v2273 = vpop.f32.mrf.mxu0
  %v2274 = vadd.f32 0.0, %v2273
  %v2275 = vpop.f32.mrf.mxu0
  %v2276 = vadd.f32 0.0, %v2275
  %2277 = vmatmul.bf16.gmra.mxu0 %v2188
  %v2278 = vpop.f32.mrf.mxu0
  %v2279 = vadd.f32 0.0, %v2278
  %v2280 = vpop.f32.mrf.mxu0
  %v2281 = vadd.f32 0.0, %v2280
  %2282 = vmatmul.bf16.gmra.mxu0 %v2189
  %v2283 = vpop.f32.mrf.mxu0
  %v2284 = vadd.f32 0.0, %v2283
  %v2285 = vpop.f32.mrf.mxu0
  %v2286 = vadd.f32 0.0, %v2285
  %2287 = vmatmul.bf16.gmra.mxu0 %v2190
  %v2288 = vpop.f32.mrf.mxu0
  %v2289 = vadd.f32 0.0, %v2288
  %v2290 = vpop.f32.mrf.mxu0
  %v2291 = vadd.f32 0.0, %v2290
  %2292 = vmatmul.bf16.gmra.mxu0 %v2191
  %v2293 = vpop.f32.mrf.mxu0
  %v2294 = vadd.f32 0.0, %v2293
  %v2295 = vpop.f32.mrf.mxu0
  %v2296 = vadd.f32 0.0, %v2295
  %2297 = vmatmul.bf16.gmra.mxu0 %v2192
  %v2298 = vpop.f32.mrf.mxu0
  %v2299 = vadd.f32 0.0, %v2298
  %v2300 = vpop.f32.mrf.mxu0
  %v2301 = vadd.f32 0.0, %v2300
  %2302 = vmatmul.bf16.gmra.mxu0 %v2193
  %v2303 = vpop.f32.mrf.mxu0
  %v2304 = vadd.f32 0.0, %v2303
  %v2305 = vpop.f32.mrf.mxu0
  %v2306 = vadd.f32 0.0, %v2305
  %2307 = vdwg.mxu0
  %v2308 = vadd.f32 %v2154, %v2269
  %v2309 = vadd.f32 %v2155, %v2271
  %v2310 = vadd.f32 %v2156, %v2274
  %v2311 = vadd.f32 %v2157, %v2276
  %v2312 = vadd.f32 %v2158, %v2279
  %v2313 = vadd.f32 %v2159, %v2281
  %v2314 = vadd.f32 %v2160, %v2284
  %v2315 = vadd.f32 %v2161, %v2286
  %v2316 = vadd.f32 %v2162, %v2289
  %v2317 = vadd.f32 %v2163, %v2291
  %v2318 = vadd.f32 %v2164, %v2294
  %v2319 = vadd.f32 %v2165, %v2296
  %v2320 = vadd.f32 %v2166, %v2299
  %v2321 = vadd.f32 %v2167, %v2301
  %v2322 = vadd.f32 %v2168, %v2304
  %v2323 = vadd.f32 %v2169, %v2306
  %v2324 = vld [vmem:[%s2015 + $0x2] sm:$0xff]
  %v2325 = vld [vmem:[%s2015 + $0x12] sm:$0xff]
  %v2326 = vld [vmem:[%s2015 + $0x22] sm:$0xff]
  %v2327 = vld [vmem:[%s2015 + $0x32] sm:$0xff]
  %v2328 = vld [vmem:[%s2015 + $0x42] sm:$0xff]
  %v2329 = vld [vmem:[%s2015 + $0x52] sm:$0xff]
  %v2330 = vld [vmem:[%s2015 + $0x62] sm:$0xff]
  %v2331 = vld [vmem:[%s2015 + $0x72] sm:$0xff]
  %v2332 = vld [vmem:[%s2015 + $0xa2] sm:$0xff]
  %v2333 = vld [vmem:[%s2015 + $0xb2] sm:$0xff]
  %v2334 = vld [vmem:[%s2015 + $0xc2] sm:$0xff]
  %v2335 = vld [vmem:[%s2015 + $0xd2] sm:$0xff]
  %v2336 = vld [vmem:[%s2015 + $0xe2] sm:$0xff]
  %v2337 = vld [vmem:[%s2015 + $0xf2] sm:$0xff]
  %v2338 = vld [vmem:[%s2015 + $0x102] sm:$0xff]
  %v2339 = vld [vmem:[%s2015 + $0x112] sm:$0xff]
  %v2340 = vpack.c.bf16 %v2325, %v2324
  %v2341 = vpack.c.bf16 %v2327, %v2326
  %v2342 = vpack.c.bf16 %v2329, %v2328
  %v2343 = vpack.c.bf16 %v2331, %v2330
  %v2344 = vpack.c.bf16 %v2333, %v2332
  %v2345 = vpack.c.bf16 %v2335, %v2334
  %v2346 = vpack.c.bf16 %v2337, %v2336
  %v2347 = vpack.c.bf16 %v2339, %v2338
  %s2348 = scalar_lea.vmem [#allocation6], 512
  %v2349 = vld [vmem:[%s2348] sm:$0xf]
  %v2350 = vld [vmem:[%s2348 + $0x4] sm:$0xf]
  %v2351 = vld [vmem:[%s2348 + $0x8] sm:$0xf]
  %v2352 = vld [vmem:[%s2348 + $0xc] sm:$0xf]
  %v2353 = vld [vmem:[%s2348 + $0x10] sm:$0xf]
  %v2354 = vld [vmem:[%s2348 + $0x14] sm:$0xf]
  %v2355 = vld [vmem:[%s2348 + $0x18] sm:$0xf]
  %v2356 = vld [vmem:[%s2348 + $0x1c] sm:$0xf]
  %v2357 = vld [vmem:[%s2348 + $0x20] sm:$0xf]
  %v2358 = vld [vmem:[%s2348 + $0x24] sm:$0xf]
  %v2359 = vld [vmem:[%s2348 + $0x28] sm:$0xf]
  %v2360 = vld [vmem:[%s2348 + $0x2c] sm:$0xf]
  %v2361 = vld [vmem:[%s2348 + $0x30] sm:$0xf]
  %v2362 = vld [vmem:[%s2348 + $0x34] sm:$0xf]
  %v2363 = vld [vmem:[%s2348 + $0x38] sm:$0xf]
  %v2364 = vld [vmem:[%s2348 + $0x3c] sm:$0xf]
  %v2381 = vunpack.c.l.b16 %v2349
  %v2382 = vunpack.c.l.b16 %v2350
  %v2383 = vunpack.c.l.b16 %v2351
  %v2384 = vunpack.c.l.b16 %v2352
  %v2385 = vunpack.c.l.b16 %v2353
  %v2386 = vunpack.c.l.b16 %v2354
  %v2387 = vunpack.c.l.b16 %v2355
  %v2388 = vunpack.c.l.b16 %v2356
  %v2389 = vunpack.c.l.b16 %v2357
  %v2390 = vunpack.c.l.b16 %v2358
  %v2391 = vunpack.c.l.b16 %v2359
  %v2392 = vunpack.c.l.b16 %v2360
  %v2393 = vunpack.c.l.b16 %v2361
  %v2394 = vunpack.c.l.b16 %v2362
  %v2395 = vunpack.c.l.b16 %v2363
  %v2396 = vunpack.c.l.b16 %v2364
  %v2397 = vpack.c.b16 %v2382, %v2381
  %v2398 = vpack.c.b16 %v2384, %v2383
  %v2399 = vpack.c.b16 %v2386, %v2385
  %v2400 = vpack.c.b16 %v2388, %v2387
  %v2401 = vpack.c.b16 %v2390, %v2389
  %v2402 = vpack.c.b16 %v2392, %v2391
  %v2403 = vpack.c.b16 %v2394, %v2393
  %v2404 = vpack.c.b16 %v2396, %v2395
  %2413 = vmatpush.bf16.msra.mxu0 %v2404
  %2414 = vmatpush.bf16.msra.mxu0 %v2403
  %2415 = vmatpush.bf16.msra.mxu0 %v2402
  %2416 = vmatpush.bf16.msra.mxu0 %v2401
  %2417 = vmatpush.bf16.msra.mxu0 %v2400
  %2418 = vmatpush.bf16.msra.mxu0 %v2399
  %2419 = vmatpush.bf16.msra.mxu0 %v2398
  %2420 = vmatpush.bf16.msra.mxu0 %v2397
  %2421 = vmatmul.bf16.gmra.mxu0 %v2340
  %v2422 = vpop.f32.mrf.mxu0
  %v2423 = vadd.f32 0.0, %v2422
  %v2424 = vpop.f32.mrf.mxu0
  %v2425 = vadd.f32 0.0, %v2424
  %2426 = vmatmul.bf16.gmra.mxu0 %v2341
  %v2427 = vpop.f32.mrf.mxu0
  %v2428 = vadd.f32 0.0, %v2427
  %v2429 = vpop.f32.mrf.mxu0
  %v2430 = vadd.f32 0.0, %v2429
  %2431 = vmatmul.bf16.gmra.mxu0 %v2342
  %v2432 = vpop.f32.mrf.mxu0
  %v2433 = vadd.f32 0.0, %v2432
  %v2434 = vpop.f32.mrf.mxu0
  %v2435 = vadd.f32 0.0, %v2434
  %2436 = vmatmul.bf16.gmra.mxu0 %v2343
  %v2437 = vpop.f32.mrf.mxu0
  %v2438 = vadd.f32 0.0, %v2437
  %v2439 = vpop.f32.mrf.mxu0
  %v2440 = vadd.f32 0.0, %v2439
  %2441 = vmatmul.bf16.gmra.mxu0 %v2344
  %v2442 = vpop.f32.mrf.mxu0
  %v2443 = vadd.f32 0.0, %v2442
  %v2444 = vpop.f32.mrf.mxu0
  %v2445 = vadd.f32 0.0, %v2444
  %2446 = vmatmul.bf16.gmra.mxu0 %v2345
  %v2447 = vpop.f32.mrf.mxu0
  %v2448 = vadd.f32 0.0, %v2447
  %v2449 = vpop.f32.mrf.mxu0
  %v2450 = vadd.f32 0.0, %v2449
  %2451 = vmatmul.bf16.gmra.mxu0 %v2346
  %v2452 = vpop.f32.mrf.mxu0
  %v2453 = vadd.f32 0.0, %v2452
  %v2454 = vpop.f32.mrf.mxu0
  %v2455 = vadd.f32 0.0, %v2454
  %2456 = vmatmul.bf16.gmra.mxu0 %v2347
  %v2457 = vpop.f32.mrf.mxu0
  %v2458 = vadd.f32 0.0, %v2457
  %v2459 = vpop.f32.mrf.mxu0
  %v2460 = vadd.f32 0.0, %v2459
  %2461 = vdwg.mxu0
  %v2462 = vadd.f32 %v2308, %v2423
  %v2463 = vadd.f32 %v2309, %v2425
  %v2464 = vadd.f32 %v2310, %v2428
  %v2465 = vadd.f32 %v2311, %v2430
  %v2466 = vadd.f32 %v2312, %v2433
  %v2467 = vadd.f32 %v2313, %v2435
  %v2468 = vadd.f32 %v2314, %v2438
  %v2469 = vadd.f32 %v2315, %v2440
  %v2470 = vadd.f32 %v2316, %v2443
  %v2471 = vadd.f32 %v2317, %v2445
  %v2472 = vadd.f32 %v2318, %v2448
  %v2473 = vadd.f32 %v2319, %v2450
  %v2474 = vadd.f32 %v2320, %v2453
  %v2475 = vadd.f32 %v2321, %v2455
  %v2476 = vadd.f32 %v2322, %v2458
  %v2477 = vadd.f32 %v2323, %v2460
  %v2478 = vld [vmem:[%s6] sm:$0x1]
  %v2480 = vperm.slane %v2478, 0
  %v2482 = vadd.f32 %v2462, %v2480
  %v2483 = vadd.f32 %v2463, %v2480
  %v2484 = vadd.f32 %v2464, %v2480
  %v2485 = vadd.f32 %v2465, %v2480
  %v2486 = vadd.f32 %v2466, %v2480
  %v2487 = vadd.f32 %v2467, %v2480
  %v2488 = vadd.f32 %v2468, %v2480
  %v2489 = vadd.f32 %v2469, %v2480
  %v2490 = vadd.f32 %v2470, %v2480
  %v2491 = vadd.f32 %v2471, %v2480
  %v2492 = vadd.f32 %v2472, %v2480
  %v2493 = vadd.f32 %v2473, %v2480
  %v2494 = vadd.f32 %v2474, %v2480
  %v2495 = vadd.f32 %v2475, %v2480
  %v2496 = vadd.f32 %v2476, %v2480
  %v2497 = vadd.f32 %v2477, %v2480
  %v2498 = vld [vmem:[%s7] sm:$0x1]
  %v2499 = vld [vmem:[%s8] sm:$0x1]
  %v2500 = vadd.f32 %v2482, %v2483
  %v2501 = vadd.f32 %v2500, %v2484
  %v2502 = vadd.f32 %v2501, %v2485
  %v2503 = vadd.f32 %v2502, %v2486
  %v2504 = vadd.f32 %v2503, %v2487
  %v2505 = vadd.f32 %v2504, %v2488
  %v2506 = vadd.f32 %v2505, %v2489
  %v2507 = vadd.f32 %v2506, %v2490
  %v2508 = vadd.f32 %v2507, %v2491
  %v2509 = vadd.f32 %v2508, %v2492
  %v2510 = vadd.f32 %v2509, %v2493
  %v2511 = vadd.f32 %v2510, %v2494
  %v2512 = vadd.f32 %v2511, %v2495
  %v2513 = vadd.f32 %v2512, %v2496
  %v2514 = vadd.f32 %v2513, %v2497
  %v2515 = vrot.slane %v2514, 4
  %v2516 = vadd.f32 %v2514, %v2515
  %v2517 = vrot.slane %v2516, 2
  %v2518 = vadd.f32 %v2516, %v2517
  %v2519 = vrot.slane %v2518, 1
  %v2520 = vadd.f32 %v2518, %v2519
  %v2521 = vrcp.pop 128.0
  %v2522 = vmul.f32 128.0, %v2521
  %v2523 = vsub.f32 1.0, %v2522
  %v2524 = vmul.f32 %v2521, %v2523
  %v2525 = vadd.f32 %v2521, %v2524
  %vm2526 = vweird.f32 %v2521
  %v2527 = vsel %vm2526, %v2521, %v2525
  %v2528 = vmul.f32 %v2520, %v2527
  %v2529 = vsub.f32 %v2482, %v2528
  %v2530 = vsub.f32 %v2483, %v2528
  %v2531 = vsub.f32 %v2484, %v2528
  %v2532 = vsub.f32 %v2485, %v2528
  %v2533 = vsub.f32 %v2486, %v2528
  %v2534 = vsub.f32 %v2487, %v2528
  %v2535 = vsub.f32 %v2488, %v2528
  %v2536 = vsub.f32 %v2489, %v2528
  %v2537 = vsub.f32 %v2490, %v2528
  %v2538 = vsub.f32 %v2491, %v2528
  %v2539 = vsub.f32 %v2492, %v2528
  %v2540 = vsub.f32 %v2493, %v2528
  %v2541 = vsub.f32 %v2494, %v2528
  %v2542 = vsub.f32 %v2495, %v2528
  %v2543 = vsub.f32 %v2496, %v2528
  %v2544 = vsub.f32 %v2497, %v2528
  %v2545 = vmul.f32 %v2529, %v2529
  %v2546 = vmul.f32 %v2530, %v2530
  %v2547 = vmul.f32 %v2531, %v2531
  %v2548 = vmul.f32 %v2532, %v2532
  %v2549 = vmul.f32 %v2533, %v2533
  %v2550 = vmul.f32 %v2534, %v2534
  %v2551 = vmul.f32 %v2535, %v2535
  %v2552 = vmul.f32 %v2536, %v2536
  %v2553 = vmul.f32 %v2537, %v2537
  %v2554 = vmul.f32 %v2538, %v2538
  %v2555 = vmul.f32 %v2539, %v2539
  %v2556 = vmul.f32 %v2540, %v2540
  %v2557 = vmul.f32 %v2541, %v2541
  %v2558 = vmul.f32 %v2542, %v2542
  %v2559 = vmul.f32 %v2543, %v2543
  %v2560 = vmul.f32 %v2544, %v2544
  %v2561 = vadd.f32 %v2545, %v2546
  %v2562 = vadd.f32 %v2561, %v2547
  %v2563 = vadd.f32 %v2562, %v2548
  %v2564 = vadd.f32 %v2563, %v2549
  %v2565 = vadd.f32 %v2564, %v2550
  %v2566 = vadd.f32 %v2565, %v2551
  %v2567 = vadd.f32 %v2566, %v2552
  %v2568 = vadd.f32 %v2567, %v2553
  %v2569 = vadd.f32 %v2568, %v2554
  %v2570 = vadd.f32 %v2569, %v2555
  %v2571 = vadd.f32 %v2570, %v2556
  %v2572 = vadd.f32 %v2571, %v2557
  %v2573 = vadd.f32 %v2572, %v2558
  %v2574 = vadd.f32 %v2573, %v2559
  %v2575 = vadd.f32 %v2574, %v2560
  %v2576 = vrot.slane %v2575, 4
  %v2577 = vadd.f32 %v2575, %v2576
  %v2578 = vrot.slane %v2577, 2
  %v2579 = vadd.f32 %v2577, %v2578
  %v2580 = vrot.slane %v2579, 1
  %v2581 = vadd.f32 %v2579, %v2580
  %v2582 = vmul.f32 %v2581, %v2527
  %v2583 = vadd.f32 %v2582, 0.8
  %v2584 = vrsqrt.pop %v2583
  %v2585 = vmul.f32 %v2584, %v2583
  %v2586 = vmul.f32 %v2585, %v2584
  %v2587 = vmul.f32 0.5, %v2586
  %v2588 = vsub.f32 1.5, %v2587
  %v2589 = vmul.f32 %v2584, %v2588
  %vm2590 = vweird.f32 %v2583
  %vm2591 = vweird.f32 %v2584
  %vm2592 = vmor %vm2590, %vm2591
  %v2593 = vsel %vm2592, %v2584, %v2589
  %v2594 = vmul.f32 %v2529, %v2593
  %v2595 = vmul.f32 %v2530, %v2593
  %v2596 = vmul.f32 %v2531, %v2593
  %v2597 = vmul.f32 %v2532, %v2593
  %v2598 = vmul.f32 %v2533, %v2593
  %v2599 = vmul.f32 %v2534, %v2593
  %v2600 = vmul.f32 %v2535, %v2593
  %v2601 = vmul.f32 %v2536, %v2593
  %v2602 = vmul.f32 %v2537, %v2593
  %v2603 = vmul.f32 %v2538, %v2593
  %v2604 = vmul.f32 %v2539, %v2593
  %v2605 = vmul.f32 %v2540, %v2593
  %v2606 = vmul.f32 %v2541, %v2593
  %v2607 = vmul.f32 %v2542, %v2593
  %v2608 = vmul.f32 %v2543, %v2593
  %v2609 = vmul.f32 %v2544, %v2593
  %v2611 = vperm.slane %v2498, 0
  %v2613 = vmul.f32 %v2594, %v2611
  %v2614 = vmul.f32 %v2595, %v2611
  %v2615 = vmul.f32 %v2596, %v2611
  %v2616 = vmul.f32 %v2597, %v2611
  %v2617 = vmul.f32 %v2598, %v2611
  %v2618 = vmul.f32 %v2599, %v2611
  %v2619 = vmul.f32 %v2600, %v2611
  %v2620 = vmul.f32 %v2601, %v2611
  %v2621 = vmul.f32 %v2602, %v2611
  %v2622 = vmul.f32 %v2603, %v2611
  %v2623 = vmul.f32 %v2604, %v2611
  %v2624 = vmul.f32 %v2605, %v2611
  %v2625 = vmul.f32 %v2606, %v2611
  %v2626 = vmul.f32 %v2607, %v2611
  %v2627 = vmul.f32 %v2608, %v2611
  %v2628 = vmul.f32 %v2609, %v2611
  %v2630 = vperm.slane %v2499, 0
  %v2632 = vadd.f32 %v2613, %v2630
  %v2633 = vadd.f32 %v2614, %v2630
  %v2634 = vadd.f32 %v2615, %v2630
  %v2635 = vadd.f32 %v2616, %v2630
  %v2636 = vadd.f32 %v2617, %v2630
  %v2637 = vadd.f32 %v2618, %v2630
  %v2638 = vadd.f32 %v2619, %v2630
  %v2639 = vadd.f32 %v2620, %v2630
  %v2640 = vadd.f32 %v2621, %v2630
  %v2641 = vadd.f32 %v2622, %v2630
  %v2642 = vadd.f32 %v2623, %v2630
  %v2643 = vadd.f32 %v2624, %v2630
  %v2644 = vadd.f32 %v2625, %v2630
  %v2645 = vadd.f32 %v2626, %v2630
  %v2646 = vadd.f32 %v2627, %v2630
  %v2647 = vadd.f32 %v2628, %v2630
  %vm2648 = vcmp.ge.f32.partialorder %v2632, 0.0
  %vm2649 = vcmp.ge.f32.partialorder %v2633, 0.0
  %vm2650 = vcmp.ge.f32.partialorder %v2634, 0.0
  %vm2651 = vcmp.ge.f32.partialorder %v2635, 0.0
  %vm2652 = vcmp.ge.f32.partialorder %v2636, 0.0
  %vm2653 = vcmp.ge.f32.partialorder %v2637, 0.0
  %vm2654 = vcmp.ge.f32.partialorder %v2638, 0.0
  %vm2655 = vcmp.ge.f32.partialorder %v2639, 0.0
  %vm2656 = vcmp.ge.f32.partialorder %v2640, 0.0
  %vm2657 = vcmp.ge.f32.partialorder %v2641, 0.0
  %vm2658 = vcmp.ge.f32.partialorder %v2642, 0.0
  %vm2659 = vcmp.ge.f32.partialorder %v2643, 0.0
  %vm2660 = vcmp.ge.f32.partialorder %v2644, 0.0
  %vm2661 = vcmp.ge.f32.partialorder %v2645, 0.0
  %vm2662 = vcmp.ge.f32.partialorder %v2646, 0.0
  %vm2663 = vcmp.ge.f32.partialorder %v2647, 0.0
  %v2664 = vmul.f32 %v2632, 0.2
  %v2665 = vmul.f32 %v2633, 0.2
  %v2666 = vmul.f32 %v2634, 0.2
  %v2667 = vmul.f32 %v2635, 0.2
  %v2668 = vmul.f32 %v2636, 0.2
  %v2669 = vmul.f32 %v2637, 0.2
  %v2670 = vmul.f32 %v2638, 0.2
  %v2671 = vmul.f32 %v2639, 0.2
  %v2672 = vmul.f32 %v2640, 0.2
  %v2673 = vmul.f32 %v2641, 0.2
  %v2674 = vmul.f32 %v2642, 0.2
  %v2675 = vmul.f32 %v2643, 0.2
  %v2676 = vmul.f32 %v2644, 0.2
  %v2677 = vmul.f32 %v2645, 0.2
  %v2678 = vmul.f32 %v2646, 0.2
  %v2679 = vmul.f32 %v2647, 0.2
  %v2680 = vsel %vm2648, %v2632, %v2664
  %v2681 = vsel %vm2649, %v2633, %v2665
  %v2682 = vsel %vm2650, %v2634, %v2666
  %v2683 = vsel %vm2651, %v2635, %v2667
  %v2684 = vsel %vm2652, %v2636, %v2668
  %v2685 = vsel %vm2653, %v2637, %v2669
  %v2686 = vsel %vm2654, %v2638, %v2670
  %v2687 = vsel %vm2655, %v2639, %v2671
  %v2688 = vsel %vm2656, %v2640, %v2672
  %v2689 = vsel %vm2657, %v2641, %v2673
  %v2690 = vsel %vm2658, %v2642, %v2674
  %v2691 = vsel %vm2659, %v2643, %v2675
  %v2692 = vsel %vm2660, %v2644, %v2676
  %v2693 = vsel %vm2661, %v2645, %v2677
  %v2694 = vsel %vm2662, %v2646, %v2678
  %v2695 = vsel %vm2663, %v2647, %v2679
  %2696 = vst [vmem:[#allocation4] sm:$0xff] 0.0
  %2697 = vst [vmem:[#allocation4 + $0x8] sm:$0xff] 0.0
  %2698 = vst [vmem:[#allocation4 + $0x10] sm:$0x3] 0.0
  %2699 = vst [vmem:[#allocation4 + $0x1b0] sm:$0xff] 0.0
  %2700 = vst [vmem:[#allocation4 + $0x1b8] sm:$0xff] 0.0
  %2701 = vst [vmem:[#allocation4 + $0x1c0] sm:$0x3] 0.0
  %s2702 = scalar_lea.vmem [#allocation4], 408
  %2703 = vst [vmem:[%s2702] sm:$0xff] 0.0
  %2704 = vst [vmem:[%s2702 + $0x8] sm:$0xff] 0.0
  %2705 = vst [vmem:[%s2702 + $0x10] sm:$0x3] 0.0
  %2706 = vst [vmem:[%s2702 + $0x1b0] sm:$0xff] 0.0
  %2707 = vst [vmem:[%s2702 + $0x1b8] sm:$0xff] 0.0
  %2708 = vst [vmem:[%s2702 + $0x1c0] sm:$0x3] 0.0
  %2709 = vst [vmem:[#allocation4] sm:$0x1] 0.0
  %2710 = vst [vmem:[#allocation4 + $0x18] sm:$0x1] 0.0
  %2711 = vst [vmem:[#allocation4 + $0x30] sm:$0x1] 0.0
  %2712 = vst [vmem:[#allocation4 + $0x48] sm:$0x1] 0.0
  %2713 = vst [vmem:[#allocation4 + $0x60] sm:$0x1] 0.0
  %2714 = vst [vmem:[#allocation4 + $0x78] sm:$0x1] 0.0
  %2715 = vst [vmem:[#allocation4 + $0x90] sm:$0x1] 0.0
  %2716 = vst [vmem:[#allocation4 + $0xa8] sm:$0x1] 0.0
  %2717 = vst [vmem:[#allocation4 + $0xc0] sm:$0x1] 0.0
  %2718 = vst [vmem:[#allocation4 + $0xd8] sm:$0x1] 0.0
  %2719 = vst [vmem:[#allocation4 + $0xf0] sm:$0x1] 0.0
  %2720 = vst [vmem:[#allocation4 + $0x108] sm:$0x1] 0.0
  %2721 = vst [vmem:[#allocation4 + $0x120] sm:$0x1] 0.0
  %2722 = vst [vmem:[#allocation4 + $0x138] sm:$0x1] 0.0
  %2723 = vst [vmem:[#allocation4 + $0x150] sm:$0x1] 0.0
  %2724 = vst [vmem:[#allocation4 + $0x168] sm:$0x1] 0.0
  %2725 = vst [vmem:[#allocation4 + $0x180] sm:$0x1] 0.0
  %2726 = vst [vmem:[#allocation4 + $0x198] sm:$0x1] 0.0
  %2727 = vst [vmem:[#allocation4 + $0x1b0] sm:$0x1] 0.0
  %2728 = vst [vmem:[#allocation4 + $0x1c8] sm:$0x1] 0.0
  %2729 = vst [vmem:[#allocation4 + $0x1e0] sm:$0x1] 0.0
  %2730 = vst [vmem:[#allocation4 + $0x1f8] sm:$0x1] 0.0
  %2731 = vst [vmem:[#allocation4 + $0x210] sm:$0x1] 0.0
  %2732 = vst [vmem:[#allocation4 + $0x228] sm:$0x1] 0.0
  %2733 = vst [vmem:[#allocation4 + $0x240] sm:$0x1] 0.0
  %2734 = vst [vmem:[#allocation4 + $0x258] sm:$0x1] 0.0
  %2735 = vst [vmem:[#allocation4 + $0x270] sm:$0x1] 0.0
  %2736 = vst [vmem:[#allocation4 + $0x288] sm:$0x1] 0.0
  %2737 = vst [vmem:[#allocation4 + $0x2a0] sm:$0x1] 0.0
  %2738 = vst [vmem:[#allocation4 + $0x2b8] sm:$0x1] 0.0
  %2739 = vst [vmem:[#allocation4 + $0x2d0] sm:$0x1] 0.0
  %2740 = vst [vmem:[#allocation4 + $0x2e8] sm:$0x1] 0.0
  %2741 = vst [vmem:[#allocation4 + $0x300] sm:$0x1] 0.0
  %2742 = vst [vmem:[#allocation4 + $0x318] sm:$0x1] 0.0
  %2743 = vst [vmem:[#allocation4 + $0x330] sm:$0x1] 0.0
  %2744 = vst [vmem:[#allocation4 + $0x348] sm:$0x1] 0.0
  %2745 = vst [vmem:[#allocation4 + $0x11] sm:$0x1] 0.0
  %2746 = vst [vmem:[#allocation4 + $0x29] sm:$0x1] 0.0
  %2747 = vst [vmem:[#allocation4 + $0x41] sm:$0x1] 0.0
  %2748 = vst [vmem:[#allocation4 + $0x59] sm:$0x1] 0.0
  %2749 = vst [vmem:[#allocation4 + $0x71] sm:$0x1] 0.0
  %2750 = vst [vmem:[#allocation4 + $0x89] sm:$0x1] 0.0
  %2751 = vst [vmem:[#allocation4 + $0xa1] sm:$0x1] 0.0
  %2752 = vst [vmem:[#allocation4 + $0xb9] sm:$0x1] 0.0
  %2753 = vst [vmem:[#allocation4 + $0xd1] sm:$0x1] 0.0
  %2754 = vst [vmem:[#allocation4 + $0xe9] sm:$0x1] 0.0
  %2755 = vst [vmem:[#allocation4 + $0x101] sm:$0x1] 0.0
  %2756 = vst [vmem:[#allocation4 + $0x119] sm:$0x1] 0.0
  %2757 = vst [vmem:[#allocation4 + $0x131] sm:$0x1] 0.0
  %2758 = vst [vmem:[#allocation4 + $0x149] sm:$0x1] 0.0
  %2759 = vst [vmem:[#allocation4 + $0x161] sm:$0x1] 0.0
  %2760 = vst [vmem:[#allocation4 + $0x179] sm:$0x1] 0.0
  %2761 = vst [vmem:[#allocation4 + $0x191] sm:$0x1] 0.0
  %2762 = vst [vmem:[#allocation4 + $0x1a9] sm:$0x1] 0.0
  %2763 = vst [vmem:[#allocation4 + $0x1c1] sm:$0x1] 0.0
  %2764 = vst [vmem:[#allocation4 + $0x1d9] sm:$0x1] 0.0
  %2765 = vst [vmem:[#allocation4 + $0x1f1] sm:$0x1] 0.0
  %2766 = vst [vmem:[#allocation4 + $0x209] sm:$0x1] 0.0
  %2767 = vst [vmem:[#allocation4 + $0x221] sm:$0x1] 0.0
  %2768 = vst [vmem:[#allocation4 + $0x239] sm:$0x1] 0.0
  %2769 = vst [vmem:[#allocation4 + $0x251] sm:$0x1] 0.0
  %2770 = vst [vmem:[#allocation4 + $0x269] sm:$0x1] 0.0
  %2771 = vst [vmem:[#allocation4 + $0x281] sm:$0x1] 0.0
  %2772 = vst [vmem:[#allocation4 + $0x299] sm:$0x1] 0.0
  %2773 = vst [vmem:[#allocation4 + $0x2b1] sm:$0x1] 0.0
  %2774 = vst [vmem:[#allocation4 + $0x2c9] sm:$0x1] 0.0
  %2775 = vst [vmem:[#allocation4 + $0x2e1] sm:$0x1] 0.0
  %2776 = vst [vmem:[#allocation4 + $0x2f9] sm:$0x1] 0.0
  %2777 = vst [vmem:[#allocation4 + $0x311] sm:$0x1] 0.0
  %2778 = vst [vmem:[#allocation4 + $0x329] sm:$0x1] 0.0
  %2779 = vst [vmem:[#allocation4 + $0x341] sm:$0x1] 0.0
  %2780 = vst [vmem:[#allocation4 + $0x359] sm:$0x1] 0.0
  %v2781 = vperm.slane %v2680, 0
  %v2782 = vperm.slane %v2681, 0
  %v2783 = vperm.slane %v2682, 0
  %v2784 = vperm.slane %v2683, 0
  %v2785 = vperm.slane %v2684, 0
  %v2786 = vperm.slane %v2685, 0
  %v2787 = vperm.slane %v2686, 0
  %v2788 = vperm.slane %v2687, 0
  %v2789 = vperm.slane %v2688, 0
  %v2790 = vperm.slane %v2689, 0
  %v2791 = vperm.slane %v2690, 0
  %v2792 = vperm.slane %v2691, 0
  %v2793 = vperm.slane %v2692, 0
  %v2794 = vperm.slane %v2693, 0
  %v2795 = vperm.slane %v2694, 0
  %v2796 = vperm.slane %v2695, 0
  %s2797 = scalar_lea.vmem [#allocation4], 24
  %2798 = vst [vmem:[%s2797 + $0x1] sm:$0x3] %v2781
  %2799 = vst [vmem:[%s2797 + $0x19] sm:$0x3] %v2781
  %2800 = vst [vmem:[%s2797 + $0x31] sm:$0x3] %v2782
  %2801 = vst [vmem:[%s2797 + $0x49] sm:$0x3] %v2782
  %2802 = vst [vmem:[%s2797 + $0x61] sm:$0x3] %v2783
  %2803 = vst [vmem:[%s2797 + $0x79] sm:$0x3] %v2783
  %2804 = vst [vmem:[%s2797 + $0x91] sm:$0x3] %v2784
  %2805 = vst [vmem:[%s2797 + $0xa9] sm:$0x3] %v2784
  %2806 = vst [vmem:[%s2797 + $0xc1] sm:$0x3] %v2785
  %2807 = vst [vmem:[%s2797 + $0xd9] sm:$0x3] %v2785
  %2808 = vst [vmem:[%s2797 + $0xf1] sm:$0x3] %v2786
  %2809 = vst [vmem:[%s2797 + $0x109] sm:$0x3] %v2786
  %2810 = vst [vmem:[%s2797 + $0x121] sm:$0x3] %v2787
  %2811 = vst [vmem:[%s2797 + $0x139] sm:$0x3] %v2787
  %2812 = vst [vmem:[%s2797 + $0x151] sm:$0x3] %v2788
  %2813 = vst [vmem:[%s2797 + $0x169] sm:$0x3] %v2788
  %2814 = vst [vmem:[%s2797 + $0x1b1] sm:$0x3] %v2789
  %2815 = vst [vmem:[%s2797 + $0x1c9] sm:$0x3] %v2789
  %2816 = vst [vmem:[%s2797 + $0x1e1] sm:$0x3] %v2790
  %2817 = vst [vmem:[%s2797 + $0x1f9] sm:$0x3] %v2790
  %2818 = vst [vmem:[%s2797 + $0x211] sm:$0x3] %v2791
  %2819 = vst [vmem:[%s2797 + $0x229] sm:$0x3] %v2791
  %2820 = vst [vmem:[%s2797 + $0x241] sm:$0x3] %v2792
  %2821 = vst [vmem:[%s2797 + $0x259] sm:$0x3] %v2792
  %2822 = vst [vmem:[%s2797 + $0x271] sm:$0x3] %v2793
  %2823 = vst [vmem:[%s2797 + $0x289] sm:$0x3] %v2793
  %2824 = vst [vmem:[%s2797 + $0x2a1] sm:$0x3] %v2794
  %2825 = vst [vmem:[%s2797 + $0x2b9] sm:$0x3] %v2794
  %2826 = vst [vmem:[%s2797 + $0x2d1] sm:$0x3] %v2795
  %2827 = vst [vmem:[%s2797 + $0x2e9] sm:$0x3] %v2795
  %2828 = vst [vmem:[%s2797 + $0x301] sm:$0x3] %v2796
  %2829 = vst [vmem:[%s2797 + $0x319] sm:$0x3] %v2796
  %v2830 = vperm.slane %v2680, 1
  %v2831 = vperm.slane %v2681, 1
  %v2832 = vperm.slane %v2682, 1
  %v2833 = vperm.slane %v2683, 1
  %v2834 = vperm.slane %v2684, 1
  %v2835 = vperm.slane %v2685, 1
  %v2836 = vperm.slane %v2686, 1
  %v2837 = vperm.slane %v2687, 1
  %v2838 = vperm.slane %v2688, 1
  %v2839 = vperm.slane %v2689, 1
  %v2840 = vperm.slane %v2690, 1
  %v2841 = vperm.slane %v2691, 1
  %v2842 = vperm.slane %v2692, 1
  %v2843 = vperm.slane %v2693, 1
  %v2844 = vperm.slane %v2694, 1
  %v2845 = vperm.slane %v2695, 1
  %2846 = vst [vmem:[%s2797 + $0x3] sm:$0x3] %v2830
  %2847 = vst [vmem:[%s2797 + $0x1b] sm:$0x3] %v2830
  %2848 = vst [vmem:[%s2797 + $0x33] sm:$0x3] %v2831
  %2849 = vst [vmem:[%s2797 + $0x4b] sm:$0x3] %v2831
  %2850 = vst [vmem:[%s2797 + $0x63] sm:$0x3] %v2832
  %2851 = vst [vmem:[%s2797 + $0x7b] sm:$0x3] %v2832
  %2852 = vst [vmem:[%s2797 + $0x93] sm:$0x3] %v2833
  %2853 = vst [vmem:[%s2797 + $0xab] sm:$0x3] %v2833
  %2854 = vst [vmem:[%s2797 + $0xc3] sm:$0x3] %v2834
  %2855 = vst [vmem:[%s2797 + $0xdb] sm:$0x3] %v2834
  %2856 = vst [vmem:[%s2797 + $0xf3] sm:$0x3] %v2835
  %2857 = vst [vmem:[%s2797 + $0x10b] sm:$0x3] %v2835
  %2858 = vst [vmem:[%s2797 + $0x123] sm:$0x3] %v2836
  %2859 = vst [vmem:[%s2797 + $0x13b] sm:$0x3] %v2836
  %2860 = vst [vmem:[%s2797 + $0x153] sm:$0x3] %v2837
  %2861 = vst [vmem:[%s2797 + $0x16b] sm:$0x3] %v2837
  %2862 = vst [vmem:[%s2797 + $0x1b3] sm:$0x3] %v2838
  %2863 = vst [vmem:[%s2797 + $0x1cb] sm:$0x3] %v2838
  %2864 = vst [vmem:[%s2797 + $0x1e3] sm:$0x3] %v2839
  %2865 = vst [vmem:[%s2797 + $0x1fb] sm:$0x3] %v2839
  %2866 = vst [vmem:[%s2797 + $0x213] sm:$0x3] %v2840
  %2867 = vst [vmem:[%s2797 + $0x22b] sm:$0x3] %v2840
  %2868 = vst [vmem:[%s2797 + $0x243] sm:$0x3] %v2841
  %2869 = vst [vmem:[%s2797 + $0x25b] sm:$0x3] %v2841
  %2870 = vst [vmem:[%s2797 + $0x273] sm:$0x3] %v2842
  %2871 = vst [vmem:[%s2797 + $0x28b] sm:$0x3] %v2842
  %2872 = vst [vmem:[%s2797 + $0x2a3] sm:$0x3] %v2843
  %2873 = vst [vmem:[%s2797 + $0x2bb] sm:$0x3] %v2843
  %2874 = vst [vmem:[%s2797 + $0x2d3] sm:$0x3] %v2844
  %2875 = vst [vmem:[%s2797 + $0x2eb] sm:$0x3] %v2844
  %2876 = vst [vmem:[%s2797 + $0x303] sm:$0x3] %v2845
  %2877 = vst [vmem:[%s2797 + $0x31b] sm:$0x3] %v2845
  %v2878 = vperm.slane %v2680, 2
  %v2879 = vperm.slane %v2681, 2
  %v2880 = vperm.slane %v2682, 2
  %v2881 = vperm.slane %v2683, 2
  %v2882 = vperm.slane %v2684, 2
  %v2883 = vperm.slane %v2685, 2
  %v2884 = vperm.slane %v2686, 2
  %v2885 = vperm.slane %v2687, 2
  %v2886 = vperm.slane %v2688, 2
  %v2887 = vperm.slane %v2689, 2
  %v2888 = vperm.slane %v2690, 2
  %v2889 = vperm.slane %v2691, 2
  %v2890 = vperm.slane %v2692, 2
  %v2891 = vperm.slane %v2693, 2
  %v2892 = vperm.slane %v2694, 2
  %v2893 = vperm.slane %v2695, 2
  %2894 = vst [vmem:[%s2797 + $0x5] sm:$0x3] %v2878
  %2895 = vst [vmem:[%s2797 + $0x1d] sm:$0x3] %v2878
  %2896 = vst [vmem:[%s2797 + $0x35] sm:$0x3] %v2879
  %2897 = vst [vmem:[%s2797 + $0x4d] sm:$0x3] %v2879
  %2898 = vst [vmem:[%s2797 + $0x65] sm:$0x3] %v2880
  %2899 = vst [vmem:[%s2797 + $0x7d] sm:$0x3] %v2880
  %2900 = vst [vmem:[%s2797 + $0x95] sm:$0x3] %v2881
  %2901 = vst [vmem:[%s2797 + $0xad] sm:$0x3] %v2881
  %2902 = vst [vmem:[%s2797 + $0xc5] sm:$0x3] %v2882
  %2903 = vst [vmem:[%s2797 + $0xdd] sm:$0x3] %v2882
  %2904 = vst [vmem:[%s2797 + $0xf5] sm:$0x3] %v2883
  %2905 = vst [vmem:[%s2797 + $0x10d] sm:$0x3] %v2883
  %2906 = vst [vmem:[%s2797 + $0x125] sm:$0x3] %v2884
  %2907 = vst [vmem:[%s2797 + $0x13d] sm:$0x3] %v2884
  %2908 = vst [vmem:[%s2797 + $0x155] sm:$0x3] %v2885
  %2909 = vst [vmem:[%s2797 + $0x16d] sm:$0x3] %v2885
  %2910 = vst [vmem:[%s2797 + $0x1b5] sm:$0x3] %v2886
  %2911 = vst [vmem:[%s2797 + $0x1cd] sm:$0x3] %v2886
  %2912 = vst [vmem:[%s2797 + $0x1e5] sm:$0x3] %v2887
  %2913 = vst [vmem:[%s2797 + $0x1fd] sm:$0x3] %v2887
  %2914 = vst [vmem:[%s2797 + $0x215] sm:$0x3] %v2888
  %2915 = vst [vmem:[%s2797 + $0x22d] sm:$0x3] %v2888
  %2916 = vst [vmem:[%s2797 + $0x245] sm:$0x3] %v2889
  %2917 = vst [vmem:[%s2797 + $0x25d] sm:$0x3] %v2889
  %2918 = vst [vmem:[%s2797 + $0x275] sm:$0x3] %v2890
  %2919 = vst [vmem:[%s2797 + $0x28d] sm:$0x3] %v2890
  %2920 = vst [vmem:[%s2797 + $0x2a5] sm:$0x3] %v2891
  %2921 = vst [vmem:[%s2797 + $0x2bd] sm:$0x3] %v2891
  %2922 = vst [vmem:[%s2797 + $0x2d5] sm:$0x3] %v2892
  %2923 = vst [vmem:[%s2797 + $0x2ed] sm:$0x3] %v2892
  %2924 = vst [vmem:[%s2797 + $0x305] sm:$0x3] %v2893
  %2925 = vst [vmem:[%s2797 + $0x31d] sm:$0x3] %v2893
  %v2926 = vperm.slane %v2680, 3
  %v2927 = vperm.slane %v2681, 3
  %v2928 = vperm.slane %v2682, 3
  %v2929 = vperm.slane %v2683, 3
  %v2930 = vperm.slane %v2684, 3
  %v2931 = vperm.slane %v2685, 3
  %v2932 = vperm.slane %v2686, 3
  %v2933 = vperm.slane %v2687, 3
  %v2934 = vperm.slane %v2688, 3
  %v2935 = vperm.slane %v2689, 3
  %v2936 = vperm.slane %v2690, 3
  %v2937 = vperm.slane %v2691, 3
  %v2938 = vperm.slane %v2692, 3
  %v2939 = vperm.slane %v2693, 3
  %v2940 = vperm.slane %v2694, 3
  %v2941 = vperm.slane %v2695, 3
  %2942 = vst [vmem:[%s2797 + $0x7] sm:$0x3] %v2926
  %2943 = vst [vmem:[%s2797 + $0x1f] sm:$0x3] %v2926
  %2944 = vst [vmem:[%s2797 + $0x37] sm:$0x3] %v2927
  %2945 = vst [vmem:[%s2797 + $0x4f] sm:$0x3] %v2927
  %2946 = vst [vmem:[%s2797 + $0x67] sm:$0x3] %v2928
  %2947 = vst [vmem:[%s2797 + $0x7f] sm:$0x3] %v2928
  %2948 = vst [vmem:[%s2797 + $0x97] sm:$0x3] %v2929
  %2949 = vst [vmem:[%s2797 + $0xaf] sm:$0x3] %v2929
  %2950 = vst [vmem:[%s2797 + $0xc7] sm:$0x3] %v2930
  %2951 = vst [vmem:[%s2797 + $0xdf] sm:$0x3] %v2930
  %2952 = vst [vmem:[%s2797 + $0xf7] sm:$0x3] %v2931
  %2953 = vst [vmem:[%s2797 + $0x10f] sm:$0x3] %v2931
  %2954 = vst [vmem:[%s2797 + $0x127] sm:$0x3] %v2932
  %2955 = vst [vmem:[%s2797 + $0x13f] sm:$0x3] %v2932
  %2956 = vst [vmem:[%s2797 + $0x157] sm:$0x3] %v2933
  %2957 = vst [vmem:[%s2797 + $0x16f] sm:$0x3] %v2933
  %2958 = vst [vmem:[%s2797 + $0x1b7] sm:$0x3] %v2934
  %2959 = vst [vmem:[%s2797 + $0x1cf] sm:$0x3] %v2934
  %2960 = vst [vmem:[%s2797 + $0x1e7] sm:$0x3] %v2935
  %2961 = vst [vmem:[%s2797 + $0x1ff] sm:$0x3] %v2935
  %2962 = vst [vmem:[%s2797 + $0x217] sm:$0x3] %v2936
  %2963 = vst [vmem:[%s2797 + $0x22f] sm:$0x3] %v2936
  %2964 = vst [vmem:[%s2797 + $0x247] sm:$0x3] %v2937
  %2965 = vst [vmem:[%s2797 + $0x25f] sm:$0x3] %v2937
  %2966 = vst [vmem:[%s2797 + $0x277] sm:$0x3] %v2938
  %2967 = vst [vmem:[%s2797 + $0x28f] sm:$0x3] %v2938
  %2968 = vst [vmem:[%s2797 + $0x2a7] sm:$0x3] %v2939
  %2969 = vst [vmem:[%s2797 + $0x2bf] sm:$0x3] %v2939
  %2970 = vst [vmem:[%s2797 + $0x2d7] sm:$0x3] %v2940
  %2971 = vst [vmem:[%s2797 + $0x2ef] sm:$0x3] %v2940
  %2972 = vst [vmem:[%s2797 + $0x307] sm:$0x3] %v2941
  %2973 = vst [vmem:[%s2797 + $0x31f] sm:$0x3] %v2941
  %v2974 = vperm.slane %v2680, 4
  %v2975 = vperm.slane %v2681, 4
  %v2976 = vperm.slane %v2682, 4
  %v2977 = vperm.slane %v2683, 4
  %v2978 = vperm.slane %v2684, 4
  %v2979 = vperm.slane %v2685, 4
  %v2980 = vperm.slane %v2686, 4
  %v2981 = vperm.slane %v2687, 4
  %v2982 = vperm.slane %v2688, 4
  %v2983 = vperm.slane %v2689, 4
  %v2984 = vperm.slane %v2690, 4
  %v2985 = vperm.slane %v2691, 4
  %v2986 = vperm.slane %v2692, 4
  %v2987 = vperm.slane %v2693, 4
  %v2988 = vperm.slane %v2694, 4
  %v2989 = vperm.slane %v2695, 4
  %2990 = vst [vmem:[%s2797 + $0x9] sm:$0x3] %v2974
  %2991 = vst [vmem:[%s2797 + $0x21] sm:$0x3] %v2974
  %2992 = vst [vmem:[%s2797 + $0x39] sm:$0x3] %v2975
  %2993 = vst [vmem:[%s2797 + $0x51] sm:$0x3] %v2975
  %2994 = vst [vmem:[%s2797 + $0x69] sm:$0x3] %v2976
  %2995 = vst [vmem:[%s2797 + $0x81] sm:$0x3] %v2976
  %2996 = vst [vmem:[%s2797 + $0x99] sm:$0x3] %v2977
  %2997 = vst [vmem:[%s2797 + $0xb1] sm:$0x3] %v2977
  %2998 = vst [vmem:[%s2797 + $0xc9] sm:$0x3] %v2978
  %2999 = vst [vmem:[%s2797 + $0xe1] sm:$0x3] %v2978
  %3000 = vst [vmem:[%s2797 + $0xf9] sm:$0x3] %v2979
  %3001 = vst [vmem:[%s2797 + $0x111] sm:$0x3] %v2979
  %3002 = vst [vmem:[%s2797 + $0x129] sm:$0x3] %v2980
  %3003 = vst [vmem:[%s2797 + $0x141] sm:$0x3] %v2980
  %3004 = vst [vmem:[%s2797 + $0x159] sm:$0x3] %v2981
  %3005 = vst [vmem:[%s2797 + $0x171] sm:$0x3] %v2981
  %3006 = vst [vmem:[%s2797 + $0x1b9] sm:$0x3] %v2982
  %3007 = vst [vmem:[%s2797 + $0x1d1] sm:$0x3] %v2982
  %3008 = vst [vmem:[%s2797 + $0x1e9] sm:$0x3] %v2983
  %3009 = vst [vmem:[%s2797 + $0x201] sm:$0x3] %v2983
  %3010 = vst [vmem:[%s2797 + $0x219] sm:$0x3] %v2984
  %3011 = vst [vmem:[%s2797 + $0x231] sm:$0x3] %v2984
  %3012 = vst [vmem:[%s2797 + $0x249] sm:$0x3] %v2985
  %3013 = vst [vmem:[%s2797 + $0x261] sm:$0x3] %v2985
  %3014 = vst [vmem:[%s2797 + $0x279] sm:$0x3] %v2986
  %3015 = vst [vmem:[%s2797 + $0x291] sm:$0x3] %v2986
  %3016 = vst [vmem:[%s2797 + $0x2a9] sm:$0x3] %v2987
  %3017 = vst [vmem:[%s2797 + $0x2c1] sm:$0x3] %v2987
  %3018 = vst [vmem:[%s2797 + $0x2d9] sm:$0x3] %v2988
  %3019 = vst [vmem:[%s2797 + $0x2f1] sm:$0x3] %v2988
  %3020 = vst [vmem:[%s2797 + $0x309] sm:$0x3] %v2989
  %3021 = vst [vmem:[%s2797 + $0x321] sm:$0x3] %v2989
  %v3022 = vperm.slane %v2680, 5
  %v3023 = vperm.slane %v2681, 5
  %v3024 = vperm.slane %v2682, 5
  %v3025 = vperm.slane %v2683, 5
  %v3026 = vperm.slane %v2684, 5
  %v3027 = vperm.slane %v2685, 5
  %v3028 = vperm.slane %v2686, 5
  %v3029 = vperm.slane %v2687, 5
  %v3030 = vperm.slane %v2688, 5
  %v3031 = vperm.slane %v2689, 5
  %v3032 = vperm.slane %v2690, 5
  %v3033 = vperm.slane %v2691, 5
  %v3034 = vperm.slane %v2692, 5
  %v3035 = vperm.slane %v2693, 5
  %v3036 = vperm.slane %v2694, 5
  %v3037 = vperm.slane %v2695, 5
  %3038 = vst [vmem:[%s2797 + $0xb] sm:$0x3] %v3022
  %3039 = vst [vmem:[%s2797 + $0x23] sm:$0x3] %v3022
  %3040 = vst [vmem:[%s2797 + $0x3b] sm:$0x3] %v3023
  %3041 = vst [vmem:[%s2797 + $0x53] sm:$0x3] %v3023
  %3042 = vst [vmem:[%s2797 + $0x6b] sm:$0x3] %v3024
  %3043 = vst [vmem:[%s2797 + $0x83] sm:$0x3] %v3024
  %3044 = vst [vmem:[%s2797 + $0x9b] sm:$0x3] %v3025
  %3045 = vst [vmem:[%s2797 + $0xb3] sm:$0x3] %v3025
  %3046 = vst [vmem:[%s2797 + $0xcb] sm:$0x3] %v3026
  %3047 = vst [vmem:[%s2797 + $0xe3] sm:$0x3] %v3026
  %3048 = vst [vmem:[%s2797 + $0xfb] sm:$0x3] %v3027
  %3049 = vst [vmem:[%s2797 + $0x113] sm:$0x3] %v3027
  %3050 = vst [vmem:[%s2797 + $0x12b] sm:$0x3] %v3028
  %3051 = vst [vmem:[%s2797 + $0x143] sm:$0x3] %v3028
  %3052 = vst [vmem:[%s2797 + $0x15b] sm:$0x3] %v3029
  %3053 = vst [vmem:[%s2797 + $0x173] sm:$0x3] %v3029
  %3054 = vst [vmem:[%s2797 + $0x1bb] sm:$0x3] %v3030
  %3055 = vst [vmem:[%s2797 + $0x1d3] sm:$0x3] %v3030
  %3056 = vst [vmem:[%s2797 + $0x1eb] sm:$0x3] %v3031
  %3057 = vst [vmem:[%s2797 + $0x203] sm:$0x3] %v3031
  %3058 = vst [vmem:[%s2797 + $0x21b] sm:$0x3] %v3032
  %3059 = vst [vmem:[%s2797 + $0x233] sm:$0x3] %v3032
  %3060 = vst [vmem:[%s2797 + $0x24b] sm:$0x3] %v3033
  %3061 = vst [vmem:[%s2797 + $0x263] sm:$0x3] %v3033
  %3062 = vst [vmem:[%s2797 + $0x27b] sm:$0x3] %v3034
  %3063 = vst [vmem:[%s2797 + $0x293] sm:$0x3] %v3034
  %3064 = vst [vmem:[%s2797 + $0x2ab] sm:$0x3] %v3035
  %3065 = vst [vmem:[%s2797 + $0x2c3] sm:$0x3] %v3035
  %3066 = vst [vmem:[%s2797 + $0x2db] sm:$0x3] %v3036
  %3067 = vst [vmem:[%s2797 + $0x2f3] sm:$0x3] %v3036
  %3068 = vst [vmem:[%s2797 + $0x30b] sm:$0x3] %v3037
  %3069 = vst [vmem:[%s2797 + $0x323] sm:$0x3] %v3037
  %v3070 = vperm.slane %v2680, 6
  %v3071 = vperm.slane %v2681, 6
  %v3072 = vperm.slane %v2682, 6
  %v3073 = vperm.slane %v2683, 6
  %v3074 = vperm.slane %v2684, 6
  %v3075 = vperm.slane %v2685, 6
  %v3076 = vperm.slane %v2686, 6
  %v3077 = vperm.slane %v2687, 6
  %v3078 = vperm.slane %v2688, 6
  %v3079 = vperm.slane %v2689, 6
  %v3080 = vperm.slane %v2690, 6
  %v3081 = vperm.slane %v2691, 6
  %v3082 = vperm.slane %v2692, 6
  %v3083 = vperm.slane %v2693, 6
  %v3084 = vperm.slane %v2694, 6
  %v3085 = vperm.slane %v2695, 6
  %3086 = vst [vmem:[%s2797 + $0xd] sm:$0x3] %v3070
  %3087 = vst [vmem:[%s2797 + $0x25] sm:$0x3] %v3070
  %3088 = vst [vmem:[%s2797 + $0x3d] sm:$0x3] %v3071
  %3089 = vst [vmem:[%s2797 + $0x55] sm:$0x3] %v3071
  %3090 = vst [vmem:[%s2797 + $0x6d] sm:$0x3] %v3072
  %3091 = vst [vmem:[%s2797 + $0x85] sm:$0x3] %v3072
  %3092 = vst [vmem:[%s2797 + $0x9d] sm:$0x3] %v3073
  %3093 = vst [vmem:[%s2797 + $0xb5] sm:$0x3] %v3073
  %3094 = vst [vmem:[%s2797 + $0xcd] sm:$0x3] %v3074
  %3095 = vst [vmem:[%s2797 + $0xe5] sm:$0x3] %v3074
  %3096 = vst [vmem:[%s2797 + $0xfd] sm:$0x3] %v3075
  %3097 = vst [vmem:[%s2797 + $0x115] sm:$0x3] %v3075
  %3098 = vst [vmem:[%s2797 + $0x12d] sm:$0x3] %v3076
  %3099 = vst [vmem:[%s2797 + $0x145] sm:$0x3] %v3076
  %3100 = vst [vmem:[%s2797 + $0x15d] sm:$0x3] %v3077
  %3101 = vst [vmem:[%s2797 + $0x175] sm:$0x3] %v3077
  %3102 = vst [vmem:[%s2797 + $0x1bd] sm:$0x3] %v3078
  %3103 = vst [vmem:[%s2797 + $0x1d5] sm:$0x3] %v3078
  %3104 = vst [vmem:[%s2797 + $0x1ed] sm:$0x3] %v3079
  %3105 = vst [vmem:[%s2797 + $0x205] sm:$0x3] %v3079
  %3106 = vst [vmem:[%s2797 + $0x21d] sm:$0x3] %v3080
  %3107 = vst [vmem:[%s2797 + $0x235] sm:$0x3] %v3080
  %3108 = vst [vmem:[%s2797 + $0x24d] sm:$0x3] %v3081
  %3109 = vst [vmem:[%s2797 + $0x265] sm:$0x3] %v3081
  %3110 = vst [vmem:[%s2797 + $0x27d] sm:$0x3] %v3082
  %3111 = vst [vmem:[%s2797 + $0x295] sm:$0x3] %v3082
  %3112 = vst [vmem:[%s2797 + $0x2ad] sm:$0x3] %v3083
  %3113 = vst [vmem:[%s2797 + $0x2c5] sm:$0x3] %v3083
  %3114 = vst [vmem:[%s2797 + $0x2dd] sm:$0x3] %v3084
  %3115 = vst [vmem:[%s2797 + $0x2f5] sm:$0x3] %v3084
  %3116 = vst [vmem:[%s2797 + $0x30d] sm:$0x3] %v3085
  %3117 = vst [vmem:[%s2797 + $0x325] sm:$0x3] %v3085
  %v3118 = vperm.slane %v2680, 7
  %v3119 = vperm.slane %v2681, 7
  %v3120 = vperm.slane %v2682, 7
  %v3121 = vperm.slane %v2683, 7
  %v3122 = vperm.slane %v2684, 7
  %v3123 = vperm.slane %v2685, 7
  %v3124 = vperm.slane %v2686, 7
  %v3125 = vperm.slane %v2687, 7
  %v3126 = vperm.slane %v2688, 7
  %v3127 = vperm.slane %v2689, 7
  %v3128 = vperm.slane %v2690, 7
  %v3129 = vperm.slane %v2691, 7
  %v3130 = vperm.slane %v2692, 7
  %v3131 = vperm.slane %v2693, 7
  %v3132 = vperm.slane %v2694, 7
  %v3133 = vperm.slane %v2695, 7
  %3134 = vst [vmem:[%s2797 + $0xf] sm:$0x3] %v3118
  %3135 = vst [vmem:[%s2797 + $0x27] sm:$0x3] %v3118
  %3136 = vst [vmem:[%s2797 + $0x3f] sm:$0x3] %v3119
  %3137 = vst [vmem:[%s2797 + $0x57] sm:$0x3] %v3119
  %3138 = vst [vmem:[%s2797 + $0x6f] sm:$0x3] %v3120
  %3139 = vst [vmem:[%s2797 + $0x87] sm:$0x3] %v3120
  %3140 = vst [vmem:[%s2797 + $0x9f] sm:$0x3] %v3121
  %3141 = vst [vmem:[%s2797 + $0xb7] sm:$0x3] %v3121
  %3142 = vst [vmem:[%s2797 + $0xcf] sm:$0x3] %v3122
  %3143 = vst [vmem:[%s2797 + $0xe7] sm:$0x3] %v3122
  %3144 = vst [vmem:[%s2797 + $0xff] sm:$0x3] %v3123
  %3145 = vst [vmem:[%s2797 + $0x117] sm:$0x3] %v3123
  %3146 = vst [vmem:[%s2797 + $0x12f] sm:$0x3] %v3124
  %3147 = vst [vmem:[%s2797 + $0x147] sm:$0x3] %v3124
  %3148 = vst [vmem:[%s2797 + $0x15f] sm:$0x3] %v3125
  %3149 = vst [vmem:[%s2797 + $0x177] sm:$0x3] %v3125
  %3150 = vst [vmem:[%s2797 + $0x1bf] sm:$0x3] %v3126
  %3151 = vst [vmem:[%s2797 + $0x1d7] sm:$0x3] %v3126
  %3152 = vst [vmem:[%s2797 + $0x1ef] sm:$0x3] %v3127
  %3153 = vst [vmem:[%s2797 + $0x207] sm:$0x3] %v3127
  %3154 = vst [vmem:[%s2797 + $0x21f] sm:$0x3] %v3128
  %3155 = vst [vmem:[%s2797 + $0x237] sm:$0x3] %v3128
  %3156 = vst [vmem:[%s2797 + $0x24f] sm:$0x3] %v3129
  %3157 = vst [vmem:[%s2797 + $0x267] sm:$0x3] %v3129
  %3158 = vst [vmem:[%s2797 + $0x27f] sm:$0x3] %v3130
  %3159 = vst [vmem:[%s2797 + $0x297] sm:$0x3] %v3130
  %3160 = vst [vmem:[%s2797 + $0x2af] sm:$0x3] %v3131
  %3161 = vst [vmem:[%s2797 + $0x2c7] sm:$0x3] %v3131
  %3162 = vst [vmem:[%s2797 + $0x2df] sm:$0x3] %v3132
  %3163 = vst [vmem:[%s2797 + $0x2f7] sm:$0x3] %v3132
  %3164 = vst [vmem:[%s2797 + $0x30f] sm:$0x3] %v3133
  %3165 = vst [vmem:[%s2797 + $0x327] sm:$0x3] %v3133
  %s3166 = sshll.u32 %s1121, 4
  %3167 = dma.done %s208, %s3166
  %v3168 = vld [vmem:[#allocation4] sm:$0xff]
  %v3169 = vld [vmem:[#allocation4 + $0x8] sm:$0xff]
  %v3170 = vld [vmem:[#allocation4 + $0x18] sm:$0xff]
  %v3171 = vld [vmem:[#allocation4 + $0x20] sm:$0xff]
  %v3172 = vld [vmem:[#allocation4 + $0x30] sm:$0xff]
  %v3173 = vld [vmem:[#allocation4 + $0x38] sm:$0xff]
  %v3174 = vld [vmem:[#allocation4 + $0x48] sm:$0xff]
  %v3175 = vld [vmem:[#allocation4 + $0x50] sm:$0xff]
  %v3176 = vld [vmem:[#allocation4 + $0x60] sm:$0xff]
  %v3177 = vld [vmem:[#allocation4 + $0x68] sm:$0xff]
  %v3178 = vld [vmem:[#allocation4 + $0x78] sm:$0xff]
  %v3179 = vld [vmem:[#allocation4 + $0x80] sm:$0xff]
  %v3180 = vld [vmem:[#allocation4 + $0x90] sm:$0xff]
  %v3181 = vld [vmem:[#allocation4 + $0x98] sm:$0xff]
  %v3182 = vld [vmem:[#allocation4 + $0xa8] sm:$0xff]
  %v3183 = vld [vmem:[#allocation4 + $0xb0] sm:$0xff]
  %v3184 = vld [vmem:[#allocation4 + $0xc0] sm:$0xff]
  %v3185 = vld [vmem:[#allocation4 + $0xc8] sm:$0xff]
  %v3186 = vld [vmem:[#allocation4 + $0xd8] sm:$0xff]
  %v3187 = vld [vmem:[#allocation4 + $0xe0] sm:$0xff]
  %v3188 = vld [vmem:[#allocation4 + $0xf0] sm:$0xff]
  %v3189 = vld [vmem:[#allocation4 + $0xf8] sm:$0xff]
  %v3190 = vld [vmem:[#allocation4 + $0x108] sm:$0xff]
  %v3191 = vld [vmem:[#allocation4 + $0x110] sm:$0xff]
  %v3192 = vld [vmem:[#allocation4 + $0x120] sm:$0xff]
  %v3193 = vld [vmem:[#allocation4 + $0x128] sm:$0xff]
  %v3194 = vld [vmem:[#allocation4 + $0x138] sm:$0xff]
  %v3195 = vld [vmem:[#allocation4 + $0x140] sm:$0xff]
  %v3196 = vld [vmem:[#allocation4 + $0x150] sm:$0xff]
  %v3197 = vld [vmem:[#allocation4 + $0x158] sm:$0xff]
  %v3198 = vld [vmem:[#allocation4 + $0x168] sm:$0xff]
  %v3199 = vld [vmem:[#allocation4 + $0x170] sm:$0xff]
  %v3200 = vld [vmem:[#allocation4 + $0x1b0] sm:$0xff]
  %v3201 = vld [vmem:[#allocation4 + $0x1b8] sm:$0xff]
  %v3202 = vld [vmem:[#allocation4 + $0x1c8] sm:$0xff]
  %v3203 = vld [vmem:[#allocation4 + $0x1d0] sm:$0xff]
  %v3204 = vld [vmem:[#allocation4 + $0x1e0] sm:$0xff]
  %v3205 = vld [vmem:[#allocation4 + $0x1e8] sm:$0xff]
  %v3206 = vld [vmem:[#allocation4 + $0x1f8] sm:$0xff]
  %v3207 = vld [vmem:[#allocation4 + $0x200] sm:$0xff]
  %v3208 = vld [vmem:[#allocation4 + $0x210] sm:$0xff]
  %v3209 = vld [vmem:[#allocation4 + $0x218] sm:$0xff]
  %v3210 = vld [vmem:[#allocation4 + $0x228] sm:$0xff]
  %v3211 = vld [vmem:[#allocation4 + $0x230] sm:$0xff]
  %v3212 = vld [vmem:[#allocation4 + $0x240] sm:$0xff]
  %v3213 = vld [vmem:[#allocation4 + $0x248] sm:$0xff]
  %v3214 = vld [vmem:[#allocation4 + $0x258] sm:$0xff]
  %v3215 = vld [vmem:[#allocation4 + $0x260] sm:$0xff]
  %v3216 = vld [vmem:[#allocation4 + $0x270] sm:$0xff]
  %v3217 = vld [vmem:[#allocation4 + $0x278] sm:$0xff]
  %v3218 = vld [vmem:[#allocation4 + $0x288] sm:$0xff]
  %v3219 = vld [vmem:[#allocation4 + $0x290] sm:$0xff]
  %v3220 = vld [vmem:[#allocation4 + $0x2a0] sm:$0xff]
  %v3221 = vld [vmem:[#allocation4 + $0x2a8] sm:$0xff]
  %v3222 = vld [vmem:[#allocation4 + $0x2b8] sm:$0xff]
  %v3223 = vld [vmem:[#allocation4 + $0x2c0] sm:$0xff]
  %v3224 = vld [vmem:[#allocation4 + $0x2d0] sm:$0xff]
  %v3225 = vld [vmem:[#allocation4 + $0x2d8] sm:$0xff]
  %v3226 = vld [vmem:[#allocation4 + $0x2e8] sm:$0xff]
  %v3227 = vld [vmem:[#allocation4 + $0x2f0] sm:$0xff]
  %v3228 = vld [vmem:[#allocation4 + $0x300] sm:$0xff]
  %v3229 = vld [vmem:[#allocation4 + $0x308] sm:$0xff]
  %v3230 = vld [vmem:[#allocation4 + $0x318] sm:$0xff]
  %v3231 = vld [vmem:[#allocation4 + $0x320] sm:$0xff]
  %v3232 = vpack.c.bf16 %v3169, %v3168
  %v3233 = vpack.c.bf16 %v3171, %v3170
  %v3234 = vpack.c.bf16 %v3173, %v3172
  %v3235 = vpack.c.bf16 %v3175, %v3174
  %v3236 = vpack.c.bf16 %v3177, %v3176
  %v3237 = vpack.c.bf16 %v3179, %v3178
  %v3238 = vpack.c.bf16 %v3181, %v3180
  %v3239 = vpack.c.bf16 %v3183, %v3182
  %v3240 = vpack.c.bf16 %v3185, %v3184
  %v3241 = vpack.c.bf16 %v3187, %v3186
  %v3242 = vpack.c.bf16 %v3189, %v3188
  %v3243 = vpack.c.bf16 %v3191, %v3190
  %v3244 = vpack.c.bf16 %v3193, %v3192
  %v3245 = vpack.c.bf16 %v3195, %v3194
  %v3246 = vpack.c.bf16 %v3197, %v3196
  %v3247 = vpack.c.bf16 %v3199, %v3198
  %v3248 = vpack.c.bf16 %v3201, %v3200
  %v3249 = vpack.c.bf16 %v3203, %v3202
  %v3250 = vpack.c.bf16 %v3205, %v3204
  %v3251 = vpack.c.bf16 %v3207, %v3206
  %v3252 = vpack.c.bf16 %v3209, %v3208
  %v3253 = vpack.c.bf16 %v3211, %v3210
  %v3254 = vpack.c.bf16 %v3213, %v3212
  %v3255 = vpack.c.bf16 %v3215, %v3214
  %v3256 = vpack.c.bf16 %v3217, %v3216
  %v3257 = vpack.c.bf16 %v3219, %v3218
  %v3258 = vpack.c.bf16 %v3221, %v3220
  %v3259 = vpack.c.bf16 %v3223, %v3222
  %v3260 = vpack.c.bf16 %v3225, %v3224
  %v3261 = vpack.c.bf16 %v3227, %v3226
  %v3262 = vpack.c.bf16 %v3229, %v3228
  %v3263 = vpack.c.bf16 %v3231, %v3230
  %v3264 = vld [vmem:[#allocation7] sm:$0xf]
  %v3265 = vld [vmem:[#allocation7 + $0x4] sm:$0xf]
  %v3266 = vld [vmem:[#allocation7 + $0x8] sm:$0xf]
  %v3267 = vld [vmem:[#allocation7 + $0xc] sm:$0xf]
  %v3268 = vld [vmem:[#allocation7 + $0x10] sm:$0xf]
  %v3269 = vld [vmem:[#allocation7 + $0x14] sm:$0xf]
  %v3270 = vld [vmem:[#allocation7 + $0x18] sm:$0xf]
  %v3271 = vld [vmem:[#allocation7 + $0x1c] sm:$0xf]
  %v3272 = vld [vmem:[#allocation7 + $0x20] sm:$0xf]
  %v3273 = vld [vmem:[#allocation7 + $0x24] sm:$0xf]
  %v3274 = vld [vmem:[#allocation7 + $0x28] sm:$0xf]
  %v3275 = vld [vmem:[#allocation7 + $0x2c] sm:$0xf]
  %v3276 = vld [vmem:[#allocation7 + $0x30] sm:$0xf]
  %v3277 = vld [vmem:[#allocation7 + $0x34] sm:$0xf]
  %v3278 = vld [vmem:[#allocation7 + $0x38] sm:$0xf]
  %v3279 = vld [vmem:[#allocation7 + $0x3c] sm:$0xf]
  %v3280 = vld [vmem:[#allocation4 + $0x1] sm:$0xff]
  %v3281 = vld [vmem:[#allocation4 + $0x9] sm:$0xff]
  %v3282 = vld [vmem:[#allocation4 + $0x19] sm:$0xff]
  %v3283 = vld [vmem:[#allocation4 + $0x21] sm:$0xff]
  %v3284 = vld [vmem:[#allocation4 + $0x31] sm:$0xff]
  %v3285 = vld [vmem:[#allocation4 + $0x39] sm:$0xff]
  %v3286 = vld [vmem:[#allocation4 + $0x49] sm:$0xff]
  %v3287 = vld [vmem:[#allocation4 + $0x51] sm:$0xff]
  %v3288 = vld [vmem:[#allocation4 + $0x61] sm:$0xff]
  %v3289 = vld [vmem:[#allocation4 + $0x69] sm:$0xff]
  %v3290 = vld [vmem:[#allocation4 + $0x79] sm:$0xff]
  %v3291 = vld [vmem:[#allocation4 + $0x81] sm:$0xff]
  %v3292 = vld [vmem:[#allocation4 + $0x91] sm:$0xff]
  %v3293 = vld [vmem:[#allocation4 + $0x99] sm:$0xff]
  %v3294 = vld [vmem:[#allocation4 + $0xa9] sm:$0xff]
  %v3295 = vld [vmem:[#allocation4 + $0xb1] sm:$0xff]
  %v3296 = vld [vmem:[#allocation4 + $0xc1] sm:$0xff]
  %v3297 = vld [vmem:[#allocation4 + $0xc9] sm:$0xff]
  %v3298 = vld [vmem:[#allocation4 + $0xd9] sm:$0xff]
  %v3299 = vld [vmem:[#allocation4 + $0xe1] sm:$0xff]
  %v3300 = vld [vmem:[#allocation4 + $0xf1] sm:$0xff]
  %v3301 = vld [vmem:[#allocation4 + $0xf9] sm:$0xff]
  %v3302 = vld [vmem:[#allocation4 + $0x109] sm:$0xff]
  %v3303 = vld [vmem:[#allocation4 + $0x111] sm:$0xff]
  %v3304 = vld [vmem:[#allocation4 + $0x121] sm:$0xff]
  %v3305 = vld [vmem:[#allocation4 + $0x129] sm:$0xff]
  %v3306 = vld [vmem:[#allocation4 + $0x139] sm:$0xff]
  %v3307 = vld [vmem:[#allocation4 + $0x141] sm:$0xff]
  %v3308 = vld [vmem:[#allocation4 + $0x151] sm:$0xff]
  %v3309 = vld [vmem:[#allocation4 + $0x159] sm:$0xff]
  %v3310 = vld [vmem:[#allocation4 + $0x169] sm:$0xff]
  %v3311 = vld [vmem:[#allocation4 + $0x171] sm:$0xff]
  %v3312 = vld [vmem:[#allocation4 + $0x1b1] sm:$0xff]
  %v3313 = vld [vmem:[#allocation4 + $0x1b9] sm:$0xff]
  %v3314 = vld [vmem:[#allocation4 + $0x1c9] sm:$0xff]
  %v3315 = vld [vmem:[#allocation4 + $0x1d1] sm:$0xff]
  %v3316 = vld [vmem:[#allocation4 + $0x1e1] sm:$0xff]
  %v3317 = vld [vmem:[#allocation4 + $0x1e9] sm:$0xff]
  %v3318 = vld [vmem:[#allocation4 + $0x1f9] sm:$0xff]
  %v3319 = vld [vmem:[#allocation4 + $0x201] sm:$0xff]
  %v3320 = vld [vmem:[#allocation4 + $0x211] sm:$0xff]
  %v3321 = vld [vmem:[#allocation4 + $0x219] sm:$0xff]
  %v3322 = vld [vmem:[#allocation4 + $0x229] sm:$0xff]
  %v3323 = vld [vmem:[#allocation4 + $0x231] sm:$0xff]
  %v3324 = vld [vmem:[#allocation4 + $0x241] sm:$0xff]
  %v3325 = vld [vmem:[#allocation4 + $0x249] sm:$0xff]
  %v3326 = vld [vmem:[#allocation4 + $0x259] sm:$0xff]
  %v3327 = vld [vmem:[#allocation4 + $0x261] sm:$0xff]
  %v3328 = vld [vmem:[#allocation4 + $0x271] sm:$0xff]
  %v3329 = vld [vmem:[#allocation4 + $0x279] sm:$0xff]
  %v3330 = vld [vmem:[#allocation4 + $0x289] sm:$0xff]
  %v3331 = vld [vmem:[#allocation4 + $0x291] sm:$0xff]
  %v3332 = vld [vmem:[#allocation4 + $0x2a1] sm:$0xff]
  %v3333 = vld [vmem:[#allocation4 + $0x2a9] sm:$0xff]
  %v3334 = vld [vmem:[#allocation4 + $0x2b9] sm:$0xff]
  %v3335 = vld [vmem:[#allocation4 + $0x2c1] sm:$0xff]
  %v3336 = vld [vmem:[#allocation4 + $0x2d1] sm:$0xff]
  %v3337 = vld [vmem:[#allocation4 + $0x2d9] sm:$0xff]
  %v3338 = vld [vmem:[#allocation4 + $0x2e9] sm:$0xff]
  %v3339 = vld [vmem:[#allocation4 + $0x2f1] sm:$0xff]
  %v3340 = vld [vmem:[#allocation4 + $0x301] sm:$0xff]
  %v3341 = vld [vmem:[#allocation4 + $0x309] sm:$0xff]
  %v3342 = vld [vmem:[#allocation4 + $0x319] sm:$0xff]
  %v3343 = vld [vmem:[#allocation4 + $0x321] sm:$0xff]
  %v3344 = vpack.c.bf16 %v3281, %v3280
  %v3345 = vpack.c.bf16 %v3283, %v3282
  %v3346 = vpack.c.bf16 %v3285, %v3284
  %v3347 = vpack.c.bf16 %v3287, %v3286
  %v3348 = vpack.c.bf16 %v3289, %v3288
  %v3349 = vpack.c.bf16 %v3291, %v3290
  %v3350 = vpack.c.bf16 %v3293, %v3292
  %v3351 = vpack.c.bf16 %v3295, %v3294
  %v3352 = vpack.c.bf16 %v3297, %v3296
  %v3353 = vpack.c.bf16 %v3299, %v3298
  %v3354 = vpack.c.bf16 %v3301, %v3300
  %v3355 = vpack.c.bf16 %v3303, %v3302
  %v3356 = vpack.c.bf16 %v3305, %v3304
  %v3357 = vpack.c.bf16 %v3307, %v3306
  %v3358 = vpack.c.bf16 %v3309, %v3308
  %v3359 = vpack.c.bf16 %v3311, %v3310
  %v3360 = vpack.c.bf16 %v3313, %v3312
  %v3361 = vpack.c.bf16 %v3315, %v3314
  %v3362 = vpack.c.bf16 %v3317, %v3316
  %v3363 = vpack.c.bf16 %v3319, %v3318
  %v3364 = vpack.c.bf16 %v3321, %v3320
  %v3365 = vpack.c.bf16 %v3323, %v3322
  %v3366 = vpack.c.bf16 %v3325, %v3324
  %v3367 = vpack.c.bf16 %v3327, %v3326
  %v3368 = vpack.c.bf16 %v3329, %v3328
  %v3369 = vpack.c.bf16 %v3331, %v3330
  %v3370 = vpack.c.bf16 %v3333, %v3332
  %v3371 = vpack.c.bf16 %v3335, %v3334
  %v3372 = vpack.c.bf16 %v3337, %v3336
  %v3373 = vpack.c.bf16 %v3339, %v3338
  %v3374 = vpack.c.bf16 %v3341, %v3340
  %v3375 = vpack.c.bf16 %v3343, %v3342
  %s3376 = scalar_lea.vmem [#allocation7], 64
  %v3377 = vld [vmem:[%s3376] sm:$0xf]
  %v3378 = vld [vmem:[%s3376 + $0x4] sm:$0xf]
  %v3379 = vld [vmem:[%s3376 + $0x8] sm:$0xf]
  %v3380 = vld [vmem:[%s3376 + $0xc] sm:$0xf]
  %v3381 = vld [vmem:[%s3376 + $0x10] sm:$0xf]
  %v3382 = vld [vmem:[%s3376 + $0x14] sm:$0xf]
  %v3383 = vld [vmem:[%s3376 + $0x18] sm:$0xf]
  %v3384 = vld [vmem:[%s3376 + $0x1c] sm:$0xf]
  %v3385 = vld [vmem:[%s3376 + $0x20] sm:$0xf]
  %v3386 = vld [vmem:[%s3376 + $0x24] sm:$0xf]
  %v3387 = vld [vmem:[%s3376 + $0x28] sm:$0xf]
  %v3388 = vld [vmem:[%s3376 + $0x2c] sm:$0xf]
  %v3389 = vld [vmem:[%s3376 + $0x30] sm:$0xf]
  %v3390 = vld [vmem:[%s3376 + $0x34] sm:$0xf]
  %v3391 = vld [vmem:[%s3376 + $0x38] sm:$0xf]
  %v3392 = vld [vmem:[%s3376 + $0x3c] sm:$0xf]
  %v3409 = vunpack.c.l.b16 %v3377
  %v3410 = vunpack.c.l.b16 %v3378
  %v3411 = vunpack.c.l.b16 %v3379
  %v3412 = vunpack.c.l.b16 %v3380
  %v3413 = vunpack.c.l.b16 %v3381
  %v3414 = vunpack.c.l.b16 %v3382
  %v3415 = vunpack.c.l.b16 %v3383
  %v3416 = vunpack.c.l.b16 %v3384
  %v3417 = vunpack.c.l.b16 %v3385
  %v3418 = vunpack.c.l.b16 %v3386
  %v3419 = vunpack.c.l.b16 %v3387
  %v3420 = vunpack.c.l.b16 %v3388
  %v3421 = vunpack.c.l.b16 %v3389
  %v3422 = vunpack.c.l.b16 %v3390
  %v3423 = vunpack.c.l.b16 %v3391
  %v3424 = vunpack.c.l.b16 %v3392
  %v3425 = vpack.c.b16 %v3410, %v3409
  %v3426 = vpack.c.b16 %v3412, %v3411
  %v3427 = vpack.c.b16 %v3414, %v3413
  %v3428 = vpack.c.b16 %v3416, %v3415
  %v3429 = vpack.c.b16 %v3418, %v3417
  %v3430 = vpack.c.b16 %v3420, %v3419
  %v3431 = vpack.c.b16 %v3422, %v3421
  %v3432 = vpack.c.b16 %v3424, %v3423
  %3441 = vmatpush.bf16.msra.mxu0 %v3432
  %3442 = vmatpush.bf16.msra.mxu0 %v3431
  %3443 = vmatpush.bf16.msra.mxu0 %v3430
  %3444 = vmatpush.bf16.msra.mxu0 %v3429
  %3445 = vmatpush.bf16.msra.mxu0 %v3428
  %3446 = vmatpush.bf16.msra.mxu0 %v3427
  %3447 = vmatpush.bf16.msra.mxu0 %v3426
  %3448 = vmatpush.bf16.msra.mxu0 %v3425
  %3449 = vmatmul.bf16.gmra.mxu0 %v3344
  %v3450 = vpop.f32.mrf.mxu0
  %v3451 = vadd.f32 0.0, %v3450
  %v3452 = vpop.f32.mrf.mxu0
  %v3453 = vadd.f32 0.0, %v3452
  %3454 = vmatmul.bf16.gmra.mxu0 %v3345
  %v3455 = vpop.f32.mrf.mxu0
  %v3456 = vadd.f32 0.0, %v3455
  %v3457 = vpop.f32.mrf.mxu0
  %v3458 = vadd.f32 0.0, %v3457
  %3459 = vmatmul.bf16.gmra.mxu0 %v3346
  %v3460 = vpop.f32.mrf.mxu0
  %v3461 = vadd.f32 0.0, %v3460
  %v3462 = vpop.f32.mrf.mxu0
  %v3463 = vadd.f32 0.0, %v3462
  %3464 = vmatmul.bf16.gmra.mxu0 %v3347
  %v3465 = vpop.f32.mrf.mxu0
  %v3466 = vadd.f32 0.0, %v3465
  %v3467 = vpop.f32.mrf.mxu0
  %v3468 = vadd.f32 0.0, %v3467
  %3469 = vmatmul.bf16.gmra.mxu0 %v3348
  %v3470 = vpop.f32.mrf.mxu0
  %v3471 = vadd.f32 0.0, %v3470
  %v3472 = vpop.f32.mrf.mxu0
  %v3473 = vadd.f32 0.0, %v3472
  %3474 = vmatmul.bf16.gmra.mxu0 %v3349
  %v3475 = vpop.f32.mrf.mxu0
  %v3476 = vadd.f32 0.0, %v3475
  %v3477 = vpop.f32.mrf.mxu0
  %v3478 = vadd.f32 0.0, %v3477
  %3479 = vmatmul.bf16.gmra.mxu0 %v3350
  %v3480 = vpop.f32.mrf.mxu0
  %v3481 = vadd.f32 0.0, %v3480
  %v3482 = vpop.f32.mrf.mxu0
  %v3483 = vadd.f32 0.0, %v3482
  %3484 = vmatmul.bf16.gmra.mxu0 %v3351
  %v3485 = vpop.f32.mrf.mxu0
  %v3486 = vadd.f32 0.0, %v3485
  %v3487 = vpop.f32.mrf.mxu0
  %v3488 = vadd.f32 0.0, %v3487
  %3489 = vmatmul.bf16.gmra.mxu0 %v3352
  %v3490 = vpop.f32.mrf.mxu0
  %v3491 = vadd.f32 0.0, %v3490
  %v3492 = vpop.f32.mrf.mxu0
  %v3493 = vadd.f32 0.0, %v3492
  %3494 = vmatmul.bf16.gmra.mxu0 %v3353
  %v3495 = vpop.f32.mrf.mxu0
  %v3496 = vadd.f32 0.0, %v3495
  %v3497 = vpop.f32.mrf.mxu0
  %v3498 = vadd.f32 0.0, %v3497
  %3499 = vmatmul.bf16.gmra.mxu0 %v3354
  %v3500 = vpop.f32.mrf.mxu0
  %v3501 = vadd.f32 0.0, %v3500
  %v3502 = vpop.f32.mrf.mxu0
  %v3503 = vadd.f32 0.0, %v3502
  %3504 = vmatmul.bf16.gmra.mxu0 %v3355
  %v3505 = vpop.f32.mrf.mxu0
  %v3506 = vadd.f32 0.0, %v3505
  %v3507 = vpop.f32.mrf.mxu0
  %v3508 = vadd.f32 0.0, %v3507
  %3509 = vmatmul.bf16.gmra.mxu0 %v3356
  %v3510 = vpop.f32.mrf.mxu0
  %v3511 = vadd.f32 0.0, %v3510
  %v3512 = vpop.f32.mrf.mxu0
  %v3513 = vadd.f32 0.0, %v3512
  %3514 = vmatmul.bf16.gmra.mxu0 %v3357
  %v3515 = vpop.f32.mrf.mxu0
  %v3516 = vadd.f32 0.0, %v3515
  %v3517 = vpop.f32.mrf.mxu0
  %v3518 = vadd.f32 0.0, %v3517
  %3519 = vmatmul.bf16.gmra.mxu0 %v3358
  %v3520 = vpop.f32.mrf.mxu0
  %v3521 = vadd.f32 0.0, %v3520
  %v3522 = vpop.f32.mrf.mxu0
  %v3523 = vadd.f32 0.0, %v3522
  %3524 = vmatmul.bf16.gmra.mxu0 %v3359
  %v3525 = vpop.f32.mrf.mxu0
  %v3526 = vadd.f32 0.0, %v3525
  %v3527 = vpop.f32.mrf.mxu0
  %v3528 = vadd.f32 0.0, %v3527
  %3529 = vmatmul.bf16.gmra.mxu0 %v3360
  %v3530 = vpop.f32.mrf.mxu0
  %v3531 = vadd.f32 0.0, %v3530
  %v3532 = vpop.f32.mrf.mxu0
  %v3533 = vadd.f32 0.0, %v3532
  %3534 = vmatmul.bf16.gmra.mxu0 %v3361
  %v3535 = vpop.f32.mrf.mxu0
  %v3536 = vadd.f32 0.0, %v3535
  %v3537 = vpop.f32.mrf.mxu0
  %v3538 = vadd.f32 0.0, %v3537
  %3539 = vmatmul.bf16.gmra.mxu0 %v3362
  %v3540 = vpop.f32.mrf.mxu0
  %v3541 = vadd.f32 0.0, %v3540
  %v3542 = vpop.f32.mrf.mxu0
  %v3543 = vadd.f32 0.0, %v3542
  %3544 = vmatmul.bf16.gmra.mxu0 %v3363
  %v3545 = vpop.f32.mrf.mxu0
  %v3546 = vadd.f32 0.0, %v3545
  %v3547 = vpop.f32.mrf.mxu0
  %v3548 = vadd.f32 0.0, %v3547
  %3549 = vmatmul.bf16.gmra.mxu0 %v3364
  %v3550 = vpop.f32.mrf.mxu0
  %v3551 = vadd.f32 0.0, %v3550
  %v3552 = vpop.f32.mrf.mxu0
  %v3553 = vadd.f32 0.0, %v3552
  %3554 = vmatmul.bf16.gmra.mxu0 %v3365
  %v3555 = vpop.f32.mrf.mxu0
  %v3556 = vadd.f32 0.0, %v3555
  %v3557 = vpop.f32.mrf.mxu0
  %v3558 = vadd.f32 0.0, %v3557
  %3559 = vmatmul.bf16.gmra.mxu0 %v3366
  %v3560 = vpop.f32.mrf.mxu0
  %v3561 = vadd.f32 0.0, %v3560
  %v3562 = vpop.f32.mrf.mxu0
  %v3563 = vadd.f32 0.0, %v3562
  %3564 = vmatmul.bf16.gmra.mxu0 %v3367
  %v3565 = vpop.f32.mrf.mxu0
  %v3566 = vadd.f32 0.0, %v3565
  %v3567 = vpop.f32.mrf.mxu0
  %v3568 = vadd.f32 0.0, %v3567
  %3569 = vmatmul.bf16.gmra.mxu0 %v3368
  %v3570 = vpop.f32.mrf.mxu0
  %v3571 = vadd.f32 0.0, %v3570
  %v3572 = vpop.f32.mrf.mxu0
  %v3573 = vadd.f32 0.0, %v3572
  %3574 = vmatmul.bf16.gmra.mxu0 %v3369
  %v3575 = vpop.f32.mrf.mxu0
  %v3576 = vadd.f32 0.0, %v3575
  %v3577 = vpop.f32.mrf.mxu0
  %v3578 = vadd.f32 0.0, %v3577
  %3579 = vmatmul.bf16.gmra.mxu0 %v3370
  %v3580 = vpop.f32.mrf.mxu0
  %v3581 = vadd.f32 0.0, %v3580
  %v3582 = vpop.f32.mrf.mxu0
  %v3583 = vadd.f32 0.0, %v3582
  %3584 = vmatmul.bf16.gmra.mxu0 %v3371
  %v3585 = vpop.f32.mrf.mxu0
  %v3586 = vadd.f32 0.0, %v3585
  %v3587 = vpop.f32.mrf.mxu0
  %v3588 = vadd.f32 0.0, %v3587
  %3589 = vmatmul.bf16.gmra.mxu0 %v3372
  %v3590 = vpop.f32.mrf.mxu0
  %v3591 = vadd.f32 0.0, %v3590
  %v3592 = vpop.f32.mrf.mxu0
  %v3593 = vadd.f32 0.0, %v3592
  %3594 = vmatmul.bf16.gmra.mxu0 %v3373
  %v3595 = vpop.f32.mrf.mxu0
  %v3596 = vadd.f32 0.0, %v3595
  %v3597 = vpop.f32.mrf.mxu0
  %v3598 = vadd.f32 0.0, %v3597
  %3599 = vmatmul.bf16.gmra.mxu0 %v3374
  %v3600 = vpop.f32.mrf.mxu0
  %v3601 = vadd.f32 0.0, %v3600
  %v3602 = vpop.f32.mrf.mxu0
  %v3603 = vadd.f32 0.0, %v3602
  %3604 = vmatmul.bf16.gmra.mxu0 %v3375
  %v3605 = vpop.f32.mrf.mxu0
  %v3606 = vadd.f32 0.0, %v3605
  %v3607 = vpop.f32.mrf.mxu0
  %v3608 = vadd.f32 0.0, %v3607
  %3609 = vdwg.mxu0
  %v3626 = vunpack.c.l.b16 %v3264
  %v3627 = vunpack.c.l.b16 %v3265
  %v3628 = vunpack.c.l.b16 %v3266
  %v3629 = vunpack.c.l.b16 %v3267
  %v3630 = vunpack.c.l.b16 %v3268
  %v3631 = vunpack.c.l.b16 %v3269
  %v3632 = vunpack.c.l.b16 %v3270
  %v3633 = vunpack.c.l.b16 %v3271
  %v3634 = vunpack.c.l.b16 %v3272
  %v3635 = vunpack.c.l.b16 %v3273
  %v3636 = vunpack.c.l.b16 %v3274
  %v3637 = vunpack.c.l.b16 %v3275
  %v3638 = vunpack.c.l.b16 %v3276
  %v3639 = vunpack.c.l.b16 %v3277
  %v3640 = vunpack.c.l.b16 %v3278
  %v3641 = vunpack.c.l.b16 %v3279
  %v3642 = vpack.c.b16 %v3627, %v3626
  %v3643 = vpack.c.b16 %v3629, %v3628
  %v3644 = vpack.c.b16 %v3631, %v3630
  %v3645 = vpack.c.b16 %v3633, %v3632
  %v3646 = vpack.c.b16 %v3635, %v3634
  %v3647 = vpack.c.b16 %v3637, %v3636
  %v3648 = vpack.c.b16 %v3639, %v3638
  %v3649 = vpack.c.b16 %v3641, %v3640
  %3658 = vmatpush.bf16.msra.mxu0 %v3649
  %3659 = vmatpush.bf16.msra.mxu0 %v3648
  %3660 = vmatpush.bf16.msra.mxu0 %v3647
  %3661 = vmatpush.bf16.msra.mxu0 %v3646
  %3662 = vmatpush.bf16.msra.mxu0 %v3645
  %3663 = vmatpush.bf16.msra.mxu0 %v3644
  %3664 = vmatpush.bf16.msra.mxu0 %v3643
  %3665 = vmatpush.bf16.msra.mxu0 %v3642
  %3666 = vmatmul.bf16.gmra.mxu0 %v3232
  %v3667 = vpop.f32.mrf.mxu0
  %v3668 = vadd.f32 %v3451, %v3667
  %v3669 = vpop.f32.mrf.mxu0
  %v3670 = vadd.f32 %v3453, %v3669
  %3671 = vmatmul.bf16.gmra.mxu0 %v3233
  %v3672 = vpop.f32.mrf.mxu0
  %v3673 = vadd.f32 %v3456, %v3672
  %v3674 = vpop.f32.mrf.mxu0
  %v3675 = vadd.f32 %v3458, %v3674
  %3676 = vmatmul.bf16.gmra.mxu0 %v3234
  %v3677 = vpop.f32.mrf.mxu0
  %v3678 = vadd.f32 %v3461, %v3677
  %v3679 = vpop.f32.mrf.mxu0
  %v3680 = vadd.f32 %v3463, %v3679
  %3681 = vmatmul.bf16.gmra.mxu0 %v3235
  %v3682 = vpop.f32.mrf.mxu0
  %v3683 = vadd.f32 %v3466, %v3682
  %v3684 = vpop.f32.mrf.mxu0
  %v3685 = vadd.f32 %v3468, %v3684
  %3686 = vmatmul.bf16.gmra.mxu0 %v3236
  %v3687 = vpop.f32.mrf.mxu0
  %v3688 = vadd.f32 %v3471, %v3687
  %v3689 = vpop.f32.mrf.mxu0
  %v3690 = vadd.f32 %v3473, %v3689
  %3691 = vmatmul.bf16.gmra.mxu0 %v3237
  %v3692 = vpop.f32.mrf.mxu0
  %v3693 = vadd.f32 %v3476, %v3692
  %v3694 = vpop.f32.mrf.mxu0
  %v3695 = vadd.f32 %v3478, %v3694
  %3696 = vmatmul.bf16.gmra.mxu0 %v3238
  %v3697 = vpop.f32.mrf.mxu0
  %v3698 = vadd.f32 %v3481, %v3697
  %v3699 = vpop.f32.mrf.mxu0
  %v3700 = vadd.f32 %v3483, %v3699
  %3701 = vmatmul.bf16.gmra.mxu0 %v3239
  %v3702 = vpop.f32.mrf.mxu0
  %v3703 = vadd.f32 %v3486, %v3702
  %v3704 = vpop.f32.mrf.mxu0
  %v3705 = vadd.f32 %v3488, %v3704
  %3706 = vmatmul.bf16.gmra.mxu0 %v3240
  %v3707 = vpop.f32.mrf.mxu0
  %v3708 = vadd.f32 %v3491, %v3707
  %v3709 = vpop.f32.mrf.mxu0
  %v3710 = vadd.f32 %v3493, %v3709
  %3711 = vmatmul.bf16.gmra.mxu0 %v3241
  %v3712 = vpop.f32.mrf.mxu0
  %v3713 = vadd.f32 %v3496, %v3712
  %v3714 = vpop.f32.mrf.mxu0
  %v3715 = vadd.f32 %v3498, %v3714
  %3716 = vmatmul.bf16.gmra.mxu0 %v3242
  %v3717 = vpop.f32.mrf.mxu0
  %v3718 = vadd.f32 %v3501, %v3717
  %v3719 = vpop.f32.mrf.mxu0
  %v3720 = vadd.f32 %v3503, %v3719
  %3721 = vmatmul.bf16.gmra.mxu0 %v3243
  %v3722 = vpop.f32.mrf.mxu0
  %v3723 = vadd.f32 %v3506, %v3722
  %v3724 = vpop.f32.mrf.mxu0
  %v3725 = vadd.f32 %v3508, %v3724
  %3726 = vmatmul.bf16.gmra.mxu0 %v3244
  %v3727 = vpop.f32.mrf.mxu0
  %v3728 = vadd.f32 %v3511, %v3727
  %v3729 = vpop.f32.mrf.mxu0
  %v3730 = vadd.f32 %v3513, %v3729
  %3731 = vmatmul.bf16.gmra.mxu0 %v3245
  %v3732 = vpop.f32.mrf.mxu0
  %v3733 = vadd.f32 %v3516, %v3732
  %v3734 = vpop.f32.mrf.mxu0
  %v3735 = vadd.f32 %v3518, %v3734
  %3736 = vmatmul.bf16.gmra.mxu0 %v3246
  %v3737 = vpop.f32.mrf.mxu0
  %v3738 = vadd.f32 %v3521, %v3737
  %v3739 = vpop.f32.mrf.mxu0
  %v3740 = vadd.f32 %v3523, %v3739
  %3741 = vmatmul.bf16.gmra.mxu0 %v3247
  %v3742 = vpop.f32.mrf.mxu0
  %v3743 = vadd.f32 %v3526, %v3742
  %v3744 = vpop.f32.mrf.mxu0
  %v3745 = vadd.f32 %v3528, %v3744
  %3746 = vmatmul.bf16.gmra.mxu0 %v3248
  %v3747 = vpop.f32.mrf.mxu0
  %v3748 = vadd.f32 %v3531, %v3747
  %v3749 = vpop.f32.mrf.mxu0
  %v3750 = vadd.f32 %v3533, %v3749
  %3751 = vmatmul.bf16.gmra.mxu0 %v3249
  %v3752 = vpop.f32.mrf.mxu0
  %v3753 = vadd.f32 %v3536, %v3752
  %v3754 = vpop.f32.mrf.mxu0
  %v3755 = vadd.f32 %v3538, %v3754
  %3756 = vmatmul.bf16.gmra.mxu0 %v3250
  %v3757 = vpop.f32.mrf.mxu0
  %v3758 = vadd.f32 %v3541, %v3757
  %v3759 = vpop.f32.mrf.mxu0
  %v3760 = vadd.f32 %v3543, %v3759
  %3761 = vmatmul.bf16.gmra.mxu0 %v3251
  %v3762 = vpop.f32.mrf.mxu0
  %v3763 = vadd.f32 %v3546, %v3762
  %v3764 = vpop.f32.mrf.mxu0
  %v3765 = vadd.f32 %v3548, %v3764
  %3766 = vmatmul.bf16.gmra.mxu0 %v3252
  %v3767 = vpop.f32.mrf.mxu0
  %v3768 = vadd.f32 %v3551, %v3767
  %v3769 = vpop.f32.mrf.mxu0
  %v3770 = vadd.f32 %v3553, %v3769
  %3771 = vmatmul.bf16.gmra.mxu0 %v3253
  %v3772 = vpop.f32.mrf.mxu0
  %v3773 = vadd.f32 %v3556, %v3772
  %v3774 = vpop.f32.mrf.mxu0
  %v3775 = vadd.f32 %v3558, %v3774
  %3776 = vmatmul.bf16.gmra.mxu0 %v3254
  %v3777 = vpop.f32.mrf.mxu0
  %v3778 = vadd.f32 %v3561, %v3777
  %v3779 = vpop.f32.mrf.mxu0
  %v3780 = vadd.f32 %v3563, %v3779
  %3781 = vmatmul.bf16.gmra.mxu0 %v3255
  %v3782 = vpop.f32.mrf.mxu0
  %v3783 = vadd.f32 %v3566, %v3782
  %v3784 = vpop.f32.mrf.mxu0
  %v3785 = vadd.f32 %v3568, %v3784
  %3786 = vmatmul.bf16.gmra.mxu0 %v3256
  %v3787 = vpop.f32.mrf.mxu0
  %v3788 = vadd.f32 %v3571, %v3787
  %v3789 = vpop.f32.mrf.mxu0
  %v3790 = vadd.f32 %v3573, %v3789
  %3791 = vmatmul.bf16.gmra.mxu0 %v3257
  %v3792 = vpop.f32.mrf.mxu0
  %v3793 = vadd.f32 %v3576, %v3792
  %v3794 = vpop.f32.mrf.mxu0
  %v3795 = vadd.f32 %v3578, %v3794
  %3796 = vmatmul.bf16.gmra.mxu0 %v3258
  %v3797 = vpop.f32.mrf.mxu0
  %v3798 = vadd.f32 %v3581, %v3797
  %v3799 = vpop.f32.mrf.mxu0
  %v3800 = vadd.f32 %v3583, %v3799
  %3801 = vmatmul.bf16.gmra.mxu0 %v3259
  %v3802 = vpop.f32.mrf.mxu0
  %v3803 = vadd.f32 %v3586, %v3802
  %v3804 = vpop.f32.mrf.mxu0
  %v3805 = vadd.f32 %v3588, %v3804
  %3806 = vmatmul.bf16.gmra.mxu0 %v3260
  %v3807 = vpop.f32.mrf.mxu0
  %v3808 = vadd.f32 %v3591, %v3807
  %v3809 = vpop.f32.mrf.mxu0
  %v3810 = vadd.f32 %v3593, %v3809
  %3811 = vmatmul.bf16.gmra.mxu0 %v3261
  %v3812 = vpop.f32.mrf.mxu0
  %v3813 = vadd.f32 %v3596, %v3812
  %v3814 = vpop.f32.mrf.mxu0
  %v3815 = vadd.f32 %v3598, %v3814
  %3816 = vmatmul.bf16.gmra.mxu0 %v3262
  %v3817 = vpop.f32.mrf.mxu0
  %v3818 = vadd.f32 %v3601, %v3817
  %v3819 = vpop.f32.mrf.mxu0
  %v3820 = vadd.f32 %v3603, %v3819
  %3821 = vmatmul.bf16.gmra.mxu0 %v3263
  %v3822 = vpop.f32.mrf.mxu0
  %v3823 = vadd.f32 %v3606, %v3822
  %v3824 = vpop.f32.mrf.mxu0
  %v3825 = vadd.f32 %v3608, %v3824
  %3826 = vdwg.mxu0
  %v3827 = vld [vmem:[#allocation4 + $0x2] sm:$0xff]
  %v3828 = vld [vmem:[#allocation4 + $0xa] sm:$0xff]
  %v3829 = vld [vmem:[#allocation4 + $0x1a] sm:$0xff]
  %v3830 = vld [vmem:[#allocation4 + $0x22] sm:$0xff]
  %v3831 = vld [vmem:[#allocation4 + $0x32] sm:$0xff]
  %v3832 = vld [vmem:[#allocation4 + $0x3a] sm:$0xff]
  %v3833 = vld [vmem:[#allocation4 + $0x4a] sm:$0xff]
  %v3834 = vld [vmem:[#allocation4 + $0x52] sm:$0xff]
  %v3835 = vld [vmem:[#allocation4 + $0x62] sm:$0xff]
  %v3836 = vld [vmem:[#allocation4 + $0x6a] sm:$0xff]
  %v3837 = vld [vmem:[#allocation4 + $0x7a] sm:$0xff]
  %v3838 = vld [vmem:[#allocation4 + $0x82] sm:$0xff]
  %v3839 = vld [vmem:[#allocation4 + $0x92] sm:$0xff]
  %v3840 = vld [vmem:[#allocation4 + $0x9a] sm:$0xff]
  %v3841 = vld [vmem:[#allocation4 + $0xaa] sm:$0xff]
  %v3842 = vld [vmem:[#allocation4 + $0xb2] sm:$0xff]
  %v3843 = vld [vmem:[#allocation4 + $0xc2] sm:$0xff]
  %v3844 = vld [vmem:[#allocation4 + $0xca] sm:$0xff]
  %v3845 = vld [vmem:[#allocation4 + $0xda] sm:$0xff]
  %v3846 = vld [vmem:[#allocation4 + $0xe2] sm:$0xff]
  %v3847 = vld [vmem:[#allocation4 + $0xf2] sm:$0xff]
  %v3848 = vld [vmem:[#allocation4 + $0xfa] sm:$0xff]
  %v3849 = vld [vmem:[#allocation4 + $0x10a] sm:$0xff]
  %v3850 = vld [vmem:[#allocation4 + $0x112] sm:$0xff]
  %v3851 = vld [vmem:[#allocation4 + $0x122] sm:$0xff]
  %v3852 = vld [vmem:[#allocation4 + $0x12a] sm:$0xff]
  %v3853 = vld [vmem:[#allocation4 + $0x13a] sm:$0xff]
  %v3854 = vld [vmem:[#allocation4 + $0x142] sm:$0xff]
  %v3855 = vld [vmem:[#allocation4 + $0x152] sm:$0xff]
  %v3856 = vld [vmem:[#allocation4 + $0x15a] sm:$0xff]
  %v3857 = vld [vmem:[#allocation4 + $0x16a] sm:$0xff]
  %v3858 = vld [vmem:[#allocation4 + $0x172] sm:$0xff]
  %v3859 = vld [vmem:[#allocation4 + $0x1b2] sm:$0xff]
  %v3860 = vld [vmem:[#allocation4 + $0x1ba] sm:$0xff]
  %v3861 = vld [vmem:[#allocation4 + $0x1ca] sm:$0xff]
  %v3862 = vld [vmem:[#allocation4 + $0x1d2] sm:$0xff]
  %v3863 = vld [vmem:[#allocation4 + $0x1e2] sm:$0xff]
  %v3864 = vld [vmem:[#allocation4 + $0x1ea] sm:$0xff]
  %v3865 = vld [vmem:[#allocation4 + $0x1fa] sm:$0xff]
  %v3866 = vld [vmem:[#allocation4 + $0x202] sm:$0xff]
  %v3867 = vld [vmem:[#allocation4 + $0x212] sm:$0xff]
  %v3868 = vld [vmem:[#allocation4 + $0x21a] sm:$0xff]
  %v3869 = vld [vmem:[#allocation4 + $0x22a] sm:$0xff]
  %v3870 = vld [vmem:[#allocation4 + $0x232] sm:$0xff]
  %v3871 = vld [vmem:[#allocation4 + $0x242] sm:$0xff]
  %v3872 = vld [vmem:[#allocation4 + $0x24a] sm:$0xff]
  %v3873 = vld [vmem:[#allocation4 + $0x25a] sm:$0xff]
  %v3874 = vld [vmem:[#allocation4 + $0x262] sm:$0xff]
  %v3875 = vld [vmem:[#allocation4 + $0x272] sm:$0xff]
  %v3876 = vld [vmem:[#allocation4 + $0x27a] sm:$0xff]
  %v3877 = vld [vmem:[#allocation4 + $0x28a] sm:$0xff]
  %v3878 = vld [vmem:[#allocation4 + $0x292] sm:$0xff]
  %v3879 = vld [vmem:[#allocation4 + $0x2a2] sm:$0xff]
  %v3880 = vld [vmem:[#allocation4 + $0x2aa] sm:$0xff]
  %v3881 = vld [vmem:[#allocation4 + $0x2ba] sm:$0xff]
  %v3882 = vld [vmem:[#allocation4 + $0x2c2] sm:$0xff]
  %v3883 = vld [vmem:[#allocation4 + $0x2d2] sm:$0xff]
  %v3884 = vld [vmem:[#allocation4 + $0x2da] sm:$0xff]
  %v3885 = vld [vmem:[#allocation4 + $0x2ea] sm:$0xff]
  %v3886 = vld [vmem:[#allocation4 + $0x2f2] sm:$0xff]
  %v3887 = vld [vmem:[#allocation4 + $0x302] sm:$0xff]
  %v3888 = vld [vmem:[#allocation4 + $0x30a] sm:$0xff]
  %v3889 = vld [vmem:[#allocation4 + $0x31a] sm:$0xff]
  %v3890 = vld [vmem:[#allocation4 + $0x322] sm:$0xff]
  %v3891 = vpack.c.bf16 %v3828, %v3827
  %v3892 = vpack.c.bf16 %v3830, %v3829
  %v3893 = vpack.c.bf16 %v3832, %v3831
  %v3894 = vpack.c.bf16 %v3834, %v3833
  %v3895 = vpack.c.bf16 %v3836, %v3835
  %v3896 = vpack.c.bf16 %v3838, %v3837
  %v3897 = vpack.c.bf16 %v3840, %v3839
  %v3898 = vpack.c.bf16 %v3842, %v3841
  %v3899 = vpack.c.bf16 %v3844, %v3843
  %v3900 = vpack.c.bf16 %v3846, %v3845
  %v3901 = vpack.c.bf16 %v3848, %v3847
  %v3902 = vpack.c.bf16 %v3850, %v3849
  %v3903 = vpack.c.bf16 %v3852, %v3851
  %v3904 = vpack.c.bf16 %v3854, %v3853
  %v3905 = vpack.c.bf16 %v3856, %v3855
  %v3906 = vpack.c.bf16 %v3858, %v3857
  %v3907 = vpack.c.bf16 %v3860, %v3859
  %v3908 = vpack.c.bf16 %v3862, %v3861
  %v3909 = vpack.c.bf16 %v3864, %v3863
  %v3910 = vpack.c.bf16 %v3866, %v3865
  %v3911 = vpack.c.bf16 %v3868, %v3867
  %v3912 = vpack.c.bf16 %v3870, %v3869
  %v3913 = vpack.c.bf16 %v3872, %v3871
  %v3914 = vpack.c.bf16 %v3874, %v3873
  %v3915 = vpack.c.bf16 %v3876, %v3875
  %v3916 = vpack.c.bf16 %v3878, %v3877
  %v3917 = vpack.c.bf16 %v3880, %v3879
  %v3918 = vpack.c.bf16 %v3882, %v3881
  %v3919 = vpack.c.bf16 %v3884, %v3883
  %v3920 = vpack.c.bf16 %v3886, %v3885
  %v3921 = vpack.c.bf16 %v3888, %v3887
  %v3922 = vpack.c.bf16 %v3890, %v3889
  %s3923 = scalar_lea.vmem [#allocation7], 128
  %v3924 = vld [vmem:[%s3923] sm:$0xf]
  %v3925 = vld [vmem:[%s3923 + $0x4] sm:$0xf]
  %v3926 = vld [vmem:[%s3923 + $0x8] sm:$0xf]
  %v3927 = vld [vmem:[%s3923 + $0xc] sm:$0xf]
  %v3928 = vld [vmem:[%s3923 + $0x10] sm:$0xf]
  %v3929 = vld [vmem:[%s3923 + $0x14] sm:$0xf]
  %v3930 = vld [vmem:[%s3923 + $0x18] sm:$0xf]
  %v3931 = vld [vmem:[%s3923 + $0x1c] sm:$0xf]
  %v3932 = vld [vmem:[%s3923 + $0x20] sm:$0xf]
  %v3933 = vld [vmem:[%s3923 + $0x24] sm:$0xf]
  %v3934 = vld [vmem:[%s3923 + $0x28] sm:$0xf]
  %v3935 = vld [vmem:[%s3923 + $0x2c] sm:$0xf]
  %v3936 = vld [vmem:[%s3923 + $0x30] sm:$0xf]
  %v3937 = vld [vmem:[%s3923 + $0x34] sm:$0xf]
  %v3938 = vld [vmem:[%s3923 + $0x38] sm:$0xf]
  %v3939 = vld [vmem:[%s3923 + $0x3c] sm:$0xf]
  %v3956 = vunpack.c.l.b16 %v3924
  %v3957 = vunpack.c.l.b16 %v3925
  %v3958 = vunpack.c.l.b16 %v3926
  %v3959 = vunpack.c.l.b16 %v3927
  %v3960 = vunpack.c.l.b16 %v3928
  %v3961 = vunpack.c.l.b16 %v3929
  %v3962 = vunpack.c.l.b16 %v3930
  %v3963 = vunpack.c.l.b16 %v3931
  %v3964 = vunpack.c.l.b16 %v3932
  %v3965 = vunpack.c.l.b16 %v3933
  %v3966 = vunpack.c.l.b16 %v3934
  %v3967 = vunpack.c.l.b16 %v3935
  %v3968 = vunpack.c.l.b16 %v3936
  %v3969 = vunpack.c.l.b16 %v3937
  %v3970 = vunpack.c.l.b16 %v3938
  %v3971 = vunpack.c.l.b16 %v3939
  %v3972 = vpack.c.b16 %v3957, %v3956
  %v3973 = vpack.c.b16 %v3959, %v3958
  %v3974 = vpack.c.b16 %v3961, %v3960
  %v3975 = vpack.c.b16 %v3963, %v3962
  %v3976 = vpack.c.b16 %v3965, %v3964
  %v3977 = vpack.c.b16 %v3967, %v3966
  %v3978 = vpack.c.b16 %v3969, %v3968
  %v3979 = vpack.c.b16 %v3971, %v3970
  %3988 = vmatpush.bf16.msra.mxu0 %v3979
  %3989 = vmatpush.bf16.msra.mxu0 %v3978
  %3990 = vmatpush.bf16.msra.mxu0 %v3977
  %3991 = vmatpush.bf16.msra.mxu0 %v3976
  %3992 = vmatpush.bf16.msra.mxu0 %v3975
  %3993 = vmatpush.bf16.msra.mxu0 %v3974
  %3994 = vmatpush.bf16.msra.mxu0 %v3973
  %3995 = vmatpush.bf16.msra.mxu0 %v3972
  %3996 = vmatmul.bf16.gmra.mxu0 %v3891
  %v3997 = vpop.f32.mrf.mxu0
  %v3998 = vadd.f32 0.0, %v3997
  %v3999 = vpop.f32.mrf.mxu0
  %v4000 = vadd.f32 0.0, %v3999
  %4001 = vmatmul.bf16.gmra.mxu0 %v3892
  %v4002 = vpop.f32.mrf.mxu0
  %v4003 = vadd.f32 0.0, %v4002
  %v4004 = vpop.f32.mrf.mxu0
  %v4005 = vadd.f32 0.0, %v4004
  %4006 = vmatmul.bf16.gmra.mxu0 %v3893
  %v4007 = vpop.f32.mrf.mxu0
  %v4008 = vadd.f32 0.0, %v4007
  %v4009 = vpop.f32.mrf.mxu0
  %v4010 = vadd.f32 0.0, %v4009
  %4011 = vmatmul.bf16.gmra.mxu0 %v3894
  %v4012 = vpop.f32.mrf.mxu0
  %v4013 = vadd.f32 0.0, %v4012
  %v4014 = vpop.f32.mrf.mxu0
  %v4015 = vadd.f32 0.0, %v4014
  %4016 = vmatmul.bf16.gmra.mxu0 %v3895
  %v4017 = vpop.f32.mrf.mxu0
  %v4018 = vadd.f32 0.0, %v4017
  %v4019 = vpop.f32.mrf.mxu0
  %v4020 = vadd.f32 0.0, %v4019
  %4021 = vmatmul.bf16.gmra.mxu0 %v3896
  %v4022 = vpop.f32.mrf.mxu0
  %v4023 = vadd.f32 0.0, %v4022
  %v4024 = vpop.f32.mrf.mxu0
  %v4025 = vadd.f32 0.0, %v4024
  %4026 = vmatmul.bf16.gmra.mxu0 %v3897
  %v4027 = vpop.f32.mrf.mxu0
  %v4028 = vadd.f32 0.0, %v4027
  %v4029 = vpop.f32.mrf.mxu0
  %v4030 = vadd.f32 0.0, %v4029
  %4031 = vmatmul.bf16.gmra.mxu0 %v3898
  %v4032 = vpop.f32.mrf.mxu0
  %v4033 = vadd.f32 0.0, %v4032
  %v4034 = vpop.f32.mrf.mxu0
  %v4035 = vadd.f32 0.0, %v4034
  %4036 = vmatmul.bf16.gmra.mxu0 %v3899
  %v4037 = vpop.f32.mrf.mxu0
  %v4038 = vadd.f32 0.0, %v4037
  %v4039 = vpop.f32.mrf.mxu0
  %v4040 = vadd.f32 0.0, %v4039
  %4041 = vmatmul.bf16.gmra.mxu0 %v3900
  %v4042 = vpop.f32.mrf.mxu0
  %v4043 = vadd.f32 0.0, %v4042
  %v4044 = vpop.f32.mrf.mxu0
  %v4045 = vadd.f32 0.0, %v4044
  %4046 = vmatmul.bf16.gmra.mxu0 %v3901
  %v4047 = vpop.f32.mrf.mxu0
  %v4048 = vadd.f32 0.0, %v4047
  %v4049 = vpop.f32.mrf.mxu0
  %v4050 = vadd.f32 0.0, %v4049
  %4051 = vmatmul.bf16.gmra.mxu0 %v3902
  %v4052 = vpop.f32.mrf.mxu0
  %v4053 = vadd.f32 0.0, %v4052
  %v4054 = vpop.f32.mrf.mxu0
  %v4055 = vadd.f32 0.0, %v4054
  %4056 = vmatmul.bf16.gmra.mxu0 %v3903
  %v4057 = vpop.f32.mrf.mxu0
  %v4058 = vadd.f32 0.0, %v4057
  %v4059 = vpop.f32.mrf.mxu0
  %v4060 = vadd.f32 0.0, %v4059
  %4061 = vmatmul.bf16.gmra.mxu0 %v3904
  %v4062 = vpop.f32.mrf.mxu0
  %v4063 = vadd.f32 0.0, %v4062
  %v4064 = vpop.f32.mrf.mxu0
  %v4065 = vadd.f32 0.0, %v4064
  %4066 = vmatmul.bf16.gmra.mxu0 %v3905
  %v4067 = vpop.f32.mrf.mxu0
  %v4068 = vadd.f32 0.0, %v4067
  %v4069 = vpop.f32.mrf.mxu0
  %v4070 = vadd.f32 0.0, %v4069
  %4071 = vmatmul.bf16.gmra.mxu0 %v3906
  %v4072 = vpop.f32.mrf.mxu0
  %v4073 = vadd.f32 0.0, %v4072
  %v4074 = vpop.f32.mrf.mxu0
  %v4075 = vadd.f32 0.0, %v4074
  %4076 = vmatmul.bf16.gmra.mxu0 %v3907
  %v4077 = vpop.f32.mrf.mxu0
  %v4078 = vadd.f32 0.0, %v4077
  %v4079 = vpop.f32.mrf.mxu0
  %v4080 = vadd.f32 0.0, %v4079
  %4081 = vmatmul.bf16.gmra.mxu0 %v3908
  %v4082 = vpop.f32.mrf.mxu0
  %v4083 = vadd.f32 0.0, %v4082
  %v4084 = vpop.f32.mrf.mxu0
  %v4085 = vadd.f32 0.0, %v4084
  %4086 = vmatmul.bf16.gmra.mxu0 %v3909
  %v4087 = vpop.f32.mrf.mxu0
  %v4088 = vadd.f32 0.0, %v4087
  %v4089 = vpop.f32.mrf.mxu0
  %v4090 = vadd.f32 0.0, %v4089
  %4091 = vmatmul.bf16.gmra.mxu0 %v3910
  %v4092 = vpop.f32.mrf.mxu0
  %v4093 = vadd.f32 0.0, %v4092
  %v4094 = vpop.f32.mrf.mxu0
  %v4095 = vadd.f32 0.0, %v4094
  %4096 = vmatmul.bf16.gmra.mxu0 %v3911
  %v4097 = vpop.f32.mrf.mxu0
  %v4098 = vadd.f32 0.0, %v4097
  %v4099 = vpop.f32.mrf.mxu0
  %v4100 = vadd.f32 0.0, %v4099
  %4101 = vmatmul.bf16.gmra.mxu0 %v3912
  %v4102 = vpop.f32.mrf.mxu0
  %v4103 = vadd.f32 0.0, %v4102
  %v4104 = vpop.f32.mrf.mxu0
  %v4105 = vadd.f32 0.0, %v4104
  %4106 = vmatmul.bf16.gmra.mxu0 %v3913
  %v4107 = vpop.f32.mrf.mxu0
  %v4108 = vadd.f32 0.0, %v4107
  %v4109 = vpop.f32.mrf.mxu0
  %v4110 = vadd.f32 0.0, %v4109
  %4111 = vmatmul.bf16.gmra.mxu0 %v3914
  %v4112 = vpop.f32.mrf.mxu0
  %v4113 = vadd.f32 0.0, %v4112
  %v4114 = vpop.f32.mrf.mxu0
  %v4115 = vadd.f32 0.0, %v4114
  %4116 = vmatmul.bf16.gmra.mxu0 %v3915
  %v4117 = vpop.f32.mrf.mxu0
  %v4118 = vadd.f32 0.0, %v4117
  %v4119 = vpop.f32.mrf.mxu0
  %v4120 = vadd.f32 0.0, %v4119
  %4121 = vmatmul.bf16.gmra.mxu0 %v3916
  %v4122 = vpop.f32.mrf.mxu0
  %v4123 = vadd.f32 0.0, %v4122
  %v4124 = vpop.f32.mrf.mxu0
  %v4125 = vadd.f32 0.0, %v4124
  %4126 = vmatmul.bf16.gmra.mxu0 %v3917
  %v4127 = vpop.f32.mrf.mxu0
  %v4128 = vadd.f32 0.0, %v4127
  %v4129 = vpop.f32.mrf.mxu0
  %v4130 = vadd.f32 0.0, %v4129
  %4131 = vmatmul.bf16.gmra.mxu0 %v3918
  %v4132 = vpop.f32.mrf.mxu0
  %v4133 = vadd.f32 0.0, %v4132
  %v4134 = vpop.f32.mrf.mxu0
  %v4135 = vadd.f32 0.0, %v4134
  %4136 = vmatmul.bf16.gmra.mxu0 %v3919
  %v4137 = vpop.f32.mrf.mxu0
  %v4138 = vadd.f32 0.0, %v4137
  %v4139 = vpop.f32.mrf.mxu0
  %v4140 = vadd.f32 0.0, %v4139
  %4141 = vmatmul.bf16.gmra.mxu0 %v3920
  %v4142 = vpop.f32.mrf.mxu0
  %v4143 = vadd.f32 0.0, %v4142
  %v4144 = vpop.f32.mrf.mxu0
  %v4145 = vadd.f32 0.0, %v4144
  %4146 = vmatmul.bf16.gmra.mxu0 %v3921
  %v4147 = vpop.f32.mrf.mxu0
  %v4148 = vadd.f32 0.0, %v4147
  %v4149 = vpop.f32.mrf.mxu0
  %v4150 = vadd.f32 0.0, %v4149
  %4151 = vmatmul.bf16.gmra.mxu0 %v3922
  %v4152 = vpop.f32.mrf.mxu0
  %v4153 = vadd.f32 0.0, %v4152
  %v4154 = vpop.f32.mrf.mxu0
  %v4155 = vadd.f32 0.0, %v4154
  %4156 = vdwg.mxu0
  %v4157 = vadd.f32 %v3668, %v3998
  %v4158 = vadd.f32 %v3670, %v4000
  %v4159 = vadd.f32 %v3673, %v4003
  %v4160 = vadd.f32 %v3675, %v4005
  %v4161 = vadd.f32 %v3678, %v4008
  %v4162 = vadd.f32 %v3680, %v4010
  %v4163 = vadd.f32 %v3683, %v4013
  %v4164 = vadd.f32 %v3685, %v4015
  %v4165 = vadd.f32 %v3688, %v4018
  %v4166 = vadd.f32 %v3690, %v4020
  %v4167 = vadd.f32 %v3693, %v4023
  %v4168 = vadd.f32 %v3695, %v4025
  %v4169 = vadd.f32 %v3698, %v4028
  %v4170 = vadd.f32 %v3700, %v4030
  %v4171 = vadd.f32 %v3703, %v4033
  %v4172 = vadd.f32 %v3705, %v4035
  %v4173 = vadd.f32 %v3708, %v4038
  %v4174 = vadd.f32 %v3710, %v4040
  %v4175 = vadd.f32 %v3713, %v4043
  %v4176 = vadd.f32 %v3715, %v4045
  %v4177 = vadd.f32 %v3718, %v4048
  %v4178 = vadd.f32 %v3720, %v4050
  %v4179 = vadd.f32 %v3723, %v4053
  %v4180 = vadd.f32 %v3725, %v4055
  %v4181 = vadd.f32 %v3728, %v4058
  %v4182 = vadd.f32 %v3730, %v4060
  %v4183 = vadd.f32 %v3733, %v4063
  %v4184 = vadd.f32 %v3735, %v4065
  %v4185 = vadd.f32 %v3738, %v4068
  %v4186 = vadd.f32 %v3740, %v4070
  %v4187 = vadd.f32 %v3743, %v4073
  %v4188 = vadd.f32 %v3745, %v4075
  %v4189 = vadd.f32 %v3748, %v4078
  %v4190 = vadd.f32 %v3750, %v4080
  %v4191 = vadd.f32 %v3753, %v4083
  %v4192 = vadd.f32 %v3755, %v4085
  %v4193 = vadd.f32 %v3758, %v4088
  %v4194 = vadd.f32 %v3760, %v4090
  %v4195 = vadd.f32 %v3763, %v4093
  %v4196 = vadd.f32 %v3765, %v4095
  %v4197 = vadd.f32 %v3768, %v4098
  %v4198 = vadd.f32 %v3770, %v4100
  %v4199 = vadd.f32 %v3773, %v4103
  %v4200 = vadd.f32 %v3775, %v4105
  %v4201 = vadd.f32 %v3778, %v4108
  %v4202 = vadd.f32 %v3780, %v4110
  %v4203 = vadd.f32 %v3783, %v4113
  %v4204 = vadd.f32 %v3785, %v4115
  %v4205 = vadd.f32 %v3788, %v4118
  %v4206 = vadd.f32 %v3790, %v4120
  %v4207 = vadd.f32 %v3793, %v4123
  %v4208 = vadd.f32 %v3795, %v4125
  %v4209 = vadd.f32 %v3798, %v4128
  %v4210 = vadd.f32 %v3800, %v4130
  %v4211 = vadd.f32 %v3803, %v4133
  %v4212 = vadd.f32 %v3805, %v4135
  %v4213 = vadd.f32 %v3808, %v4138
  %v4214 = vadd.f32 %v3810, %v4140
  %v4215 = vadd.f32 %v3813, %v4143
  %v4216 = vadd.f32 %v3815, %v4145
  %v4217 = vadd.f32 %v3818, %v4148
  %v4218 = vadd.f32 %v3820, %v4150
  %v4219 = vadd.f32 %v3823, %v4153
  %v4220 = vadd.f32 %v3825, %v4155
  %v4221 = vld [vmem:[%s2797] sm:$0xff]
  %v4222 = vld [vmem:[%s2797 + $0x8] sm:$0xff]
  %v4223 = vld [vmem:[%s2797 + $0x18] sm:$0xff]
  %v4224 = vld [vmem:[%s2797 + $0x20] sm:$0xff]
  %v4225 = vld [vmem:[%s2797 + $0x30] sm:$0xff]
  %v4226 = vld [vmem:[%s2797 + $0x38] sm:$0xff]
  %v4227 = vld [vmem:[%s2797 + $0x48] sm:$0xff]
  %v4228 = vld [vmem:[%s2797 + $0x50] sm:$0xff]
  %v4229 = vld [vmem:[%s2797 + $0x60] sm:$0xff]
  %v4230 = vld [vmem:[%s2797 + $0x68] sm:$0xff]
  %v4231 = vld [vmem:[%s2797 + $0x78] sm:$0xff]
  %v4232 = vld [vmem:[%s2797 + $0x80] sm:$0xff]
  %v4233 = vld [vmem:[%s2797 + $0x90] sm:$0xff]
  %v4234 = vld [vmem:[%s2797 + $0x98] sm:$0xff]
  %v4235 = vld [vmem:[%s2797 + $0xa8] sm:$0xff]
  %v4236 = vld [vmem:[%s2797 + $0xb0] sm:$0xff]
  %v4237 = vld [vmem:[%s2797 + $0xc0] sm:$0xff]
  %v4238 = vld [vmem:[%s2797 + $0xc8] sm:$0xff]
  %v4239 = vld [vmem:[%s2797 + $0xd8] sm:$0xff]
  %v4240 = vld [vmem:[%s2797 + $0xe0] sm:$0xff]
  %v4241 = vld [vmem:[%s2797 + $0xf0] sm:$0xff]
  %v4242 = vld [vmem:[%s2797 + $0xf8] sm:$0xff]
  %v4243 = vld [vmem:[%s2797 + $0x108] sm:$0xff]
  %v4244 = vld [vmem:[%s2797 + $0x110] sm:$0xff]
  %v4245 = vld [vmem:[%s2797 + $0x120] sm:$0xff]
  %v4246 = vld [vmem:[%s2797 + $0x128] sm:$0xff]
  %v4247 = vld [vmem:[%s2797 + $0x138] sm:$0xff]
  %v4248 = vld [vmem:[%s2797 + $0x140] sm:$0xff]
  %v4249 = vld [vmem:[%s2797 + $0x150] sm:$0xff]
  %v4250 = vld [vmem:[%s2797 + $0x158] sm:$0xff]
  %v4251 = vld [vmem:[%s2797 + $0x168] sm:$0xff]
  %v4252 = vld [vmem:[%s2797 + $0x170] sm:$0xff]
  %v4253 = vld [vmem:[%s2797 + $0x1b0] sm:$0xff]
  %v4254 = vld [vmem:[%s2797 + $0x1b8] sm:$0xff]
  %v4255 = vld [vmem:[%s2797 + $0x1c8] sm:$0xff]
  %v4256 = vld [vmem:[%s2797 + $0x1d0] sm:$0xff]
  %v4257 = vld [vmem:[%s2797 + $0x1e0] sm:$0xff]
  %v4258 = vld [vmem:[%s2797 + $0x1e8] sm:$0xff]
  %v4259 = vld [vmem:[%s2797 + $0x1f8] sm:$0xff]
  %v4260 = vld [vmem:[%s2797 + $0x200] sm:$0xff]
  %v4261 = vld [vmem:[%s2797 + $0x210] sm:$0xff]
  %v4262 = vld [vmem:[%s2797 + $0x218] sm:$0xff]
  %v4263 = vld [vmem:[%s2797 + $0x228] sm:$0xff]
  %v4264 = vld [vmem:[%s2797 + $0x230] sm:$0xff]
  %v4265 = vld [vmem:[%s2797 + $0x240] sm:$0xff]
  %v4266 = vld [vmem:[%s2797 + $0x248] sm:$0xff]
  %v4267 = vld [vmem:[%s2797 + $0x258] sm:$0xff]
  %v4268 = vld [vmem:[%s2797 + $0x260] sm:$0xff]
  %v4269 = vld [vmem:[%s2797 + $0x270] sm:$0xff]
  %v4270 = vld [vmem:[%s2797 + $0x278] sm:$0xff]
  %v4271 = vld [vmem:[%s2797 + $0x288] sm:$0xff]
  %v4272 = vld [vmem:[%s2797 + $0x290] sm:$0xff]
  %v4273 = vld [vmem:[%s2797 + $0x2a0] sm:$0xff]
  %v4274 = vld [vmem:[%s2797 + $0x2a8] sm:$0xff]
  %v4275 = vld [vmem:[%s2797 + $0x2b8] sm:$0xff]
  %v4276 = vld [vmem:[%s2797 + $0x2c0] sm:$0xff]
  %v4277 = vld [vmem:[%s2797 + $0x2d0] sm:$0xff]
  %v4278 = vld [vmem:[%s2797 + $0x2d8] sm:$0xff]
  %v4279 = vld [vmem:[%s2797 + $0x2e8] sm:$0xff]
  %v4280 = vld [vmem:[%s2797 + $0x2f0] sm:$0xff]
  %v4281 = vld [vmem:[%s2797 + $0x300] sm:$0xff]
  %v4282 = vld [vmem:[%s2797 + $0x308] sm:$0xff]
  %v4283 = vld [vmem:[%s2797 + $0x318] sm:$0xff]
  %v4284 = vld [vmem:[%s2797 + $0x320] sm:$0xff]
  %v4285 = vpack.c.bf16 %v4222, %v4221
  %v4286 = vpack.c.bf16 %v4224, %v4223
  %v4287 = vpack.c.bf16 %v4226, %v4225
  %v4288 = vpack.c.bf16 %v4228, %v4227
  %v4289 = vpack.c.bf16 %v4230, %v4229
  %v4290 = vpack.c.bf16 %v4232, %v4231
  %v4291 = vpack.c.bf16 %v4234, %v4233
  %v4292 = vpack.c.bf16 %v4236, %v4235
  %v4293 = vpack.c.bf16 %v4238, %v4237
  %v4294 = vpack.c.bf16 %v4240, %v4239
  %v4295 = vpack.c.bf16 %v4242, %v4241
  %v4296 = vpack.c.bf16 %v4244, %v4243
  %v4297 = vpack.c.bf16 %v4246, %v4245
  %v4298 = vpack.c.bf16 %v4248, %v4247
  %v4299 = vpack.c.bf16 %v4250, %v4249
  %v4300 = vpack.c.bf16 %v4252, %v4251
  %v4301 = vpack.c.bf16 %v4254, %v4253
  %v4302 = vpack.c.bf16 %v4256, %v4255
  %v4303 = vpack.c.bf16 %v4258, %v4257
  %v4304 = vpack.c.bf16 %v4260, %v4259
  %v4305 = vpack.c.bf16 %v4262, %v4261
  %v4306 = vpack.c.bf16 %v4264, %v4263
  %v4307 = vpack.c.bf16 %v4266, %v4265
  %v4308 = vpack.c.bf16 %v4268, %v4267
  %v4309 = vpack.c.bf16 %v4270, %v4269
  %v4310 = vpack.c.bf16 %v4272, %v4271
  %v4311 = vpack.c.bf16 %v4274, %v4273
  %v4312 = vpack.c.bf16 %v4276, %v4275
  %v4313 = vpack.c.bf16 %v4278, %v4277
  %v4314 = vpack.c.bf16 %v4280, %v4279
  %v4315 = vpack.c.bf16 %v4282, %v4281
  %v4316 = vpack.c.bf16 %v4284, %v4283
  %s4317 = scalar_lea.vmem [#allocation7], 192
  %v4318 = vld [vmem:[%s4317] sm:$0xf]
  %v4319 = vld [vmem:[%s4317 + $0x4] sm:$0xf]
  %v4320 = vld [vmem:[%s4317 + $0x8] sm:$0xf]
  %v4321 = vld [vmem:[%s4317 + $0xc] sm:$0xf]
  %v4322 = vld [vmem:[%s4317 + $0x10] sm:$0xf]
  %v4323 = vld [vmem:[%s4317 + $0x14] sm:$0xf]
  %v4324 = vld [vmem:[%s4317 + $0x18] sm:$0xf]
  %v4325 = vld [vmem:[%s4317 + $0x1c] sm:$0xf]
  %v4326 = vld [vmem:[%s4317 + $0x20] sm:$0xf]
  %v4327 = vld [vmem:[%s4317 + $0x24] sm:$0xf]
  %v4328 = vld [vmem:[%s4317 + $0x28] sm:$0xf]
  %v4329 = vld [vmem:[%s4317 + $0x2c] sm:$0xf]
  %v4330 = vld [vmem:[%s4317 + $0x30] sm:$0xf]
  %v4331 = vld [vmem:[%s4317 + $0x34] sm:$0xf]
  %v4332 = vld [vmem:[%s4317 + $0x38] sm:$0xf]
  %v4333 = vld [vmem:[%s4317 + $0x3c] sm:$0xf]
  %v4350 = vunpack.c.l.b16 %v4318
  %v4351 = vunpack.c.l.b16 %v4319
  %v4352 = vunpack.c.l.b16 %v4320
  %v4353 = vunpack.c.l.b16 %v4321
  %v4354 = vunpack.c.l.b16 %v4322
  %v4355 = vunpack.c.l.b16 %v4323
  %v4356 = vunpack.c.l.b16 %v4324
  %v4357 = vunpack.c.l.b16 %v4325
  %v4358 = vunpack.c.l.b16 %v4326
  %v4359 = vunpack.c.l.b16 %v4327
  %v4360 = vunpack.c.l.b16 %v4328
  %v4361 = vunpack.c.l.b16 %v4329
  %v4362 = vunpack.c.l.b16 %v4330
  %v4363 = vunpack.c.l.b16 %v4331
  %v4364 = vunpack.c.l.b16 %v4332
  %v4365 = vunpack.c.l.b16 %v4333
  %v4366 = vpack.c.b16 %v4351, %v4350
  %v4367 = vpack.c.b16 %v4353, %v4352
  %v4368 = vpack.c.b16 %v4355, %v4354
  %v4369 = vpack.c.b16 %v4357, %v4356
  %v4370 = vpack.c.b16 %v4359, %v4358
  %v4371 = vpack.c.b16 %v4361, %v4360
  %v4372 = vpack.c.b16 %v4363, %v4362
  %v4373 = vpack.c.b16 %v4365, %v4364
  %4382 = vmatpush.bf16.msra.mxu0 %v4373
  %4383 = vmatpush.bf16.msra.mxu0 %v4372
  %4384 = vmatpush.bf16.msra.mxu0 %v4371
  %4385 = vmatpush.bf16.msra.mxu0 %v4370
  %4386 = vmatpush.bf16.msra.mxu0 %v4369
  %4387 = vmatpush.bf16.msra.mxu0 %v4368
  %4388 = vmatpush.bf16.msra.mxu0 %v4367
  %4389 = vmatpush.bf16.msra.mxu0 %v4366
  %4390 = vmatmul.bf16.gmra.mxu0 %v4285
  %v4391 = vpop.f32.mrf.mxu0
  %v4392 = vadd.f32 0.0, %v4391
  %v4393 = vpop.f32.mrf.mxu0
  %v4394 = vadd.f32 0.0, %v4393
  %4395 = vmatmul.bf16.gmra.mxu0 %v4286
  %v4396 = vpop.f32.mrf.mxu0
  %v4397 = vadd.f32 0.0, %v4396
  %v4398 = vpop.f32.mrf.mxu0
  %v4399 = vadd.f32 0.0, %v4398
  %4400 = vmatmul.bf16.gmra.mxu0 %v4287
  %v4401 = vpop.f32.mrf.mxu0
  %v4402 = vadd.f32 0.0, %v4401
  %v4403 = vpop.f32.mrf.mxu0
  %v4404 = vadd.f32 0.0, %v4403
  %4405 = vmatmul.bf16.gmra.mxu0 %v4288
  %v4406 = vpop.f32.mrf.mxu0
  %v4407 = vadd.f32 0.0, %v4406
  %v4408 = vpop.f32.mrf.mxu0
  %v4409 = vadd.f32 0.0, %v4408
  %4410 = vmatmul.bf16.gmra.mxu0 %v4289
  %v4411 = vpop.f32.mrf.mxu0
  %v4412 = vadd.f32 0.0, %v4411
  %v4413 = vpop.f32.mrf.mxu0
  %v4414 = vadd.f32 0.0, %v4413
  %4415 = vmatmul.bf16.gmra.mxu0 %v4290
  %v4416 = vpop.f32.mrf.mxu0
  %v4417 = vadd.f32 0.0, %v4416
  %v4418 = vpop.f32.mrf.mxu0
  %v4419 = vadd.f32 0.0, %v4418
  %4420 = vmatmul.bf16.gmra.mxu0 %v4291
  %v4421 = vpop.f32.mrf.mxu0
  %v4422 = vadd.f32 0.0, %v4421
  %v4423 = vpop.f32.mrf.mxu0
  %v4424 = vadd.f32 0.0, %v4423
  %4425 = vmatmul.bf16.gmra.mxu0 %v4292
  %v4426 = vpop.f32.mrf.mxu0
  %v4427 = vadd.f32 0.0, %v4426
  %v4428 = vpop.f32.mrf.mxu0
  %v4429 = vadd.f32 0.0, %v4428
  %4430 = vmatmul.bf16.gmra.mxu0 %v4293
  %v4431 = vpop.f32.mrf.mxu0
  %v4432 = vadd.f32 0.0, %v4431
  %v4433 = vpop.f32.mrf.mxu0
  %v4434 = vadd.f32 0.0, %v4433
  %4435 = vmatmul.bf16.gmra.mxu0 %v4294
  %v4436 = vpop.f32.mrf.mxu0
  %v4437 = vadd.f32 0.0, %v4436
  %v4438 = vpop.f32.mrf.mxu0
  %v4439 = vadd.f32 0.0, %v4438
  %4440 = vmatmul.bf16.gmra.mxu0 %v4295
  %v4441 = vpop.f32.mrf.mxu0
  %v4442 = vadd.f32 0.0, %v4441
  %v4443 = vpop.f32.mrf.mxu0
  %v4444 = vadd.f32 0.0, %v4443
  %4445 = vmatmul.bf16.gmra.mxu0 %v4296
  %v4446 = vpop.f32.mrf.mxu0
  %v4447 = vadd.f32 0.0, %v4446
  %v4448 = vpop.f32.mrf.mxu0
  %v4449 = vadd.f32 0.0, %v4448
  %4450 = vmatmul.bf16.gmra.mxu0 %v4297
  %v4451 = vpop.f32.mrf.mxu0
  %v4452 = vadd.f32 0.0, %v4451
  %v4453 = vpop.f32.mrf.mxu0
  %v4454 = vadd.f32 0.0, %v4453
  %4455 = vmatmul.bf16.gmra.mxu0 %v4298
  %v4456 = vpop.f32.mrf.mxu0
  %v4457 = vadd.f32 0.0, %v4456
  %v4458 = vpop.f32.mrf.mxu0
  %v4459 = vadd.f32 0.0, %v4458
  %4460 = vmatmul.bf16.gmra.mxu0 %v4299
  %v4461 = vpop.f32.mrf.mxu0
  %v4462 = vadd.f32 0.0, %v4461
  %v4463 = vpop.f32.mrf.mxu0
  %v4464 = vadd.f32 0.0, %v4463
  %4465 = vmatmul.bf16.gmra.mxu0 %v4300
  %v4466 = vpop.f32.mrf.mxu0
  %v4467 = vadd.f32 0.0, %v4466
  %v4468 = vpop.f32.mrf.mxu0
  %v4469 = vadd.f32 0.0, %v4468
  %4470 = vmatmul.bf16.gmra.mxu0 %v4301
  %v4471 = vpop.f32.mrf.mxu0
  %v4472 = vadd.f32 0.0, %v4471
  %v4473 = vpop.f32.mrf.mxu0
  %v4474 = vadd.f32 0.0, %v4473
  %4475 = vmatmul.bf16.gmra.mxu0 %v4302
  %v4476 = vpop.f32.mrf.mxu0
  %v4477 = vadd.f32 0.0, %v4476
  %v4478 = vpop.f32.mrf.mxu0
  %v4479 = vadd.f32 0.0, %v4478
  %4480 = vmatmul.bf16.gmra.mxu0 %v4303
  %v4481 = vpop.f32.mrf.mxu0
  %v4482 = vadd.f32 0.0, %v4481
  %v4483 = vpop.f32.mrf.mxu0
  %v4484 = vadd.f32 0.0, %v4483
  %4485 = vmatmul.bf16.gmra.mxu0 %v4304
  %v4486 = vpop.f32.mrf.mxu0
  %v4487 = vadd.f32 0.0, %v4486
  %v4488 = vpop.f32.mrf.mxu0
  %v4489 = vadd.f32 0.0, %v4488
  %4490 = vmatmul.bf16.gmra.mxu0 %v4305
  %v4491 = vpop.f32.mrf.mxu0
  %v4492 = vadd.f32 0.0, %v4491
  %v4493 = vpop.f32.mrf.mxu0
  %v4494 = vadd.f32 0.0, %v4493
  %4495 = vmatmul.bf16.gmra.mxu0 %v4306
  %v4496 = vpop.f32.mrf.mxu0
  %v4497 = vadd.f32 0.0, %v4496
  %v4498 = vpop.f32.mrf.mxu0
  %v4499 = vadd.f32 0.0, %v4498
  %4500 = vmatmul.bf16.gmra.mxu0 %v4307
  %v4501 = vpop.f32.mrf.mxu0
  %v4502 = vadd.f32 0.0, %v4501
  %v4503 = vpop.f32.mrf.mxu0
  %v4504 = vadd.f32 0.0, %v4503
  %4505 = vmatmul.bf16.gmra.mxu0 %v4308
  %v4506 = vpop.f32.mrf.mxu0
  %v4507 = vadd.f32 0.0, %v4506
  %v4508 = vpop.f32.mrf.mxu0
  %v4509 = vadd.f32 0.0, %v4508
  %4510 = vmatmul.bf16.gmra.mxu0 %v4309
  %v4511 = vpop.f32.mrf.mxu0
  %v4512 = vadd.f32 0.0, %v4511
  %v4513 = vpop.f32.mrf.mxu0
  %v4514 = vadd.f32 0.0, %v4513
  %4515 = vmatmul.bf16.gmra.mxu0 %v4310
  %v4516 = vpop.f32.mrf.mxu0
  %v4517 = vadd.f32 0.0, %v4516
  %v4518 = vpop.f32.mrf.mxu0
  %v4519 = vadd.f32 0.0, %v4518
  %4520 = vmatmul.bf16.gmra.mxu0 %v4311
  %v4521 = vpop.f32.mrf.mxu0
  %v4522 = vadd.f32 0.0, %v4521
  %v4523 = vpop.f32.mrf.mxu0
  %v4524 = vadd.f32 0.0, %v4523
  %4525 = vmatmul.bf16.gmra.mxu0 %v4312
  %v4526 = vpop.f32.mrf.mxu0
  %v4527 = vadd.f32 0.0, %v4526
  %v4528 = vpop.f32.mrf.mxu0
  %v4529 = vadd.f32 0.0, %v4528
  %4530 = vmatmul.bf16.gmra.mxu0 %v4313
  %v4531 = vpop.f32.mrf.mxu0
  %v4532 = vadd.f32 0.0, %v4531
  %v4533 = vpop.f32.mrf.mxu0
  %v4534 = vadd.f32 0.0, %v4533
  %4535 = vmatmul.bf16.gmra.mxu0 %v4314
  %v4536 = vpop.f32.mrf.mxu0
  %v4537 = vadd.f32 0.0, %v4536
  %v4538 = vpop.f32.mrf.mxu0
  %v4539 = vadd.f32 0.0, %v4538
  %4540 = vmatmul.bf16.gmra.mxu0 %v4315
  %v4541 = vpop.f32.mrf.mxu0
  %v4542 = vadd.f32 0.0, %v4541
  %v4543 = vpop.f32.mrf.mxu0
  %v4544 = vadd.f32 0.0, %v4543
  %4545 = vmatmul.bf16.gmra.mxu0 %v4316
  %v4546 = vpop.f32.mrf.mxu0
  %v4547 = vadd.f32 0.0, %v4546
  %v4548 = vpop.f32.mrf.mxu0
  %v4549 = vadd.f32 0.0, %v4548
  %4550 = vdwg.mxu0
  %v4551 = vadd.f32 %v4157, %v4392
  %v4552 = vadd.f32 %v4158, %v4394
  %v4553 = vadd.f32 %v4159, %v4397
  %v4554 = vadd.f32 %v4160, %v4399
  %v4555 = vadd.f32 %v4161, %v4402
  %v4556 = vadd.f32 %v4162, %v4404
  %v4557 = vadd.f32 %v4163, %v4407
  %v4558 = vadd.f32 %v4164, %v4409
  %v4559 = vadd.f32 %v4165, %v4412
  %v4560 = vadd.f32 %v4166, %v4414
  %v4561 = vadd.f32 %v4167, %v4417
  %v4562 = vadd.f32 %v4168, %v4419
  %v4563 = vadd.f32 %v4169, %v4422
  %v4564 = vadd.f32 %v4170, %v4424
  %v4565 = vadd.f32 %v4171, %v4427
  %v4566 = vadd.f32 %v4172, %v4429
  %v4567 = vadd.f32 %v4173, %v4432
  %v4568 = vadd.f32 %v4174, %v4434
  %v4569 = vadd.f32 %v4175, %v4437
  %v4570 = vadd.f32 %v4176, %v4439
  %v4571 = vadd.f32 %v4177, %v4442
  %v4572 = vadd.f32 %v4178, %v4444
  %v4573 = vadd.f32 %v4179, %v4447
  %v4574 = vadd.f32 %v4180, %v4449
  %v4575 = vadd.f32 %v4181, %v4452
  %v4576 = vadd.f32 %v4182, %v4454
  %v4577 = vadd.f32 %v4183, %v4457
  %v4578 = vadd.f32 %v4184, %v4459
  %v4579 = vadd.f32 %v4185, %v4462
  %v4580 = vadd.f32 %v4186, %v4464
  %v4581 = vadd.f32 %v4187, %v4467
  %v4582 = vadd.f32 %v4188, %v4469
  %v4583 = vadd.f32 %v4189, %v4472
  %v4584 = vadd.f32 %v4190, %v4474
  %v4585 = vadd.f32 %v4191, %v4477
  %v4586 = vadd.f32 %v4192, %v4479
  %v4587 = vadd.f32 %v4193, %v4482
  %v4588 = vadd.f32 %v4194, %v4484
  %v4589 = vadd.f32 %v4195, %v4487
  %v4590 = vadd.f32 %v4196, %v4489
  %v4591 = vadd.f32 %v4197, %v4492
  %v4592 = vadd.f32 %v4198, %v4494
  %v4593 = vadd.f32 %v4199, %v4497
  %v4594 = vadd.f32 %v4200, %v4499
  %v4595 = vadd.f32 %v4201, %v4502
  %v4596 = vadd.f32 %v4202, %v4504
  %v4597 = vadd.f32 %v4203, %v4507
  %v4598 = vadd.f32 %v4204, %v4509
  %v4599 = vadd.f32 %v4205, %v4512
  %v4600 = vadd.f32 %v4206, %v4514
  %v4601 = vadd.f32 %v4207, %v4517
  %v4602 = vadd.f32 %v4208, %v4519
  %v4603 = vadd.f32 %v4209, %v4522
  %v4604 = vadd.f32 %v4210, %v4524
  %v4605 = vadd.f32 %v4211, %v4527
  %v4606 = vadd.f32 %v4212, %v4529
  %v4607 = vadd.f32 %v4213, %v4532
  %v4608 = vadd.f32 %v4214, %v4534
  %v4609 = vadd.f32 %v4215, %v4537
  %v4610 = vadd.f32 %v4216, %v4539
  %v4611 = vadd.f32 %v4217, %v4542
  %v4612 = vadd.f32 %v4218, %v4544
  %v4613 = vadd.f32 %v4219, %v4547
  %v4614 = vadd.f32 %v4220, %v4549
  %v4615 = vld [vmem:[%s2797 + $0x1] sm:$0xff]
  %v4616 = vld [vmem:[%s2797 + $0x9] sm:$0xff]
  %v4617 = vld [vmem:[%s2797 + $0x19] sm:$0xff]
  %v4618 = vld [vmem:[%s2797 + $0x21] sm:$0xff]
  %v4619 = vld [vmem:[%s2797 + $0x31] sm:$0xff]
  %v4620 = vld [vmem:[%s2797 + $0x39] sm:$0xff]
  %v4621 = vld [vmem:[%s2797 + $0x49] sm:$0xff]
  %v4622 = vld [vmem:[%s2797 + $0x51] sm:$0xff]
  %v4623 = vld [vmem:[%s2797 + $0x61] sm:$0xff]
  %v4624 = vld [vmem:[%s2797 + $0x69] sm:$0xff]
  %v4625 = vld [vmem:[%s2797 + $0x79] sm:$0xff]
  %v4626 = vld [vmem:[%s2797 + $0x81] sm:$0xff]
  %v4627 = vld [vmem:[%s2797 + $0x91] sm:$0xff]
  %v4628 = vld [vmem:[%s2797 + $0x99] sm:$0xff]
  %v4629 = vld [vmem:[%s2797 + $0xa9] sm:$0xff]
  %v4630 = vld [vmem:[%s2797 + $0xb1] sm:$0xff]
  %v4631 = vld [vmem:[%s2797 + $0xc1] sm:$0xff]
  %v4632 = vld [vmem:[%s2797 + $0xc9] sm:$0xff]
  %v4633 = vld [vmem:[%s2797 + $0xd9] sm:$0xff]
  %v4634 = vld [vmem:[%s2797 + $0xe1] sm:$0xff]
  %v4635 = vld [vmem:[%s2797 + $0xf1] sm:$0xff]
  %v4636 = vld [vmem:[%s2797 + $0xf9] sm:$0xff]
  %v4637 = vld [vmem:[%s2797 + $0x109] sm:$0xff]
  %v4638 = vld [vmem:[%s2797 + $0x111] sm:$0xff]
  %v4639 = vld [vmem:[%s2797 + $0x121] sm:$0xff]
  %v4640 = vld [vmem:[%s2797 + $0x129] sm:$0xff]
  %v4641 = vld [vmem:[%s2797 + $0x139] sm:$0xff]
  %v4642 = vld [vmem:[%s2797 + $0x141] sm:$0xff]
  %v4643 = vld [vmem:[%s2797 + $0x151] sm:$0xff]
  %v4644 = vld [vmem:[%s2797 + $0x159] sm:$0xff]
  %v4645 = vld [vmem:[%s2797 + $0x169] sm:$0xff]
  %v4646 = vld [vmem:[%s2797 + $0x171] sm:$0xff]
  %v4647 = vld [vmem:[%s2797 + $0x1b1] sm:$0xff]
  %v4648 = vld [vmem:[%s2797 + $0x1b9] sm:$0xff]
  %v4649 = vld [vmem:[%s2797 + $0x1c9] sm:$0xff]
  %v4650 = vld [vmem:[%s2797 + $0x1d1] sm:$0xff]
  %v4651 = vld [vmem:[%s2797 + $0x1e1] sm:$0xff]
  %v4652 = vld [vmem:[%s2797 + $0x1e9] sm:$0xff]
  %v4653 = vld [vmem:[%s2797 + $0x1f9] sm:$0xff]
  %v4654 = vld [vmem:[%s2797 + $0x201] sm:$0xff]
  %v4655 = vld [vmem:[%s2797 + $0x211] sm:$0xff]
  %v4656 = vld [vmem:[%s2797 + $0x219] sm:$0xff]
  %v4657 = vld [vmem:[%s2797 + $0x229] sm:$0xff]
  %v4658 = vld [vmem:[%s2797 + $0x231] sm:$0xff]
  %v4659 = vld [vmem:[%s2797 + $0x241] sm:$0xff]
  %v4660 = vld [vmem:[%s2797 + $0x249] sm:$0xff]
  %v4661 = vld [vmem:[%s2797 + $0x259] sm:$0xff]
  %v4662 = vld [vmem:[%s2797 + $0x261] sm:$0xff]
  %v4663 = vld [vmem:[%s2797 + $0x271] sm:$0xff]
  %v4664 = vld [vmem:[%s2797 + $0x279] sm:$0xff]
  %v4665 = vld [vmem:[%s2797 + $0x289] sm:$0xff]
  %v4666 = vld [vmem:[%s2797 + $0x291] sm:$0xff]
  %v4667 = vld [vmem:[%s2797 + $0x2a1] sm:$0xff]
  %v4668 = vld [vmem:[%s2797 + $0x2a9] sm:$0xff]
  %v4669 = vld [vmem:[%s2797 + $0x2b9] sm:$0xff]
  %v4670 = vld [vmem:[%s2797 + $0x2c1] sm:$0xff]
  %v4671 = vld [vmem:[%s2797 + $0x2d1] sm:$0xff]
  %v4672 = vld [vmem:[%s2797 + $0x2d9] sm:$0xff]
  %v4673 = vld [vmem:[%s2797 + $0x2e9] sm:$0xff]
  %v4674 = vld [vmem:[%s2797 + $0x2f1] sm:$0xff]
  %v4675 = vld [vmem:[%s2797 + $0x301] sm:$0xff]
  %v4676 = vld [vmem:[%s2797 + $0x309] sm:$0xff]
  %v4677 = vld [vmem:[%s2797 + $0x319] sm:$0xff]
  %v4678 = vld [vmem:[%s2797 + $0x321] sm:$0xff]
  %v4679 = vpack.c.bf16 %v4616, %v4615
  %v4680 = vpack.c.bf16 %v4618, %v4617
  %v4681 = vpack.c.bf16 %v4620, %v4619
  %v4682 = vpack.c.bf16 %v4622, %v4621
  %v4683 = vpack.c.bf16 %v4624, %v4623
  %v4684 = vpack.c.bf16 %v4626, %v4625
  %v4685 = vpack.c.bf16 %v4628, %v4627
  %v4686 = vpack.c.bf16 %v4630, %v4629
  %v4687 = vpack.c.bf16 %v4632, %v4631
  %v4688 = vpack.c.bf16 %v4634, %v4633
  %v4689 = vpack.c.bf16 %v4636, %v4635
  %v4690 = vpack.c.bf16 %v4638, %v4637
  %v4691 = vpack.c.bf16 %v4640, %v4639
  %v4692 = vpack.c.bf16 %v4642, %v4641
  %v4693 = vpack.c.bf16 %v4644, %v4643
  %v4694 = vpack.c.bf16 %v4646, %v4645
  %v4695 = vpack.c.bf16 %v4648, %v4647
  %v4696 = vpack.c.bf16 %v4650, %v4649
  %v4697 = vpack.c.bf16 %v4652, %v4651
  %v4698 = vpack.c.bf16 %v4654, %v4653
  %v4699 = vpack.c.bf16 %v4656, %v4655
  %v4700 = vpack.c.bf16 %v4658, %v4657
  %v4701 = vpack.c.bf16 %v4660, %v4659
  %v4702 = vpack.c.bf16 %v4662, %v4661
  %v4703 = vpack.c.bf16 %v4664, %v4663
  %v4704 = vpack.c.bf16 %v4666, %v4665
  %v4705 = vpack.c.bf16 %v4668, %v4667
  %v4706 = vpack.c.bf16 %v4670, %v4669
  %v4707 = vpack.c.bf16 %v4672, %v4671
  %v4708 = vpack.c.bf16 %v4674, %v4673
  %v4709 = vpack.c.bf16 %v4676, %v4675
  %v4710 = vpack.c.bf16 %v4678, %v4677
  %s4711 = scalar_lea.vmem [#allocation7], 256
  %v4712 = vld [vmem:[%s4711] sm:$0xf]
  %v4713 = vld [vmem:[%s4711 + $0x4] sm:$0xf]
  %v4714 = vld [vmem:[%s4711 + $0x8] sm:$0xf]
  %v4715 = vld [vmem:[%s4711 + $0xc] sm:$0xf]
  %v4716 = vld [vmem:[%s4711 + $0x10] sm:$0xf]
  %v4717 = vld [vmem:[%s4711 + $0x14] sm:$0xf]
  %v4718 = vld [vmem:[%s4711 + $0x18] sm:$0xf]
  %v4719 = vld [vmem:[%s4711 + $0x1c] sm:$0xf]
  %v4720 = vld [vmem:[%s4711 + $0x20] sm:$0xf]
  %v4721 = vld [vmem:[%s4711 + $0x24] sm:$0xf]
  %v4722 = vld [vmem:[%s4711 + $0x28] sm:$0xf]
  %v4723 = vld [vmem:[%s4711 + $0x2c] sm:$0xf]
  %v4724 = vld [vmem:[%s4711 + $0x30] sm:$0xf]
  %v4725 = vld [vmem:[%s4711 + $0x34] sm:$0xf]
  %v4726 = vld [vmem:[%s4711 + $0x38] sm:$0xf]
  %v4727 = vld [vmem:[%s4711 + $0x3c] sm:$0xf]
  %v4744 = vunpack.c.l.b16 %v4712
  %v4745 = vunpack.c.l.b16 %v4713
  %v4746 = vunpack.c.l.b16 %v4714
  %v4747 = vunpack.c.l.b16 %v4715
  %v4748 = vunpack.c.l.b16 %v4716
  %v4749 = vunpack.c.l.b16 %v4717
  %v4750 = vunpack.c.l.b16 %v4718
  %v4751 = vunpack.c.l.b16 %v4719
  %v4752 = vunpack.c.l.b16 %v4720
  %v4753 = vunpack.c.l.b16 %v4721
  %v4754 = vunpack.c.l.b16 %v4722
  %v4755 = vunpack.c.l.b16 %v4723
  %v4756 = vunpack.c.l.b16 %v4724
  %v4757 = vunpack.c.l.b16 %v4725
  %v4758 = vunpack.c.l.b16 %v4726
  %v4759 = vunpack.c.l.b16 %v4727
  %v4760 = vpack.c.b16 %v4745, %v4744
  %v4761 = vpack.c.b16 %v4747, %v4746
  %v4762 = vpack.c.b16 %v4749, %v4748
  %v4763 = vpack.c.b16 %v4751, %v4750
  %v4764 = vpack.c.b16 %v4753, %v4752
  %v4765 = vpack.c.b16 %v4755, %v4754
  %v4766 = vpack.c.b16 %v4757, %v4756
  %v4767 = vpack.c.b16 %v4759, %v4758
  %4776 = vmatpush.bf16.msra.mxu0 %v4767
  %4777 = vmatpush.bf16.msra.mxu0 %v4766
  %4778 = vmatpush.bf16.msra.mxu0 %v4765
  %4779 = vmatpush.bf16.msra.mxu0 %v4764
  %4780 = vmatpush.bf16.msra.mxu0 %v4763
  %4781 = vmatpush.bf16.msra.mxu0 %v4762
  %4782 = vmatpush.bf16.msra.mxu0 %v4761
  %4783 = vmatpush.bf16.msra.mxu0 %v4760
  %4784 = vmatmul.bf16.gmra.mxu0 %v4679
  %v4785 = vpop.f32.mrf.mxu0
  %v4786 = vadd.f32 0.0, %v4785
  %v4787 = vpop.f32.mrf.mxu0
  %v4788 = vadd.f32 0.0, %v4787
  %4789 = vmatmul.bf16.gmra.mxu0 %v4680
  %v4790 = vpop.f32.mrf.mxu0
  %v4791 = vadd.f32 0.0, %v4790
  %v4792 = vpop.f32.mrf.mxu0
  %v4793 = vadd.f32 0.0, %v4792
  %4794 = vmatmul.bf16.gmra.mxu0 %v4681
  %v4795 = vpop.f32.mrf.mxu0
  %v4796 = vadd.f32 0.0, %v4795
  %v4797 = vpop.f32.mrf.mxu0
  %v4798 = vadd.f32 0.0, %v4797
  %4799 = vmatmul.bf16.gmra.mxu0 %v4682
  %v4800 = vpop.f32.mrf.mxu0
  %v4801 = vadd.f32 0.0, %v4800
  %v4802 = vpop.f32.mrf.mxu0
  %v4803 = vadd.f32 0.0, %v4802
  %4804 = vmatmul.bf16.gmra.mxu0 %v4683
  %v4805 = vpop.f32.mrf.mxu0
  %v4806 = vadd.f32 0.0, %v4805
  %v4807 = vpop.f32.mrf.mxu0
  %v4808 = vadd.f32 0.0, %v4807
  %4809 = vmatmul.bf16.gmra.mxu0 %v4684
  %v4810 = vpop.f32.mrf.mxu0
  %v4811 = vadd.f32 0.0, %v4810
  %v4812 = vpop.f32.mrf.mxu0
  %v4813 = vadd.f32 0.0, %v4812
  %4814 = vmatmul.bf16.gmra.mxu0 %v4685
  %v4815 = vpop.f32.mrf.mxu0
  %v4816 = vadd.f32 0.0, %v4815
  %v4817 = vpop.f32.mrf.mxu0
  %v4818 = vadd.f32 0.0, %v4817
  %4819 = vmatmul.bf16.gmra.mxu0 %v4686
  %v4820 = vpop.f32.mrf.mxu0
  %v4821 = vadd.f32 0.0, %v4820
  %v4822 = vpop.f32.mrf.mxu0
  %v4823 = vadd.f32 0.0, %v4822
  %4824 = vmatmul.bf16.gmra.mxu0 %v4687
  %v4825 = vpop.f32.mrf.mxu0
  %v4826 = vadd.f32 0.0, %v4825
  %v4827 = vpop.f32.mrf.mxu0
  %v4828 = vadd.f32 0.0, %v4827
  %4829 = vmatmul.bf16.gmra.mxu0 %v4688
  %v4830 = vpop.f32.mrf.mxu0
  %v4831 = vadd.f32 0.0, %v4830
  %v4832 = vpop.f32.mrf.mxu0
  %v4833 = vadd.f32 0.0, %v4832
  %4834 = vmatmul.bf16.gmra.mxu0 %v4689
  %v4835 = vpop.f32.mrf.mxu0
  %v4836 = vadd.f32 0.0, %v4835
  %v4837 = vpop.f32.mrf.mxu0
  %v4838 = vadd.f32 0.0, %v4837
  %4839 = vmatmul.bf16.gmra.mxu0 %v4690
  %v4840 = vpop.f32.mrf.mxu0
  %v4841 = vadd.f32 0.0, %v4840
  %v4842 = vpop.f32.mrf.mxu0
  %v4843 = vadd.f32 0.0, %v4842
  %4844 = vmatmul.bf16.gmra.mxu0 %v4691
  %v4845 = vpop.f32.mrf.mxu0
  %v4846 = vadd.f32 0.0, %v4845
  %v4847 = vpop.f32.mrf.mxu0
  %v4848 = vadd.f32 0.0, %v4847
  %4849 = vmatmul.bf16.gmra.mxu0 %v4692
  %v4850 = vpop.f32.mrf.mxu0
  %v4851 = vadd.f32 0.0, %v4850
  %v4852 = vpop.f32.mrf.mxu0
  %v4853 = vadd.f32 0.0, %v4852
  %4854 = vmatmul.bf16.gmra.mxu0 %v4693
  %v4855 = vpop.f32.mrf.mxu0
  %v4856 = vadd.f32 0.0, %v4855
  %v4857 = vpop.f32.mrf.mxu0
  %v4858 = vadd.f32 0.0, %v4857
  %4859 = vmatmul.bf16.gmra.mxu0 %v4694
  %v4860 = vpop.f32.mrf.mxu0
  %v4861 = vadd.f32 0.0, %v4860
  %v4862 = vpop.f32.mrf.mxu0
  %v4863 = vadd.f32 0.0, %v4862
  %4864 = vmatmul.bf16.gmra.mxu0 %v4695
  %v4865 = vpop.f32.mrf.mxu0
  %v4866 = vadd.f32 0.0, %v4865
  %v4867 = vpop.f32.mrf.mxu0
  %v4868 = vadd.f32 0.0, %v4867
  %4869 = vmatmul.bf16.gmra.mxu0 %v4696
  %v4870 = vpop.f32.mrf.mxu0
  %v4871 = vadd.f32 0.0, %v4870
  %v4872 = vpop.f32.mrf.mxu0
  %v4873 = vadd.f32 0.0, %v4872
  %4874 = vmatmul.bf16.gmra.mxu0 %v4697
  %v4875 = vpop.f32.mrf.mxu0
  %v4876 = vadd.f32 0.0, %v4875
  %v4877 = vpop.f32.mrf.mxu0
  %v4878 = vadd.f32 0.0, %v4877
  %4879 = vmatmul.bf16.gmra.mxu0 %v4698
  %v4880 = vpop.f32.mrf.mxu0
  %v4881 = vadd.f32 0.0, %v4880
  %v4882 = vpop.f32.mrf.mxu0
  %v4883 = vadd.f32 0.0, %v4882
  %4884 = vmatmul.bf16.gmra.mxu0 %v4699
  %v4885 = vpop.f32.mrf.mxu0
  %v4886 = vadd.f32 0.0, %v4885
  %v4887 = vpop.f32.mrf.mxu0
  %v4888 = vadd.f32 0.0, %v4887
  %4889 = vmatmul.bf16.gmra.mxu0 %v4700
  %v4890 = vpop.f32.mrf.mxu0
  %v4891 = vadd.f32 0.0, %v4890
  %v4892 = vpop.f32.mrf.mxu0
  %v4893 = vadd.f32 0.0, %v4892
  %4894 = vmatmul.bf16.gmra.mxu0 %v4701
  %v4895 = vpop.f32.mrf.mxu0
  %v4896 = vadd.f32 0.0, %v4895
  %v4897 = vpop.f32.mrf.mxu0
  %v4898 = vadd.f32 0.0, %v4897
  %4899 = vmatmul.bf16.gmra.mxu0 %v4702
  %v4900 = vpop.f32.mrf.mxu0
  %v4901 = vadd.f32 0.0, %v4900
  %v4902 = vpop.f32.mrf.mxu0
  %v4903 = vadd.f32 0.0, %v4902
  %4904 = vmatmul.bf16.gmra.mxu0 %v4703
  %v4905 = vpop.f32.mrf.mxu0
  %v4906 = vadd.f32 0.0, %v4905
  %v4907 = vpop.f32.mrf.mxu0
  %v4908 = vadd.f32 0.0, %v4907
  %4909 = vmatmul.bf16.gmra.mxu0 %v4704
  %v4910 = vpop.f32.mrf.mxu0
  %v4911 = vadd.f32 0.0, %v4910
  %v4912 = vpop.f32.mrf.mxu0
  %v4913 = vadd.f32 0.0, %v4912
  %4914 = vmatmul.bf16.gmra.mxu0 %v4705
  %v4915 = vpop.f32.mrf.mxu0
  %v4916 = vadd.f32 0.0, %v4915
  %v4917 = vpop.f32.mrf.mxu0
  %v4918 = vadd.f32 0.0, %v4917
  %4919 = vmatmul.bf16.gmra.mxu0 %v4706
  %v4920 = vpop.f32.mrf.mxu0
  %v4921 = vadd.f32 0.0, %v4920
  %v4922 = vpop.f32.mrf.mxu0
  %v4923 = vadd.f32 0.0, %v4922
  %4924 = vmatmul.bf16.gmra.mxu0 %v4707
  %v4925 = vpop.f32.mrf.mxu0
  %v4926 = vadd.f32 0.0, %v4925
  %v4927 = vpop.f32.mrf.mxu0
  %v4928 = vadd.f32 0.0, %v4927
  %4929 = vmatmul.bf16.gmra.mxu0 %v4708
  %v4930 = vpop.f32.mrf.mxu0
  %v4931 = vadd.f32 0.0, %v4930
  %v4932 = vpop.f32.mrf.mxu0
  %v4933 = vadd.f32 0.0, %v4932
  %4934 = vmatmul.bf16.gmra.mxu0 %v4709
  %v4935 = vpop.f32.mrf.mxu0
  %v4936 = vadd.f32 0.0, %v4935
  %v4937 = vpop.f32.mrf.mxu0
  %v4938 = vadd.f32 0.0, %v4937
  %4939 = vmatmul.bf16.gmra.mxu0 %v4710
  %v4940 = vpop.f32.mrf.mxu0
  %v4941 = vadd.f32 0.0, %v4940
  %v4942 = vpop.f32.mrf.mxu0
  %v4943 = vadd.f32 0.0, %v4942
  %4944 = vdwg.mxu0
  %v4945 = vadd.f32 %v4551, %v4786
  %v4946 = vadd.f32 %v4552, %v4788
  %v4947 = vadd.f32 %v4553, %v4791
  %v4948 = vadd.f32 %v4554, %v4793
  %v4949 = vadd.f32 %v4555, %v4796
  %v4950 = vadd.f32 %v4556, %v4798
  %v4951 = vadd.f32 %v4557, %v4801
  %v4952 = vadd.f32 %v4558, %v4803
  %v4953 = vadd.f32 %v4559, %v4806
  %v4954 = vadd.f32 %v4560, %v4808
  %v4955 = vadd.f32 %v4561, %v4811
  %v4956 = vadd.f32 %v4562, %v4813
  %v4957 = vadd.f32 %v4563, %v4816
  %v4958 = vadd.f32 %v4564, %v4818
  %v4959 = vadd.f32 %v4565, %v4821
  %v4960 = vadd.f32 %v4566, %v4823
  %v4961 = vadd.f32 %v4567, %v4826
  %v4962 = vadd.f32 %v4568, %v4828
  %v4963 = vadd.f32 %v4569, %v4831
  %v4964 = vadd.f32 %v4570, %v4833
  %v4965 = vadd.f32 %v4571, %v4836
  %v4966 = vadd.f32 %v4572, %v4838
  %v4967 = vadd.f32 %v4573, %v4841
  %v4968 = vadd.f32 %v4574, %v4843
  %v4969 = vadd.f32 %v4575, %v4846
  %v4970 = vadd.f32 %v4576, %v4848
  %v4971 = vadd.f32 %v4577, %v4851
  %v4972 = vadd.f32 %v4578, %v4853
  %v4973 = vadd.f32 %v4579, %v4856
  %v4974 = vadd.f32 %v4580, %v4858
  %v4975 = vadd.f32 %v4581, %v4861
  %v4976 = vadd.f32 %v4582, %v4863
  %v4977 = vadd.f32 %v4583, %v4866
  %v4978 = vadd.f32 %v4584, %v4868
  %v4979 = vadd.f32 %v4585, %v4871
  %v4980 = vadd.f32 %v4586, %v4873
  %v4981 = vadd.f32 %v4587, %v4876
  %v4982 = vadd.f32 %v4588, %v4878
  %v4983 = vadd.f32 %v4589, %v4881
  %v4984 = vadd.f32 %v4590, %v4883
  %v4985 = vadd.f32 %v4591, %v4886
  %v4986 = vadd.f32 %v4592, %v4888
  %v4987 = vadd.f32 %v4593, %v4891
  %v4988 = vadd.f32 %v4594, %v4893
  %v4989 = vadd.f32 %v4595, %v4896
  %v4990 = vadd.f32 %v4596, %v4898
  %v4991 = vadd.f32 %v4597, %v4901
  %v4992 = vadd.f32 %v4598, %v4903
  %v4993 = vadd.f32 %v4599, %v4906
  %v4994 = vadd.f32 %v4600, %v4908
  %v4995 = vadd.f32 %v4601, %v4911
  %v4996 = vadd.f32 %v4602, %v4913
  %v4997 = vadd.f32 %v4603, %v4916
  %v4998 = vadd.f32 %v4604, %v4918
  %v4999 = vadd.f32 %v4605, %v4921
  %v5000 = vadd.f32 %v4606, %v4923
  %v5001 = vadd.f32 %v4607, %v4926
  %v5002 = vadd.f32 %v4608, %v4928
  %v5003 = vadd.f32 %v4609, %v4931
  %v5004 = vadd.f32 %v4610, %v4933
  %v5005 = vadd.f32 %v4611, %v4936
  %v5006 = vadd.f32 %v4612, %v4938
  %v5007 = vadd.f32 %v4613, %v4941
  %v5008 = vadd.f32 %v4614, %v4943
  %v5009 = vld [vmem:[%s2797 + $0x2] sm:$0xff]
  %v5010 = vld [vmem:[%s2797 + $0xa] sm:$0xff]
  %v5011 = vld [vmem:[%s2797 + $0x1a] sm:$0xff]
  %v5012 = vld [vmem:[%s2797 + $0x22] sm:$0xff]
  %v5013 = vld [vmem:[%s2797 + $0x32] sm:$0xff]
  %v5014 = vld [vmem:[%s2797 + $0x3a] sm:$0xff]
  %v5015 = vld [vmem:[%s2797 + $0x4a] sm:$0xff]
  %v5016 = vld [vmem:[%s2797 + $0x52] sm:$0xff]
  %v5017 = vld [vmem:[%s2797 + $0x62] sm:$0xff]
  %v5018 = vld [vmem:[%s2797 + $0x6a] sm:$0xff]
  %v5019 = vld [vmem:[%s2797 + $0x7a] sm:$0xff]
  %v5020 = vld [vmem:[%s2797 + $0x82] sm:$0xff]
  %v5021 = vld [vmem:[%s2797 + $0x92] sm:$0xff]
  %v5022 = vld [vmem:[%s2797 + $0x9a] sm:$0xff]
  %v5023 = vld [vmem:[%s2797 + $0xaa] sm:$0xff]
  %v5024 = vld [vmem:[%s2797 + $0xb2] sm:$0xff]
  %v5025 = vld [vmem:[%s2797 + $0xc2] sm:$0xff]
  %v5026 = vld [vmem:[%s2797 + $0xca] sm:$0xff]
  %v5027 = vld [vmem:[%s2797 + $0xda] sm:$0xff]
  %v5028 = vld [vmem:[%s2797 + $0xe2] sm:$0xff]
  %v5029 = vld [vmem:[%s2797 + $0xf2] sm:$0xff]
  %v5030 = vld [vmem:[%s2797 + $0xfa] sm:$0xff]
  %v5031 = vld [vmem:[%s2797 + $0x10a] sm:$0xff]
  %v5032 = vld [vmem:[%s2797 + $0x112] sm:$0xff]
  %v5033 = vld [vmem:[%s2797 + $0x122] sm:$0xff]
  %v5034 = vld [vmem:[%s2797 + $0x12a] sm:$0xff]
  %v5035 = vld [vmem:[%s2797 + $0x13a] sm:$0xff]
  %v5036 = vld [vmem:[%s2797 + $0x142] sm:$0xff]
  %v5037 = vld [vmem:[%s2797 + $0x152] sm:$0xff]
  %v5038 = vld [vmem:[%s2797 + $0x15a] sm:$0xff]
  %v5039 = vld [vmem:[%s2797 + $0x16a] sm:$0xff]
  %v5040 = vld [vmem:[%s2797 + $0x172] sm:$0xff]
  %v5041 = vld [vmem:[%s2797 + $0x1b2] sm:$0xff]
  %v5042 = vld [vmem:[%s2797 + $0x1ba] sm:$0xff]
  %v5043 = vld [vmem:[%s2797 + $0x1ca] sm:$0xff]
  %v5044 = vld [vmem:[%s2797 + $0x1d2] sm:$0xff]
  %v5045 = vld [vmem:[%s2797 + $0x1e2] sm:$0xff]
  %v5046 = vld [vmem:[%s2797 + $0x1ea] sm:$0xff]
  %v5047 = vld [vmem:[%s2797 + $0x1fa] sm:$0xff]
  %v5048 = vld [vmem:[%s2797 + $0x202] sm:$0xff]
  %v5049 = vld [vmem:[%s2797 + $0x212] sm:$0xff]
  %v5050 = vld [vmem:[%s2797 + $0x21a] sm:$0xff]
  %v5051 = vld [vmem:[%s2797 + $0x22a] sm:$0xff]
  %v5052 = vld [vmem:[%s2797 + $0x232] sm:$0xff]
  %v5053 = vld [vmem:[%s2797 + $0x242] sm:$0xff]
  %v5054 = vld [vmem:[%s2797 + $0x24a] sm:$0xff]
  %v5055 = vld [vmem:[%s2797 + $0x25a] sm:$0xff]
  %v5056 = vld [vmem:[%s2797 + $0x262] sm:$0xff]
  %v5057 = vld [vmem:[%s2797 + $0x272] sm:$0xff]
  %v5058 = vld [vmem:[%s2797 + $0x27a] sm:$0xff]
  %v5059 = vld [vmem:[%s2797 + $0x28a] sm:$0xff]
  %v5060 = vld [vmem:[%s2797 + $0x292] sm:$0xff]
  %v5061 = vld [vmem:[%s2797 + $0x2a2] sm:$0xff]
  %v5062 = vld [vmem:[%s2797 + $0x2aa] sm:$0xff]
  %v5063 = vld [vmem:[%s2797 + $0x2ba] sm:$0xff]
  %v5064 = vld [vmem:[%s2797 + $0x2c2] sm:$0xff]
  %v5065 = vld [vmem:[%s2797 + $0x2d2] sm:$0xff]
  %v5066 = vld [vmem:[%s2797 + $0x2da] sm:$0xff]
  %v5067 = vld [vmem:[%s2797 + $0x2ea] sm:$0xff]
  %v5068 = vld [vmem:[%s2797 + $0x2f2] sm:$0xff]
  %v5069 = vld [vmem:[%s2797 + $0x302] sm:$0xff]
  %v5070 = vld [vmem:[%s2797 + $0x30a] sm:$0xff]
  %v5071 = vld [vmem:[%s2797 + $0x31a] sm:$0xff]
  %v5072 = vld [vmem:[%s2797 + $0x322] sm:$0xff]
  %v5073 = vpack.c.bf16 %v5010, %v5009
  %v5074 = vpack.c.bf16 %v5012, %v5011
  %v5075 = vpack.c.bf16 %v5014, %v5013
  %v5076 = vpack.c.bf16 %v5016, %v5015
  %v5077 = vpack.c.bf16 %v5018, %v5017
  %v5078 = vpack.c.bf16 %v5020, %v5019
  %v5079 = vpack.c.bf16 %v5022, %v5021
  %v5080 = vpack.c.bf16 %v5024, %v5023
  %v5081 = vpack.c.bf16 %v5026, %v5025
  %v5082 = vpack.c.bf16 %v5028, %v5027
  %v5083 = vpack.c.bf16 %v5030, %v5029
  %v5084 = vpack.c.bf16 %v5032, %v5031
  %v5085 = vpack.c.bf16 %v5034, %v5033
  %v5086 = vpack.c.bf16 %v5036, %v5035
  %v5087 = vpack.c.bf16 %v5038, %v5037
  %v5088 = vpack.c.bf16 %v5040, %v5039
  %v5089 = vpack.c.bf16 %v5042, %v5041
  %v5090 = vpack.c.bf16 %v5044, %v5043
  %v5091 = vpack.c.bf16 %v5046, %v5045
  %v5092 = vpack.c.bf16 %v5048, %v5047
  %v5093 = vpack.c.bf16 %v5050, %v5049
  %v5094 = vpack.c.bf16 %v5052, %v5051
  %v5095 = vpack.c.bf16 %v5054, %v5053
  %v5096 = vpack.c.bf16 %v5056, %v5055
  %v5097 = vpack.c.bf16 %v5058, %v5057
  %v5098 = vpack.c.bf16 %v5060, %v5059
  %v5099 = vpack.c.bf16 %v5062, %v5061
  %v5100 = vpack.c.bf16 %v5064, %v5063
  %v5101 = vpack.c.bf16 %v5066, %v5065
  %v5102 = vpack.c.bf16 %v5068, %v5067
  %v5103 = vpack.c.bf16 %v5070, %v5069
  %v5104 = vpack.c.bf16 %v5072, %v5071
  %s5105 = scalar_lea.vmem [#allocation7], 320
  %v5106 = vld [vmem:[%s5105] sm:$0xf]
  %v5107 = vld [vmem:[%s5105 + $0x4] sm:$0xf]
  %v5108 = vld [vmem:[%s5105 + $0x8] sm:$0xf]
  %v5109 = vld [vmem:[%s5105 + $0xc] sm:$0xf]
  %v5110 = vld [vmem:[%s5105 + $0x10] sm:$0xf]
  %v5111 = vld [vmem:[%s5105 + $0x14] sm:$0xf]
  %v5112 = vld [vmem:[%s5105 + $0x18] sm:$0xf]
  %v5113 = vld [vmem:[%s5105 + $0x1c] sm:$0xf]
  %v5114 = vld [vmem:[%s5105 + $0x20] sm:$0xf]
  %v5115 = vld [vmem:[%s5105 + $0x24] sm:$0xf]
  %v5116 = vld [vmem:[%s5105 + $0x28] sm:$0xf]
  %v5117 = vld [vmem:[%s5105 + $0x2c] sm:$0xf]
  %v5118 = vld [vmem:[%s5105 + $0x30] sm:$0xf]
  %v5119 = vld [vmem:[%s5105 + $0x34] sm:$0xf]
  %v5120 = vld [vmem:[%s5105 + $0x38] sm:$0xf]
  %v5121 = vld [vmem:[%s5105 + $0x3c] sm:$0xf]
  %v5138 = vunpack.c.l.b16 %v5106
  %v5139 = vunpack.c.l.b16 %v5107
  %v5140 = vunpack.c.l.b16 %v5108
  %v5141 = vunpack.c.l.b16 %v5109
  %v5142 = vunpack.c.l.b16 %v5110
  %v5143 = vunpack.c.l.b16 %v5111
  %v5144 = vunpack.c.l.b16 %v5112
  %v5145 = vunpack.c.l.b16 %v5113
  %v5146 = vunpack.c.l.b16 %v5114
  %v5147 = vunpack.c.l.b16 %v5115
  %v5148 = vunpack.c.l.b16 %v5116
  %v5149 = vunpack.c.l.b16 %v5117
  %v5150 = vunpack.c.l.b16 %v5118
  %v5151 = vunpack.c.l.b16 %v5119
  %v5152 = vunpack.c.l.b16 %v5120
  %v5153 = vunpack.c.l.b16 %v5121
  %v5154 = vpack.c.b16 %v5139, %v5138
  %v5155 = vpack.c.b16 %v5141, %v5140
  %v5156 = vpack.c.b16 %v5143, %v5142
  %v5157 = vpack.c.b16 %v5145, %v5144
  %v5158 = vpack.c.b16 %v5147, %v5146
  %v5159 = vpack.c.b16 %v5149, %v5148
  %v5160 = vpack.c.b16 %v5151, %v5150
  %v5161 = vpack.c.b16 %v5153, %v5152
  %5170 = vmatpush.bf16.msra.mxu0 %v5161
  %5171 = vmatpush.bf16.msra.mxu0 %v5160
  %5172 = vmatpush.bf16.msra.mxu0 %v5159
  %5173 = vmatpush.bf16.msra.mxu0 %v5158
  %5174 = vmatpush.bf16.msra.mxu0 %v5157
  %5175 = vmatpush.bf16.msra.mxu0 %v5156
  %5176 = vmatpush.bf16.msra.mxu0 %v5155
  %5177 = vmatpush.bf16.msra.mxu0 %v5154
  %5178 = vmatmul.bf16.gmra.mxu0 %v5073
  %v5179 = vpop.f32.mrf.mxu0
  %v5180 = vadd.f32 0.0, %v5179
  %v5181 = vpop.f32.mrf.mxu0
  %v5182 = vadd.f32 0.0, %v5181
  %5183 = vmatmul.bf16.gmra.mxu0 %v5074
  %v5184 = vpop.f32.mrf.mxu0
  %v5185 = vadd.f32 0.0, %v5184
  %v5186 = vpop.f32.mrf.mxu0
  %v5187 = vadd.f32 0.0, %v5186
  %5188 = vmatmul.bf16.gmra.mxu0 %v5075
  %v5189 = vpop.f32.mrf.mxu0
  %v5190 = vadd.f32 0.0, %v5189
  %v5191 = vpop.f32.mrf.mxu0
  %v5192 = vadd.f32 0.0, %v5191
  %5193 = vmatmul.bf16.gmra.mxu0 %v5076
  %v5194 = vpop.f32.mrf.mxu0
  %v5195 = vadd.f32 0.0, %v5194
  %v5196 = vpop.f32.mrf.mxu0
  %v5197 = vadd.f32 0.0, %v5196
  %5198 = vmatmul.bf16.gmra.mxu0 %v5077
  %v5199 = vpop.f32.mrf.mxu0
  %v5200 = vadd.f32 0.0, %v5199
  %v5201 = vpop.f32.mrf.mxu0
  %v5202 = vadd.f32 0.0, %v5201
  %5203 = vmatmul.bf16.gmra.mxu0 %v5078
  %v5204 = vpop.f32.mrf.mxu0
  %v5205 = vadd.f32 0.0, %v5204
  %v5206 = vpop.f32.mrf.mxu0
  %v5207 = vadd.f32 0.0, %v5206
  %5208 = vmatmul.bf16.gmra.mxu0 %v5079
  %v5209 = vpop.f32.mrf.mxu0
  %v5210 = vadd.f32 0.0, %v5209
  %v5211 = vpop.f32.mrf.mxu0
  %v5212 = vadd.f32 0.0, %v5211
  %5213 = vmatmul.bf16.gmra.mxu0 %v5080
  %v5214 = vpop.f32.mrf.mxu0
  %v5215 = vadd.f32 0.0, %v5214
  %v5216 = vpop.f32.mrf.mxu0
  %v5217 = vadd.f32 0.0, %v5216
  %5218 = vmatmul.bf16.gmra.mxu0 %v5081
  %v5219 = vpop.f32.mrf.mxu0
  %v5220 = vadd.f32 0.0, %v5219
  %v5221 = vpop.f32.mrf.mxu0
  %v5222 = vadd.f32 0.0, %v5221
  %5223 = vmatmul.bf16.gmra.mxu0 %v5082
  %v5224 = vpop.f32.mrf.mxu0
  %v5225 = vadd.f32 0.0, %v5224
  %v5226 = vpop.f32.mrf.mxu0
  %v5227 = vadd.f32 0.0, %v5226
  %5228 = vmatmul.bf16.gmra.mxu0 %v5083
  %v5229 = vpop.f32.mrf.mxu0
  %v5230 = vadd.f32 0.0, %v5229
  %v5231 = vpop.f32.mrf.mxu0
  %v5232 = vadd.f32 0.0, %v5231
  %5233 = vmatmul.bf16.gmra.mxu0 %v5084
  %v5234 = vpop.f32.mrf.mxu0
  %v5235 = vadd.f32 0.0, %v5234
  %v5236 = vpop.f32.mrf.mxu0
  %v5237 = vadd.f32 0.0, %v5236
  %5238 = vmatmul.bf16.gmra.mxu0 %v5085
  %v5239 = vpop.f32.mrf.mxu0
  %v5240 = vadd.f32 0.0, %v5239
  %v5241 = vpop.f32.mrf.mxu0
  %v5242 = vadd.f32 0.0, %v5241
  %5243 = vmatmul.bf16.gmra.mxu0 %v5086
  %v5244 = vpop.f32.mrf.mxu0
  %v5245 = vadd.f32 0.0, %v5244
  %v5246 = vpop.f32.mrf.mxu0
  %v5247 = vadd.f32 0.0, %v5246
  %5248 = vmatmul.bf16.gmra.mxu0 %v5087
  %v5249 = vpop.f32.mrf.mxu0
  %v5250 = vadd.f32 0.0, %v5249
  %v5251 = vpop.f32.mrf.mxu0
  %v5252 = vadd.f32 0.0, %v5251
  %5253 = vmatmul.bf16.gmra.mxu0 %v5088
  %v5254 = vpop.f32.mrf.mxu0
  %v5255 = vadd.f32 0.0, %v5254
  %v5256 = vpop.f32.mrf.mxu0
  %v5257 = vadd.f32 0.0, %v5256
  %5258 = vmatmul.bf16.gmra.mxu0 %v5089
  %v5259 = vpop.f32.mrf.mxu0
  %v5260 = vadd.f32 0.0, %v5259
  %v5261 = vpop.f32.mrf.mxu0
  %v5262 = vadd.f32 0.0, %v5261
  %5263 = vmatmul.bf16.gmra.mxu0 %v5090
  %v5264 = vpop.f32.mrf.mxu0
  %v5265 = vadd.f32 0.0, %v5264
  %v5266 = vpop.f32.mrf.mxu0
  %v5267 = vadd.f32 0.0, %v5266
  %5268 = vmatmul.bf16.gmra.mxu0 %v5091
  %v5269 = vpop.f32.mrf.mxu0
  %v5270 = vadd.f32 0.0, %v5269
  %v5271 = vpop.f32.mrf.mxu0
  %v5272 = vadd.f32 0.0, %v5271
  %5273 = vmatmul.bf16.gmra.mxu0 %v5092
  %v5274 = vpop.f32.mrf.mxu0
  %v5275 = vadd.f32 0.0, %v5274
  %v5276 = vpop.f32.mrf.mxu0
  %v5277 = vadd.f32 0.0, %v5276
  %5278 = vmatmul.bf16.gmra.mxu0 %v5093
  %v5279 = vpop.f32.mrf.mxu0
  %v5280 = vadd.f32 0.0, %v5279
  %v5281 = vpop.f32.mrf.mxu0
  %v5282 = vadd.f32 0.0, %v5281
  %5283 = vmatmul.bf16.gmra.mxu0 %v5094
  %v5284 = vpop.f32.mrf.mxu0
  %v5285 = vadd.f32 0.0, %v5284
  %v5286 = vpop.f32.mrf.mxu0
  %v5287 = vadd.f32 0.0, %v5286
  %5288 = vmatmul.bf16.gmra.mxu0 %v5095
  %v5289 = vpop.f32.mrf.mxu0
  %v5290 = vadd.f32 0.0, %v5289
  %v5291 = vpop.f32.mrf.mxu0
  %v5292 = vadd.f32 0.0, %v5291
  %5293 = vmatmul.bf16.gmra.mxu0 %v5096
  %v5294 = vpop.f32.mrf.mxu0
  %v5295 = vadd.f32 0.0, %v5294
  %v5296 = vpop.f32.mrf.mxu0
  %v5297 = vadd.f32 0.0, %v5296
  %5298 = vmatmul.bf16.gmra.mxu0 %v5097
  %v5299 = vpop.f32.mrf.mxu0
  %v5300 = vadd.f32 0.0, %v5299
  %v5301 = vpop.f32.mrf.mxu0
  %v5302 = vadd.f32 0.0, %v5301
  %5303 = vmatmul.bf16.gmra.mxu0 %v5098
  %v5304 = vpop.f32.mrf.mxu0
  %v5305 = vadd.f32 0.0, %v5304
  %v5306 = vpop.f32.mrf.mxu0
  %v5307 = vadd.f32 0.0, %v5306
  %5308 = vmatmul.bf16.gmra.mxu0 %v5099
  %v5309 = vpop.f32.mrf.mxu0
  %v5310 = vadd.f32 0.0, %v5309
  %v5311 = vpop.f32.mrf.mxu0
  %v5312 = vadd.f32 0.0, %v5311
  %5313 = vmatmul.bf16.gmra.mxu0 %v5100
  %v5314 = vpop.f32.mrf.mxu0
  %v5315 = vadd.f32 0.0, %v5314
  %v5316 = vpop.f32.mrf.mxu0
  %v5317 = vadd.f32 0.0, %v5316
  %5318 = vmatmul.bf16.gmra.mxu0 %v5101
  %v5319 = vpop.f32.mrf.mxu0
  %v5320 = vadd.f32 0.0, %v5319
  %v5321 = vpop.f32.mrf.mxu0
  %v5322 = vadd.f32 0.0, %v5321
  %5323 = vmatmul.bf16.gmra.mxu0 %v5102
  %v5324 = vpop.f32.mrf.mxu0
  %v5325 = vadd.f32 0.0, %v5324
  %v5326 = vpop.f32.mrf.mxu0
  %v5327 = vadd.f32 0.0, %v5326
  %5328 = vmatmul.bf16.gmra.mxu0 %v5103
  %v5329 = vpop.f32.mrf.mxu0
  %v5330 = vadd.f32 0.0, %v5329
  %v5331 = vpop.f32.mrf.mxu0
  %v5332 = vadd.f32 0.0, %v5331
  %5333 = vmatmul.bf16.gmra.mxu0 %v5104
  %v5334 = vpop.f32.mrf.mxu0
  %v5335 = vadd.f32 0.0, %v5334
  %v5336 = vpop.f32.mrf.mxu0
  %v5337 = vadd.f32 0.0, %v5336
  %5338 = vdwg.mxu0
  %v5339 = vadd.f32 %v4945, %v5180
  %v5340 = vadd.f32 %v4946, %v5182
  %v5341 = vadd.f32 %v4947, %v5185
  %v5342 = vadd.f32 %v4948, %v5187
  %v5343 = vadd.f32 %v4949, %v5190
  %v5344 = vadd.f32 %v4950, %v5192
  %v5345 = vadd.f32 %v4951, %v5195
  %v5346 = vadd.f32 %v4952, %v5197
  %v5347 = vadd.f32 %v4953, %v5200
  %v5348 = vadd.f32 %v4954, %v5202
  %v5349 = vadd.f32 %v4955, %v5205
  %v5350 = vadd.f32 %v4956, %v5207
  %v5351 = vadd.f32 %v4957, %v5210
  %v5352 = vadd.f32 %v4958, %v5212
  %v5353 = vadd.f32 %v4959, %v5215
  %v5354 = vadd.f32 %v4960, %v5217
  %v5355 = vadd.f32 %v4961, %v5220
  %v5356 = vadd.f32 %v4962, %v5222
  %v5357 = vadd.f32 %v4963, %v5225
  %v5358 = vadd.f32 %v4964, %v5227
  %v5359 = vadd.f32 %v4965, %v5230
  %v5360 = vadd.f32 %v4966, %v5232
  %v5361 = vadd.f32 %v4967, %v5235
  %v5362 = vadd.f32 %v4968, %v5237
  %v5363 = vadd.f32 %v4969, %v5240
  %v5364 = vadd.f32 %v4970, %v5242
  %v5365 = vadd.f32 %v4971, %v5245
  %v5366 = vadd.f32 %v4972, %v5247
  %v5367 = vadd.f32 %v4973, %v5250
  %v5368 = vadd.f32 %v4974, %v5252
  %v5369 = vadd.f32 %v4975, %v5255
  %v5370 = vadd.f32 %v4976, %v5257
  %v5371 = vadd.f32 %v4977, %v5260
  %v5372 = vadd.f32 %v4978, %v5262
  %v5373 = vadd.f32 %v4979, %v5265
  %v5374 = vadd.f32 %v4980, %v5267
  %v5375 = vadd.f32 %v4981, %v5270
  %v5376 = vadd.f32 %v4982, %v5272
  %v5377 = vadd.f32 %v4983, %v5275
  %v5378 = vadd.f32 %v4984, %v5277
  %v5379 = vadd.f32 %v4985, %v5280
  %v5380 = vadd.f32 %v4986, %v5282
  %v5381 = vadd.f32 %v4987, %v5285
  %v5382 = vadd.f32 %v4988, %v5287
  %v5383 = vadd.f32 %v4989, %v5290
  %v5384 = vadd.f32 %v4990, %v5292
  %v5385 = vadd.f32 %v4991, %v5295
  %v5386 = vadd.f32 %v4992, %v5297
  %v5387 = vadd.f32 %v4993, %v5300
  %v5388 = vadd.f32 %v4994, %v5302
  %v5389 = vadd.f32 %v4995, %v5305
  %v5390 = vadd.f32 %v4996, %v5307
  %v5391 = vadd.f32 %v4997, %v5310
  %v5392 = vadd.f32 %v4998, %v5312
  %v5393 = vadd.f32 %v4999, %v5315
  %v5394 = vadd.f32 %v5000, %v5317
  %v5395 = vadd.f32 %v5001, %v5320
  %v5396 = vadd.f32 %v5002, %v5322
  %v5397 = vadd.f32 %v5003, %v5325
  %v5398 = vadd.f32 %v5004, %v5327
  %v5399 = vadd.f32 %v5005, %v5330
  %v5400 = vadd.f32 %v5006, %v5332
  %v5401 = vadd.f32 %v5007, %v5335
  %v5402 = vadd.f32 %v5008, %v5337
  %s5403 = scalar_lea.vmem [#allocation4], 48
  %v5404 = vld [vmem:[%s5403] sm:$0xff]
  %v5405 = vld [vmem:[%s5403 + $0x8] sm:$0xff]
  %v5406 = vld [vmem:[%s5403 + $0x18] sm:$0xff]
  %v5407 = vld [vmem:[%s5403 + $0x20] sm:$0xff]
  %v5408 = vld [vmem:[%s5403 + $0x30] sm:$0xff]
  %v5409 = vld [vmem:[%s5403 + $0x38] sm:$0xff]
  %v5410 = vld [vmem:[%s5403 + $0x48] sm:$0xff]
  %v5411 = vld [vmem:[%s5403 + $0x50] sm:$0xff]
  %v5412 = vld [vmem:[%s5403 + $0x60] sm:$0xff]
  %v5413 = vld [vmem:[%s5403 + $0x68] sm:$0xff]
  %v5414 = vld [vmem:[%s5403 + $0x78] sm:$0xff]
  %v5415 = vld [vmem:[%s5403 + $0x80] sm:$0xff]
  %v5416 = vld [vmem:[%s5403 + $0x90] sm:$0xff]
  %v5417 = vld [vmem:[%s5403 + $0x98] sm:$0xff]
  %v5418 = vld [vmem:[%s5403 + $0xa8] sm:$0xff]
  %v5419 = vld [vmem:[%s5403 + $0xb0] sm:$0xff]
  %v5420 = vld [vmem:[%s5403 + $0xc0] sm:$0xff]
  %v5421 = vld [vmem:[%s5403 + $0xc8] sm:$0xff]
  %v5422 = vld [vmem:[%s5403 + $0xd8] sm:$0xff]
  %v5423 = vld [vmem:[%s5403 + $0xe0] sm:$0xff]
  %v5424 = vld [vmem:[%s5403 + $0xf0] sm:$0xff]
  %v5425 = vld [vmem:[%s5403 + $0xf8] sm:$0xff]
  %v5426 = vld [vmem:[%s5403 + $0x108] sm:$0xff]
  %v5427 = vld [vmem:[%s5403 + $0x110] sm:$0xff]
  %v5428 = vld [vmem:[%s5403 + $0x120] sm:$0xff]
  %v5429 = vld [vmem:[%s5403 + $0x128] sm:$0xff]
  %v5430 = vld [vmem:[%s5403 + $0x138] sm:$0xff]
  %v5431 = vld [vmem:[%s5403 + $0x140] sm:$0xff]
  %v5432 = vld [vmem:[%s5403 + $0x150] sm:$0xff]
  %v5433 = vld [vmem:[%s5403 + $0x158] sm:$0xff]
  %v5434 = vld [vmem:[%s5403 + $0x168] sm:$0xff]
  %v5435 = vld [vmem:[%s5403 + $0x170] sm:$0xff]
  %v5436 = vld [vmem:[%s5403 + $0x1b0] sm:$0xff]
  %v5437 = vld [vmem:[%s5403 + $0x1b8] sm:$0xff]
  %v5438 = vld [vmem:[%s5403 + $0x1c8] sm:$0xff]
  %v5439 = vld [vmem:[%s5403 + $0x1d0] sm:$0xff]
  %v5440 = vld [vmem:[%s5403 + $0x1e0] sm:$0xff]
  %v5441 = vld [vmem:[%s5403 + $0x1e8] sm:$0xff]
  %v5442 = vld [vmem:[%s5403 + $0x1f8] sm:$0xff]
  %v5443 = vld [vmem:[%s5403 + $0x200] sm:$0xff]
  %v5444 = vld [vmem:[%s5403 + $0x210] sm:$0xff]
  %v5445 = vld [vmem:[%s5403 + $0x218] sm:$0xff]
  %v5446 = vld [vmem:[%s5403 + $0x228] sm:$0xff]
  %v5447 = vld [vmem:[%s5403 + $0x230] sm:$0xff]
  %v5448 = vld [vmem:[%s5403 + $0x240] sm:$0xff]
  %v5449 = vld [vmem:[%s5403 + $0x248] sm:$0xff]
  %v5450 = vld [vmem:[%s5403 + $0x258] sm:$0xff]
  %v5451 = vld [vmem:[%s5403 + $0x260] sm:$0xff]
  %v5452 = vld [vmem:[%s5403 + $0x270] sm:$0xff]
  %v5453 = vld [vmem:[%s5403 + $0x278] sm:$0xff]
  %v5454 = vld [vmem:[%s5403 + $0x288] sm:$0xff]
  %v5455 = vld [vmem:[%s5403 + $0x290] sm:$0xff]
  %v5456 = vld [vmem:[%s5403 + $0x2a0] sm:$0xff]
  %v5457 = vld [vmem:[%s5403 + $0x2a8] sm:$0xff]
  %v5458 = vld [vmem:[%s5403 + $0x2b8] sm:$0xff]
  %v5459 = vld [vmem:[%s5403 + $0x2c0] sm:$0xff]
  %v5460 = vld [vmem:[%s5403 + $0x2d0] sm:$0xff]
  %v5461 = vld [vmem:[%s5403 + $0x2d8] sm:$0xff]
  %v5462 = vld [vmem:[%s5403 + $0x2e8] sm:$0xff]
  %v5463 = vld [vmem:[%s5403 + $0x2f0] sm:$0xff]
  %v5464 = vld [vmem:[%s5403 + $0x300] sm:$0xff]
  %v5465 = vld [vmem:[%s5403 + $0x308] sm:$0xff]
  %v5466 = vld [vmem:[%s5403 + $0x318] sm:$0xff]
  %v5467 = vld [vmem:[%s5403 + $0x320] sm:$0xff]
  %v5468 = vpack.c.bf16 %v5405, %v5404
  %v5469 = vpack.c.bf16 %v5407, %v5406
  %v5470 = vpack.c.bf16 %v5409, %v5408
  %v5471 = vpack.c.bf16 %v5411, %v5410
  %v5472 = vpack.c.bf16 %v5413, %v5412
  %v5473 = vpack.c.bf16 %v5415, %v5414
  %v5474 = vpack.c.bf16 %v5417, %v5416
  %v5475 = vpack.c.bf16 %v5419, %v5418
  %v5476 = vpack.c.bf16 %v5421, %v5420
  %v5477 = vpack.c.bf16 %v5423, %v5422
  %v5478 = vpack.c.bf16 %v5425, %v5424
  %v5479 = vpack.c.bf16 %v5427, %v5426
  %v5480 = vpack.c.bf16 %v5429, %v5428
  %v5481 = vpack.c.bf16 %v5431, %v5430
  %v5482 = vpack.c.bf16 %v5433, %v5432
  %v5483 = vpack.c.bf16 %v5435, %v5434
  %v5484 = vpack.c.bf16 %v5437, %v5436
  %v5485 = vpack.c.bf16 %v5439, %v5438
  %v5486 = vpack.c.bf16 %v5441, %v5440
  %v5487 = vpack.c.bf16 %v5443, %v5442
  %v5488 = vpack.c.bf16 %v5445, %v5444
  %v5489 = vpack.c.bf16 %v5447, %v5446
  %v5490 = vpack.c.bf16 %v5449, %v5448
  %v5491 = vpack.c.bf16 %v5451, %v5450
  %v5492 = vpack.c.bf16 %v5453, %v5452
  %v5493 = vpack.c.bf16 %v5455, %v5454
  %v5494 = vpack.c.bf16 %v5457, %v5456
  %v5495 = vpack.c.bf16 %v5459, %v5458
  %v5496 = vpack.c.bf16 %v5461, %v5460
  %v5497 = vpack.c.bf16 %v5463, %v5462
  %v5498 = vpack.c.bf16 %v5465, %v5464
  %v5499 = vpack.c.bf16 %v5467, %v5466
  %s5500 = scalar_lea.vmem [#allocation7], 384
  %v5501 = vld [vmem:[%s5500] sm:$0xf]
  %v5502 = vld [vmem:[%s5500 + $0x4] sm:$0xf]
  %v5503 = vld [vmem:[%s5500 + $0x8] sm:$0xf]
  %v5504 = vld [vmem:[%s5500 + $0xc] sm:$0xf]
  %v5505 = vld [vmem:[%s5500 + $0x10] sm:$0xf]
  %v5506 = vld [vmem:[%s5500 + $0x14] sm:$0xf]
  %v5507 = vld [vmem:[%s5500 + $0x18] sm:$0xf]
  %v5508 = vld [vmem:[%s5500 + $0x1c] sm:$0xf]
  %v5509 = vld [vmem:[%s5500 + $0x20] sm:$0xf]
  %v5510 = vld [vmem:[%s5500 + $0x24] sm:$0xf]
  %v5511 = vld [vmem:[%s5500 + $0x28] sm:$0xf]
  %v5512 = vld [vmem:[%s5500 + $0x2c] sm:$0xf]
  %v5513 = vld [vmem:[%s5500 + $0x30] sm:$0xf]
  %v5514 = vld [vmem:[%s5500 + $0x34] sm:$0xf]
  %v5515 = vld [vmem:[%s5500 + $0x38] sm:$0xf]
  %v5516 = vld [vmem:[%s5500 + $0x3c] sm:$0xf]
  %v5533 = vunpack.c.l.b16 %v5501
  %v5534 = vunpack.c.l.b16 %v5502
  %v5535 = vunpack.c.l.b16 %v5503
  %v5536 = vunpack.c.l.b16 %v5504
  %v5537 = vunpack.c.l.b16 %v5505
  %v5538 = vunpack.c.l.b16 %v5506
  %v5539 = vunpack.c.l.b16 %v5507
  %v5540 = vunpack.c.l.b16 %v5508
  %v5541 = vunpack.c.l.b16 %v5509
  %v5542 = vunpack.c.l.b16 %v5510
  %v5543 = vunpack.c.l.b16 %v5511
  %v5544 = vunpack.c.l.b16 %v5512
  %v5545 = vunpack.c.l.b16 %v5513
  %v5546 = vunpack.c.l.b16 %v5514
  %v5547 = vunpack.c.l.b16 %v5515
  %v5548 = vunpack.c.l.b16 %v5516
  %v5549 = vpack.c.b16 %v5534, %v5533
  %v5550 = vpack.c.b16 %v5536, %v5535
  %v5551 = vpack.c.b16 %v5538, %v5537
  %v5552 = vpack.c.b16 %v5540, %v5539
  %v5553 = vpack.c.b16 %v5542, %v5541
  %v5554 = vpack.c.b16 %v5544, %v5543
  %v5555 = vpack.c.b16 %v5546, %v5545
  %v5556 = vpack.c.b16 %v5548, %v5547
  %5565 = vmatpush.bf16.msra.mxu0 %v5556
  %5566 = vmatpush.bf16.msra.mxu0 %v5555
  %5567 = vmatpush.bf16.msra.mxu0 %v5554
  %5568 = vmatpush.bf16.msra.mxu0 %v5553
  %5569 = vmatpush.bf16.msra.mxu0 %v5552
  %5570 = vmatpush.bf16.msra.mxu0 %v5551
  %5571 = vmatpush.bf16.msra.mxu0 %v5550
  %5572 = vmatpush.bf16.msra.mxu0 %v5549
  %5573 = vmatmul.bf16.gmra.mxu0 %v5468
  %v5574 = vpop.f32.mrf.mxu0
  %v5575 = vadd.f32 0.0, %v5574
  %v5576 = vpop.f32.mrf.mxu0
  %v5577 = vadd.f32 0.0, %v5576
  %5578 = vmatmul.bf16.gmra.mxu0 %v5469
  %v5579 = vpop.f32.mrf.mxu0
  %v5580 = vadd.f32 0.0, %v5579
  %v5581 = vpop.f32.mrf.mxu0
  %v5582 = vadd.f32 0.0, %v5581
  %5583 = vmatmul.bf16.gmra.mxu0 %v5470
  %v5584 = vpop.f32.mrf.mxu0
  %v5585 = vadd.f32 0.0, %v5584
  %v5586 = vpop.f32.mrf.mxu0
  %v5587 = vadd.f32 0.0, %v5586
  %5588 = vmatmul.bf16.gmra.mxu0 %v5471
  %v5589 = vpop.f32.mrf.mxu0
  %v5590 = vadd.f32 0.0, %v5589
  %v5591 = vpop.f32.mrf.mxu0
  %v5592 = vadd.f32 0.0, %v5591
  %5593 = vmatmul.bf16.gmra.mxu0 %v5472
  %v5594 = vpop.f32.mrf.mxu0
  %v5595 = vadd.f32 0.0, %v5594
  %v5596 = vpop.f32.mrf.mxu0
  %v5597 = vadd.f32 0.0, %v5596
  %5598 = vmatmul.bf16.gmra.mxu0 %v5473
  %v5599 = vpop.f32.mrf.mxu0
  %v5600 = vadd.f32 0.0, %v5599
  %v5601 = vpop.f32.mrf.mxu0
  %v5602 = vadd.f32 0.0, %v5601
  %5603 = vmatmul.bf16.gmra.mxu0 %v5474
  %v5604 = vpop.f32.mrf.mxu0
  %v5605 = vadd.f32 0.0, %v5604
  %v5606 = vpop.f32.mrf.mxu0
  %v5607 = vadd.f32 0.0, %v5606
  %5608 = vmatmul.bf16.gmra.mxu0 %v5475
  %v5609 = vpop.f32.mrf.mxu0
  %v5610 = vadd.f32 0.0, %v5609
  %v5611 = vpop.f32.mrf.mxu0
  %v5612 = vadd.f32 0.0, %v5611
  %5613 = vmatmul.bf16.gmra.mxu0 %v5476
  %v5614 = vpop.f32.mrf.mxu0
  %v5615 = vadd.f32 0.0, %v5614
  %v5616 = vpop.f32.mrf.mxu0
  %v5617 = vadd.f32 0.0, %v5616
  %5618 = vmatmul.bf16.gmra.mxu0 %v5477
  %v5619 = vpop.f32.mrf.mxu0
  %v5620 = vadd.f32 0.0, %v5619
  %v5621 = vpop.f32.mrf.mxu0
  %v5622 = vadd.f32 0.0, %v5621
  %5623 = vmatmul.bf16.gmra.mxu0 %v5478
  %v5624 = vpop.f32.mrf.mxu0
  %v5625 = vadd.f32 0.0, %v5624
  %v5626 = vpop.f32.mrf.mxu0
  %v5627 = vadd.f32 0.0, %v5626
  %5628 = vmatmul.bf16.gmra.mxu0 %v5479
  %v5629 = vpop.f32.mrf.mxu0
  %v5630 = vadd.f32 0.0, %v5629
  %v5631 = vpop.f32.mrf.mxu0
  %v5632 = vadd.f32 0.0, %v5631
  %5633 = vmatmul.bf16.gmra.mxu0 %v5480
  %v5634 = vpop.f32.mrf.mxu0
  %v5635 = vadd.f32 0.0, %v5634
  %v5636 = vpop.f32.mrf.mxu0
  %v5637 = vadd.f32 0.0, %v5636
  %5638 = vmatmul.bf16.gmra.mxu0 %v5481
  %v5639 = vpop.f32.mrf.mxu0
  %v5640 = vadd.f32 0.0, %v5639
  %v5641 = vpop.f32.mrf.mxu0
  %v5642 = vadd.f32 0.0, %v5641
  %5643 = vmatmul.bf16.gmra.mxu0 %v5482
  %v5644 = vpop.f32.mrf.mxu0
  %v5645 = vadd.f32 0.0, %v5644
  %v5646 = vpop.f32.mrf.mxu0
  %v5647 = vadd.f32 0.0, %v5646
  %5648 = vmatmul.bf16.gmra.mxu0 %v5483
  %v5649 = vpop.f32.mrf.mxu0
  %v5650 = vadd.f32 0.0, %v5649
  %v5651 = vpop.f32.mrf.mxu0
  %v5652 = vadd.f32 0.0, %v5651
  %5653 = vmatmul.bf16.gmra.mxu0 %v5484
  %v5654 = vpop.f32.mrf.mxu0
  %v5655 = vadd.f32 0.0, %v5654
  %v5656 = vpop.f32.mrf.mxu0
  %v5657 = vadd.f32 0.0, %v5656
  %5658 = vmatmul.bf16.gmra.mxu0 %v5485
  %v5659 = vpop.f32.mrf.mxu0
  %v5660 = vadd.f32 0.0, %v5659
  %v5661 = vpop.f32.mrf.mxu0
  %v5662 = vadd.f32 0.0, %v5661
  %5663 = vmatmul.bf16.gmra.mxu0 %v5486
  %v5664 = vpop.f32.mrf.mxu0
  %v5665 = vadd.f32 0.0, %v5664
  %v5666 = vpop.f32.mrf.mxu0
  %v5667 = vadd.f32 0.0, %v5666
  %5668 = vmatmul.bf16.gmra.mxu0 %v5487
  %v5669 = vpop.f32.mrf.mxu0
  %v5670 = vadd.f32 0.0, %v5669
  %v5671 = vpop.f32.mrf.mxu0
  %v5672 = vadd.f32 0.0, %v5671
  %5673 = vmatmul.bf16.gmra.mxu0 %v5488
  %v5674 = vpop.f32.mrf.mxu0
  %v5675 = vadd.f32 0.0, %v5674
  %v5676 = vpop.f32.mrf.mxu0
  %v5677 = vadd.f32 0.0, %v5676
  %5678 = vmatmul.bf16.gmra.mxu0 %v5489
  %v5679 = vpop.f32.mrf.mxu0
  %v5680 = vadd.f32 0.0, %v5679
  %v5681 = vpop.f32.mrf.mxu0
  %v5682 = vadd.f32 0.0, %v5681
  %5683 = vmatmul.bf16.gmra.mxu0 %v5490
  %v5684 = vpop.f32.mrf.mxu0
  %v5685 = vadd.f32 0.0, %v5684
  %v5686 = vpop.f32.mrf.mxu0
  %v5687 = vadd.f32 0.0, %v5686
  %5688 = vmatmul.bf16.gmra.mxu0 %v5491
  %v5689 = vpop.f32.mrf.mxu0
  %v5690 = vadd.f32 0.0, %v5689
  %v5691 = vpop.f32.mrf.mxu0
  %v5692 = vadd.f32 0.0, %v5691
  %5693 = vmatmul.bf16.gmra.mxu0 %v5492
  %v5694 = vpop.f32.mrf.mxu0
  %v5695 = vadd.f32 0.0, %v5694
  %v5696 = vpop.f32.mrf.mxu0
  %v5697 = vadd.f32 0.0, %v5696
  %5698 = vmatmul.bf16.gmra.mxu0 %v5493
  %v5699 = vpop.f32.mrf.mxu0
  %v5700 = vadd.f32 0.0, %v5699
  %v5701 = vpop.f32.mrf.mxu0
  %v5702 = vadd.f32 0.0, %v5701
  %5703 = vmatmul.bf16.gmra.mxu0 %v5494
  %v5704 = vpop.f32.mrf.mxu0
  %v5705 = vadd.f32 0.0, %v5704
  %v5706 = vpop.f32.mrf.mxu0
  %v5707 = vadd.f32 0.0, %v5706
  %5708 = vmatmul.bf16.gmra.mxu0 %v5495
  %v5709 = vpop.f32.mrf.mxu0
  %v5710 = vadd.f32 0.0, %v5709
  %v5711 = vpop.f32.mrf.mxu0
  %v5712 = vadd.f32 0.0, %v5711
  %5713 = vmatmul.bf16.gmra.mxu0 %v5496
  %v5714 = vpop.f32.mrf.mxu0
  %v5715 = vadd.f32 0.0, %v5714
  %v5716 = vpop.f32.mrf.mxu0
  %v5717 = vadd.f32 0.0, %v5716
  %5718 = vmatmul.bf16.gmra.mxu0 %v5497
  %v5719 = vpop.f32.mrf.mxu0
  %v5720 = vadd.f32 0.0, %v5719
  %v5721 = vpop.f32.mrf.mxu0
  %v5722 = vadd.f32 0.0, %v5721
  %5723 = vmatmul.bf16.gmra.mxu0 %v5498
  %v5724 = vpop.f32.mrf.mxu0
  %v5725 = vadd.f32 0.0, %v5724
  %v5726 = vpop.f32.mrf.mxu0
  %v5727 = vadd.f32 0.0, %v5726
  %5728 = vmatmul.bf16.gmra.mxu0 %v5499
  %v5729 = vpop.f32.mrf.mxu0
  %v5730 = vadd.f32 0.0, %v5729
  %v5731 = vpop.f32.mrf.mxu0
  %v5732 = vadd.f32 0.0, %v5731
  %5733 = vdwg.mxu0
  %v5734 = vadd.f32 %v5339, %v5575
  %v5735 = vadd.f32 %v5340, %v5577
  %v5736 = vadd.f32 %v5341, %v5580
  %v5737 = vadd.f32 %v5342, %v5582
  %v5738 = vadd.f32 %v5343, %v5585
  %v5739 = vadd.f32 %v5344, %v5587
  %v5740 = vadd.f32 %v5345, %v5590
  %v5741 = vadd.f32 %v5346, %v5592
  %v5742 = vadd.f32 %v5347, %v5595
  %v5743 = vadd.f32 %v5348, %v5597
  %v5744 = vadd.f32 %v5349, %v5600
  %v5745 = vadd.f32 %v5350, %v5602
  %v5746 = vadd.f32 %v5351, %v5605
  %v5747 = vadd.f32 %v5352, %v5607
  %v5748 = vadd.f32 %v5353, %v5610
  %v5749 = vadd.f32 %v5354, %v5612
  %v5750 = vadd.f32 %v5355, %v5615
  %v5751 = vadd.f32 %v5356, %v5617
  %v5752 = vadd.f32 %v5357, %v5620
  %v5753 = vadd.f32 %v5358, %v5622
  %v5754 = vadd.f32 %v5359, %v5625
  %v5755 = vadd.f32 %v5360, %v5627
  %v5756 = vadd.f32 %v5361, %v5630
  %v5757 = vadd.f32 %v5362, %v5632
  %v5758 = vadd.f32 %v5363, %v5635
  %v5759 = vadd.f32 %v5364, %v5637
  %v5760 = vadd.f32 %v5365, %v5640
  %v5761 = vadd.f32 %v5366, %v5642
  %v5762 = vadd.f32 %v5367, %v5645
  %v5763 = vadd.f32 %v5368, %v5647
  %v5764 = vadd.f32 %v5369, %v5650
  %v5765 = vadd.f32 %v5370, %v5652
  %v5766 = vadd.f32 %v5371, %v5655
  %v5767 = vadd.f32 %v5372, %v5657
  %v5768 = vadd.f32 %v5373, %v5660
  %v5769 = vadd.f32 %v5374, %v5662
  %v5770 = vadd.f32 %v5375, %v5665
  %v5771 = vadd.f32 %v5376, %v5667
  %v5772 = vadd.f32 %v5377, %v5670
  %v5773 = vadd.f32 %v5378, %v5672
  %v5774 = vadd.f32 %v5379, %v5675
  %v5775 = vadd.f32 %v5380, %v5677
  %v5776 = vadd.f32 %v5381, %v5680
  %v5777 = vadd.f32 %v5382, %v5682
  %v5778 = vadd.f32 %v5383, %v5685
  %v5779 = vadd.f32 %v5384, %v5687
  %v5780 = vadd.f32 %v5385, %v5690
  %v5781 = vadd.f32 %v5386, %v5692
  %v5782 = vadd.f32 %v5387, %v5695
  %v5783 = vadd.f32 %v5388, %v5697
  %v5784 = vadd.f32 %v5389, %v5700
  %v5785 = vadd.f32 %v5390, %v5702
  %v5786 = vadd.f32 %v5391, %v5705
  %v5787 = vadd.f32 %v5392, %v5707
  %v5788 = vadd.f32 %v5393, %v5710
  %v5789 = vadd.f32 %v5394, %v5712
  %v5790 = vadd.f32 %v5395, %v5715
  %v5791 = vadd.f32 %v5396, %v5717
  %v5792 = vadd.f32 %v5397, %v5720
  %v5793 = vadd.f32 %v5398, %v5722
  %v5794 = vadd.f32 %v5399, %v5725
  %v5795 = vadd.f32 %v5400, %v5727
  %v5796 = vadd.f32 %v5401, %v5730
  %v5797 = vadd.f32 %v5402, %v5732
  %v5798 = vld [vmem:[%s5403 + $0x1] sm:$0xff]
  %v5799 = vld [vmem:[%s5403 + $0x9] sm:$0xff]
  %v5800 = vld [vmem:[%s5403 + $0x19] sm:$0xff]
  %v5801 = vld [vmem:[%s5403 + $0x21] sm:$0xff]
  %v5802 = vld [vmem:[%s5403 + $0x31] sm:$0xff]
  %v5803 = vld [vmem:[%s5403 + $0x39] sm:$0xff]
  %v5804 = vld [vmem:[%s5403 + $0x49] sm:$0xff]
  %v5805 = vld [vmem:[%s5403 + $0x51] sm:$0xff]
  %v5806 = vld [vmem:[%s5403 + $0x61] sm:$0xff]
  %v5807 = vld [vmem:[%s5403 + $0x69] sm:$0xff]
  %v5808 = vld [vmem:[%s5403 + $0x79] sm:$0xff]
  %v5809 = vld [vmem:[%s5403 + $0x81] sm:$0xff]
  %v5810 = vld [vmem:[%s5403 + $0x91] sm:$0xff]
  %v5811 = vld [vmem:[%s5403 + $0x99] sm:$0xff]
  %v5812 = vld [vmem:[%s5403 + $0xa9] sm:$0xff]
  %v5813 = vld [vmem:[%s5403 + $0xb1] sm:$0xff]
  %v5814 = vld [vmem:[%s5403 + $0xc1] sm:$0xff]
  %v5815 = vld [vmem:[%s5403 + $0xc9] sm:$0xff]
  %v5816 = vld [vmem:[%s5403 + $0xd9] sm:$0xff]
  %v5817 = vld [vmem:[%s5403 + $0xe1] sm:$0xff]
  %v5818 = vld [vmem:[%s5403 + $0xf1] sm:$0xff]
  %v5819 = vld [vmem:[%s5403 + $0xf9] sm:$0xff]
  %v5820 = vld [vmem:[%s5403 + $0x109] sm:$0xff]
  %v5821 = vld [vmem:[%s5403 + $0x111] sm:$0xff]
  %v5822 = vld [vmem:[%s5403 + $0x121] sm:$0xff]
  %v5823 = vld [vmem:[%s5403 + $0x129] sm:$0xff]
  %v5824 = vld [vmem:[%s5403 + $0x139] sm:$0xff]
  %v5825 = vld [vmem:[%s5403 + $0x141] sm:$0xff]
  %v5826 = vld [vmem:[%s5403 + $0x151] sm:$0xff]
  %v5827 = vld [vmem:[%s5403 + $0x159] sm:$0xff]
  %v5828 = vld [vmem:[%s5403 + $0x169] sm:$0xff]
  %v5829 = vld [vmem:[%s5403 + $0x171] sm:$0xff]
  %v5830 = vld [vmem:[%s5403 + $0x1b1] sm:$0xff]
  %v5831 = vld [vmem:[%s5403 + $0x1b9] sm:$0xff]
  %v5832 = vld [vmem:[%s5403 + $0x1c9] sm:$0xff]
  %v5833 = vld [vmem:[%s5403 + $0x1d1] sm:$0xff]
  %v5834 = vld [vmem:[%s5403 + $0x1e1] sm:$0xff]
  %v5835 = vld [vmem:[%s5403 + $0x1e9] sm:$0xff]
  %v5836 = vld [vmem:[%s5403 + $0x1f9] sm:$0xff]
  %v5837 = vld [vmem:[%s5403 + $0x201] sm:$0xff]
  %v5838 = vld [vmem:[%s5403 + $0x211] sm:$0xff]
  %v5839 = vld [vmem:[%s5403 + $0x219] sm:$0xff]
  %v5840 = vld [vmem:[%s5403 + $0x229] sm:$0xff]
  %v5841 = vld [vmem:[%s5403 + $0x231] sm:$0xff]
  %v5842 = vld [vmem:[%s5403 + $0x241] sm:$0xff]
  %v5843 = vld [vmem:[%s5403 + $0x249] sm:$0xff]
  %v5844 = vld [vmem:[%s5403 + $0x259] sm:$0xff]
  %v5845 = vld [vmem:[%s5403 + $0x261] sm:$0xff]
  %v5846 = vld [vmem:[%s5403 + $0x271] sm:$0xff]
  %v5847 = vld [vmem:[%s5403 + $0x279] sm:$0xff]
  %v5848 = vld [vmem:[%s5403 + $0x289] sm:$0xff]
  %v5849 = vld [vmem:[%s5403 + $0x291] sm:$0xff]
  %v5850 = vld [vmem:[%s5403 + $0x2a1] sm:$0xff]
  %v5851 = vld [vmem:[%s5403 + $0x2a9] sm:$0xff]
  %v5852 = vld [vmem:[%s5403 + $0x2b9] sm:$0xff]
  %v5853 = vld [vmem:[%s5403 + $0x2c1] sm:$0xff]
  %v5854 = vld [vmem:[%s5403 + $0x2d1] sm:$0xff]
  %v5855 = vld [vmem:[%s5403 + $0x2d9] sm:$0xff]
  %v5856 = vld [vmem:[%s5403 + $0x2e9] sm:$0xff]
  %v5857 = vld [vmem:[%s5403 + $0x2f1] sm:$0xff]
  %v5858 = vld [vmem:[%s5403 + $0x301] sm:$0xff]
  %v5859 = vld [vmem:[%s5403 + $0x309] sm:$0xff]
  %v5860 = vld [vmem:[%s5403 + $0x319] sm:$0xff]
  %v5861 = vld [vmem:[%s5403 + $0x321] sm:$0xff]
  %v5862 = vpack.c.bf16 %v5799, %v5798
  %v5863 = vpack.c.bf16 %v5801, %v5800
  %v5864 = vpack.c.bf16 %v5803, %v5802
  %v5865 = vpack.c.bf16 %v5805, %v5804
  %v5866 = vpack.c.bf16 %v5807, %v5806
  %v5867 = vpack.c.bf16 %v5809, %v5808
  %v5868 = vpack.c.bf16 %v5811, %v5810
  %v5869 = vpack.c.bf16 %v5813, %v5812
  %v5870 = vpack.c.bf16 %v5815, %v5814
  %v5871 = vpack.c.bf16 %v5817, %v5816
  %v5872 = vpack.c.bf16 %v5819, %v5818
  %v5873 = vpack.c.bf16 %v5821, %v5820
  %v5874 = vpack.c.bf16 %v5823, %v5822
  %v5875 = vpack.c.bf16 %v5825, %v5824
  %v5876 = vpack.c.bf16 %v5827, %v5826
  %v5877 = vpack.c.bf16 %v5829, %v5828
  %v5878 = vpack.c.bf16 %v5831, %v5830
  %v5879 = vpack.c.bf16 %v5833, %v5832
  %v5880 = vpack.c.bf16 %v5835, %v5834
  %v5881 = vpack.c.bf16 %v5837, %v5836
  %v5882 = vpack.c.bf16 %v5839, %v5838
  %v5883 = vpack.c.bf16 %v5841, %v5840
  %v5884 = vpack.c.bf16 %v5843, %v5842
  %v5885 = vpack.c.bf16 %v5845, %v5844
  %v5886 = vpack.c.bf16 %v5847, %v5846
  %v5887 = vpack.c.bf16 %v5849, %v5848
  %v5888 = vpack.c.bf16 %v5851, %v5850
  %v5889 = vpack.c.bf16 %v5853, %v5852
  %v5890 = vpack.c.bf16 %v5855, %v5854
  %v5891 = vpack.c.bf16 %v5857, %v5856
  %v5892 = vpack.c.bf16 %v5859, %v5858
  %v5893 = vpack.c.bf16 %v5861, %v5860
  %s5894 = scalar_lea.vmem [#allocation7], 448
  %v5895 = vld [vmem:[%s5894] sm:$0xf]
  %v5896 = vld [vmem:[%s5894 + $0x4] sm:$0xf]
  %v5897 = vld [vmem:[%s5894 + $0x8] sm:$0xf]
  %v5898 = vld [vmem:[%s5894 + $0xc] sm:$0xf]
  %v5899 = vld [vmem:[%s5894 + $0x10] sm:$0xf]
  %v5900 = vld [vmem:[%s5894 + $0x14] sm:$0xf]
  %v5901 = vld [vmem:[%s5894 + $0x18] sm:$0xf]
  %v5902 = vld [vmem:[%s5894 + $0x1c] sm:$0xf]
  %v5903 = vld [vmem:[%s5894 + $0x20] sm:$0xf]
  %v5904 = vld [vmem:[%s5894 + $0x24] sm:$0xf]
  %v5905 = vld [vmem:[%s5894 + $0x28] sm:$0xf]
  %v5906 = vld [vmem:[%s5894 + $0x2c] sm:$0xf]
  %v5907 = vld [vmem:[%s5894 + $0x30] sm:$0xf]
  %v5908 = vld [vmem:[%s5894 + $0x34] sm:$0xf]
  %v5909 = vld [vmem:[%s5894 + $0x38] sm:$0xf]
  %v5910 = vld [vmem:[%s5894 + $0x3c] sm:$0xf]
  %v5927 = vunpack.c.l.b16 %v5895
  %v5928 = vunpack.c.l.b16 %v5896
  %v5929 = vunpack.c.l.b16 %v5897
  %v5930 = vunpack.c.l.b16 %v5898
  %v5931 = vunpack.c.l.b16 %v5899
  %v5932 = vunpack.c.l.b16 %v5900
  %v5933 = vunpack.c.l.b16 %v5901
  %v5934 = vunpack.c.l.b16 %v5902
  %v5935 = vunpack.c.l.b16 %v5903
  %v5936 = vunpack.c.l.b16 %v5904
  %v5937 = vunpack.c.l.b16 %v5905
  %v5938 = vunpack.c.l.b16 %v5906
  %v5939 = vunpack.c.l.b16 %v5907
  %v5940 = vunpack.c.l.b16 %v5908
  %v5941 = vunpack.c.l.b16 %v5909
  %v5942 = vunpack.c.l.b16 %v5910
  %v5943 = vpack.c.b16 %v5928, %v5927
  %v5944 = vpack.c.b16 %v5930, %v5929
  %v5945 = vpack.c.b16 %v5932, %v5931
  %v5946 = vpack.c.b16 %v5934, %v5933
  %v5947 = vpack.c.b16 %v5936, %v5935
  %v5948 = vpack.c.b16 %v5938, %v5937
  %v5949 = vpack.c.b16 %v5940, %v5939
  %v5950 = vpack.c.b16 %v5942, %v5941
  %5959 = vmatpush.bf16.msra.mxu0 %v5950
  %5960 = vmatpush.bf16.msra.mxu0 %v5949
  %5961 = vmatpush.bf16.msra.mxu0 %v5948
  %5962 = vmatpush.bf16.msra.mxu0 %v5947
  %5963 = vmatpush.bf16.msra.mxu0 %v5946
  %5964 = vmatpush.bf16.msra.mxu0 %v5945
  %5965 = vmatpush.bf16.msra.mxu0 %v5944
  %5966 = vmatpush.bf16.msra.mxu0 %v5943
  %5967 = vmatmul.bf16.gmra.mxu0 %v5862
  %v5968 = vpop.f32.mrf.mxu0
  %v5969 = vadd.f32 0.0, %v5968
  %v5970 = vpop.f32.mrf.mxu0
  %v5971 = vadd.f32 0.0, %v5970
  %5972 = vmatmul.bf16.gmra.mxu0 %v5863
  %v5973 = vpop.f32.mrf.mxu0
  %v5974 = vadd.f32 0.0, %v5973
  %v5975 = vpop.f32.mrf.mxu0
  %v5976 = vadd.f32 0.0, %v5975
  %5977 = vmatmul.bf16.gmra.mxu0 %v5864
  %v5978 = vpop.f32.mrf.mxu0
  %v5979 = vadd.f32 0.0, %v5978
  %v5980 = vpop.f32.mrf.mxu0
  %v5981 = vadd.f32 0.0, %v5980
  %5982 = vmatmul.bf16.gmra.mxu0 %v5865
  %v5983 = vpop.f32.mrf.mxu0
  %v5984 = vadd.f32 0.0, %v5983
  %v5985 = vpop.f32.mrf.mxu0
  %v5986 = vadd.f32 0.0, %v5985
  %5987 = vmatmul.bf16.gmra.mxu0 %v5866
  %v5988 = vpop.f32.mrf.mxu0
  %v5989 = vadd.f32 0.0, %v5988
  %v5990 = vpop.f32.mrf.mxu0
  %v5991 = vadd.f32 0.0, %v5990
  %5992 = vmatmul.bf16.gmra.mxu0 %v5867
  %v5993 = vpop.f32.mrf.mxu0
  %v5994 = vadd.f32 0.0, %v5993
  %v5995 = vpop.f32.mrf.mxu0
  %v5996 = vadd.f32 0.0, %v5995
  %5997 = vmatmul.bf16.gmra.mxu0 %v5868
  %v5998 = vpop.f32.mrf.mxu0
  %v5999 = vadd.f32 0.0, %v5998
  %v6000 = vpop.f32.mrf.mxu0
  %v6001 = vadd.f32 0.0, %v6000
  %6002 = vmatmul.bf16.gmra.mxu0 %v5869
  %v6003 = vpop.f32.mrf.mxu0
  %v6004 = vadd.f32 0.0, %v6003
  %v6005 = vpop.f32.mrf.mxu0
  %v6006 = vadd.f32 0.0, %v6005
  %6007 = vmatmul.bf16.gmra.mxu0 %v5870
  %v6008 = vpop.f32.mrf.mxu0
  %v6009 = vadd.f32 0.0, %v6008
  %v6010 = vpop.f32.mrf.mxu0
  %v6011 = vadd.f32 0.0, %v6010
  %6012 = vmatmul.bf16.gmra.mxu0 %v5871
  %v6013 = vpop.f32.mrf.mxu0
  %v6014 = vadd.f32 0.0, %v6013
  %v6015 = vpop.f32.mrf.mxu0
  %v6016 = vadd.f32 0.0, %v6015
  %6017 = vmatmul.bf16.gmra.mxu0 %v5872
  %v6018 = vpop.f32.mrf.mxu0
  %v6019 = vadd.f32 0.0, %v6018
  %v6020 = vpop.f32.mrf.mxu0
  %v6021 = vadd.f32 0.0, %v6020
  %6022 = vmatmul.bf16.gmra.mxu0 %v5873
  %v6023 = vpop.f32.mrf.mxu0
  %v6024 = vadd.f32 0.0, %v6023
  %v6025 = vpop.f32.mrf.mxu0
  %v6026 = vadd.f32 0.0, %v6025
  %6027 = vmatmul.bf16.gmra.mxu0 %v5874
  %v6028 = vpop.f32.mrf.mxu0
  %v6029 = vadd.f32 0.0, %v6028
  %v6030 = vpop.f32.mrf.mxu0
  %v6031 = vadd.f32 0.0, %v6030
  %6032 = vmatmul.bf16.gmra.mxu0 %v5875
  %v6033 = vpop.f32.mrf.mxu0
  %v6034 = vadd.f32 0.0, %v6033
  %v6035 = vpop.f32.mrf.mxu0
  %v6036 = vadd.f32 0.0, %v6035
  %6037 = vmatmul.bf16.gmra.mxu0 %v5876
  %v6038 = vpop.f32.mrf.mxu0
  %v6039 = vadd.f32 0.0, %v6038
  %v6040 = vpop.f32.mrf.mxu0
  %v6041 = vadd.f32 0.0, %v6040
  %6042 = vmatmul.bf16.gmra.mxu0 %v5877
  %v6043 = vpop.f32.mrf.mxu0
  %v6044 = vadd.f32 0.0, %v6043
  %v6045 = vpop.f32.mrf.mxu0
  %v6046 = vadd.f32 0.0, %v6045
  %6047 = vmatmul.bf16.gmra.mxu0 %v5878
  %v6048 = vpop.f32.mrf.mxu0
  %v6049 = vadd.f32 0.0, %v6048
  %v6050 = vpop.f32.mrf.mxu0
  %v6051 = vadd.f32 0.0, %v6050
  %6052 = vmatmul.bf16.gmra.mxu0 %v5879
  %v6053 = vpop.f32.mrf.mxu0
  %v6054 = vadd.f32 0.0, %v6053
  %v6055 = vpop.f32.mrf.mxu0
  %v6056 = vadd.f32 0.0, %v6055
  %6057 = vmatmul.bf16.gmra.mxu0 %v5880
  %v6058 = vpop.f32.mrf.mxu0
  %v6059 = vadd.f32 0.0, %v6058
  %v6060 = vpop.f32.mrf.mxu0
  %v6061 = vadd.f32 0.0, %v6060
  %6062 = vmatmul.bf16.gmra.mxu0 %v5881
  %v6063 = vpop.f32.mrf.mxu0
  %v6064 = vadd.f32 0.0, %v6063
  %v6065 = vpop.f32.mrf.mxu0
  %v6066 = vadd.f32 0.0, %v6065
  %6067 = vmatmul.bf16.gmra.mxu0 %v5882
  %v6068 = vpop.f32.mrf.mxu0
  %v6069 = vadd.f32 0.0, %v6068
  %v6070 = vpop.f32.mrf.mxu0
  %v6071 = vadd.f32 0.0, %v6070
  %6072 = vmatmul.bf16.gmra.mxu0 %v5883
  %v6073 = vpop.f32.mrf.mxu0
  %v6074 = vadd.f32 0.0, %v6073
  %v6075 = vpop.f32.mrf.mxu0
  %v6076 = vadd.f32 0.0, %v6075
  %6077 = vmatmul.bf16.gmra.mxu0 %v5884
  %v6078 = vpop.f32.mrf.mxu0
  %v6079 = vadd.f32 0.0, %v6078
  %v6080 = vpop.f32.mrf.mxu0
  %v6081 = vadd.f32 0.0, %v6080
  %6082 = vmatmul.bf16.gmra.mxu0 %v5885
  %v6083 = vpop.f32.mrf.mxu0
  %v6084 = vadd.f32 0.0, %v6083
  %v6085 = vpop.f32.mrf.mxu0
  %v6086 = vadd.f32 0.0, %v6085
  %6087 = vmatmul.bf16.gmra.mxu0 %v5886
  %v6088 = vpop.f32.mrf.mxu0
  %v6089 = vadd.f32 0.0, %v6088
  %v6090 = vpop.f32.mrf.mxu0
  %v6091 = vadd.f32 0.0, %v6090
  %6092 = vmatmul.bf16.gmra.mxu0 %v5887
  %v6093 = vpop.f32.mrf.mxu0
  %v6094 = vadd.f32 0.0, %v6093
  %v6095 = vpop.f32.mrf.mxu0
  %v6096 = vadd.f32 0.0, %v6095
  %6097 = vmatmul.bf16.gmra.mxu0 %v5888
  %v6098 = vpop.f32.mrf.mxu0
  %v6099 = vadd.f32 0.0, %v6098
  %v6100 = vpop.f32.mrf.mxu0
  %v6101 = vadd.f32 0.0, %v6100
  %6102 = vmatmul.bf16.gmra.mxu0 %v5889
  %v6103 = vpop.f32.mrf.mxu0
  %v6104 = vadd.f32 0.0, %v6103
  %v6105 = vpop.f32.mrf.mxu0
  %v6106 = vadd.f32 0.0, %v6105
  %6107 = vmatmul.bf16.gmra.mxu0 %v5890
  %v6108 = vpop.f32.mrf.mxu0
  %v6109 = vadd.f32 0.0, %v6108
  %v6110 = vpop.f32.mrf.mxu0
  %v6111 = vadd.f32 0.0, %v6110
  %6112 = vmatmul.bf16.gmra.mxu0 %v5891
  %v6113 = vpop.f32.mrf.mxu0
  %v6114 = vadd.f32 0.0, %v6113
  %v6115 = vpop.f32.mrf.mxu0
  %v6116 = vadd.f32 0.0, %v6115
  %6117 = vmatmul.bf16.gmra.mxu0 %v5892
  %v6118 = vpop.f32.mrf.mxu0
  %v6119 = vadd.f32 0.0, %v6118
  %v6120 = vpop.f32.mrf.mxu0
  %v6121 = vadd.f32 0.0, %v6120
  %6122 = vmatmul.bf16.gmra.mxu0 %v5893
  %v6123 = vpop.f32.mrf.mxu0
  %v6124 = vadd.f32 0.0, %v6123
  %v6125 = vpop.f32.mrf.mxu0
  %v6126 = vadd.f32 0.0, %v6125
  %6127 = vdwg.mxu0
  %v6128 = vadd.f32 %v5734, %v5969
  %v6129 = vadd.f32 %v5735, %v5971
  %v6130 = vadd.f32 %v5736, %v5974
  %v6131 = vadd.f32 %v5737, %v5976
  %v6132 = vadd.f32 %v5738, %v5979
  %v6133 = vadd.f32 %v5739, %v5981
  %v6134 = vadd.f32 %v5740, %v5984
  %v6135 = vadd.f32 %v5741, %v5986
  %v6136 = vadd.f32 %v5742, %v5989
  %v6137 = vadd.f32 %v5743, %v5991
  %v6138 = vadd.f32 %v5744, %v5994
  %v6139 = vadd.f32 %v5745, %v5996
  %v6140 = vadd.f32 %v5746, %v5999
  %v6141 = vadd.f32 %v5747, %v6001
  %v6142 = vadd.f32 %v5748, %v6004
  %v6143 = vadd.f32 %v5749, %v6006
  %v6144 = vadd.f32 %v5750, %v6009
  %v6145 = vadd.f32 %v5751, %v6011
  %v6146 = vadd.f32 %v5752, %v6014
  %v6147 = vadd.f32 %v5753, %v6016
  %v6148 = vadd.f32 %v5754, %v6019
  %v6149 = vadd.f32 %v5755, %v6021
  %v6150 = vadd.f32 %v5756, %v6024
  %v6151 = vadd.f32 %v5757, %v6026
  %v6152 = vadd.f32 %v5758, %v6029
  %v6153 = vadd.f32 %v5759, %v6031
  %v6154 = vadd.f32 %v5760, %v6034
  %v6155 = vadd.f32 %v5761, %v6036
  %v6156 = vadd.f32 %v5762, %v6039
  %v6157 = vadd.f32 %v5763, %v6041
  %v6158 = vadd.f32 %v5764, %v6044
  %v6159 = vadd.f32 %v5765, %v6046
  %v6160 = vadd.f32 %v5766, %v6049
  %v6161 = vadd.f32 %v5767, %v6051
  %v6162 = vadd.f32 %v5768, %v6054
  %v6163 = vadd.f32 %v5769, %v6056
  %v6164 = vadd.f32 %v5770, %v6059
  %v6165 = vadd.f32 %v5771, %v6061
  %v6166 = vadd.f32 %v5772, %v6064
  %v6167 = vadd.f32 %v5773, %v6066
  %v6168 = vadd.f32 %v5774, %v6069
  %v6169 = vadd.f32 %v5775, %v6071
  %v6170 = vadd.f32 %v5776, %v6074
  %v6171 = vadd.f32 %v5777, %v6076
  %v6172 = vadd.f32 %v5778, %v6079
  %v6173 = vadd.f32 %v5779, %v6081
  %v6174 = vadd.f32 %v5780, %v6084
  %v6175 = vadd.f32 %v5781, %v6086
  %v6176 = vadd.f32 %v5782, %v6089
  %v6177 = vadd.f32 %v5783, %v6091
  %v6178 = vadd.f32 %v5784, %v6094
  %v6179 = vadd.f32 %v5785, %v6096
  %v6180 = vadd.f32 %v5786, %v6099
  %v6181 = vadd.f32 %v5787, %v6101
  %v6182 = vadd.f32 %v5788, %v6104
  %v6183 = vadd.f32 %v5789, %v6106
  %v6184 = vadd.f32 %v5790, %v6109
  %v6185 = vadd.f32 %v5791, %v6111
  %v6186 = vadd.f32 %v5792, %v6114
  %v6187 = vadd.f32 %v5793, %v6116
  %v6188 = vadd.f32 %v5794, %v6119
  %v6189 = vadd.f32 %v5795, %v6121
  %v6190 = vadd.f32 %v5796, %v6124
  %v6191 = vadd.f32 %v5797, %v6126
  %v6192 = vld [vmem:[%s5403 + $0x2] sm:$0xff]
  %v6193 = vld [vmem:[%s5403 + $0xa] sm:$0xff]
  %v6194 = vld [vmem:[%s5403 + $0x1a] sm:$0xff]
  %v6195 = vld [vmem:[%s5403 + $0x22] sm:$0xff]
  %v6196 = vld [vmem:[%s5403 + $0x32] sm:$0xff]
  %v6197 = vld [vmem:[%s5403 + $0x3a] sm:$0xff]
  %v6198 = vld [vmem:[%s5403 + $0x4a] sm:$0xff]
  %v6199 = vld [vmem:[%s5403 + $0x52] sm:$0xff]
  %v6200 = vld [vmem:[%s5403 + $0x62] sm:$0xff]
  %v6201 = vld [vmem:[%s5403 + $0x6a] sm:$0xff]
  %v6202 = vld [vmem:[%s5403 + $0x7a] sm:$0xff]
  %v6203 = vld [vmem:[%s5403 + $0x82] sm:$0xff]
  %v6204 = vld [vmem:[%s5403 + $0x92] sm:$0xff]
  %v6205 = vld [vmem:[%s5403 + $0x9a] sm:$0xff]
  %v6206 = vld [vmem:[%s5403 + $0xaa] sm:$0xff]
  %v6207 = vld [vmem:[%s5403 + $0xb2] sm:$0xff]
  %v6208 = vld [vmem:[%s5403 + $0xc2] sm:$0xff]
  %v6209 = vld [vmem:[%s5403 + $0xca] sm:$0xff]
  %v6210 = vld [vmem:[%s5403 + $0xda] sm:$0xff]
  %v6211 = vld [vmem:[%s5403 + $0xe2] sm:$0xff]
  %v6212 = vld [vmem:[%s5403 + $0xf2] sm:$0xff]
  %v6213 = vld [vmem:[%s5403 + $0xfa] sm:$0xff]
  %v6214 = vld [vmem:[%s5403 + $0x10a] sm:$0xff]
  %v6215 = vld [vmem:[%s5403 + $0x112] sm:$0xff]
  %v6216 = vld [vmem:[%s5403 + $0x122] sm:$0xff]
  %v6217 = vld [vmem:[%s5403 + $0x12a] sm:$0xff]
  %v6218 = vld [vmem:[%s5403 + $0x13a] sm:$0xff]
  %v6219 = vld [vmem:[%s5403 + $0x142] sm:$0xff]
  %v6220 = vld [vmem:[%s5403 + $0x152] sm:$0xff]
  %v6221 = vld [vmem:[%s5403 + $0x15a] sm:$0xff]
  %v6222 = vld [vmem:[%s5403 + $0x16a] sm:$0xff]
  %v6223 = vld [vmem:[%s5403 + $0x172] sm:$0xff]
  %v6224 = vld [vmem:[%s5403 + $0x1b2] sm:$0xff]
  %v6225 = vld [vmem:[%s5403 + $0x1ba] sm:$0xff]
  %v6226 = vld [vmem:[%s5403 + $0x1ca] sm:$0xff]
  %v6227 = vld [vmem:[%s5403 + $0x1d2] sm:$0xff]
  %v6228 = vld [vmem:[%s5403 + $0x1e2] sm:$0xff]
  %v6229 = vld [vmem:[%s5403 + $0x1ea] sm:$0xff]
  %v6230 = vld [vmem:[%s5403 + $0x1fa] sm:$0xff]
  %v6231 = vld [vmem:[%s5403 + $0x202] sm:$0xff]
  %v6232 = vld [vmem:[%s5403 + $0x212] sm:$0xff]
  %v6233 = vld [vmem:[%s5403 + $0x21a] sm:$0xff]
  %v6234 = vld [vmem:[%s5403 + $0x22a] sm:$0xff]
  %v6235 = vld [vmem:[%s5403 + $0x232] sm:$0xff]
  %v6236 = vld [vmem:[%s5403 + $0x242] sm:$0xff]
  %v6237 = vld [vmem:[%s5403 + $0x24a] sm:$0xff]
  %v6238 = vld [vmem:[%s5403 + $0x25a] sm:$0xff]
  %v6239 = vld [vmem:[%s5403 + $0x262] sm:$0xff]
  %v6240 = vld [vmem:[%s5403 + $0x272] sm:$0xff]
  %v6241 = vld [vmem:[%s5403 + $0x27a] sm:$0xff]
  %v6242 = vld [vmem:[%s5403 + $0x28a] sm:$0xff]
  %v6243 = vld [vmem:[%s5403 + $0x292] sm:$0xff]
  %v6244 = vld [vmem:[%s5403 + $0x2a2] sm:$0xff]
  %v6245 = vld [vmem:[%s5403 + $0x2aa] sm:$0xff]
  %v6246 = vld [vmem:[%s5403 + $0x2ba] sm:$0xff]
  %v6247 = vld [vmem:[%s5403 + $0x2c2] sm:$0xff]
  %v6248 = vld [vmem:[%s5403 + $0x2d2] sm:$0xff]
  %v6249 = vld [vmem:[%s5403 + $0x2da] sm:$0xff]
  %v6250 = vld [vmem:[%s5403 + $0x2ea] sm:$0xff]
  %v6251 = vld [vmem:[%s5403 + $0x2f2] sm:$0xff]
  %v6252 = vld [vmem:[%s5403 + $0x302] sm:$0xff]
  %v6253 = vld [vmem:[%s5403 + $0x30a] sm:$0xff]
  %v6254 = vld [vmem:[%s5403 + $0x31a] sm:$0xff]
  %v6255 = vld [vmem:[%s5403 + $0x322] sm:$0xff]
  %v6256 = vpack.c.bf16 %v6193, %v6192
  %v6257 = vpack.c.bf16 %v6195, %v6194
  %v6258 = vpack.c.bf16 %v6197, %v6196
  %v6259 = vpack.c.bf16 %v6199, %v6198
  %v6260 = vpack.c.bf16 %v6201, %v6200
  %v6261 = vpack.c.bf16 %v6203, %v6202
  %v6262 = vpack.c.bf16 %v6205, %v6204
  %v6263 = vpack.c.bf16 %v6207, %v6206
  %v6264 = vpack.c.bf16 %v6209, %v6208
  %v6265 = vpack.c.bf16 %v6211, %v6210
  %v6266 = vpack.c.bf16 %v6213, %v6212
  %v6267 = vpack.c.bf16 %v6215, %v6214
  %v6268 = vpack.c.bf16 %v6217, %v6216
  %v6269 = vpack.c.bf16 %v6219, %v6218
  %v6270 = vpack.c.bf16 %v6221, %v6220
  %v6271 = vpack.c.bf16 %v6223, %v6222
  %v6272 = vpack.c.bf16 %v6225, %v6224
  %v6273 = vpack.c.bf16 %v6227, %v6226
  %v6274 = vpack.c.bf16 %v6229, %v6228
  %v6275 = vpack.c.bf16 %v6231, %v6230
  %v6276 = vpack.c.bf16 %v6233, %v6232
  %v6277 = vpack.c.bf16 %v6235, %v6234
  %v6278 = vpack.c.bf16 %v6237, %v6236
  %v6279 = vpack.c.bf16 %v6239, %v6238
  %v6280 = vpack.c.bf16 %v6241, %v6240
  %v6281 = vpack.c.bf16 %v6243, %v6242
  %v6282 = vpack.c.bf16 %v6245, %v6244
  %v6283 = vpack.c.bf16 %v6247, %v6246
  %v6284 = vpack.c.bf16 %v6249, %v6248
  %v6285 = vpack.c.bf16 %v6251, %v6250
  %v6286 = vpack.c.bf16 %v6253, %v6252
  %v6287 = vpack.c.bf16 %v6255, %v6254
  %s6288 = scalar_lea.vmem [#allocation7], 512
  %v6289 = vld [vmem:[%s6288] sm:$0xf]
  %v6290 = vld [vmem:[%s6288 + $0x4] sm:$0xf]
  %v6291 = vld [vmem:[%s6288 + $0x8] sm:$0xf]
  %v6292 = vld [vmem:[%s6288 + $0xc] sm:$0xf]
  %v6293 = vld [vmem:[%s6288 + $0x10] sm:$0xf]
  %v6294 = vld [vmem:[%s6288 + $0x14] sm:$0xf]
  %v6295 = vld [vmem:[%s6288 + $0x18] sm:$0xf]
  %v6296 = vld [vmem:[%s6288 + $0x1c] sm:$0xf]
  %v6297 = vld [vmem:[%s6288 + $0x20] sm:$0xf]
  %v6298 = vld [vmem:[%s6288 + $0x24] sm:$0xf]
  %v6299 = vld [vmem:[%s6288 + $0x28] sm:$0xf]
  %v6300 = vld [vmem:[%s6288 + $0x2c] sm:$0xf]
  %v6301 = vld [vmem:[%s6288 + $0x30] sm:$0xf]
  %v6302 = vld [vmem:[%s6288 + $0x34] sm:$0xf]
  %v6303 = vld [vmem:[%s6288 + $0x38] sm:$0xf]
  %v6304 = vld [vmem:[%s6288 + $0x3c] sm:$0xf]
  %v6321 = vunpack.c.l.b16 %v6289
  %v6322 = vunpack.c.l.b16 %v6290
  %v6323 = vunpack.c.l.b16 %v6291
  %v6324 = vunpack.c.l.b16 %v6292
  %v6325 = vunpack.c.l.b16 %v6293
  %v6326 = vunpack.c.l.b16 %v6294
  %v6327 = vunpack.c.l.b16 %v6295
  %v6328 = vunpack.c.l.b16 %v6296
  %v6329 = vunpack.c.l.b16 %v6297
  %v6330 = vunpack.c.l.b16 %v6298
  %v6331 = vunpack.c.l.b16 %v6299
  %v6332 = vunpack.c.l.b16 %v6300
  %v6333 = vunpack.c.l.b16 %v6301
  %v6334 = vunpack.c.l.b16 %v6302
  %v6335 = vunpack.c.l.b16 %v6303
  %v6336 = vunpack.c.l.b16 %v6304
  %v6337 = vpack.c.b16 %v6322, %v6321
  %v6338 = vpack.c.b16 %v6324, %v6323
  %v6339 = vpack.c.b16 %v6326, %v6325
  %v6340 = vpack.c.b16 %v6328, %v6327
  %v6341 = vpack.c.b16 %v6330, %v6329
  %v6342 = vpack.c.b16 %v6332, %v6331
  %v6343 = vpack.c.b16 %v6334, %v6333
  %v6344 = vpack.c.b16 %v6336, %v6335
  %6353 = vmatpush.bf16.msra.mxu0 %v6344
  %6354 = vmatpush.bf16.msra.mxu0 %v6343
  %6355 = vmatpush.bf16.msra.mxu0 %v6342
  %6356 = vmatpush.bf16.msra.mxu0 %v6341
  %6357 = vmatpush.bf16.msra.mxu0 %v6340
  %6358 = vmatpush.bf16.msra.mxu0 %v6339
  %6359 = vmatpush.bf16.msra.mxu0 %v6338
  %6360 = vmatpush.bf16.msra.mxu0 %v6337
  %6361 = vmatmul.bf16.gmra.mxu0 %v6256
  %v6362 = vpop.f32.mrf.mxu0
  %v6363 = vadd.f32 0.0, %v6362
  %v6364 = vpop.f32.mrf.mxu0
  %v6365 = vadd.f32 0.0, %v6364
  %6366 = vmatmul.bf16.gmra.mxu0 %v6257
  %v6367 = vpop.f32.mrf.mxu0
  %v6368 = vadd.f32 0.0, %v6367
  %v6369 = vpop.f32.mrf.mxu0
  %v6370 = vadd.f32 0.0, %v6369
  %6371 = vmatmul.bf16.gmra.mxu0 %v6258
  %v6372 = vpop.f32.mrf.mxu0
  %v6373 = vadd.f32 0.0, %v6372
  %v6374 = vpop.f32.mrf.mxu0
  %v6375 = vadd.f32 0.0, %v6374
  %6376 = vmatmul.bf16.gmra.mxu0 %v6259
  %v6377 = vpop.f32.mrf.mxu0
  %v6378 = vadd.f32 0.0, %v6377
  %v6379 = vpop.f32.mrf.mxu0
  %v6380 = vadd.f32 0.0, %v6379
  %6381 = vmatmul.bf16.gmra.mxu0 %v6260
  %v6382 = vpop.f32.mrf.mxu0
  %v6383 = vadd.f32 0.0, %v6382
  %v6384 = vpop.f32.mrf.mxu0
  %v6385 = vadd.f32 0.0, %v6384
  %6386 = vmatmul.bf16.gmra.mxu0 %v6261
  %v6387 = vpop.f32.mrf.mxu0
  %v6388 = vadd.f32 0.0, %v6387
  %v6389 = vpop.f32.mrf.mxu0
  %v6390 = vadd.f32 0.0, %v6389
  %6391 = vmatmul.bf16.gmra.mxu0 %v6262
  %v6392 = vpop.f32.mrf.mxu0
  %v6393 = vadd.f32 0.0, %v6392
  %v6394 = vpop.f32.mrf.mxu0
  %v6395 = vadd.f32 0.0, %v6394
  %6396 = vmatmul.bf16.gmra.mxu0 %v6263
  %v6397 = vpop.f32.mrf.mxu0
  %v6398 = vadd.f32 0.0, %v6397
  %v6399 = vpop.f32.mrf.mxu0
  %v6400 = vadd.f32 0.0, %v6399
  %6401 = vmatmul.bf16.gmra.mxu0 %v6264
  %v6402 = vpop.f32.mrf.mxu0
  %v6403 = vadd.f32 0.0, %v6402
  %v6404 = vpop.f32.mrf.mxu0
  %v6405 = vadd.f32 0.0, %v6404
  %6406 = vmatmul.bf16.gmra.mxu0 %v6265
  %v6407 = vpop.f32.mrf.mxu0
  %v6408 = vadd.f32 0.0, %v6407
  %v6409 = vpop.f32.mrf.mxu0
  %v6410 = vadd.f32 0.0, %v6409
  %6411 = vmatmul.bf16.gmra.mxu0 %v6266
  %v6412 = vpop.f32.mrf.mxu0
  %v6413 = vadd.f32 0.0, %v6412
  %v6414 = vpop.f32.mrf.mxu0
  %v6415 = vadd.f32 0.0, %v6414
  %6416 = vmatmul.bf16.gmra.mxu0 %v6267
  %v6417 = vpop.f32.mrf.mxu0
  %v6418 = vadd.f32 0.0, %v6417
  %v6419 = vpop.f32.mrf.mxu0
  %v6420 = vadd.f32 0.0, %v6419
  %6421 = vmatmul.bf16.gmra.mxu0 %v6268
  %v6422 = vpop.f32.mrf.mxu0
  %v6423 = vadd.f32 0.0, %v6422
  %v6424 = vpop.f32.mrf.mxu0
  %v6425 = vadd.f32 0.0, %v6424
  %6426 = vmatmul.bf16.gmra.mxu0 %v6269
  %v6427 = vpop.f32.mrf.mxu0
  %v6428 = vadd.f32 0.0, %v6427
  %v6429 = vpop.f32.mrf.mxu0
  %v6430 = vadd.f32 0.0, %v6429
  %6431 = vmatmul.bf16.gmra.mxu0 %v6270
  %v6432 = vpop.f32.mrf.mxu0
  %v6433 = vadd.f32 0.0, %v6432
  %v6434 = vpop.f32.mrf.mxu0
  %v6435 = vadd.f32 0.0, %v6434
  %6436 = vmatmul.bf16.gmra.mxu0 %v6271
  %v6437 = vpop.f32.mrf.mxu0
  %v6438 = vadd.f32 0.0, %v6437
  %v6439 = vpop.f32.mrf.mxu0
  %v6440 = vadd.f32 0.0, %v6439
  %6441 = vmatmul.bf16.gmra.mxu0 %v6272
  %v6442 = vpop.f32.mrf.mxu0
  %v6443 = vadd.f32 0.0, %v6442
  %v6444 = vpop.f32.mrf.mxu0
  %v6445 = vadd.f32 0.0, %v6444
  %6446 = vmatmul.bf16.gmra.mxu0 %v6273
  %v6447 = vpop.f32.mrf.mxu0
  %v6448 = vadd.f32 0.0, %v6447
  %v6449 = vpop.f32.mrf.mxu0
  %v6450 = vadd.f32 0.0, %v6449
  %6451 = vmatmul.bf16.gmra.mxu0 %v6274
  %v6452 = vpop.f32.mrf.mxu0
  %v6453 = vadd.f32 0.0, %v6452
  %v6454 = vpop.f32.mrf.mxu0
  %v6455 = vadd.f32 0.0, %v6454
  %6456 = vmatmul.bf16.gmra.mxu0 %v6275
  %v6457 = vpop.f32.mrf.mxu0
  %v6458 = vadd.f32 0.0, %v6457
  %v6459 = vpop.f32.mrf.mxu0
  %v6460 = vadd.f32 0.0, %v6459
  %6461 = vmatmul.bf16.gmra.mxu0 %v6276
  %v6462 = vpop.f32.mrf.mxu0
  %v6463 = vadd.f32 0.0, %v6462
  %v6464 = vpop.f32.mrf.mxu0
  %v6465 = vadd.f32 0.0, %v6464
  %6466 = vmatmul.bf16.gmra.mxu0 %v6277
  %v6467 = vpop.f32.mrf.mxu0
  %v6468 = vadd.f32 0.0, %v6467
  %v6469 = vpop.f32.mrf.mxu0
  %v6470 = vadd.f32 0.0, %v6469
  %6471 = vmatmul.bf16.gmra.mxu0 %v6278
  %v6472 = vpop.f32.mrf.mxu0
  %v6473 = vadd.f32 0.0, %v6472
  %v6474 = vpop.f32.mrf.mxu0
  %v6475 = vadd.f32 0.0, %v6474
  %6476 = vmatmul.bf16.gmra.mxu0 %v6279
  %v6477 = vpop.f32.mrf.mxu0
  %v6478 = vadd.f32 0.0, %v6477
  %v6479 = vpop.f32.mrf.mxu0
  %v6480 = vadd.f32 0.0, %v6479
  %6481 = vmatmul.bf16.gmra.mxu0 %v6280
  %v6482 = vpop.f32.mrf.mxu0
  %v6483 = vadd.f32 0.0, %v6482
  %v6484 = vpop.f32.mrf.mxu0
  %v6485 = vadd.f32 0.0, %v6484
  %6486 = vmatmul.bf16.gmra.mxu0 %v6281
  %v6487 = vpop.f32.mrf.mxu0
  %v6488 = vadd.f32 0.0, %v6487
  %v6489 = vpop.f32.mrf.mxu0
  %v6490 = vadd.f32 0.0, %v6489
  %6491 = vmatmul.bf16.gmra.mxu0 %v6282
  %v6492 = vpop.f32.mrf.mxu0
  %v6493 = vadd.f32 0.0, %v6492
  %v6494 = vpop.f32.mrf.mxu0
  %v6495 = vadd.f32 0.0, %v6494
  %6496 = vmatmul.bf16.gmra.mxu0 %v6283
  %v6497 = vpop.f32.mrf.mxu0
  %v6498 = vadd.f32 0.0, %v6497
  %v6499 = vpop.f32.mrf.mxu0
  %v6500 = vadd.f32 0.0, %v6499
  %6501 = vmatmul.bf16.gmra.mxu0 %v6284
  %v6502 = vpop.f32.mrf.mxu0
  %v6503 = vadd.f32 0.0, %v6502
  %v6504 = vpop.f32.mrf.mxu0
  %v6505 = vadd.f32 0.0, %v6504
  %6506 = vmatmul.bf16.gmra.mxu0 %v6285
  %v6507 = vpop.f32.mrf.mxu0
  %v6508 = vadd.f32 0.0, %v6507
  %v6509 = vpop.f32.mrf.mxu0
  %v6510 = vadd.f32 0.0, %v6509
  %6511 = vmatmul.bf16.gmra.mxu0 %v6286
  %v6512 = vpop.f32.mrf.mxu0
  %v6513 = vadd.f32 0.0, %v6512
  %v6514 = vpop.f32.mrf.mxu0
  %v6515 = vadd.f32 0.0, %v6514
  %6516 = vmatmul.bf16.gmra.mxu0 %v6287
  %v6517 = vpop.f32.mrf.mxu0
  %v6518 = vadd.f32 0.0, %v6517
  %v6519 = vpop.f32.mrf.mxu0
  %v6520 = vadd.f32 0.0, %v6519
  %6521 = vdwg.mxu0
  %v6522 = vadd.f32 %v6128, %v6363
  %v6523 = vadd.f32 %v6129, %v6365
  %v6524 = vadd.f32 %v6130, %v6368
  %v6525 = vadd.f32 %v6131, %v6370
  %v6526 = vadd.f32 %v6132, %v6373
  %v6527 = vadd.f32 %v6133, %v6375
  %v6528 = vadd.f32 %v6134, %v6378
  %v6529 = vadd.f32 %v6135, %v6380
  %v6530 = vadd.f32 %v6136, %v6383
  %v6531 = vadd.f32 %v6137, %v6385
  %v6532 = vadd.f32 %v6138, %v6388
  %v6533 = vadd.f32 %v6139, %v6390
  %v6534 = vadd.f32 %v6140, %v6393
  %v6535 = vadd.f32 %v6141, %v6395
  %v6536 = vadd.f32 %v6142, %v6398
  %v6537 = vadd.f32 %v6143, %v6400
  %v6538 = vadd.f32 %v6144, %v6403
  %v6539 = vadd.f32 %v6145, %v6405
  %v6540 = vadd.f32 %v6146, %v6408
  %v6541 = vadd.f32 %v6147, %v6410
  %v6542 = vadd.f32 %v6148, %v6413
  %v6543 = vadd.f32 %v6149, %v6415
  %v6544 = vadd.f32 %v6150, %v6418
  %v6545 = vadd.f32 %v6151, %v6420
  %v6546 = vadd.f32 %v6152, %v6423
  %v6547 = vadd.f32 %v6153, %v6425
  %v6548 = vadd.f32 %v6154, %v6428
  %v6549 = vadd.f32 %v6155, %v6430
  %v6550 = vadd.f32 %v6156, %v6433
  %v6551 = vadd.f32 %v6157, %v6435
  %v6552 = vadd.f32 %v6158, %v6438
  %v6553 = vadd.f32 %v6159, %v6440
  %v6554 = vadd.f32 %v6160, %v6443
  %v6555 = vadd.f32 %v6161, %v6445
  %v6556 = vadd.f32 %v6162, %v6448
  %v6557 = vadd.f32 %v6163, %v6450
  %v6558 = vadd.f32 %v6164, %v6453
  %v6559 = vadd.f32 %v6165, %v6455
  %v6560 = vadd.f32 %v6166, %v6458
  %v6561 = vadd.f32 %v6167, %v6460
  %v6562 = vadd.f32 %v6168, %v6463
  %v6563 = vadd.f32 %v6169, %v6465
  %v6564 = vadd.f32 %v6170, %v6468
  %v6565 = vadd.f32 %v6171, %v6470
  %v6566 = vadd.f32 %v6172, %v6473
  %v6567 = vadd.f32 %v6173, %v6475
  %v6568 = vadd.f32 %v6174, %v6478
  %v6569 = vadd.f32 %v6175, %v6480
  %v6570 = vadd.f32 %v6176, %v6483
  %v6571 = vadd.f32 %v6177, %v6485
  %v6572 = vadd.f32 %v6178, %v6488
  %v6573 = vadd.f32 %v6179, %v6490
  %v6574 = vadd.f32 %v6180, %v6493
  %v6575 = vadd.f32 %v6181, %v6495
  %v6576 = vadd.f32 %v6182, %v6498
  %v6577 = vadd.f32 %v6183, %v6500
  %v6578 = vadd.f32 %v6184, %v6503
  %v6579 = vadd.f32 %v6185, %v6505
  %v6580 = vadd.f32 %v6186, %v6508
  %v6581 = vadd.f32 %v6187, %v6510
  %v6582 = vadd.f32 %v6188, %v6513
  %v6583 = vadd.f32 %v6189, %v6515
  %v6584 = vadd.f32 %v6190, %v6518
  %v6585 = vadd.f32 %v6191, %v6520
  %v6586 = vld [vmem:[%s10] sm:$0x1]
  %v6588 = vperm.slane %v6586, 0
  %v6590 = vadd.f32 %v6522, %v6588
  %v6591 = vadd.f32 %v6523, %v6588
  %v6592 = vadd.f32 %v6524, %v6588
  %v6593 = vadd.f32 %v6525, %v6588
  %v6594 = vadd.f32 %v6526, %v6588
  %v6595 = vadd.f32 %v6527, %v6588
  %v6596 = vadd.f32 %v6528, %v6588
  %v6597 = vadd.f32 %v6529, %v6588
  %v6598 = vadd.f32 %v6530, %v6588
  %v6599 = vadd.f32 %v6531, %v6588
  %v6600 = vadd.f32 %v6532, %v6588
  %v6601 = vadd.f32 %v6533, %v6588
  %v6602 = vadd.f32 %v6534, %v6588
  %v6603 = vadd.f32 %v6535, %v6588
  %v6604 = vadd.f32 %v6536, %v6588
  %v6605 = vadd.f32 %v6537, %v6588
  %v6606 = vadd.f32 %v6538, %v6588
  %v6607 = vadd.f32 %v6539, %v6588
  %v6608 = vadd.f32 %v6540, %v6588
  %v6609 = vadd.f32 %v6541, %v6588
  %v6610 = vadd.f32 %v6542, %v6588
  %v6611 = vadd.f32 %v6543, %v6588
  %v6612 = vadd.f32 %v6544, %v6588
  %v6613 = vadd.f32 %v6545, %v6588
  %v6614 = vadd.f32 %v6546, %v6588
  %v6615 = vadd.f32 %v6547, %v6588
  %v6616 = vadd.f32 %v6548, %v6588
  %v6617 = vadd.f32 %v6549, %v6588
  %v6618 = vadd.f32 %v6550, %v6588
  %v6619 = vadd.f32 %v6551, %v6588
  %v6620 = vadd.f32 %v6552, %v6588
  %v6621 = vadd.f32 %v6553, %v6588
  %v6622 = vadd.f32 %v6554, %v6588
  %v6623 = vadd.f32 %v6555, %v6588
  %v6624 = vadd.f32 %v6556, %v6588
  %v6625 = vadd.f32 %v6557, %v6588
  %v6626 = vadd.f32 %v6558, %v6588
  %v6627 = vadd.f32 %v6559, %v6588
  %v6628 = vadd.f32 %v6560, %v6588
  %v6629 = vadd.f32 %v6561, %v6588
  %v6630 = vadd.f32 %v6562, %v6588
  %v6631 = vadd.f32 %v6563, %v6588
  %v6632 = vadd.f32 %v6564, %v6588
  %v6633 = vadd.f32 %v6565, %v6588
  %v6634 = vadd.f32 %v6566, %v6588
  %v6635 = vadd.f32 %v6567, %v6588
  %v6636 = vadd.f32 %v6568, %v6588
  %v6637 = vadd.f32 %v6569, %v6588
  %v6638 = vadd.f32 %v6570, %v6588
  %v6639 = vadd.f32 %v6571, %v6588
  %v6640 = vadd.f32 %v6572, %v6588
  %v6641 = vadd.f32 %v6573, %v6588
  %v6642 = vadd.f32 %v6574, %v6588
  %v6643 = vadd.f32 %v6575, %v6588
  %v6644 = vadd.f32 %v6576, %v6588
  %v6645 = vadd.f32 %v6577, %v6588
  %v6646 = vadd.f32 %v6578, %v6588
  %v6647 = vadd.f32 %v6579, %v6588
  %v6648 = vadd.f32 %v6580, %v6588
  %v6649 = vadd.f32 %v6581, %v6588
  %v6650 = vadd.f32 %v6582, %v6588
  %v6651 = vadd.f32 %v6583, %v6588
  %v6652 = vadd.f32 %v6584, %v6588
  %v6653 = vadd.f32 %v6585, %v6588
  %v6654 = vld [vmem:[%s11] sm:$0x1]
  %v6655 = vld [vmem:[%s12] sm:$0x1]
  %vm6656 = vcmask 523264
  %v6657 = vsel %vm6656, %v6590, 0.0
  %v6658 = vsel %vm6656, %v6591, 0.0
  %v6659 = vadd.f32 %v6657, %v6658
  %v6660 = vsel %vm6656, %v6592, 0.0
  %v6661 = vadd.f32 %v6659, %v6660
  %v6662 = vsel %vm6656, %v6593, 0.0
  %v6663 = vadd.f32 %v6661, %v6662
  %v6664 = vsel %vm6656, %v6594, 0.0
  %v6665 = vadd.f32 %v6663, %v6664
  %v6666 = vsel %vm6656, %v6595, 0.0
  %v6667 = vadd.f32 %v6665, %v6666
  %v6668 = vsel %vm6656, %v6596, 0.0
  %v6669 = vadd.f32 %v6667, %v6668
  %v6670 = vsel %vm6656, %v6597, 0.0
  %v6671 = vadd.f32 %v6669, %v6670
  %v6672 = vsel %vm6656, %v6598, 0.0
  %v6673 = vadd.f32 %v6671, %v6672
  %v6674 = vsel %vm6656, %v6599, 0.0
  %v6675 = vadd.f32 %v6673, %v6674
  %v6676 = vsel %vm6656, %v6600, 0.0
  %v6677 = vadd.f32 %v6675, %v6676
  %v6678 = vsel %vm6656, %v6601, 0.0
  %v6679 = vadd.f32 %v6677, %v6678
  %v6680 = vsel %vm6656, %v6602, 0.0
  %v6681 = vadd.f32 %v6679, %v6680
  %v6682 = vsel %vm6656, %v6603, 0.0
  %v6683 = vadd.f32 %v6681, %v6682
  %v6684 = vsel %vm6656, %v6604, 0.0
  %v6685 = vadd.f32 %v6683, %v6684
  %v6686 = vsel %vm6656, %v6605, 0.0
  %v6687 = vadd.f32 %v6685, %v6686
  %v6688 = vsel %vm6656, %v6606, 0.0
  %v6689 = vadd.f32 %v6687, %v6688
  %v6690 = vsel %vm6656, %v6607, 0.0
  %v6691 = vadd.f32 %v6689, %v6690
  %v6692 = vsel %vm6656, %v6608, 0.0
  %v6693 = vadd.f32 %v6691, %v6692
  %v6694 = vsel %vm6656, %v6609, 0.0
  %v6695 = vadd.f32 %v6693, %v6694
  %v6696 = vsel %vm6656, %v6610, 0.0
  %v6697 = vadd.f32 %v6695, %v6696
  %v6698 = vsel %vm6656, %v6611, 0.0
  %v6699 = vadd.f32 %v6697, %v6698
  %v6700 = vsel %vm6656, %v6612, 0.0
  %v6701 = vadd.f32 %v6699, %v6700
  %v6702 = vsel %vm6656, %v6613, 0.0
  %v6703 = vadd.f32 %v6701, %v6702
  %v6704 = vsel %vm6656, %v6614, 0.0
  %v6705 = vadd.f32 %v6703, %v6704
  %v6706 = vsel %vm6656, %v6615, 0.0
  %v6707 = vadd.f32 %v6705, %v6706
  %v6708 = vsel %vm6656, %v6616, 0.0
  %v6709 = vadd.f32 %v6707, %v6708
  %v6710 = vsel %vm6656, %v6617, 0.0
  %v6711 = vadd.f32 %v6709, %v6710
  %v6712 = vsel %vm6656, %v6618, 0.0
  %v6713 = vadd.f32 %v6711, %v6712
  %v6714 = vsel %vm6656, %v6619, 0.0
  %v6715 = vadd.f32 %v6713, %v6714
  %v6716 = vsel %vm6656, %v6620, 0.0
  %v6717 = vadd.f32 %v6715, %v6716
  %v6718 = vsel %vm6656, %v6621, 0.0
  %v6719 = vadd.f32 %v6717, %v6718
  %v6720 = vsel %vm6656, %v6622, 0.0
  %v6721 = vadd.f32 %v6719, %v6720
  %v6722 = vsel %vm6656, %v6623, 0.0
  %v6723 = vadd.f32 %v6721, %v6722
  %v6724 = vsel %vm6656, %v6624, 0.0
  %v6725 = vadd.f32 %v6723, %v6724
  %v6726 = vsel %vm6656, %v6625, 0.0
  %v6727 = vadd.f32 %v6725, %v6726
  %v6728 = vsel %vm6656, %v6626, 0.0
  %v6729 = vadd.f32 %v6727, %v6728
  %v6730 = vsel %vm6656, %v6627, 0.0
  %v6731 = vadd.f32 %v6729, %v6730
  %v6732 = vsel %vm6656, %v6628, 0.0
  %v6733 = vadd.f32 %v6731, %v6732
  %v6734 = vsel %vm6656, %v6629, 0.0
  %v6735 = vadd.f32 %v6733, %v6734
  %v6736 = vsel %vm6656, %v6630, 0.0
  %v6737 = vadd.f32 %v6735, %v6736
  %v6738 = vsel %vm6656, %v6631, 0.0
  %v6739 = vadd.f32 %v6737, %v6738
  %v6740 = vsel %vm6656, %v6632, 0.0
  %v6741 = vadd.f32 %v6739, %v6740
  %v6742 = vsel %vm6656, %v6633, 0.0
  %v6743 = vadd.f32 %v6741, %v6742
  %v6744 = vsel %vm6656, %v6634, 0.0
  %v6745 = vadd.f32 %v6743, %v6744
  %v6746 = vsel %vm6656, %v6635, 0.0
  %v6747 = vadd.f32 %v6745, %v6746
  %v6748 = vsel %vm6656, %v6636, 0.0
  %v6749 = vadd.f32 %v6747, %v6748
  %v6750 = vsel %vm6656, %v6637, 0.0
  %v6751 = vadd.f32 %v6749, %v6750
  %v6752 = vsel %vm6656, %v6638, 0.0
  %v6753 = vadd.f32 %v6751, %v6752
  %v6754 = vsel %vm6656, %v6639, 0.0
  %v6755 = vadd.f32 %v6753, %v6754
  %v6756 = vsel %vm6656, %v6640, 0.0
  %v6757 = vadd.f32 %v6755, %v6756
  %v6758 = vsel %vm6656, %v6641, 0.0
  %v6759 = vadd.f32 %v6757, %v6758
  %v6760 = vsel %vm6656, %v6642, 0.0
  %v6761 = vadd.f32 %v6759, %v6760
  %v6762 = vsel %vm6656, %v6643, 0.0
  %v6763 = vadd.f32 %v6761, %v6762
  %v6764 = vsel %vm6656, %v6644, 0.0
  %v6765 = vadd.f32 %v6763, %v6764
  %v6766 = vsel %vm6656, %v6645, 0.0
  %v6767 = vadd.f32 %v6765, %v6766
  %v6768 = vsel %vm6656, %v6646, 0.0
  %v6769 = vadd.f32 %v6767, %v6768
  %v6770 = vsel %vm6656, %v6647, 0.0
  %v6771 = vadd.f32 %v6769, %v6770
  %v6772 = vsel %vm6656, %v6648, 0.0
  %v6773 = vadd.f32 %v6771, %v6772
  %v6774 = vsel %vm6656, %v6649, 0.0
  %v6775 = vadd.f32 %v6773, %v6774
  %v6776 = vsel %vm6656, %v6650, 0.0
  %v6777 = vadd.f32 %v6775, %v6776
  %v6778 = vsel %vm6656, %v6651, 0.0
  %v6779 = vadd.f32 %v6777, %v6778
  %v6780 = vsel %vm6656, %v6652, 0.0
  %v6781 = vadd.f32 %v6779, %v6780
  %v6782 = vsel %vm6656, %v6653, 0.0
  %v6783 = vadd.f32 %v6781, %v6782
  %v6784 = vrot.slane %v6783, 4
  %v6785 = vadd.f32 %v6783, %v6784
  %v6786 = vrot.slane %v6785, 2
  %v6787 = vadd.f32 %v6785, %v6786
  %v6788 = vrot.slane %v6787, 1
  %v6789 = vadd.f32 %v6787, %v6788
  %v6790 = vrcp.pop 512.0
  %v6791 = vmul.f32 512.0, %v6790
  %v6792 = vsub.f32 1.0, %v6791
  %v6793 = vmul.f32 %v6790, %v6792
  %v6794 = vadd.f32 %v6790, %v6793
  %vm6795 = vweird.f32 %v6790
  %v6796 = vsel %vm6795, %v6790, %v6794
  %v6797 = vmul.f32 %v6789, %v6796
  %v6798 = vsub.f32 %v6590, %v6797
  %v6799 = vsub.f32 %v6591, %v6797
  %v6800 = vsub.f32 %v6592, %v6797
  %v6801 = vsub.f32 %v6593, %v6797
  %v6802 = vsub.f32 %v6594, %v6797
  %v6803 = vsub.f32 %v6595, %v6797
  %v6804 = vsub.f32 %v6596, %v6797
  %v6805 = vsub.f32 %v6597, %v6797
  %v6806 = vsub.f32 %v6598, %v6797
  %v6807 = vsub.f32 %v6599, %v6797
  %v6808 = vsub.f32 %v6600, %v6797
  %v6809 = vsub.f32 %v6601, %v6797
  %v6810 = vsub.f32 %v6602, %v6797
  %v6811 = vsub.f32 %v6603, %v6797
  %v6812 = vsub.f32 %v6604, %v6797
  %v6813 = vsub.f32 %v6605, %v6797
  %v6814 = vsub.f32 %v6606, %v6797
  %v6815 = vsub.f32 %v6607, %v6797
  %v6816 = vsub.f32 %v6608, %v6797
  %v6817 = vsub.f32 %v6609, %v6797
  %v6818 = vsub.f32 %v6610, %v6797
  %v6819 = vsub.f32 %v6611, %v6797
  %v6820 = vsub.f32 %v6612, %v6797
  %v6821 = vsub.f32 %v6613, %v6797
  %v6822 = vsub.f32 %v6614, %v6797
  %v6823 = vsub.f32 %v6615, %v6797
  %v6824 = vsub.f32 %v6616, %v6797
  %v6825 = vsub.f32 %v6617, %v6797
  %v6826 = vsub.f32 %v6618, %v6797
  %v6827 = vsub.f32 %v6619, %v6797
  %v6828 = vsub.f32 %v6620, %v6797
  %v6829 = vsub.f32 %v6621, %v6797
  %v6830 = vsub.f32 %v6622, %v6797
  %v6831 = vsub.f32 %v6623, %v6797
  %v6832 = vsub.f32 %v6624, %v6797
  %v6833 = vsub.f32 %v6625, %v6797
  %v6834 = vsub.f32 %v6626, %v6797
  %v6835 = vsub.f32 %v6627, %v6797
  %v6836 = vsub.f32 %v6628, %v6797
  %v6837 = vsub.f32 %v6629, %v6797
  %v6838 = vsub.f32 %v6630, %v6797
  %v6839 = vsub.f32 %v6631, %v6797
  %v6840 = vsub.f32 %v6632, %v6797
  %v6841 = vsub.f32 %v6633, %v6797
  %v6842 = vsub.f32 %v6634, %v6797
  %v6843 = vsub.f32 %v6635, %v6797
  %v6844 = vsub.f32 %v6636, %v6797
  %v6845 = vsub.f32 %v6637, %v6797
  %v6846 = vsub.f32 %v6638, %v6797
  %v6847 = vsub.f32 %v6639, %v6797
  %v6848 = vsub.f32 %v6640, %v6797
  %v6849 = vsub.f32 %v6641, %v6797
  %v6850 = vsub.f32 %v6642, %v6797
  %v6851 = vsub.f32 %v6643, %v6797
  %v6852 = vsub.f32 %v6644, %v6797
  %v6853 = vsub.f32 %v6645, %v6797
  %v6854 = vsub.f32 %v6646, %v6797
  %v6855 = vsub.f32 %v6647, %v6797
  %v6856 = vsub.f32 %v6648, %v6797
  %v6857 = vsub.f32 %v6649, %v6797
  %v6858 = vsub.f32 %v6650, %v6797
  %v6859 = vsub.f32 %v6651, %v6797
  %v6860 = vsub.f32 %v6652, %v6797
  %v6861 = vsub.f32 %v6653, %v6797
  %v6862 = vmul.f32 %v6798, %v6798
  %v6863 = vmul.f32 %v6799, %v6799
  %v6864 = vmul.f32 %v6800, %v6800
  %v6865 = vmul.f32 %v6801, %v6801
  %v6866 = vmul.f32 %v6802, %v6802
  %v6867 = vmul.f32 %v6803, %v6803
  %v6868 = vmul.f32 %v6804, %v6804
  %v6869 = vmul.f32 %v6805, %v6805
  %v6870 = vmul.f32 %v6806, %v6806
  %v6871 = vmul.f32 %v6807, %v6807
  %v6872 = vmul.f32 %v6808, %v6808
  %v6873 = vmul.f32 %v6809, %v6809
  %v6874 = vmul.f32 %v6810, %v6810
  %v6875 = vmul.f32 %v6811, %v6811
  %v6876 = vmul.f32 %v6812, %v6812
  %v6877 = vmul.f32 %v6813, %v6813
  %v6878 = vmul.f32 %v6814, %v6814
  %v6879 = vmul.f32 %v6815, %v6815
  %v6880 = vmul.f32 %v6816, %v6816
  %v6881 = vmul.f32 %v6817, %v6817
  %v6882 = vmul.f32 %v6818, %v6818
  %v6883 = vmul.f32 %v6819, %v6819
  %v6884 = vmul.f32 %v6820, %v6820
  %v6885 = vmul.f32 %v6821, %v6821
  %v6886 = vmul.f32 %v6822, %v6822
  %v6887 = vmul.f32 %v6823, %v6823
  %v6888 = vmul.f32 %v6824, %v6824
  %v6889 = vmul.f32 %v6825, %v6825
  %v6890 = vmul.f32 %v6826, %v6826
  %v6891 = vmul.f32 %v6827, %v6827
  %v6892 = vmul.f32 %v6828, %v6828
  %v6893 = vmul.f32 %v6829, %v6829
  %v6894 = vmul.f32 %v6830, %v6830
  %v6895 = vmul.f32 %v6831, %v6831
  %v6896 = vmul.f32 %v6832, %v6832
  %v6897 = vmul.f32 %v6833, %v6833
  %v6898 = vmul.f32 %v6834, %v6834
  %v6899 = vmul.f32 %v6835, %v6835
  %v6900 = vmul.f32 %v6836, %v6836
  %v6901 = vmul.f32 %v6837, %v6837
  %v6902 = vmul.f32 %v6838, %v6838
  %v6903 = vmul.f32 %v6839, %v6839
  %v6904 = vmul.f32 %v6840, %v6840
  %v6905 = vmul.f32 %v6841, %v6841
  %v6906 = vmul.f32 %v6842, %v6842
  %v6907 = vmul.f32 %v6843, %v6843
  %v6908 = vmul.f32 %v6844, %v6844
  %v6909 = vmul.f32 %v6845, %v6845
  %v6910 = vmul.f32 %v6846, %v6846
  %v6911 = vmul.f32 %v6847, %v6847
  %v6912 = vmul.f32 %v6848, %v6848
  %v6913 = vmul.f32 %v6849, %v6849
  %v6914 = vmul.f32 %v6850, %v6850
  %v6915 = vmul.f32 %v6851, %v6851
  %v6916 = vmul.f32 %v6852, %v6852
  %v6917 = vmul.f32 %v6853, %v6853
  %v6918 = vmul.f32 %v6854, %v6854
  %v6919 = vmul.f32 %v6855, %v6855
  %v6920 = vmul.f32 %v6856, %v6856
  %v6921 = vmul.f32 %v6857, %v6857
  %v6922 = vmul.f32 %v6858, %v6858
  %v6923 = vmul.f32 %v6859, %v6859
  %v6924 = vmul.f32 %v6860, %v6860
  %v6925 = vmul.f32 %v6861, %v6861
  %v6926 = vsel %vm6656, %v6862, 0.0
  %v6927 = vsel %vm6656, %v6863, 0.0
  %v6928 = vadd.f32 %v6926, %v6927
  %v6929 = vsel %vm6656, %v6864, 0.0
  %v6930 = vadd.f32 %v6928, %v6929
  %v6931 = vsel %vm6656, %v6865, 0.0
  %v6932 = vadd.f32 %v6930, %v6931
  %v6933 = vsel %vm6656, %v6866, 0.0
  %v6934 = vadd.f32 %v6932, %v6933
  %v6935 = vsel %vm6656, %v6867, 0.0
  %v6936 = vadd.f32 %v6934, %v6935
  %v6937 = vsel %vm6656, %v6868, 0.0
  %v6938 = vadd.f32 %v6936, %v6937
  %v6939 = vsel %vm6656, %v6869, 0.0
  %v6940 = vadd.f32 %v6938, %v6939
  %v6941 = vsel %vm6656, %v6870, 0.0
  %v6942 = vadd.f32 %v6940, %v6941
  %v6943 = vsel %vm6656, %v6871, 0.0
  %v6944 = vadd.f32 %v6942, %v6943
  %v6945 = vsel %vm6656, %v6872, 0.0
  %v6946 = vadd.f32 %v6944, %v6945
  %v6947 = vsel %vm6656, %v6873, 0.0
  %v6948 = vadd.f32 %v6946, %v6947
  %v6949 = vsel %vm6656, %v6874, 0.0
  %v6950 = vadd.f32 %v6948, %v6949
  %v6951 = vsel %vm6656, %v6875, 0.0
  %v6952 = vadd.f32 %v6950, %v6951
  %v6953 = vsel %vm6656, %v6876, 0.0
  %v6954 = vadd.f32 %v6952, %v6953
  %v6955 = vsel %vm6656, %v6877, 0.0
  %v6956 = vadd.f32 %v6954, %v6955
  %v6957 = vsel %vm6656, %v6878, 0.0
  %v6958 = vadd.f32 %v6956, %v6957
  %v6959 = vsel %vm6656, %v6879, 0.0
  %v6960 = vadd.f32 %v6958, %v6959
  %v6961 = vsel %vm6656, %v6880, 0.0
  %v6962 = vadd.f32 %v6960, %v6961
  %v6963 = vsel %vm6656, %v6881, 0.0
  %v6964 = vadd.f32 %v6962, %v6963
  %v6965 = vsel %vm6656, %v6882, 0.0
  %v6966 = vadd.f32 %v6964, %v6965
  %v6967 = vsel %vm6656, %v6883, 0.0
  %v6968 = vadd.f32 %v6966, %v6967
  %v6969 = vsel %vm6656, %v6884, 0.0
  %v6970 = vadd.f32 %v6968, %v6969
  %v6971 = vsel %vm6656, %v6885, 0.0
  %v6972 = vadd.f32 %v6970, %v6971
  %v6973 = vsel %vm6656, %v6886, 0.0
  %v6974 = vadd.f32 %v6972, %v6973
  %v6975 = vsel %vm6656, %v6887, 0.0
  %v6976 = vadd.f32 %v6974, %v6975
  %v6977 = vsel %vm6656, %v6888, 0.0
  %v6978 = vadd.f32 %v6976, %v6977
  %v6979 = vsel %vm6656, %v6889, 0.0
  %v6980 = vadd.f32 %v6978, %v6979
  %v6981 = vsel %vm6656, %v6890, 0.0
  %v6982 = vadd.f32 %v6980, %v6981
  %v6983 = vsel %vm6656, %v6891, 0.0
  %v6984 = vadd.f32 %v6982, %v6983
  %v6985 = vsel %vm6656, %v6892, 0.0
  %v6986 = vadd.f32 %v6984, %v6985
  %v6987 = vsel %vm6656, %v6893, 0.0
  %v6988 = vadd.f32 %v6986, %v6987
  %v6989 = vsel %vm6656, %v6894, 0.0
  %v6990 = vadd.f32 %v6988, %v6989
  %v6991 = vsel %vm6656, %v6895, 0.0
  %v6992 = vadd.f32 %v6990, %v6991
  %v6993 = vsel %vm6656, %v6896, 0.0
  %v6994 = vadd.f32 %v6992, %v6993
  %v6995 = vsel %vm6656, %v6897, 0.0
  %v6996 = vadd.f32 %v6994, %v6995
  %v6997 = vsel %vm6656, %v6898, 0.0
  %v6998 = vadd.f32 %v6996, %v6997
  %v6999 = vsel %vm6656, %v6899, 0.0
  %v7000 = vadd.f32 %v6998, %v6999
  %v7001 = vsel %vm6656, %v6900, 0.0
  %v7002 = vadd.f32 %v7000, %v7001
  %v7003 = vsel %vm6656, %v6901, 0.0
  %v7004 = vadd.f32 %v7002, %v7003
  %v7005 = vsel %vm6656, %v6902, 0.0
  %v7006 = vadd.f32 %v7004, %v7005
  %v7007 = vsel %vm6656, %v6903, 0.0
  %v7008 = vadd.f32 %v7006, %v7007
  %v7009 = vsel %vm6656, %v6904, 0.0
  %v7010 = vadd.f32 %v7008, %v7009
  %v7011 = vsel %vm6656, %v6905, 0.0
  %v7012 = vadd.f32 %v7010, %v7011
  %v7013 = vsel %vm6656, %v6906, 0.0
  %v7014 = vadd.f32 %v7012, %v7013
  %v7015 = vsel %vm6656, %v6907, 0.0
  %v7016 = vadd.f32 %v7014, %v7015
  %v7017 = vsel %vm6656, %v6908, 0.0
  %v7018 = vadd.f32 %v7016, %v7017
  %v7019 = vsel %vm6656, %v6909, 0.0
  %v7020 = vadd.f32 %v7018, %v7019
  %v7021 = vsel %vm6656, %v6910, 0.0
  %v7022 = vadd.f32 %v7020, %v7021
  %v7023 = vsel %vm6656, %v6911, 0.0
  %v7024 = vadd.f32 %v7022, %v7023
  %v7025 = vsel %vm6656, %v6912, 0.0
  %v7026 = vadd.f32 %v7024, %v7025
  %v7027 = vsel %vm6656, %v6913, 0.0
  %v7028 = vadd.f32 %v7026, %v7027
  %v7029 = vsel %vm6656, %v6914, 0.0
  %v7030 = vadd.f32 %v7028, %v7029
  %v7031 = vsel %vm6656, %v6915, 0.0
  %v7032 = vadd.f32 %v7030, %v7031
  %v7033 = vsel %vm6656, %v6916, 0.0
  %v7034 = vadd.f32 %v7032, %v7033
  %v7035 = vsel %vm6656, %v6917, 0.0
  %v7036 = vadd.f32 %v7034, %v7035
  %v7037 = vsel %vm6656, %v6918, 0.0
  %v7038 = vadd.f32 %v7036, %v7037
  %v7039 = vsel %vm6656, %v6919, 0.0
  %v7040 = vadd.f32 %v7038, %v7039
  %v7041 = vsel %vm6656, %v6920, 0.0
  %v7042 = vadd.f32 %v7040, %v7041
  %v7043 = vsel %vm6656, %v6921, 0.0
  %v7044 = vadd.f32 %v7042, %v7043
  %v7045 = vsel %vm6656, %v6922, 0.0
  %v7046 = vadd.f32 %v7044, %v7045
  %v7047 = vsel %vm6656, %v6923, 0.0
  %v7048 = vadd.f32 %v7046, %v7047
  %v7049 = vsel %vm6656, %v6924, 0.0
  %v7050 = vadd.f32 %v7048, %v7049
  %v7051 = vsel %vm6656, %v6925, 0.0
  %v7052 = vadd.f32 %v7050, %v7051
  %v7053 = vrot.slane %v7052, 4
  %v7054 = vadd.f32 %v7052, %v7053
  %v7055 = vrot.slane %v7054, 2
  %v7056 = vadd.f32 %v7054, %v7055
  %v7057 = vrot.slane %v7056, 1
  %v7058 = vadd.f32 %v7056, %v7057
  %v7059 = vmul.f32 %v7058, %v6796
  %v7060 = vadd.f32 %v7059, 0.8
  %v7061 = vrsqrt.pop %v7060
  %v7062 = vmul.f32 %v7061, %v7060
  %v7063 = vmul.f32 %v7062, %v7061
  %v7064 = vmul.f32 0.5, %v7063
  %v7065 = vsub.f32 1.5, %v7064
  %v7066 = vmul.f32 %v7061, %v7065
  %vm7067 = vweird.f32 %v7060
  %vm7068 = vweird.f32 %v7061
  %vm7069 = vmor %vm7067, %vm7068
  %v7070 = vsel %vm7069, %v7061, %v7066
  %v7071 = vmul.f32 %v6798, %v7070
  %v7072 = vmul.f32 %v6799, %v7070
  %v7073 = vmul.f32 %v6800, %v7070
  %v7074 = vmul.f32 %v6801, %v7070
  %v7075 = vmul.f32 %v6802, %v7070
  %v7076 = vmul.f32 %v6803, %v7070
  %v7077 = vmul.f32 %v6804, %v7070
  %v7078 = vmul.f32 %v6805, %v7070
  %v7079 = vmul.f32 %v6806, %v7070
  %v7080 = vmul.f32 %v6807, %v7070
  %v7081 = vmul.f32 %v6808, %v7070
  %v7082 = vmul.f32 %v6809, %v7070
  %v7083 = vmul.f32 %v6810, %v7070
  %v7084 = vmul.f32 %v6811, %v7070
  %v7085 = vmul.f32 %v6812, %v7070
  %v7086 = vmul.f32 %v6813, %v7070
  %v7087 = vmul.f32 %v6814, %v7070
  %v7088 = vmul.f32 %v6815, %v7070
  %v7089 = vmul.f32 %v6816, %v7070
  %v7090 = vmul.f32 %v6817, %v7070
  %v7091 = vmul.f32 %v6818, %v7070
  %v7092 = vmul.f32 %v6819, %v7070
  %v7093 = vmul.f32 %v6820, %v7070
  %v7094 = vmul.f32 %v6821, %v7070
  %v7095 = vmul.f32 %v6822, %v7070
  %v7096 = vmul.f32 %v6823, %v7070
  %v7097 = vmul.f32 %v6824, %v7070
  %v7098 = vmul.f32 %v6825, %v7070
  %v7099 = vmul.f32 %v6826, %v7070
  %v7100 = vmul.f32 %v6827, %v7070
  %v7101 = vmul.f32 %v6828, %v7070
  %v7102 = vmul.f32 %v6829, %v7070
  %v7103 = vmul.f32 %v6830, %v7070
  %v7104 = vmul.f32 %v6831, %v7070
  %v7105 = vmul.f32 %v6832, %v7070
  %v7106 = vmul.f32 %v6833, %v7070
  %v7107 = vmul.f32 %v6834, %v7070
  %v7108 = vmul.f32 %v6835, %v7070
  %v7109 = vmul.f32 %v6836, %v7070
  %v7110 = vmul.f32 %v6837, %v7070
  %v7111 = vmul.f32 %v6838, %v7070
  %v7112 = vmul.f32 %v6839, %v7070
  %v7113 = vmul.f32 %v6840, %v7070
  %v7114 = vmul.f32 %v6841, %v7070
  %v7115 = vmul.f32 %v6842, %v7070
  %v7116 = vmul.f32 %v6843, %v7070
  %v7117 = vmul.f32 %v6844, %v7070
  %v7118 = vmul.f32 %v6845, %v7070
  %v7119 = vmul.f32 %v6846, %v7070
  %v7120 = vmul.f32 %v6847, %v7070
  %v7121 = vmul.f32 %v6848, %v7070
  %v7122 = vmul.f32 %v6849, %v7070
  %v7123 = vmul.f32 %v6850, %v7070
  %v7124 = vmul.f32 %v6851, %v7070
  %v7125 = vmul.f32 %v6852, %v7070
  %v7126 = vmul.f32 %v6853, %v7070
  %v7127 = vmul.f32 %v6854, %v7070
  %v7128 = vmul.f32 %v6855, %v7070
  %v7129 = vmul.f32 %v6856, %v7070
  %v7130 = vmul.f32 %v6857, %v7070
  %v7131 = vmul.f32 %v6858, %v7070
  %v7132 = vmul.f32 %v6859, %v7070
  %v7133 = vmul.f32 %v6860, %v7070
  %v7134 = vmul.f32 %v6861, %v7070
  %v7136 = vperm.slane %v6654, 0
  %v7138 = vmul.f32 %v7071, %v7136
  %v7139 = vmul.f32 %v7072, %v7136
  %v7140 = vmul.f32 %v7073, %v7136
  %v7141 = vmul.f32 %v7074, %v7136
  %v7142 = vmul.f32 %v7075, %v7136
  %v7143 = vmul.f32 %v7076, %v7136
  %v7144 = vmul.f32 %v7077, %v7136
  %v7145 = vmul.f32 %v7078, %v7136
  %v7146 = vmul.f32 %v7079, %v7136
  %v7147 = vmul.f32 %v7080, %v7136
  %v7148 = vmul.f32 %v7081, %v7136
  %v7149 = vmul.f32 %v7082, %v7136
  %v7150 = vmul.f32 %v7083, %v7136
  %v7151 = vmul.f32 %v7084, %v7136
  %v7152 = vmul.f32 %v7085, %v7136
  %v7153 = vmul.f32 %v7086, %v7136
  %v7154 = vmul.f32 %v7087, %v7136
  %v7155 = vmul.f32 %v7088, %v7136
  %v7156 = vmul.f32 %v7089, %v7136
  %v7157 = vmul.f32 %v7090, %v7136
  %v7158 = vmul.f32 %v7091, %v7136
  %v7159 = vmul.f32 %v7092, %v7136
  %v7160 = vmul.f32 %v7093, %v7136
  %v7161 = vmul.f32 %v7094, %v7136
  %v7162 = vmul.f32 %v7095, %v7136
  %v7163 = vmul.f32 %v7096, %v7136
  %v7164 = vmul.f32 %v7097, %v7136
  %v7165 = vmul.f32 %v7098, %v7136
  %v7166 = vmul.f32 %v7099, %v7136
  %v7167 = vmul.f32 %v7100, %v7136
  %v7168 = vmul.f32 %v7101, %v7136
  %v7169 = vmul.f32 %v7102, %v7136
  %v7170 = vmul.f32 %v7103, %v7136
  %v7171 = vmul.f32 %v7104, %v7136
  %v7172 = vmul.f32 %v7105, %v7136
  %v7173 = vmul.f32 %v7106, %v7136
  %v7174 = vmul.f32 %v7107, %v7136
  %v7175 = vmul.f32 %v7108, %v7136
  %v7176 = vmul.f32 %v7109, %v7136
  %v7177 = vmul.f32 %v7110, %v7136
  %v7178 = vmul.f32 %v7111, %v7136
  %v7179 = vmul.f32 %v7112, %v7136
  %v7180 = vmul.f32 %v7113, %v7136
  %v7181 = vmul.f32 %v7114, %v7136
  %v7182 = vmul.f32 %v7115, %v7136
  %v7183 = vmul.f32 %v7116, %v7136
  %v7184 = vmul.f32 %v7117, %v7136
  %v7185 = vmul.f32 %v7118, %v7136
  %v7186 = vmul.f32 %v7119, %v7136
  %v7187 = vmul.f32 %v7120, %v7136
  %v7188 = vmul.f32 %v7121, %v7136
  %v7189 = vmul.f32 %v7122, %v7136
  %v7190 = vmul.f32 %v7123, %v7136
  %v7191 = vmul.f32 %v7124, %v7136
  %v7192 = vmul.f32 %v7125, %v7136
  %v7193 = vmul.f32 %v7126, %v7136
  %v7194 = vmul.f32 %v7127, %v7136
  %v7195 = vmul.f32 %v7128, %v7136
  %v7196 = vmul.f32 %v7129, %v7136
  %v7197 = vmul.f32 %v7130, %v7136
  %v7198 = vmul.f32 %v7131, %v7136
  %v7199 = vmul.f32 %v7132, %v7136
  %v7200 = vmul.f32 %v7133, %v7136
  %v7201 = vmul.f32 %v7134, %v7136
  %v7203 = vperm.slane %v6655, 0
  %v7205 = vadd.f32 %v7138, %v7203
  %v7206 = vadd.f32 %v7139, %v7203
  %v7207 = vadd.f32 %v7140, %v7203
  %v7208 = vadd.f32 %v7141, %v7203
  %v7209 = vadd.f32 %v7142, %v7203
  %v7210 = vadd.f32 %v7143, %v7203
  %v7211 = vadd.f32 %v7144, %v7203
  %v7212 = vadd.f32 %v7145, %v7203
  %v7213 = vadd.f32 %v7146, %v7203
  %v7214 = vadd.f32 %v7147, %v7203
  %v7215 = vadd.f32 %v7148, %v7203
  %v7216 = vadd.f32 %v7149, %v7203
  %v7217 = vadd.f32 %v7150, %v7203
  %v7218 = vadd.f32 %v7151, %v7203
  %v7219 = vadd.f32 %v7152, %v7203
  %v7220 = vadd.f32 %v7153, %v7203
  %v7221 = vadd.f32 %v7154, %v7203
  %v7222 = vadd.f32 %v7155, %v7203
  %v7223 = vadd.f32 %v7156, %v7203
  %v7224 = vadd.f32 %v7157, %v7203
  %v7225 = vadd.f32 %v7158, %v7203
  %v7226 = vadd.f32 %v7159, %v7203
  %v7227 = vadd.f32 %v7160, %v7203
  %v7228 = vadd.f32 %v7161, %v7203
  %v7229 = vadd.f32 %v7162, %v7203
  %v7230 = vadd.f32 %v7163, %v7203
  %v7231 = vadd.f32 %v7164, %v7203
  %v7232 = vadd.f32 %v7165, %v7203
  %v7233 = vadd.f32 %v7166, %v7203
  %v7234 = vadd.f32 %v7167, %v7203
  %v7235 = vadd.f32 %v7168, %v7203
  %v7236 = vadd.f32 %v7169, %v7203
  %v7237 = vadd.f32 %v7170, %v7203
  %v7238 = vadd.f32 %v7171, %v7203
  %v7239 = vadd.f32 %v7172, %v7203
  %v7240 = vadd.f32 %v7173, %v7203
  %v7241 = vadd.f32 %v7174, %v7203
  %v7242 = vadd.f32 %v7175, %v7203
  %v7243 = vadd.f32 %v7176, %v7203
  %v7244 = vadd.f32 %v7177, %v7203
  %v7245 = vadd.f32 %v7178, %v7203
  %v7246 = vadd.f32 %v7179, %v7203
  %v7247 = vadd.f32 %v7180, %v7203
  %v7248 = vadd.f32 %v7181, %v7203
  %v7249 = vadd.f32 %v7182, %v7203
  %v7250 = vadd.f32 %v7183, %v7203
  %v7251 = vadd.f32 %v7184, %v7203
  %v7252 = vadd.f32 %v7185, %v7203
  %v7253 = vadd.f32 %v7186, %v7203
  %v7254 = vadd.f32 %v7187, %v7203
  %v7255 = vadd.f32 %v7188, %v7203
  %v7256 = vadd.f32 %v7189, %v7203
  %v7257 = vadd.f32 %v7190, %v7203
  %v7258 = vadd.f32 %v7191, %v7203
  %v7259 = vadd.f32 %v7192, %v7203
  %v7260 = vadd.f32 %v7193, %v7203
  %v7261 = vadd.f32 %v7194, %v7203
  %v7262 = vadd.f32 %v7195, %v7203
  %v7263 = vadd.f32 %v7196, %v7203
  %v7264 = vadd.f32 %v7197, %v7203
  %v7265 = vadd.f32 %v7198, %v7203
  %v7266 = vadd.f32 %v7199, %v7203
  %v7267 = vadd.f32 %v7200, %v7203
  %v7268 = vadd.f32 %v7201, %v7203
  %vm7269 = vcmp.ge.f32.partialorder %v7205, 0.0
  %vm7270 = vcmp.ge.f32.partialorder %v7206, 0.0
  %vm7271 = vcmp.ge.f32.partialorder %v7207, 0.0
  %vm7272 = vcmp.ge.f32.partialorder %v7208, 0.0
  %vm7273 = vcmp.ge.f32.partialorder %v7209, 0.0
  %vm7274 = vcmp.ge.f32.partialorder %v7210, 0.0
  %vm7275 = vcmp.ge.f32.partialorder %v7211, 0.0
  %vm7276 = vcmp.ge.f32.partialorder %v7212, 0.0
  %vm7277 = vcmp.ge.f32.partialorder %v7213, 0.0
  %vm7278 = vcmp.ge.f32.partialorder %v7214, 0.0
  %vm7279 = vcmp.ge.f32.partialorder %v7215, 0.0
  %vm7280 = vcmp.ge.f32.partialorder %v7216, 0.0
  %vm7281 = vcmp.ge.f32.partialorder %v7217, 0.0
  %vm7282 = vcmp.ge.f32.partialorder %v7218, 0.0
  %vm7283 = vcmp.ge.f32.partialorder %v7219, 0.0
  %vm7284 = vcmp.ge.f32.partialorder %v7220, 0.0
  %vm7285 = vcmp.ge.f32.partialorder %v7221, 0.0
  %vm7286 = vcmp.ge.f32.partialorder %v7222, 0.0
  %vm7287 = vcmp.ge.f32.partialorder %v7223, 0.0
  %vm7288 = vcmp.ge.f32.partialorder %v7224, 0.0
  %vm7289 = vcmp.ge.f32.partialorder %v7225, 0.0
  %vm7290 = vcmp.ge.f32.partialorder %v7226, 0.0
  %vm7291 = vcmp.ge.f32.partialorder %v7227, 0.0
  %vm7292 = vcmp.ge.f32.partialorder %v7228, 0.0
  %vm7293 = vcmp.ge.f32.partialorder %v7229, 0.0
  %vm7294 = vcmp.ge.f32.partialorder %v7230, 0.0
  %vm7295 = vcmp.ge.f32.partialorder %v7231, 0.0
  %vm7296 = vcmp.ge.f32.partialorder %v7232, 0.0
  %vm7297 = vcmp.ge.f32.partialorder %v7233, 0.0
  %vm7298 = vcmp.ge.f32.partialorder %v7234, 0.0
  %vm7299 = vcmp.ge.f32.partialorder %v7235, 0.0
  %vm7300 = vcmp.ge.f32.partialorder %v7236, 0.0
  %vm7301 = vcmp.ge.f32.partialorder %v7237, 0.0
  %vm7302 = vcmp.ge.f32.partialorder %v7238, 0.0
  %vm7303 = vcmp.ge.f32.partialorder %v7239, 0.0
  %vm7304 = vcmp.ge.f32.partialorder %v7240, 0.0
  %vm7305 = vcmp.ge.f32.partialorder %v7241, 0.0
  %vm7306 = vcmp.ge.f32.partialorder %v7242, 0.0
  %vm7307 = vcmp.ge.f32.partialorder %v7243, 0.0
  %vm7308 = vcmp.ge.f32.partialorder %v7244, 0.0
  %vm7309 = vcmp.ge.f32.partialorder %v7245, 0.0
  %vm7310 = vcmp.ge.f32.partialorder %v7246, 0.0
  %vm7311 = vcmp.ge.f32.partialorder %v7247, 0.0
  %vm7312 = vcmp.ge.f32.partialorder %v7248, 0.0
  %vm7313 = vcmp.ge.f32.partialorder %v7249, 0.0
  %vm7314 = vcmp.ge.f32.partialorder %v7250, 0.0
  %vm7315 = vcmp.ge.f32.partialorder %v7251, 0.0
  %vm7316 = vcmp.ge.f32.partialorder %v7252, 0.0
  %vm7317 = vcmp.ge.f32.partialorder %v7253, 0.0
  %vm7318 = vcmp.ge.f32.partialorder %v7254, 0.0
  %vm7319 = vcmp.ge.f32.partialorder %v7255, 0.0
  %vm7320 = vcmp.ge.f32.partialorder %v7256, 0.0
  %vm7321 = vcmp.ge.f32.partialorder %v7257, 0.0
  %vm7322 = vcmp.ge.f32.partialorder %v7258, 0.0
  %vm7323 = vcmp.ge.f32.partialorder %v7259, 0.0
  %vm7324 = vcmp.ge.f32.partialorder %v7260, 0.0
  %vm7325 = vcmp.ge.f32.partialorder %v7261, 0.0
  %vm7326 = vcmp.ge.f32.partialorder %v7262, 0.0
  %vm7327 = vcmp.ge.f32.partialorder %v7263, 0.0
  %vm7328 = vcmp.ge.f32.partialorder %v7264, 0.0
  %vm7329 = vcmp.ge.f32.partialorder %v7265, 0.0
  %vm7330 = vcmp.ge.f32.partialorder %v7266, 0.0
  %vm7331 = vcmp.ge.f32.partialorder %v7267, 0.0
  %vm7332 = vcmp.ge.f32.partialorder %v7268, 0.0
  %v7333 = vmul.f32 %v7205, 0.2
  %v7334 = vmul.f32 %v7206, 0.2
  %v7335 = vmul.f32 %v7207, 0.2
  %v7336 = vmul.f32 %v7208, 0.2
  %v7337 = vmul.f32 %v7209, 0.2
  %v7338 = vmul.f32 %v7210, 0.2
  %v7339 = vmul.f32 %v7211, 0.2
  %v7340 = vmul.f32 %v7212, 0.2
  %v7341 = vmul.f32 %v7213, 0.2
  %v7342 = vmul.f32 %v7214, 0.2
  %v7343 = vmul.f32 %v7215, 0.2
  %v7344 = vmul.f32 %v7216, 0.2
  %v7345 = vmul.f32 %v7217, 0.2
  %v7346 = vmul.f32 %v7218, 0.2
  %v7347 = vmul.f32 %v7219, 0.2
  %v7348 = vmul.f32 %v7220, 0.2
  %v7349 = vmul.f32 %v7221, 0.2
  %v7350 = vmul.f32 %v7222, 0.2
  %v7351 = vmul.f32 %v7223, 0.2
  %v7352 = vmul.f32 %v7224, 0.2
  %v7353 = vmul.f32 %v7225, 0.2
  %v7354 = vmul.f32 %v7226, 0.2
  %v7355 = vmul.f32 %v7227, 0.2
  %v7356 = vmul.f32 %v7228, 0.2
  %v7357 = vmul.f32 %v7229, 0.2
  %v7358 = vmul.f32 %v7230, 0.2
  %v7359 = vmul.f32 %v7231, 0.2
  %v7360 = vmul.f32 %v7232, 0.2
  %v7361 = vmul.f32 %v7233, 0.2
  %v7362 = vmul.f32 %v7234, 0.2
  %v7363 = vmul.f32 %v7235, 0.2
  %v7364 = vmul.f32 %v7236, 0.2
  %v7365 = vmul.f32 %v7237, 0.2
  %v7366 = vmul.f32 %v7238, 0.2
  %v7367 = vmul.f32 %v7239, 0.2
  %v7368 = vmul.f32 %v7240, 0.2
  %v7369 = vmul.f32 %v7241, 0.2
  %v7370 = vmul.f32 %v7242, 0.2
  %v7371 = vmul.f32 %v7243, 0.2
  %v7372 = vmul.f32 %v7244, 0.2
  %v7373 = vmul.f32 %v7245, 0.2
  %v7374 = vmul.f32 %v7246, 0.2
  %v7375 = vmul.f32 %v7247, 0.2
  %v7376 = vmul.f32 %v7248, 0.2
  %v7377 = vmul.f32 %v7249, 0.2
  %v7378 = vmul.f32 %v7250, 0.2
  %v7379 = vmul.f32 %v7251, 0.2
  %v7380 = vmul.f32 %v7252, 0.2
  %v7381 = vmul.f32 %v7253, 0.2
  %v7382 = vmul.f32 %v7254, 0.2
  %v7383 = vmul.f32 %v7255, 0.2
  %v7384 = vmul.f32 %v7256, 0.2
  %v7385 = vmul.f32 %v7257, 0.2
  %v7386 = vmul.f32 %v7258, 0.2
  %v7387 = vmul.f32 %v7259, 0.2
  %v7388 = vmul.f32 %v7260, 0.2
  %v7389 = vmul.f32 %v7261, 0.2
  %v7390 = vmul.f32 %v7262, 0.2
  %v7391 = vmul.f32 %v7263, 0.2
  %v7392 = vmul.f32 %v7264, 0.2
  %v7393 = vmul.f32 %v7265, 0.2
  %v7394 = vmul.f32 %v7266, 0.2
  %v7395 = vmul.f32 %v7267, 0.2
  %v7396 = vmul.f32 %v7268, 0.2
  %v7397 = vsel %vm7269, %v7205, %v7333
  %v7398 = vsel %vm7270, %v7206, %v7334
  %v7399 = vsel %vm7271, %v7207, %v7335
  %v7400 = vsel %vm7272, %v7208, %v7336
  %v7401 = vsel %vm7273, %v7209, %v7337
  %v7402 = vsel %vm7274, %v7210, %v7338
  %v7403 = vsel %vm7275, %v7211, %v7339
  %v7404 = vsel %vm7276, %v7212, %v7340
  %v7405 = vsel %vm7277, %v7213, %v7341
  %v7406 = vsel %vm7278, %v7214, %v7342
  %v7407 = vsel %vm7279, %v7215, %v7343
  %v7408 = vsel %vm7280, %v7216, %v7344
  %v7409 = vsel %vm7281, %v7217, %v7345
  %v7410 = vsel %vm7282, %v7218, %v7346
  %v7411 = vsel %vm7283, %v7219, %v7347
  %v7412 = vsel %vm7284, %v7220, %v7348
  %v7413 = vsel %vm7285, %v7221, %v7349
  %v7414 = vsel %vm7286, %v7222, %v7350
  %v7415 = vsel %vm7287, %v7223, %v7351
  %v7416 = vsel %vm7288, %v7224, %v7352
  %v7417 = vsel %vm7289, %v7225, %v7353
  %v7418 = vsel %vm7290, %v7226, %v7354
  %v7419 = vsel %vm7291, %v7227, %v7355
  %v7420 = vsel %vm7292, %v7228, %v7356
  %v7421 = vsel %vm7293, %v7229, %v7357
  %v7422 = vsel %vm7294, %v7230, %v7358
  %v7423 = vsel %vm7295, %v7231, %v7359
  %v7424 = vsel %vm7296, %v7232, %v7360
  %v7425 = vsel %vm7297, %v7233, %v7361
  %v7426 = vsel %vm7298, %v7234, %v7362
  %v7427 = vsel %vm7299, %v7235, %v7363
  %v7428 = vsel %vm7300, %v7236, %v7364
  %v7429 = vsel %vm7301, %v7237, %v7365
  %v7430 = vsel %vm7302, %v7238, %v7366
  %v7431 = vsel %vm7303, %v7239, %v7367
  %v7432 = vsel %vm7304, %v7240, %v7368
  %v7433 = vsel %vm7305, %v7241, %v7369
  %v7434 = vsel %vm7306, %v7242, %v7370
  %v7435 = vsel %vm7307, %v7243, %v7371
  %v7436 = vsel %vm7308, %v7244, %v7372
  %v7437 = vsel %vm7309, %v7245, %v7373
  %v7438 = vsel %vm7310, %v7246, %v7374
  %v7439 = vsel %vm7311, %v7247, %v7375
  %v7440 = vsel %vm7312, %v7248, %v7376
  %v7441 = vsel %vm7313, %v7249, %v7377
  %v7442 = vsel %vm7314, %v7250, %v7378
  %v7443 = vsel %vm7315, %v7251, %v7379
  %v7444 = vsel %vm7316, %v7252, %v7380
  %v7445 = vsel %vm7317, %v7253, %v7381
  %v7446 = vsel %vm7318, %v7254, %v7382
  %v7447 = vsel %vm7319, %v7255, %v7383
  %v7448 = vsel %vm7320, %v7256, %v7384
  %v7449 = vsel %vm7321, %v7257, %v7385
  %v7450 = vsel %vm7322, %v7258, %v7386
  %v7451 = vsel %vm7323, %v7259, %v7387
  %v7452 = vsel %vm7324, %v7260, %v7388
  %v7453 = vsel %vm7325, %v7261, %v7389
  %v7454 = vsel %vm7326, %v7262, %v7390
  %v7455 = vsel %vm7327, %v7263, %v7391
  %v7456 = vsel %vm7328, %v7264, %v7392
  %v7457 = vsel %vm7329, %v7265, %v7393
  %v7458 = vsel %vm7330, %v7266, %v7394
  %v7459 = vsel %vm7331, %v7267, %v7395
  %v7460 = vsel %vm7332, %v7268, %v7396
  %7461 = vst.msk [vmem:[#allocation5] sm:$0xff] %vm6656, 0.0
  %7462 = vst.msk [vmem:[#allocation5 + $0x8] sm:$0xff] %vm6656, 0.0
  %vm7463 = vcmask 517120
  %7464 = vst.msk [vmem:[#allocation5 + $0x10] sm:$0x3] %vm7463, 0.0
  %7465 = vst.msk [vmem:[#allocation5 + $0x1b0] sm:$0xff] %vm6656, 0.0
  %7466 = vst.msk [vmem:[#allocation5 + $0x1b8] sm:$0xff] %vm6656, 0.0
  %7467 = vst.msk [vmem:[#allocation5 + $0x1c0] sm:$0x3] %vm7463, 0.0
  %s7468 = scalar_lea.vmem [#allocation5], 408
  %7469 = vst.msk [vmem:[%s7468] sm:$0xff] %vm6656, 0.0
  %7470 = vst.msk [vmem:[%s7468 + $0x8] sm:$0xff] %vm6656, 0.0
  %7471 = vst.msk [vmem:[%s7468 + $0x10] sm:$0x3] %vm7463, 0.0
  %7472 = vst.msk [vmem:[%s7468 + $0x1b0] sm:$0xff] %vm6656, 0.0
  %7473 = vst.msk [vmem:[%s7468 + $0x1b8] sm:$0xff] %vm6656, 0.0
  %7474 = vst.msk [vmem:[%s7468 + $0x1c0] sm:$0x3] %vm7463, 0.0
  %vm7475 = vcmask 516096
  %7476 = vst.msk [vmem:[#allocation5] sm:$0x1] %vm7475, 0.0
  %7477 = vst.msk [vmem:[#allocation5 + $0x18] sm:$0x1] %vm7475, 0.0
  %7478 = vst.msk [vmem:[#allocation5 + $0x30] sm:$0x1] %vm7475, 0.0
  %7479 = vst.msk [vmem:[#allocation5 + $0x48] sm:$0x1] %vm7475, 0.0
  %7480 = vst.msk [vmem:[#allocation5 + $0x60] sm:$0x1] %vm7475, 0.0
  %7481 = vst.msk [vmem:[#allocation5 + $0x78] sm:$0x1] %vm7475, 0.0
  %7482 = vst.msk [vmem:[#allocation5 + $0x90] sm:$0x1] %vm7475, 0.0
  %7483 = vst.msk [vmem:[#allocation5 + $0xa8] sm:$0x1] %vm7475, 0.0
  %7484 = vst.msk [vmem:[#allocation5 + $0xc0] sm:$0x1] %vm7475, 0.0
  %7485 = vst.msk [vmem:[#allocation5 + $0xd8] sm:$0x1] %vm7475, 0.0
  %7486 = vst.msk [vmem:[#allocation5 + $0xf0] sm:$0x1] %vm7475, 0.0
  %7487 = vst.msk [vmem:[#allocation5 + $0x108] sm:$0x1] %vm7475, 0.0
  %7488 = vst.msk [vmem:[#allocation5 + $0x120] sm:$0x1] %vm7475, 0.0
  %7489 = vst.msk [vmem:[#allocation5 + $0x138] sm:$0x1] %vm7475, 0.0
  %7490 = vst.msk [vmem:[#allocation5 + $0x150] sm:$0x1] %vm7475, 0.0
  %7491 = vst.msk [vmem:[#allocation5 + $0x168] sm:$0x1] %vm7475, 0.0
  %7492 = vst.msk [vmem:[#allocation5 + $0x180] sm:$0x1] %vm7475, 0.0
  %7493 = vst.msk [vmem:[#allocation5 + $0x198] sm:$0x1] %vm7475, 0.0
  %7494 = vst.msk [vmem:[#allocation5 + $0x1b0] sm:$0x1] %vm7475, 0.0
  %7495 = vst.msk [vmem:[#allocation5 + $0x1c8] sm:$0x1] %vm7475, 0.0
  %7496 = vst.msk [vmem:[#allocation5 + $0x1e0] sm:$0x1] %vm7475, 0.0
  %7497 = vst.msk [vmem:[#allocation5 + $0x1f8] sm:$0x1] %vm7475, 0.0
  %7498 = vst.msk [vmem:[#allocation5 + $0x210] sm:$0x1] %vm7475, 0.0
  %7499 = vst.msk [vmem:[#allocation5 + $0x228] sm:$0x1] %vm7475, 0.0
  %7500 = vst.msk [vmem:[#allocation5 + $0x240] sm:$0x1] %vm7475, 0.0
  %7501 = vst.msk [vmem:[#allocation5 + $0x258] sm:$0x1] %vm7475, 0.0
  %7502 = vst.msk [vmem:[#allocation5 + $0x270] sm:$0x1] %vm7475, 0.0
  %7503 = vst.msk [vmem:[#allocation5 + $0x288] sm:$0x1] %vm7475, 0.0
  %7504 = vst.msk [vmem:[#allocation5 + $0x2a0] sm:$0x1] %vm7475, 0.0
  %7505 = vst.msk [vmem:[#allocation5 + $0x2b8] sm:$0x1] %vm7475, 0.0
  %7506 = vst.msk [vmem:[#allocation5 + $0x2d0] sm:$0x1] %vm7475, 0.0
  %7507 = vst.msk [vmem:[#allocation5 + $0x2e8] sm:$0x1] %vm7475, 0.0
  %7508 = vst.msk [vmem:[#allocation5 + $0x300] sm:$0x1] %vm7475, 0.0
  %7509 = vst.msk [vmem:[#allocation5 + $0x318] sm:$0x1] %vm7475, 0.0
  %7510 = vst.msk [vmem:[#allocation5 + $0x330] sm:$0x1] %vm7475, 0.0
  %7511 = vst.msk [vmem:[#allocation5 + $0x348] sm:$0x1] %vm7475, 0.0
  %7512 = vst.msk [vmem:[#allocation5 + $0x11] sm:$0x1] %vm7475, 0.0
  %7513 = vst.msk [vmem:[#allocation5 + $0x29] sm:$0x1] %vm7475, 0.0
  %7514 = vst.msk [vmem:[#allocation5 + $0x41] sm:$0x1] %vm7475, 0.0
  %7515 = vst.msk [vmem:[#allocation5 + $0x59] sm:$0x1] %vm7475, 0.0
  %7516 = vst.msk [vmem:[#allocation5 + $0x71] sm:$0x1] %vm7475, 0.0
  %7517 = vst.msk [vmem:[#allocation5 + $0x89] sm:$0x1] %vm7475, 0.0
  %7518 = vst.msk [vmem:[#allocation5 + $0xa1] sm:$0x1] %vm7475, 0.0
  %7519 = vst.msk [vmem:[#allocation5 + $0xb9] sm:$0x1] %vm7475, 0.0
  %7520 = vst.msk [vmem:[#allocation5 + $0xd1] sm:$0x1] %vm7475, 0.0
  %7521 = vst.msk [vmem:[#allocation5 + $0xe9] sm:$0x1] %vm7475, 0.0
  %7522 = vst.msk [vmem:[#allocation5 + $0x101] sm:$0x1] %vm7475, 0.0
  %7523 = vst.msk [vmem:[#allocation5 + $0x119] sm:$0x1] %vm7475, 0.0
  %7524 = vst.msk [vmem:[#allocation5 + $0x131] sm:$0x1] %vm7475, 0.0
  %7525 = vst.msk [vmem:[#allocation5 + $0x149] sm:$0x1] %vm7475, 0.0
  %7526 = vst.msk [vmem:[#allocation5 + $0x161] sm:$0x1] %vm7475, 0.0
  %7527 = vst.msk [vmem:[#allocation5 + $0x179] sm:$0x1] %vm7475, 0.0
  %7528 = vst.msk [vmem:[#allocation5 + $0x191] sm:$0x1] %vm7475, 0.0
  %7529 = vst.msk [vmem:[#allocation5 + $0x1a9] sm:$0x1] %vm7475, 0.0
  %7530 = vst.msk [vmem:[#allocation5 + $0x1c1] sm:$0x1] %vm7475, 0.0
  %7531 = vst.msk [vmem:[#allocation5 + $0x1d9] sm:$0x1] %vm7475, 0.0
  %7532 = vst.msk [vmem:[#allocation5 + $0x1f1] sm:$0x1] %vm7475, 0.0
  %7533 = vst.msk [vmem:[#allocation5 + $0x209] sm:$0x1] %vm7475, 0.0
  %7534 = vst.msk [vmem:[#allocation5 + $0x221] sm:$0x1] %vm7475, 0.0
  %7535 = vst.msk [vmem:[#allocation5 + $0x239] sm:$0x1] %vm7475, 0.0
  %7536 = vst.msk [vmem:[#allocation5 + $0x251] sm:$0x1] %vm7475, 0.0
  %7537 = vst.msk [vmem:[#allocation5 + $0x269] sm:$0x1] %vm7475, 0.0
  %7538 = vst.msk [vmem:[#allocation5 + $0x281] sm:$0x1] %vm7475, 0.0
  %7539 = vst.msk [vmem:[#allocation5 + $0x299] sm:$0x1] %vm7475, 0.0
  %7540 = vst.msk [vmem:[#allocation5 + $0x2b1] sm:$0x1] %vm7475, 0.0
  %7541 = vst.msk [vmem:[#allocation5 + $0x2c9] sm:$0x1] %vm7475, 0.0
  %7542 = vst.msk [vmem:[#allocation5 + $0x2e1] sm:$0x1] %vm7475, 0.0
  %7543 = vst.msk [vmem:[#allocation5 + $0x2f9] sm:$0x1] %vm7475, 0.0
  %7544 = vst.msk [vmem:[#allocation5 + $0x311] sm:$0x1] %vm7475, 0.0
  %7545 = vst.msk [vmem:[#allocation5 + $0x329] sm:$0x1] %vm7475, 0.0
  %7546 = vst.msk [vmem:[#allocation5 + $0x341] sm:$0x1] %vm7475, 0.0
  %7547 = vst.msk [vmem:[#allocation5 + $0x359] sm:$0x1] %vm7475, 0.0
  %s7548 = scalar_lea.vmem [#allocation5], 24
  %7549 = vst.msk [vmem:[%s7548 + $0x1] sm:$0xff] %vm6656, %v7397
  %7550 = vst.msk [vmem:[%s7548 + $0x9] sm:$0xff] %vm6656, %v7398
  %7551 = vst.msk [vmem:[%s7548 + $0x19] sm:$0xff] %vm6656, %v7399
  %7552 = vst.msk [vmem:[%s7548 + $0x21] sm:$0xff] %vm6656, %v7400
  %7553 = vst.msk [vmem:[%s7548 + $0x31] sm:$0xff] %vm6656, %v7401
  %7554 = vst.msk [vmem:[%s7548 + $0x39] sm:$0xff] %vm6656, %v7402
  %7555 = vst.msk [vmem:[%s7548 + $0x49] sm:$0xff] %vm6656, %v7403
  %7556 = vst.msk [vmem:[%s7548 + $0x51] sm:$0xff] %vm6656, %v7404
  %7557 = vst.msk [vmem:[%s7548 + $0x61] sm:$0xff] %vm6656, %v7405
  %7558 = vst.msk [vmem:[%s7548 + $0x69] sm:$0xff] %vm6656, %v7406
  %7559 = vst.msk [vmem:[%s7548 + $0x79] sm:$0xff] %vm6656, %v7407
  %7560 = vst.msk [vmem:[%s7548 + $0x81] sm:$0xff] %vm6656, %v7408
  %7561 = vst.msk [vmem:[%s7548 + $0x91] sm:$0xff] %vm6656, %v7409
  %7562 = vst.msk [vmem:[%s7548 + $0x99] sm:$0xff] %vm6656, %v7410
  %7563 = vst.msk [vmem:[%s7548 + $0xa9] sm:$0xff] %vm6656, %v7411
  %7564 = vst.msk [vmem:[%s7548 + $0xb1] sm:$0xff] %vm6656, %v7412
  %7565 = vst.msk [vmem:[%s7548 + $0xc1] sm:$0xff] %vm6656, %v7413
  %7566 = vst.msk [vmem:[%s7548 + $0xc9] sm:$0xff] %vm6656, %v7414
  %7567 = vst.msk [vmem:[%s7548 + $0xd9] sm:$0xff] %vm6656, %v7415
  %7568 = vst.msk [vmem:[%s7548 + $0xe1] sm:$0xff] %vm6656, %v7416
  %7569 = vst.msk [vmem:[%s7548 + $0xf1] sm:$0xff] %vm6656, %v7417
  %7570 = vst.msk [vmem:[%s7548 + $0xf9] sm:$0xff] %vm6656, %v7418
  %7571 = vst.msk [vmem:[%s7548 + $0x109] sm:$0xff] %vm6656, %v7419
  %7572 = vst.msk [vmem:[%s7548 + $0x111] sm:$0xff] %vm6656, %v7420
  %7573 = vst.msk [vmem:[%s7548 + $0x121] sm:$0xff] %vm6656, %v7421
  %7574 = vst.msk [vmem:[%s7548 + $0x129] sm:$0xff] %vm6656, %v7422
  %7575 = vst.msk [vmem:[%s7548 + $0x139] sm:$0xff] %vm6656, %v7423
  %7576 = vst.msk [vmem:[%s7548 + $0x141] sm:$0xff] %vm6656, %v7424
  %7577 = vst.msk [vmem:[%s7548 + $0x151] sm:$0xff] %vm6656, %v7425
  %7578 = vst.msk [vmem:[%s7548 + $0x159] sm:$0xff] %vm6656, %v7426
  %7579 = vst.msk [vmem:[%s7548 + $0x169] sm:$0xff] %vm6656, %v7427
  %7580 = vst.msk [vmem:[%s7548 + $0x171] sm:$0xff] %vm6656, %v7428
  %7581 = vst.msk [vmem:[%s7548 + $0x1b1] sm:$0xff] %vm6656, %v7429
  %7582 = vst.msk [vmem:[%s7548 + $0x1b9] sm:$0xff] %vm6656, %v7430
  %7583 = vst.msk [vmem:[%s7548 + $0x1c9] sm:$0xff] %vm6656, %v7431
  %7584 = vst.msk [vmem:[%s7548 + $0x1d1] sm:$0xff] %vm6656, %v7432
  %7585 = vst.msk [vmem:[%s7548 + $0x1e1] sm:$0xff] %vm6656, %v7433
  %7586 = vst.msk [vmem:[%s7548 + $0x1e9] sm:$0xff] %vm6656, %v7434
  %7587 = vst.msk [vmem:[%s7548 + $0x1f9] sm:$0xff] %vm6656, %v7435
  %7588 = vst.msk [vmem:[%s7548 + $0x201] sm:$0xff] %vm6656, %v7436
  %7589 = vst.msk [vmem:[%s7548 + $0x211] sm:$0xff] %vm6656, %v7437
  %7590 = vst.msk [vmem:[%s7548 + $0x219] sm:$0xff] %vm6656, %v7438
  %7591 = vst.msk [vmem:[%s7548 + $0x229] sm:$0xff] %vm6656, %v7439
  %7592 = vst.msk [vmem:[%s7548 + $0x231] sm:$0xff] %vm6656, %v7440
  %7593 = vst.msk [vmem:[%s7548 + $0x241] sm:$0xff] %vm6656, %v7441
  %7594 = vst.msk [vmem:[%s7548 + $0x249] sm:$0xff] %vm6656, %v7442
  %7595 = vst.msk [vmem:[%s7548 + $0x259] sm:$0xff] %vm6656, %v7443
  %7596 = vst.msk [vmem:[%s7548 + $0x261] sm:$0xff] %vm6656, %v7444
  %7597 = vst.msk [vmem:[%s7548 + $0x271] sm:$0xff] %vm6656, %v7445
  %7598 = vst.msk [vmem:[%s7548 + $0x279] sm:$0xff] %vm6656, %v7446
  %7599 = vst.msk [vmem:[%s7548 + $0x289] sm:$0xff] %vm6656, %v7447
  %7600 = vst.msk [vmem:[%s7548 + $0x291] sm:$0xff] %vm6656, %v7448
  %7601 = vst.msk [vmem:[%s7548 + $0x2a1] sm:$0xff] %vm6656, %v7449
  %7602 = vst.msk [vmem:[%s7548 + $0x2a9] sm:$0xff] %vm6656, %v7450
  %7603 = vst.msk [vmem:[%s7548 + $0x2b9] sm:$0xff] %vm6656, %v7451
  %7604 = vst.msk [vmem:[%s7548 + $0x2c1] sm:$0xff] %vm6656, %v7452
  %7605 = vst.msk [vmem:[%s7548 + $0x2d1] sm:$0xff] %vm6656, %v7453
  %7606 = vst.msk [vmem:[%s7548 + $0x2d9] sm:$0xff] %vm6656, %v7454
  %7607 = vst.msk [vmem:[%s7548 + $0x2e9] sm:$0xff] %vm6656, %v7455
  %7608 = vst.msk [vmem:[%s7548 + $0x2f1] sm:$0xff] %vm6656, %v7456
  %7609 = vst.msk [vmem:[%s7548 + $0x301] sm:$0xff] %vm6656, %v7457
  %7610 = vst.msk [vmem:[%s7548 + $0x309] sm:$0xff] %vm6656, %v7458
  %7611 = vst.msk [vmem:[%s7548 + $0x319] sm:$0xff] %vm6656, %v7459
  %7612 = vst.msk [vmem:[%s7548 + $0x321] sm:$0xff] %vm6656, %v7460
  %v7613 = vld [vmem:[%s13] sm:$0xff]
  %v7614 = vld [vmem:[%s13 + $0x8] sm:$0x1]
  %v7615 = vld [vmem:[#allocation5] sm:$0xff]
  %v7616 = vld [vmem:[#allocation5 + $0x8] sm:$0xff]
  %v7617 = vld [vmem:[#allocation5 + $0x18] sm:$0xff]
  %v7618 = vld [vmem:[#allocation5 + $0x20] sm:$0xff]
  %v7619 = vld [vmem:[#allocation5 + $0x30] sm:$0xff]
  %v7620 = vld [vmem:[#allocation5 + $0x38] sm:$0xff]
  %v7621 = vld [vmem:[#allocation5 + $0x48] sm:$0xff]
  %v7622 = vld [vmem:[#allocation5 + $0x50] sm:$0xff]
  %v7623 = vld [vmem:[#allocation5 + $0x60] sm:$0xff]
  %v7624 = vld [vmem:[#allocation5 + $0x68] sm:$0xff]
  %v7625 = vld [vmem:[#allocation5 + $0x78] sm:$0xff]
  %v7626 = vld [vmem:[#allocation5 + $0x80] sm:$0xff]
  %v7627 = vld [vmem:[#allocation5 + $0x90] sm:$0xff]
  %v7628 = vld [vmem:[#allocation5 + $0x98] sm:$0xff]
  %v7629 = vld [vmem:[#allocation5 + $0xa8] sm:$0xff]
  %v7630 = vld [vmem:[#allocation5 + $0xb0] sm:$0xff]
  %v7631 = vld [vmem:[#allocation5 + $0xc0] sm:$0xff]
  %v7632 = vld [vmem:[#allocation5 + $0xc8] sm:$0xff]
  %v7633 = vld [vmem:[#allocation5 + $0xd8] sm:$0xff]
  %v7634 = vld [vmem:[#allocation5 + $0xe0] sm:$0xff]
  %v7635 = vld [vmem:[#allocation5 + $0xf0] sm:$0xff]
  %v7636 = vld [vmem:[#allocation5 + $0xf8] sm:$0xff]
  %v7637 = vld [vmem:[#allocation5 + $0x108] sm:$0xff]
  %v7638 = vld [vmem:[#allocation5 + $0x110] sm:$0xff]
  %v7639 = vld [vmem:[#allocation5 + $0x120] sm:$0xff]
  %v7640 = vld [vmem:[#allocation5 + $0x128] sm:$0xff]
  %v7641 = vld [vmem:[#allocation5 + $0x138] sm:$0xff]
  %v7642 = vld [vmem:[#allocation5 + $0x140] sm:$0xff]
  %v7643 = vld [vmem:[#allocation5 + $0x150] sm:$0xff]
  %v7644 = vld [vmem:[#allocation5 + $0x158] sm:$0xff]
  %v7645 = vld [vmem:[#allocation5 + $0x168] sm:$0xff]
  %v7646 = vld [vmem:[#allocation5 + $0x170] sm:$0xff]
  %v7647 = vld [vmem:[#allocation5 + $0x1b0] sm:$0xff]
  %v7648 = vld [vmem:[#allocation5 + $0x1b8] sm:$0xff]
  %v7649 = vld [vmem:[#allocation5 + $0x1c8] sm:$0xff]
  %v7650 = vld [vmem:[#allocation5 + $0x1d0] sm:$0xff]
  %v7651 = vld [vmem:[#allocation5 + $0x1e0] sm:$0xff]
  %v7652 = vld [vmem:[#allocation5 + $0x1e8] sm:$0xff]
  %v7653 = vld [vmem:[#allocation5 + $0x1f8] sm:$0xff]
  %v7654 = vld [vmem:[#allocation5 + $0x200] sm:$0xff]
  %v7655 = vld [vmem:[#allocation5 + $0x210] sm:$0xff]
  %v7656 = vld [vmem:[#allocation5 + $0x218] sm:$0xff]
  %v7657 = vld [vmem:[#allocation5 + $0x228] sm:$0xff]
  %v7658 = vld [vmem:[#allocation5 + $0x230] sm:$0xff]
  %v7659 = vld [vmem:[#allocation5 + $0x240] sm:$0xff]
  %v7660 = vld [vmem:[#allocation5 + $0x248] sm:$0xff]
  %v7661 = vld [vmem:[#allocation5 + $0x258] sm:$0xff]
  %v7662 = vld [vmem:[#allocation5 + $0x260] sm:$0xff]
  %v7663 = vld [vmem:[#allocation5 + $0x270] sm:$0xff]
  %v7664 = vld [vmem:[#allocation5 + $0x278] sm:$0xff]
  %v7665 = vld [vmem:[#allocation5 + $0x288] sm:$0xff]
  %v7666 = vld [vmem:[#allocation5 + $0x290] sm:$0xff]
  %v7667 = vld [vmem:[#allocation5 + $0x2a0] sm:$0xff]
  %v7668 = vld [vmem:[#allocation5 + $0x2a8] sm:$0xff]
  %v7669 = vld [vmem:[#allocation5 + $0x2b8] sm:$0xff]
  %v7670 = vld [vmem:[#allocation5 + $0x2c0] sm:$0xff]
  %v7671 = vld [vmem:[#allocation5 + $0x2d0] sm:$0xff]
  %v7672 = vld [vmem:[#allocation5 + $0x2d8] sm:$0xff]
  %v7673 = vld [vmem:[#allocation5 + $0x2e8] sm:$0xff]
  %v7674 = vld [vmem:[#allocation5 + $0x2f0] sm:$0xff]
  %v7675 = vld [vmem:[#allocation5 + $0x300] sm:$0xff]
  %v7676 = vld [vmem:[#allocation5 + $0x308] sm:$0xff]
  %v7677 = vld [vmem:[#allocation5 + $0x318] sm:$0xff]
  %v7678 = vld [vmem:[#allocation5 + $0x320] sm:$0xff]
  %v7679 = vperm.slane %v7613, 0
  %v7680 = vmul.f32 %v7615, %v7679
  %v7681 = vmul.f32 %v7616, %v7679
  %v7682 = vmul.f32 %v7617, %v7679
  %v7683 = vmul.f32 %v7618, %v7679
  %v7684 = vmul.f32 %v7619, %v7679
  %v7685 = vmul.f32 %v7620, %v7679
  %v7686 = vmul.f32 %v7621, %v7679
  %v7687 = vmul.f32 %v7622, %v7679
  %v7688 = vmul.f32 %v7623, %v7679
  %v7689 = vmul.f32 %v7624, %v7679
  %v7690 = vmul.f32 %v7625, %v7679
  %v7691 = vmul.f32 %v7626, %v7679
  %v7692 = vmul.f32 %v7627, %v7679
  %v7693 = vmul.f32 %v7628, %v7679
  %v7694 = vmul.f32 %v7629, %v7679
  %v7695 = vmul.f32 %v7630, %v7679
  %v7696 = vmul.f32 %v7631, %v7679
  %v7697 = vmul.f32 %v7632, %v7679
  %v7698 = vmul.f32 %v7633, %v7679
  %v7699 = vmul.f32 %v7634, %v7679
  %v7700 = vmul.f32 %v7635, %v7679
  %v7701 = vmul.f32 %v7636, %v7679
  %v7702 = vmul.f32 %v7637, %v7679
  %v7703 = vmul.f32 %v7638, %v7679
  %v7704 = vmul.f32 %v7639, %v7679
  %v7705 = vmul.f32 %v7640, %v7679
  %v7706 = vmul.f32 %v7641, %v7679
  %v7707 = vmul.f32 %v7642, %v7679
  %v7708 = vmul.f32 %v7643, %v7679
  %v7709 = vmul.f32 %v7644, %v7679
  %v7710 = vmul.f32 %v7645, %v7679
  %v7711 = vmul.f32 %v7646, %v7679
  %v7712 = vmul.f32 %v7647, %v7679
  %v7713 = vmul.f32 %v7648, %v7679
  %v7714 = vmul.f32 %v7649, %v7679
  %v7715 = vmul.f32 %v7650, %v7679
  %v7716 = vmul.f32 %v7651, %v7679
  %v7717 = vmul.f32 %v7652, %v7679
  %v7718 = vmul.f32 %v7653, %v7679
  %v7719 = vmul.f32 %v7654, %v7679
  %v7720 = vmul.f32 %v7655, %v7679
  %v7721 = vmul.f32 %v7656, %v7679
  %v7722 = vmul.f32 %v7657, %v7679
  %v7723 = vmul.f32 %v7658, %v7679
  %v7724 = vmul.f32 %v7659, %v7679
  %v7725 = vmul.f32 %v7660, %v7679
  %v7726 = vmul.f32 %v7661, %v7679
  %v7727 = vmul.f32 %v7662, %v7679
  %v7728 = vmul.f32 %v7663, %v7679
  %v7729 = vmul.f32 %v7664, %v7679
  %v7730 = vmul.f32 %v7665, %v7679
  %v7731 = vmul.f32 %v7666, %v7679
  %v7732 = vmul.f32 %v7667, %v7679
  %v7733 = vmul.f32 %v7668, %v7679
  %v7734 = vmul.f32 %v7669, %v7679
  %v7735 = vmul.f32 %v7670, %v7679
  %v7736 = vmul.f32 %v7671, %v7679
  %v7737 = vmul.f32 %v7672, %v7679
  %v7738 = vmul.f32 %v7673, %v7679
  %v7739 = vmul.f32 %v7674, %v7679
  %v7740 = vmul.f32 %v7675, %v7679
  %v7741 = vmul.f32 %v7676, %v7679
  %v7742 = vmul.f32 %v7677, %v7679
  %v7743 = vmul.f32 %v7678, %v7679
  %v7744 = vadd.f32 %v7680, 0.0
  %v7745 = vadd.f32 %v7681, 0.0
  %v7746 = vadd.f32 %v7682, 0.0
  %v7747 = vadd.f32 %v7683, 0.0
  %v7748 = vadd.f32 %v7684, 0.0
  %v7749 = vadd.f32 %v7685, 0.0
  %v7750 = vadd.f32 %v7686, 0.0
  %v7751 = vadd.f32 %v7687, 0.0
  %v7752 = vadd.f32 %v7688, 0.0
  %v7753 = vadd.f32 %v7689, 0.0
  %v7754 = vadd.f32 %v7690, 0.0
  %v7755 = vadd.f32 %v7691, 0.0
  %v7756 = vadd.f32 %v7692, 0.0
  %v7757 = vadd.f32 %v7693, 0.0
  %v7758 = vadd.f32 %v7694, 0.0
  %v7759 = vadd.f32 %v7695, 0.0
  %v7760 = vadd.f32 %v7696, 0.0
  %v7761 = vadd.f32 %v7697, 0.0
  %v7762 = vadd.f32 %v7698, 0.0
  %v7763 = vadd.f32 %v7699, 0.0
  %v7764 = vadd.f32 %v7700, 0.0
  %v7765 = vadd.f32 %v7701, 0.0
  %v7766 = vadd.f32 %v7702, 0.0
  %v7767 = vadd.f32 %v7703, 0.0
  %v7768 = vadd.f32 %v7704, 0.0
  %v7769 = vadd.f32 %v7705, 0.0
  %v7770 = vadd.f32 %v7706, 0.0
  %v7771 = vadd.f32 %v7707, 0.0
  %v7772 = vadd.f32 %v7708, 0.0
  %v7773 = vadd.f32 %v7709, 0.0
  %v7774 = vadd.f32 %v7710, 0.0
  %v7775 = vadd.f32 %v7711, 0.0
  %v7776 = vadd.f32 %v7712, 0.0
  %v7777 = vadd.f32 %v7713, 0.0
  %v7778 = vadd.f32 %v7714, 0.0
  %v7779 = vadd.f32 %v7715, 0.0
  %v7780 = vadd.f32 %v7716, 0.0
  %v7781 = vadd.f32 %v7717, 0.0
  %v7782 = vadd.f32 %v7718, 0.0
  %v7783 = vadd.f32 %v7719, 0.0
  %v7784 = vadd.f32 %v7720, 0.0
  %v7785 = vadd.f32 %v7721, 0.0
  %v7786 = vadd.f32 %v7722, 0.0
  %v7787 = vadd.f32 %v7723, 0.0
  %v7788 = vadd.f32 %v7724, 0.0
  %v7789 = vadd.f32 %v7725, 0.0
  %v7790 = vadd.f32 %v7726, 0.0
  %v7791 = vadd.f32 %v7727, 0.0
  %v7792 = vadd.f32 %v7728, 0.0
  %v7793 = vadd.f32 %v7729, 0.0
  %v7794 = vadd.f32 %v7730, 0.0
  %v7795 = vadd.f32 %v7731, 0.0
  %v7796 = vadd.f32 %v7732, 0.0
  %v7797 = vadd.f32 %v7733, 0.0
  %v7798 = vadd.f32 %v7734, 0.0
  %v7799 = vadd.f32 %v7735, 0.0
  %v7800 = vadd.f32 %v7736, 0.0
  %v7801 = vadd.f32 %v7737, 0.0
  %v7802 = vadd.f32 %v7738, 0.0
  %v7803 = vadd.f32 %v7739, 0.0
  %v7804 = vadd.f32 %v7740, 0.0
  %v7805 = vadd.f32 %v7741, 0.0
  %v7806 = vadd.f32 %v7742, 0.0
  %v7807 = vadd.f32 %v7743, 0.0
  %v7808 = vld [vmem:[#allocation5 + $0x1] sm:$0xff]
  %v7809 = vld [vmem:[#allocation5 + $0x9] sm:$0xff]
  %v7810 = vld [vmem:[#allocation5 + $0x19] sm:$0xff]
  %v7811 = vld [vmem:[#allocation5 + $0x21] sm:$0xff]
  %v7812 = vld [vmem:[#allocation5 + $0x31] sm:$0xff]
  %v7813 = vld [vmem:[#allocation5 + $0x39] sm:$0xff]
  %v7814 = vld [vmem:[#allocation5 + $0x49] sm:$0xff]
  %v7815 = vld [vmem:[#allocation5 + $0x51] sm:$0xff]
  %v7816 = vld [vmem:[#allocation5 + $0x61] sm:$0xff]
  %v7817 = vld [vmem:[#allocation5 + $0x69] sm:$0xff]
  %v7818 = vld [vmem:[#allocation5 + $0x79] sm:$0xff]
  %v7819 = vld [vmem:[#allocation5 + $0x81] sm:$0xff]
  %v7820 = vld [vmem:[#allocation5 + $0x91] sm:$0xff]
  %v7821 = vld [vmem:[#allocation5 + $0x99] sm:$0xff]
  %v7822 = vld [vmem:[#allocation5 + $0xa9] sm:$0xff]
  %v7823 = vld [vmem:[#allocation5 + $0xb1] sm:$0xff]
  %v7824 = vld [vmem:[#allocation5 + $0xc1] sm:$0xff]
  %v7825 = vld [vmem:[#allocation5 + $0xc9] sm:$0xff]
  %v7826 = vld [vmem:[#allocation5 + $0xd9] sm:$0xff]
  %v7827 = vld [vmem:[#allocation5 + $0xe1] sm:$0xff]
  %v7828 = vld [vmem:[#allocation5 + $0xf1] sm:$0xff]
  %v7829 = vld [vmem:[#allocation5 + $0xf9] sm:$0xff]
  %v7830 = vld [vmem:[#allocation5 + $0x109] sm:$0xff]
  %v7831 = vld [vmem:[#allocation5 + $0x111] sm:$0xff]
  %v7832 = vld [vmem:[#allocation5 + $0x121] sm:$0xff]
  %v7833 = vld [vmem:[#allocation5 + $0x129] sm:$0xff]
  %v7834 = vld [vmem:[#allocation5 + $0x139] sm:$0xff]
  %v7835 = vld [vmem:[#allocation5 + $0x141] sm:$0xff]
  %v7836 = vld [vmem:[#allocation5 + $0x151] sm:$0xff]
  %v7837 = vld [vmem:[#allocation5 + $0x159] sm:$0xff]
  %v7838 = vld [vmem:[#allocation5 + $0x169] sm:$0xff]
  %v7839 = vld [vmem:[#allocation5 + $0x171] sm:$0xff]
  %v7840 = vld [vmem:[#allocation5 + $0x1b1] sm:$0xff]
  %v7841 = vld [vmem:[#allocation5 + $0x1b9] sm:$0xff]
  %v7842 = vld [vmem:[#allocation5 + $0x1c9] sm:$0xff]
  %v7843 = vld [vmem:[#allocation5 + $0x1d1] sm:$0xff]
  %v7844 = vld [vmem:[#allocation5 + $0x1e1] sm:$0xff]
  %v7845 = vld [vmem:[#allocation5 + $0x1e9] sm:$0xff]
  %v7846 = vld [vmem:[#allocation5 + $0x1f9] sm:$0xff]
  %v7847 = vld [vmem:[#allocation5 + $0x201] sm:$0xff]
  %v7848 = vld [vmem:[#allocation5 + $0x211] sm:$0xff]
  %v7849 = vld [vmem:[#allocation5 + $0x219] sm:$0xff]
  %v7850 = vld [vmem:[#allocation5 + $0x229] sm:$0xff]
  %v7851 = vld [vmem:[#allocation5 + $0x231] sm:$0xff]
  %v7852 = vld [vmem:[#allocation5 + $0x241] sm:$0xff]
  %v7853 = vld [vmem:[#allocation5 + $0x249] sm:$0xff]
  %v7854 = vld [vmem:[#allocation5 + $0x259] sm:$0xff]
  %v7855 = vld [vmem:[#allocation5 + $0x261] sm:$0xff]
  %v7856 = vld [vmem:[#allocation5 + $0x271] sm:$0xff]
  %v7857 = vld [vmem:[#allocation5 + $0x279] sm:$0xff]
  %v7858 = vld [vmem:[#allocation5 + $0x289] sm:$0xff]
  %v7859 = vld [vmem:[#allocation5 + $0x291] sm:$0xff]
  %v7860 = vld [vmem:[#allocation5 + $0x2a1] sm:$0xff]
  %v7861 = vld [vmem:[#allocation5 + $0x2a9] sm:$0xff]
  %v7862 = vld [vmem:[#allocation5 + $0x2b9] sm:$0xff]
  %v7863 = vld [vmem:[#allocation5 + $0x2c1] sm:$0xff]
  %v7864 = vld [vmem:[#allocation5 + $0x2d1] sm:$0xff]
  %v7865 = vld [vmem:[#allocation5 + $0x2d9] sm:$0xff]
  %v7866 = vld [vmem:[#allocation5 + $0x2e9] sm:$0xff]
  %v7867 = vld [vmem:[#allocation5 + $0x2f1] sm:$0xff]
  %v7868 = vld [vmem:[#allocation5 + $0x301] sm:$0xff]
  %v7869 = vld [vmem:[#allocation5 + $0x309] sm:$0xff]
  %v7870 = vld [vmem:[#allocation5 + $0x319] sm:$0xff]
  %v7871 = vld [vmem:[#allocation5 + $0x321] sm:$0xff]
  %v7872 = vperm.slane %v7613, 1
  %v7873 = vmul.f32 %v7808, %v7872
  %v7874 = vmul.f32 %v7809, %v7872
  %v7875 = vmul.f32 %v7810, %v7872
  %v7876 = vmul.f32 %v7811, %v7872
  %v7877 = vmul.f32 %v7812, %v7872
  %v7878 = vmul.f32 %v7813, %v7872
  %v7879 = vmul.f32 %v7814, %v7872
  %v7880 = vmul.f32 %v7815, %v7872
  %v7881 = vmul.f32 %v7816, %v7872
  %v7882 = vmul.f32 %v7817, %v7872
  %v7883 = vmul.f32 %v7818, %v7872
  %v7884 = vmul.f32 %v7819, %v7872
  %v7885 = vmul.f32 %v7820, %v7872
  %v7886 = vmul.f32 %v7821, %v7872
  %v7887 = vmul.f32 %v7822, %v7872
  %v7888 = vmul.f32 %v7823, %v7872
  %v7889 = vmul.f32 %v7824, %v7872
  %v7890 = vmul.f32 %v7825, %v7872
  %v7891 = vmul.f32 %v7826, %v7872
  %v7892 = vmul.f32 %v7827, %v7872
  %v7893 = vmul.f32 %v7828, %v7872
  %v7894 = vmul.f32 %v7829, %v7872
  %v7895 = vmul.f32 %v7830, %v7872
  %v7896 = vmul.f32 %v7831, %v7872
  %v7897 = vmul.f32 %v7832, %v7872
  %v7898 = vmul.f32 %v7833, %v7872
  %v7899 = vmul.f32 %v7834, %v7872
  %v7900 = vmul.f32 %v7835, %v7872
  %v7901 = vmul.f32 %v7836, %v7872
  %v7902 = vmul.f32 %v7837, %v7872
  %v7903 = vmul.f32 %v7838, %v7872
  %v7904 = vmul.f32 %v7839, %v7872
  %v7905 = vmul.f32 %v7840, %v7872
  %v7906 = vmul.f32 %v7841, %v7872
  %v7907 = vmul.f32 %v7842, %v7872
  %v7908 = vmul.f32 %v7843, %v7872
  %v7909 = vmul.f32 %v7844, %v7872
  %v7910 = vmul.f32 %v7845, %v7872
  %v7911 = vmul.f32 %v7846, %v7872
  %v7912 = vmul.f32 %v7847, %v7872
  %v7913 = vmul.f32 %v7848, %v7872
  %v7914 = vmul.f32 %v7849, %v7872
  %v7915 = vmul.f32 %v7850, %v7872
  %v7916 = vmul.f32 %v7851, %v7872
  %v7917 = vmul.f32 %v7852, %v7872
  %v7918 = vmul.f32 %v7853, %v7872
  %v7919 = vmul.f32 %v7854, %v7872
  %v7920 = vmul.f32 %v7855, %v7872
  %v7921 = vmul.f32 %v7856, %v7872
  %v7922 = vmul.f32 %v7857, %v7872
  %v7923 = vmul.f32 %v7858, %v7872
  %v7924 = vmul.f32 %v7859, %v7872
  %v7925 = vmul.f32 %v7860, %v7872
  %v7926 = vmul.f32 %v7861, %v7872
  %v7927 = vmul.f32 %v7862, %v7872
  %v7928 = vmul.f32 %v7863, %v7872
  %v7929 = vmul.f32 %v7864, %v7872
  %v7930 = vmul.f32 %v7865, %v7872
  %v7931 = vmul.f32 %v7866, %v7872
  %v7932 = vmul.f32 %v7867, %v7872
  %v7933 = vmul.f32 %v7868, %v7872
  %v7934 = vmul.f32 %v7869, %v7872
  %v7935 = vmul.f32 %v7870, %v7872
  %v7936 = vmul.f32 %v7871, %v7872
  %v7937 = vadd.f32 %v7744, %v7873
  %v7938 = vadd.f32 %v7745, %v7874
  %v7939 = vadd.f32 %v7746, %v7875
  %v7940 = vadd.f32 %v7747, %v7876
  %v7941 = vadd.f32 %v7748, %v7877
  %v7942 = vadd.f32 %v7749, %v7878
  %v7943 = vadd.f32 %v7750, %v7879
  %v7944 = vadd.f32 %v7751, %v7880
  %v7945 = vadd.f32 %v7752, %v7881
  %v7946 = vadd.f32 %v7753, %v7882
  %v7947 = vadd.f32 %v7754, %v7883
  %v7948 = vadd.f32 %v7755, %v7884
  %v7949 = vadd.f32 %v7756, %v7885
  %v7950 = vadd.f32 %v7757, %v7886
  %v7951 = vadd.f32 %v7758, %v7887
  %v7952 = vadd.f32 %v7759, %v7888
  %v7953 = vadd.f32 %v7760, %v7889
  %v7954 = vadd.f32 %v7761, %v7890
  %v7955 = vadd.f32 %v7762, %v7891
  %v7956 = vadd.f32 %v7763, %v7892
  %v7957 = vadd.f32 %v7764, %v7893
  %v7958 = vadd.f32 %v7765, %v7894
  %v7959 = vadd.f32 %v7766, %v7895
  %v7960 = vadd.f32 %v7767, %v7896
  %v7961 = vadd.f32 %v7768, %v7897
  %v7962 = vadd.f32 %v7769, %v7898
  %v7963 = vadd.f32 %v7770, %v7899
  %v7964 = vadd.f32 %v7771, %v7900
  %v7965 = vadd.f32 %v7772, %v7901
  %v7966 = vadd.f32 %v7773, %v7902
  %v7967 = vadd.f32 %v7774, %v7903
  %v7968 = vadd.f32 %v7775, %v7904
  %v7969 = vadd.f32 %v7776, %v7905
  %v7970 = vadd.f32 %v7777, %v7906
  %v7971 = vadd.f32 %v7778, %v7907
  %v7972 = vadd.f32 %v7779, %v7908
  %v7973 = vadd.f32 %v7780, %v7909
  %v7974 = vadd.f32 %v7781, %v7910
  %v7975 = vadd.f32 %v7782, %v7911
  %v7976 = vadd.f32 %v7783, %v7912
  %v7977 = vadd.f32 %v7784, %v7913
  %v7978 = vadd.f32 %v7785, %v7914
  %v7979 = vadd.f32 %v7786, %v7915
  %v7980 = vadd.f32 %v7787, %v7916
  %v7981 = vadd.f32 %v7788, %v7917
  %v7982 = vadd.f32 %v7789, %v7918
  %v7983 = vadd.f32 %v7790, %v7919
  %v7984 = vadd.f32 %v7791, %v7920
  %v7985 = vadd.f32 %v7792, %v7921
  %v7986 = vadd.f32 %v7793, %v7922
  %v7987 = vadd.f32 %v7794, %v7923
  %v7988 = vadd.f32 %v7795, %v7924
  %v7989 = vadd.f32 %v7796, %v7925
  %v7990 = vadd.f32 %v7797, %v7926
  %v7991 = vadd.f32 %v7798, %v7927
  %v7992 = vadd.f32 %v7799, %v7928
  %v7993 = vadd.f32 %v7800, %v7929
  %v7994 = vadd.f32 %v7801, %v7930
  %v7995 = vadd.f32 %v7802, %v7931
  %v7996 = vadd.f32 %v7803, %v7932
  %v7997 = vadd.f32 %v7804, %v7933
  %v7998 = vadd.f32 %v7805, %v7934
  %v7999 = vadd.f32 %v7806, %v7935
  %v8000 = vadd.f32 %v7807, %v7936
  %v8001 = vld [vmem:[#allocation5 + $0x2] sm:$0xff]
  %v8002 = vld [vmem:[#allocation5 + $0xa] sm:$0xff]
  %v8003 = vld [vmem:[#allocation5 + $0x1a] sm:$0xff]
  %v8004 = vld [vmem:[#allocation5 + $0x22] sm:$0xff]
  %v8005 = vld [vmem:[#allocation5 + $0x32] sm:$0xff]
  %v8006 = vld [vmem:[#allocation5 + $0x3a] sm:$0xff]
  %v8007 = vld [vmem:[#allocation5 + $0x4a] sm:$0xff]
  %v8008 = vld [vmem:[#allocation5 + $0x52] sm:$0xff]
  %v8009 = vld [vmem:[#allocation5 + $0x62] sm:$0xff]
  %v8010 = vld [vmem:[#allocation5 + $0x6a] sm:$0xff]
  %v8011 = vld [vmem:[#allocation5 + $0x7a] sm:$0xff]
  %v8012 = vld [vmem:[#allocation5 + $0x82] sm:$0xff]
  %v8013 = vld [vmem:[#allocation5 + $0x92] sm:$0xff]
  %v8014 = vld [vmem:[#allocation5 + $0x9a] sm:$0xff]
  %v8015 = vld [vmem:[#allocation5 + $0xaa] sm:$0xff]
  %v8016 = vld [vmem:[#allocation5 + $0xb2] sm:$0xff]
  %v8017 = vld [vmem:[#allocation5 + $0xc2] sm:$0xff]
  %v8018 = vld [vmem:[#allocation5 + $0xca] sm:$0xff]
  %v8019 = vld [vmem:[#allocation5 + $0xda] sm:$0xff]
  %v8020 = vld [vmem:[#allocation5 + $0xe2] sm:$0xff]
  %v8021 = vld [vmem:[#allocation5 + $0xf2] sm:$0xff]
  %v8022 = vld [vmem:[#allocation5 + $0xfa] sm:$0xff]
  %v8023 = vld [vmem:[#allocation5 + $0x10a] sm:$0xff]
  %v8024 = vld [vmem:[#allocation5 + $0x112] sm:$0xff]
  %v8025 = vld [vmem:[#allocation5 + $0x122] sm:$0xff]
  %v8026 = vld [vmem:[#allocation5 + $0x12a] sm:$0xff]
  %v8027 = vld [vmem:[#allocation5 + $0x13a] sm:$0xff]
  %v8028 = vld [vmem:[#allocation5 + $0x142] sm:$0xff]
  %v8029 = vld [vmem:[#allocation5 + $0x152] sm:$0xff]
  %v8030 = vld [vmem:[#allocation5 + $0x15a] sm:$0xff]
  %v8031 = vld [vmem:[#allocation5 + $0x16a] sm:$0xff]
  %v8032 = vld [vmem:[#allocation5 + $0x172] sm:$0xff]
  %v8033 = vld [vmem:[#allocation5 + $0x1b2] sm:$0xff]
  %v8034 = vld [vmem:[#allocation5 + $0x1ba] sm:$0xff]
  %v8035 = vld [vmem:[#allocation5 + $0x1ca] sm:$0xff]
  %v8036 = vld [vmem:[#allocation5 + $0x1d2] sm:$0xff]
  %v8037 = vld [vmem:[#allocation5 + $0x1e2] sm:$0xff]
  %v8038 = vld [vmem:[#allocation5 + $0x1ea] sm:$0xff]
  %v8039 = vld [vmem:[#allocation5 + $0x1fa] sm:$0xff]
  %v8040 = vld [vmem:[#allocation5 + $0x202] sm:$0xff]
  %v8041 = vld [vmem:[#allocation5 + $0x212] sm:$0xff]
  %v8042 = vld [vmem:[#allocation5 + $0x21a] sm:$0xff]
  %v8043 = vld [vmem:[#allocation5 + $0x22a] sm:$0xff]
  %v8044 = vld [vmem:[#allocation5 + $0x232] sm:$0xff]
  %v8045 = vld [vmem:[#allocation5 + $0x242] sm:$0xff]
  %v8046 = vld [vmem:[#allocation5 + $0x24a] sm:$0xff]
  %v8047 = vld [vmem:[#allocation5 + $0x25a] sm:$0xff]
  %v8048 = vld [vmem:[#allocation5 + $0x262] sm:$0xff]
  %v8049 = vld [vmem:[#allocation5 + $0x272] sm:$0xff]
  %v8050 = vld [vmem:[#allocation5 + $0x27a] sm:$0xff]
  %v8051 = vld [vmem:[#allocation5 + $0x28a] sm:$0xff]
  %v8052 = vld [vmem:[#allocation5 + $0x292] sm:$0xff]
  %v8053 = vld [vmem:[#allocation5 + $0x2a2] sm:$0xff]
  %v8054 = vld [vmem:[#allocation5 + $0x2aa] sm:$0xff]
  %v8055 = vld [vmem:[#allocation5 + $0x2ba] sm:$0xff]
  %v8056 = vld [vmem:[#allocation5 + $0x2c2] sm:$0xff]
  %v8057 = vld [vmem:[#allocation5 + $0x2d2] sm:$0xff]
  %v8058 = vld [vmem:[#allocation5 + $0x2da] sm:$0xff]
  %v8059 = vld [vmem:[#allocation5 + $0x2ea] sm:$0xff]
  %v8060 = vld [vmem:[#allocation5 + $0x2f2] sm:$0xff]
  %v8061 = vld [vmem:[#allocation5 + $0x302] sm:$0xff]
  %v8062 = vld [vmem:[#allocation5 + $0x30a] sm:$0xff]
  %v8063 = vld [vmem:[#allocation5 + $0x31a] sm:$0xff]
  %v8064 = vld [vmem:[#allocation5 + $0x322] sm:$0xff]
  %v8065 = vperm.slane %v7613, 2
  %v8066 = vmul.f32 %v8001, %v8065
  %v8067 = vmul.f32 %v8002, %v8065
  %v8068 = vmul.f32 %v8003, %v8065
  %v8069 = vmul.f32 %v8004, %v8065
  %v8070 = vmul.f32 %v8005, %v8065
  %v8071 = vmul.f32 %v8006, %v8065
  %v8072 = vmul.f32 %v8007, %v8065
  %v8073 = vmul.f32 %v8008, %v8065
  %v8074 = vmul.f32 %v8009, %v8065
  %v8075 = vmul.f32 %v8010, %v8065
  %v8076 = vmul.f32 %v8011, %v8065
  %v8077 = vmul.f32 %v8012, %v8065
  %v8078 = vmul.f32 %v8013, %v8065
  %v8079 = vmul.f32 %v8014, %v8065
  %v8080 = vmul.f32 %v8015, %v8065
  %v8081 = vmul.f32 %v8016, %v8065
  %v8082 = vmul.f32 %v8017, %v8065
  %v8083 = vmul.f32 %v8018, %v8065
  %v8084 = vmul.f32 %v8019, %v8065
  %v8085 = vmul.f32 %v8020, %v8065
  %v8086 = vmul.f32 %v8021, %v8065
  %v8087 = vmul.f32 %v8022, %v8065
  %v8088 = vmul.f32 %v8023, %v8065
  %v8089 = vmul.f32 %v8024, %v8065
  %v8090 = vmul.f32 %v8025, %v8065
  %v8091 = vmul.f32 %v8026, %v8065
  %v8092 = vmul.f32 %v8027, %v8065
  %v8093 = vmul.f32 %v8028, %v8065
  %v8094 = vmul.f32 %v8029, %v8065
  %v8095 = vmul.f32 %v8030, %v8065
  %v8096 = vmul.f32 %v8031, %v8065
  %v8097 = vmul.f32 %v8032, %v8065
  %v8098 = vmul.f32 %v8033, %v8065
  %v8099 = vmul.f32 %v8034, %v8065
  %v8100 = vmul.f32 %v8035, %v8065
  %v8101 = vmul.f32 %v8036, %v8065
  %v8102 = vmul.f32 %v8037, %v8065
  %v8103 = vmul.f32 %v8038, %v8065
  %v8104 = vmul.f32 %v8039, %v8065
  %v8105 = vmul.f32 %v8040, %v8065
  %v8106 = vmul.f32 %v8041, %v8065
  %v8107 = vmul.f32 %v8042, %v8065
  %v8108 = vmul.f32 %v8043, %v8065
  %v8109 = vmul.f32 %v8044, %v8065
  %v8110 = vmul.f32 %v8045, %v8065
  %v8111 = vmul.f32 %v8046, %v8065
  %v8112 = vmul.f32 %v8047, %v8065
  %v8113 = vmul.f32 %v8048, %v8065
  %v8114 = vmul.f32 %v8049, %v8065
  %v8115 = vmul.f32 %v8050, %v8065
  %v8116 = vmul.f32 %v8051, %v8065
  %v8117 = vmul.f32 %v8052, %v8065
  %v8118 = vmul.f32 %v8053, %v8065
  %v8119 = vmul.f32 %v8054, %v8065
  %v8120 = vmul.f32 %v8055, %v8065
  %v8121 = vmul.f32 %v8056, %v8065
  %v8122 = vmul.f32 %v8057, %v8065
  %v8123 = vmul.f32 %v8058, %v8065
  %v8124 = vmul.f32 %v8059, %v8065
  %v8125 = vmul.f32 %v8060, %v8065
  %v8126 = vmul.f32 %v8061, %v8065
  %v8127 = vmul.f32 %v8062, %v8065
  %v8128 = vmul.f32 %v8063, %v8065
  %v8129 = vmul.f32 %v8064, %v8065
  %v8130 = vadd.f32 %v7937, %v8066
  %v8131 = vadd.f32 %v7938, %v8067
  %v8132 = vadd.f32 %v7939, %v8068
  %v8133 = vadd.f32 %v7940, %v8069
  %v8134 = vadd.f32 %v7941, %v8070
  %v8135 = vadd.f32 %v7942, %v8071
  %v8136 = vadd.f32 %v7943, %v8072
  %v8137 = vadd.f32 %v7944, %v8073
  %v8138 = vadd.f32 %v7945, %v8074
  %v8139 = vadd.f32 %v7946, %v8075
  %v8140 = vadd.f32 %v7947, %v8076
  %v8141 = vadd.f32 %v7948, %v8077
  %v8142 = vadd.f32 %v7949, %v8078
  %v8143 = vadd.f32 %v7950, %v8079
  %v8144 = vadd.f32 %v7951, %v8080
  %v8145 = vadd.f32 %v7952, %v8081
  %v8146 = vadd.f32 %v7953, %v8082
  %v8147 = vadd.f32 %v7954, %v8083
  %v8148 = vadd.f32 %v7955, %v8084
  %v8149 = vadd.f32 %v7956, %v8085
  %v8150 = vadd.f32 %v7957, %v8086
  %v8151 = vadd.f32 %v7958, %v8087
  %v8152 = vadd.f32 %v7959, %v8088
  %v8153 = vadd.f32 %v7960, %v8089
  %v8154 = vadd.f32 %v7961, %v8090
  %v8155 = vadd.f32 %v7962, %v8091
  %v8156 = vadd.f32 %v7963, %v8092
  %v8157 = vadd.f32 %v7964, %v8093
  %v8158 = vadd.f32 %v7965, %v8094
  %v8159 = vadd.f32 %v7966, %v8095
  %v8160 = vadd.f32 %v7967, %v8096
  %v8161 = vadd.f32 %v7968, %v8097
  %v8162 = vadd.f32 %v7969, %v8098
  %v8163 = vadd.f32 %v7970, %v8099
  %v8164 = vadd.f32 %v7971, %v8100
  %v8165 = vadd.f32 %v7972, %v8101
  %v8166 = vadd.f32 %v7973, %v8102
  %v8167 = vadd.f32 %v7974, %v8103
  %v8168 = vadd.f32 %v7975, %v8104
  %v8169 = vadd.f32 %v7976, %v8105
  %v8170 = vadd.f32 %v7977, %v8106
  %v8171 = vadd.f32 %v7978, %v8107
  %v8172 = vadd.f32 %v7979, %v8108
  %v8173 = vadd.f32 %v7980, %v8109
  %v8174 = vadd.f32 %v7981, %v8110
  %v8175 = vadd.f32 %v7982, %v8111
  %v8176 = vadd.f32 %v7983, %v8112
  %v8177 = vadd.f32 %v7984, %v8113
  %v8178 = vadd.f32 %v7985, %v8114
  %v8179 = vadd.f32 %v7986, %v8115
  %v8180 = vadd.f32 %v7987, %v8116
  %v8181 = vadd.f32 %v7988, %v8117
  %v8182 = vadd.f32 %v7989, %v8118
  %v8183 = vadd.f32 %v7990, %v8119
  %v8184 = vadd.f32 %v7991, %v8120
  %v8185 = vadd.f32 %v7992, %v8121
  %v8186 = vadd.f32 %v7993, %v8122
  %v8187 = vadd.f32 %v7994, %v8123
  %v8188 = vadd.f32 %v7995, %v8124
  %v8189 = vadd.f32 %v7996, %v8125
  %v8190 = vadd.f32 %v7997, %v8126
  %v8191 = vadd.f32 %v7998, %v8127
  %v8192 = vadd.f32 %v7999, %v8128
  %v8193 = vadd.f32 %v8000, %v8129
  %v8194 = vld [vmem:[%s7548] sm:$0xff]
  %v8195 = vld [vmem:[%s7548 + $0x8] sm:$0xff]
  %v8196 = vld [vmem:[%s7548 + $0x18] sm:$0xff]
  %v8197 = vld [vmem:[%s7548 + $0x20] sm:$0xff]
  %v8198 = vld [vmem:[%s7548 + $0x30] sm:$0xff]
  %v8199 = vld [vmem:[%s7548 + $0x38] sm:$0xff]
  %v8200 = vld [vmem:[%s7548 + $0x48] sm:$0xff]
  %v8201 = vld [vmem:[%s7548 + $0x50] sm:$0xff]
  %v8202 = vld [vmem:[%s7548 + $0x60] sm:$0xff]
  %v8203 = vld [vmem:[%s7548 + $0x68] sm:$0xff]
  %v8204 = vld [vmem:[%s7548 + $0x78] sm:$0xff]
  %v8205 = vld [vmem:[%s7548 + $0x80] sm:$0xff]
  %v8206 = vld [vmem:[%s7548 + $0x90] sm:$0xff]
  %v8207 = vld [vmem:[%s7548 + $0x98] sm:$0xff]
  %v8208 = vld [vmem:[%s7548 + $0xa8] sm:$0xff]
  %v8209 = vld [vmem:[%s7548 + $0xb0] sm:$0xff]
  %v8210 = vld [vmem:[%s7548 + $0xc0] sm:$0xff]
  %v8211 = vld [vmem:[%s7548 + $0xc8] sm:$0xff]
  %v8212 = vld [vmem:[%s7548 + $0xd8] sm:$0xff]
  %v8213 = vld [vmem:[%s7548 + $0xe0] sm:$0xff]
  %v8214 = vld [vmem:[%s7548 + $0xf0] sm:$0xff]
  %v8215 = vld [vmem:[%s7548 + $0xf8] sm:$0xff]
  %v8216 = vld [vmem:[%s7548 + $0x108] sm:$0xff]
  %v8217 = vld [vmem:[%s7548 + $0x110] sm:$0xff]
  %v8218 = vld [vmem:[%s7548 + $0x120] sm:$0xff]
  %v8219 = vld [vmem:[%s7548 + $0x128] sm:$0xff]
  %v8220 = vld [vmem:[%s7548 + $0x138] sm:$0xff]
  %v8221 = vld [vmem:[%s7548 + $0x140] sm:$0xff]
  %v8222 = vld [vmem:[%s7548 + $0x150] sm:$0xff]
  %v8223 = vld [vmem:[%s7548 + $0x158] sm:$0xff]
  %v8224 = vld [vmem:[%s7548 + $0x168] sm:$0xff]
  %v8225 = vld [vmem:[%s7548 + $0x170] sm:$0xff]
  %v8226 = vld [vmem:[%s7548 + $0x1b0] sm:$0xff]
  %v8227 = vld [vmem:[%s7548 + $0x1b8] sm:$0xff]
  %v8228 = vld [vmem:[%s7548 + $0x1c8] sm:$0xff]
  %v8229 = vld [vmem:[%s7548 + $0x1d0] sm:$0xff]
  %v8230 = vld [vmem:[%s7548 + $0x1e0] sm:$0xff]
  %v8231 = vld [vmem:[%s7548 + $0x1e8] sm:$0xff]
  %v8232 = vld [vmem:[%s7548 + $0x1f8] sm:$0xff]
  %v8233 = vld [vmem:[%s7548 + $0x200] sm:$0xff]
  %v8234 = vld [vmem:[%s7548 + $0x210] sm:$0xff]
  %v8235 = vld [vmem:[%s7548 + $0x218] sm:$0xff]
  %v8236 = vld [vmem:[%s7548 + $0x228] sm:$0xff]
  %v8237 = vld [vmem:[%s7548 + $0x230] sm:$0xff]
  %v8238 = vld [vmem:[%s7548 + $0x240] sm:$0xff]
  %v8239 = vld [vmem:[%s7548 + $0x248] sm:$0xff]
  %v8240 = vld [vmem:[%s7548 + $0x258] sm:$0xff]
  %v8241 = vld [vmem:[%s7548 + $0x260] sm:$0xff]
  %v8242 = vld [vmem:[%s7548 + $0x270] sm:$0xff]
  %v8243 = vld [vmem:[%s7548 + $0x278] sm:$0xff]
  %v8244 = vld [vmem:[%s7548 + $0x288] sm:$0xff]
  %v8245 = vld [vmem:[%s7548 + $0x290] sm:$0xff]
  %v8246 = vld [vmem:[%s7548 + $0x2a0] sm:$0xff]
  %v8247 = vld [vmem:[%s7548 + $0x2a8] sm:$0xff]
  %v8248 = vld [vmem:[%s7548 + $0x2b8] sm:$0xff]
  %v8249 = vld [vmem:[%s7548 + $0x2c0] sm:$0xff]
  %v8250 = vld [vmem:[%s7548 + $0x2d0] sm:$0xff]
  %v8251 = vld [vmem:[%s7548 + $0x2d8] sm:$0xff]
  %v8252 = vld [vmem:[%s7548 + $0x2e8] sm:$0xff]
  %v8253 = vld [vmem:[%s7548 + $0x2f0] sm:$0xff]
  %v8254 = vld [vmem:[%s7548 + $0x300] sm:$0xff]
  %v8255 = vld [vmem:[%s7548 + $0x308] sm:$0xff]
  %v8256 = vld [vmem:[%s7548 + $0x318] sm:$0xff]
  %v8257 = vld [vmem:[%s7548 + $0x320] sm:$0xff]
  %v8258 = vperm.slane %v7613, 3
  %v8259 = vmul.f32 %v8194, %v8258
  %v8260 = vmul.f32 %v8195, %v8258
  %v8261 = vmul.f32 %v8196, %v8258
  %v8262 = vmul.f32 %v8197, %v8258
  %v8263 = vmul.f32 %v8198, %v8258
  %v8264 = vmul.f32 %v8199, %v8258
  %v8265 = vmul.f32 %v8200, %v8258
  %v8266 = vmul.f32 %v8201, %v8258
  %v8267 = vmul.f32 %v8202, %v8258
  %v8268 = vmul.f32 %v8203, %v8258
  %v8269 = vmul.f32 %v8204, %v8258
  %v8270 = vmul.f32 %v8205, %v8258
  %v8271 = vmul.f32 %v8206, %v8258
  %v8272 = vmul.f32 %v8207, %v8258
  %v8273 = vmul.f32 %v8208, %v8258
  %v8274 = vmul.f32 %v8209, %v8258
  %v8275 = vmul.f32 %v8210, %v8258
  %v8276 = vmul.f32 %v8211, %v8258
  %v8277 = vmul.f32 %v8212, %v8258
  %v8278 = vmul.f32 %v8213, %v8258
  %v8279 = vmul.f32 %v8214, %v8258
  %v8280 = vmul.f32 %v8215, %v8258
  %v8281 = vmul.f32 %v8216, %v8258
  %v8282 = vmul.f32 %v8217, %v8258
  %v8283 = vmul.f32 %v8218, %v8258
  %v8284 = vmul.f32 %v8219, %v8258
  %v8285 = vmul.f32 %v8220, %v8258
  %v8286 = vmul.f32 %v8221, %v8258
  %v8287 = vmul.f32 %v8222, %v8258
  %v8288 = vmul.f32 %v8223, %v8258
  %v8289 = vmul.f32 %v8224, %v8258
  %v8290 = vmul.f32 %v8225, %v8258
  %v8291 = vmul.f32 %v8226, %v8258
  %v8292 = vmul.f32 %v8227, %v8258
  %v8293 = vmul.f32 %v8228, %v8258
  %v8294 = vmul.f32 %v8229, %v8258
  %v8295 = vmul.f32 %v8230, %v8258
  %v8296 = vmul.f32 %v8231, %v8258
  %v8297 = vmul.f32 %v8232, %v8258
  %v8298 = vmul.f32 %v8233, %v8258
  %v8299 = vmul.f32 %v8234, %v8258
  %v8300 = vmul.f32 %v8235, %v8258
  %v8301 = vmul.f32 %v8236, %v8258
  %v8302 = vmul.f32 %v8237, %v8258
  %v8303 = vmul.f32 %v8238, %v8258
  %v8304 = vmul.f32 %v8239, %v8258
  %v8305 = vmul.f32 %v8240, %v8258
  %v8306 = vmul.f32 %v8241, %v8258
  %v8307 = vmul.f32 %v8242, %v8258
  %v8308 = vmul.f32 %v8243, %v8258
  %v8309 = vmul.f32 %v8244, %v8258
  %v8310 = vmul.f32 %v8245, %v8258
  %v8311 = vmul.f32 %v8246, %v8258
  %v8312 = vmul.f32 %v8247, %v8258
  %v8313 = vmul.f32 %v8248, %v8258
  %v8314 = vmul.f32 %v8249, %v8258
  %v8315 = vmul.f32 %v8250, %v8258
  %v8316 = vmul.f32 %v8251, %v8258
  %v8317 = vmul.f32 %v8252, %v8258
  %v8318 = vmul.f32 %v8253, %v8258
  %v8319 = vmul.f32 %v8254, %v8258
  %v8320 = vmul.f32 %v8255, %v8258
  %v8321 = vmul.f32 %v8256, %v8258
  %v8322 = vmul.f32 %v8257, %v8258
  %v8323 = vadd.f32 %v8130, %v8259
  %v8324 = vadd.f32 %v8131, %v8260
  %v8325 = vadd.f32 %v8132, %v8261
  %v8326 = vadd.f32 %v8133, %v8262
  %v8327 = vadd.f32 %v8134, %v8263
  %v8328 = vadd.f32 %v8135, %v8264
  %v8329 = vadd.f32 %v8136, %v8265
  %v8330 = vadd.f32 %v8137, %v8266
  %v8331 = vadd.f32 %v8138, %v8267
  %v8332 = vadd.f32 %v8139, %v8268
  %v8333 = vadd.f32 %v8140, %v8269
  %v8334 = vadd.f32 %v8141, %v8270
  %v8335 = vadd.f32 %v8142, %v8271
  %v8336 = vadd.f32 %v8143, %v8272
  %v8337 = vadd.f32 %v8144, %v8273
  %v8338 = vadd.f32 %v8145, %v8274
  %v8339 = vadd.f32 %v8146, %v8275
  %v8340 = vadd.f32 %v8147, %v8276
  %v8341 = vadd.f32 %v8148, %v8277
  %v8342 = vadd.f32 %v8149, %v8278
  %v8343 = vadd.f32 %v8150, %v8279
  %v8344 = vadd.f32 %v8151, %v8280
  %v8345 = vadd.f32 %v8152, %v8281
  %v8346 = vadd.f32 %v8153, %v8282
  %v8347 = vadd.f32 %v8154, %v8283
  %v8348 = vadd.f32 %v8155, %v8284
  %v8349 = vadd.f32 %v8156, %v8285
  %v8350 = vadd.f32 %v8157, %v8286
  %v8351 = vadd.f32 %v8158, %v8287
  %v8352 = vadd.f32 %v8159, %v8288
  %v8353 = vadd.f32 %v8160, %v8289
  %v8354 = vadd.f32 %v8161, %v8290
  %v8355 = vadd.f32 %v8162, %v8291
  %v8356 = vadd.f32 %v8163, %v8292
  %v8357 = vadd.f32 %v8164, %v8293
  %v8358 = vadd.f32 %v8165, %v8294
  %v8359 = vadd.f32 %v8166, %v8295
  %v8360 = vadd.f32 %v8167, %v8296
  %v8361 = vadd.f32 %v8168, %v8297
  %v8362 = vadd.f32 %v8169, %v8298
  %v8363 = vadd.f32 %v8170, %v8299
  %v8364 = vadd.f32 %v8171, %v8300
  %v8365 = vadd.f32 %v8172, %v8301
  %v8366 = vadd.f32 %v8173, %v8302
  %v8367 = vadd.f32 %v8174, %v8303
  %v8368 = vadd.f32 %v8175, %v8304
  %v8369 = vadd.f32 %v8176, %v8305
  %v8370 = vadd.f32 %v8177, %v8306
  %v8371 = vadd.f32 %v8178, %v8307
  %v8372 = vadd.f32 %v8179, %v8308
  %v8373 = vadd.f32 %v8180, %v8309
  %v8374 = vadd.f32 %v8181, %v8310
  %v8375 = vadd.f32 %v8182, %v8311
  %v8376 = vadd.f32 %v8183, %v8312
  %v8377 = vadd.f32 %v8184, %v8313
  %v8378 = vadd.f32 %v8185, %v8314
  %v8379 = vadd.f32 %v8186, %v8315
  %v8380 = vadd.f32 %v8187, %v8316
  %v8381 = vadd.f32 %v8188, %v8317
  %v8382 = vadd.f32 %v8189, %v8318
  %v8383 = vadd.f32 %v8190, %v8319
  %v8384 = vadd.f32 %v8191, %v8320
  %v8385 = vadd.f32 %v8192, %v8321
  %v8386 = vadd.f32 %v8193, %v8322
  %v8387 = vld [vmem:[%s7548 + $0x1] sm:$0xff]
  %v8388 = vld [vmem:[%s7548 + $0x9] sm:$0xff]
  %v8389 = vld [vmem:[%s7548 + $0x19] sm:$0xff]
  %v8390 = vld [vmem:[%s7548 + $0x21] sm:$0xff]
  %v8391 = vld [vmem:[%s7548 + $0x31] sm:$0xff]
  %v8392 = vld [vmem:[%s7548 + $0x39] sm:$0xff]
  %v8393 = vld [vmem:[%s7548 + $0x49] sm:$0xff]
  %v8394 = vld [vmem:[%s7548 + $0x51] sm:$0xff]
  %v8395 = vld [vmem:[%s7548 + $0x61] sm:$0xff]
  %v8396 = vld [vmem:[%s7548 + $0x69] sm:$0xff]
  %v8397 = vld [vmem:[%s7548 + $0x79] sm:$0xff]
  %v8398 = vld [vmem:[%s7548 + $0x81] sm:$0xff]
  %v8399 = vld [vmem:[%s7548 + $0x91] sm:$0xff]
  %v8400 = vld [vmem:[%s7548 + $0x99] sm:$0xff]
  %v8401 = vld [vmem:[%s7548 + $0xa9] sm:$0xff]
  %v8402 = vld [vmem:[%s7548 + $0xb1] sm:$0xff]
  %v8403 = vld [vmem:[%s7548 + $0xc1] sm:$0xff]
  %v8404 = vld [vmem:[%s7548 + $0xc9] sm:$0xff]
  %v8405 = vld [vmem:[%s7548 + $0xd9] sm:$0xff]
  %v8406 = vld [vmem:[%s7548 + $0xe1] sm:$0xff]
  %v8407 = vld [vmem:[%s7548 + $0xf1] sm:$0xff]
  %v8408 = vld [vmem:[%s7548 + $0xf9] sm:$0xff]
  %v8409 = vld [vmem:[%s7548 + $0x109] sm:$0xff]
  %v8410 = vld [vmem:[%s7548 + $0x111] sm:$0xff]
  %v8411 = vld [vmem:[%s7548 + $0x121] sm:$0xff]
  %v8412 = vld [vmem:[%s7548 + $0x129] sm:$0xff]
  %v8413 = vld [vmem:[%s7548 + $0x139] sm:$0xff]
  %v8414 = vld [vmem:[%s7548 + $0x141] sm:$0xff]
  %v8415 = vld [vmem:[%s7548 + $0x151] sm:$0xff]
  %v8416 = vld [vmem:[%s7548 + $0x159] sm:$0xff]
  %v8417 = vld [vmem:[%s7548 + $0x169] sm:$0xff]
  %v8418 = vld [vmem:[%s7548 + $0x171] sm:$0xff]
  %v8419 = vld [vmem:[%s7548 + $0x1b1] sm:$0xff]
  %v8420 = vld [vmem:[%s7548 + $0x1b9] sm:$0xff]
  %v8421 = vld [vmem:[%s7548 + $0x1c9] sm:$0xff]
  %v8422 = vld [vmem:[%s7548 + $0x1d1] sm:$0xff]
  %v8423 = vld [vmem:[%s7548 + $0x1e1] sm:$0xff]
  %v8424 = vld [vmem:[%s7548 + $0x1e9] sm:$0xff]
  %v8425 = vld [vmem:[%s7548 + $0x1f9] sm:$0xff]
  %v8426 = vld [vmem:[%s7548 + $0x201] sm:$0xff]
  %v8427 = vld [vmem:[%s7548 + $0x211] sm:$0xff]
  %v8428 = vld [vmem:[%s7548 + $0x219] sm:$0xff]
  %v8429 = vld [vmem:[%s7548 + $0x229] sm:$0xff]
  %v8430 = vld [vmem:[%s7548 + $0x231] sm:$0xff]
  %v8431 = vld [vmem:[%s7548 + $0x241] sm:$0xff]
  %v8432 = vld [vmem:[%s7548 + $0x249] sm:$0xff]
  %v8433 = vld [vmem:[%s7548 + $0x259] sm:$0xff]
  %v8434 = vld [vmem:[%s7548 + $0x261] sm:$0xff]
  %v8435 = vld [vmem:[%s7548 + $0x271] sm:$0xff]
  %v8436 = vld [vmem:[%s7548 + $0x279] sm:$0xff]
  %v8437 = vld [vmem:[%s7548 + $0x289] sm:$0xff]
  %v8438 = vld [vmem:[%s7548 + $0x291] sm:$0xff]
  %v8439 = vld [vmem:[%s7548 + $0x2a1] sm:$0xff]
  %v8440 = vld [vmem:[%s7548 + $0x2a9] sm:$0xff]
  %v8441 = vld [vmem:[%s7548 + $0x2b9] sm:$0xff]
  %v8442 = vld [vmem:[%s7548 + $0x2c1] sm:$0xff]
  %v8443 = vld [vmem:[%s7548 + $0x2d1] sm:$0xff]
  %v8444 = vld [vmem:[%s7548 + $0x2d9] sm:$0xff]
  %v8445 = vld [vmem:[%s7548 + $0x2e9] sm:$0xff]
  %v8446 = vld [vmem:[%s7548 + $0x2f1] sm:$0xff]
  %v8447 = vld [vmem:[%s7548 + $0x301] sm:$0xff]
  %v8448 = vld [vmem:[%s7548 + $0x309] sm:$0xff]
  %v8449 = vld [vmem:[%s7548 + $0x319] sm:$0xff]
  %v8450 = vld [vmem:[%s7548 + $0x321] sm:$0xff]
  %v8451 = vperm.slane %v7613, 4
  %v8452 = vmul.f32 %v8387, %v8451
  %v8453 = vmul.f32 %v8388, %v8451
  %v8454 = vmul.f32 %v8389, %v8451
  %v8455 = vmul.f32 %v8390, %v8451
  %v8456 = vmul.f32 %v8391, %v8451
  %v8457 = vmul.f32 %v8392, %v8451
  %v8458 = vmul.f32 %v8393, %v8451
  %v8459 = vmul.f32 %v8394, %v8451
  %v8460 = vmul.f32 %v8395, %v8451
  %v8461 = vmul.f32 %v8396, %v8451
  %v8462 = vmul.f32 %v8397, %v8451
  %v8463 = vmul.f32 %v8398, %v8451
  %v8464 = vmul.f32 %v8399, %v8451
  %v8465 = vmul.f32 %v8400, %v8451
  %v8466 = vmul.f32 %v8401, %v8451
  %v8467 = vmul.f32 %v8402, %v8451
  %v8468 = vmul.f32 %v8403, %v8451
  %v8469 = vmul.f32 %v8404, %v8451
  %v8470 = vmul.f32 %v8405, %v8451
  %v8471 = vmul.f32 %v8406, %v8451
  %v8472 = vmul.f32 %v8407, %v8451
  %v8473 = vmul.f32 %v8408, %v8451
  %v8474 = vmul.f32 %v8409, %v8451
  %v8475 = vmul.f32 %v8410, %v8451
  %v8476 = vmul.f32 %v8411, %v8451
  %v8477 = vmul.f32 %v8412, %v8451
  %v8478 = vmul.f32 %v8413, %v8451
  %v8479 = vmul.f32 %v8414, %v8451
  %v8480 = vmul.f32 %v8415, %v8451
  %v8481 = vmul.f32 %v8416, %v8451
  %v8482 = vmul.f32 %v8417, %v8451
  %v8483 = vmul.f32 %v8418, %v8451
  %v8484 = vmul.f32 %v8419, %v8451
  %v8485 = vmul.f32 %v8420, %v8451
  %v8486 = vmul.f32 %v8421, %v8451
  %v8487 = vmul.f32 %v8422, %v8451
  %v8488 = vmul.f32 %v8423, %v8451
  %v8489 = vmul.f32 %v8424, %v8451
  %v8490 = vmul.f32 %v8425, %v8451
  %v8491 = vmul.f32 %v8426, %v8451
  %v8492 = vmul.f32 %v8427, %v8451
  %v8493 = vmul.f32 %v8428, %v8451
  %v8494 = vmul.f32 %v8429, %v8451
  %v8495 = vmul.f32 %v8430, %v8451
  %v8496 = vmul.f32 %v8431, %v8451
  %v8497 = vmul.f32 %v8432, %v8451
  %v8498 = vmul.f32 %v8433, %v8451
  %v8499 = vmul.f32 %v8434, %v8451
  %v8500 = vmul.f32 %v8435, %v8451
  %v8501 = vmul.f32 %v8436, %v8451
  %v8502 = vmul.f32 %v8437, %v8451
  %v8503 = vmul.f32 %v8438, %v8451
  %v8504 = vmul.f32 %v8439, %v8451
  %v8505 = vmul.f32 %v8440, %v8451
  %v8506 = vmul.f32 %v8441, %v8451
  %v8507 = vmul.f32 %v8442, %v8451
  %v8508 = vmul.f32 %v8443, %v8451
  %v8509 = vmul.f32 %v8444, %v8451
  %v8510 = vmul.f32 %v8445, %v8451
  %v8511 = vmul.f32 %v8446, %v8451
  %v8512 = vmul.f32 %v8447, %v8451
  %v8513 = vmul.f32 %v8448, %v8451
  %v8514 = vmul.f32 %v8449, %v8451
  %v8515 = vmul.f32 %v8450, %v8451
  %v8516 = vadd.f32 %v8323, %v8452
  %v8517 = vadd.f32 %v8324, %v8453
  %v8518 = vadd.f32 %v8325, %v8454
  %v8519 = vadd.f32 %v8326, %v8455
  %v8520 = vadd.f32 %v8327, %v8456
  %v8521 = vadd.f32 %v8328, %v8457
  %v8522 = vadd.f32 %v8329, %v8458
  %v8523 = vadd.f32 %v8330, %v8459
  %v8524 = vadd.f32 %v8331, %v8460
  %v8525 = vadd.f32 %v8332, %v8461
  %v8526 = vadd.f32 %v8333, %v8462
  %v8527 = vadd.f32 %v8334, %v8463
  %v8528 = vadd.f32 %v8335, %v8464
  %v8529 = vadd.f32 %v8336, %v8465
  %v8530 = vadd.f32 %v8337, %v8466
  %v8531 = vadd.f32 %v8338, %v8467
  %v8532 = vadd.f32 %v8339, %v8468
  %v8533 = vadd.f32 %v8340, %v8469
  %v8534 = vadd.f32 %v8341, %v8470
  %v8535 = vadd.f32 %v8342, %v8471
  %v8536 = vadd.f32 %v8343, %v8472
  %v8537 = vadd.f32 %v8344, %v8473
  %v8538 = vadd.f32 %v8345, %v8474
  %v8539 = vadd.f32 %v8346, %v8475
  %v8540 = vadd.f32 %v8347, %v8476
  %v8541 = vadd.f32 %v8348, %v8477
  %v8542 = vadd.f32 %v8349, %v8478
  %v8543 = vadd.f32 %v8350, %v8479
  %v8544 = vadd.f32 %v8351, %v8480
  %v8545 = vadd.f32 %v8352, %v8481
  %v8546 = vadd.f32 %v8353, %v8482
  %v8547 = vadd.f32 %v8354, %v8483
  %v8548 = vadd.f32 %v8355, %v8484
  %v8549 = vadd.f32 %v8356, %v8485
  %v8550 = vadd.f32 %v8357, %v8486
  %v8551 = vadd.f32 %v8358, %v8487
  %v8552 = vadd.f32 %v8359, %v8488
  %v8553 = vadd.f32 %v8360, %v8489
  %v8554 = vadd.f32 %v8361, %v8490
  %v8555 = vadd.f32 %v8362, %v8491
  %v8556 = vadd.f32 %v8363, %v8492
  %v8557 = vadd.f32 %v8364, %v8493
  %v8558 = vadd.f32 %v8365, %v8494
  %v8559 = vadd.f32 %v8366, %v8495
  %v8560 = vadd.f32 %v8367, %v8496
  %v8561 = vadd.f32 %v8368, %v8497
  %v8562 = vadd.f32 %v8369, %v8498
  %v8563 = vadd.f32 %v8370, %v8499
  %v8564 = vadd.f32 %v8371, %v8500
  %v8565 = vadd.f32 %v8372, %v8501
  %v8566 = vadd.f32 %v8373, %v8502
  %v8567 = vadd.f32 %v8374, %v8503
  %v8568 = vadd.f32 %v8375, %v8504
  %v8569 = vadd.f32 %v8376, %v8505
  %v8570 = vadd.f32 %v8377, %v8506
  %v8571 = vadd.f32 %v8378, %v8507
  %v8572 = vadd.f32 %v8379, %v8508
  %v8573 = vadd.f32 %v8380, %v8509
  %v8574 = vadd.f32 %v8381, %v8510
  %v8575 = vadd.f32 %v8382, %v8511
  %v8576 = vadd.f32 %v8383, %v8512
  %v8577 = vadd.f32 %v8384, %v8513
  %v8578 = vadd.f32 %v8385, %v8514
  %v8579 = vadd.f32 %v8386, %v8515
  %v8580 = vld [vmem:[%s7548 + $0x2] sm:$0xff]
  %v8581 = vld [vmem:[%s7548 + $0xa] sm:$0xff]
  %v8582 = vld [vmem:[%s7548 + $0x1a] sm:$0xff]
  %v8583 = vld [vmem:[%s7548 + $0x22] sm:$0xff]
  %v8584 = vld [vmem:[%s7548 + $0x32] sm:$0xff]
  %v8585 = vld [vmem:[%s7548 + $0x3a] sm:$0xff]
  %v8586 = vld [vmem:[%s7548 + $0x4a] sm:$0xff]
  %v8587 = vld [vmem:[%s7548 + $0x52] sm:$0xff]
  %v8588 = vld [vmem:[%s7548 + $0x62] sm:$0xff]
  %v8589 = vld [vmem:[%s7548 + $0x6a] sm:$0xff]
  %v8590 = vld [vmem:[%s7548 + $0x7a] sm:$0xff]
  %v8591 = vld [vmem:[%s7548 + $0x82] sm:$0xff]
  %v8592 = vld [vmem:[%s7548 + $0x92] sm:$0xff]
  %v8593 = vld [vmem:[%s7548 + $0x9a] sm:$0xff]
  %v8594 = vld [vmem:[%s7548 + $0xaa] sm:$0xff]
  %v8595 = vld [vmem:[%s7548 + $0xb2] sm:$0xff]
  %v8596 = vld [vmem:[%s7548 + $0xc2] sm:$0xff]
  %v8597 = vld [vmem:[%s7548 + $0xca] sm:$0xff]
  %v8598 = vld [vmem:[%s7548 + $0xda] sm:$0xff]
  %v8599 = vld [vmem:[%s7548 + $0xe2] sm:$0xff]
  %v8600 = vld [vmem:[%s7548 + $0xf2] sm:$0xff]
  %v8601 = vld [vmem:[%s7548 + $0xfa] sm:$0xff]
  %v8602 = vld [vmem:[%s7548 + $0x10a] sm:$0xff]
  %v8603 = vld [vmem:[%s7548 + $0x112] sm:$0xff]
  %v8604 = vld [vmem:[%s7548 + $0x122] sm:$0xff]
  %v8605 = vld [vmem:[%s7548 + $0x12a] sm:$0xff]
  %v8606 = vld [vmem:[%s7548 + $0x13a] sm:$0xff]
  %v8607 = vld [vmem:[%s7548 + $0x142] sm:$0xff]
  %v8608 = vld [vmem:[%s7548 + $0x152] sm:$0xff]
  %v8609 = vld [vmem:[%s7548 + $0x15a] sm:$0xff]
  %v8610 = vld [vmem:[%s7548 + $0x16a] sm:$0xff]
  %v8611 = vld [vmem:[%s7548 + $0x172] sm:$0xff]
  %v8612 = vld [vmem:[%s7548 + $0x1b2] sm:$0xff]
  %v8613 = vld [vmem:[%s7548 + $0x1ba] sm:$0xff]
  %v8614 = vld [vmem:[%s7548 + $0x1ca] sm:$0xff]
  %v8615 = vld [vmem:[%s7548 + $0x1d2] sm:$0xff]
  %v8616 = vld [vmem:[%s7548 + $0x1e2] sm:$0xff]
  %v8617 = vld [vmem:[%s7548 + $0x1ea] sm:$0xff]
  %v8618 = vld [vmem:[%s7548 + $0x1fa] sm:$0xff]
  %v8619 = vld [vmem:[%s7548 + $0x202] sm:$0xff]
  %v8620 = vld [vmem:[%s7548 + $0x212] sm:$0xff]
  %v8621 = vld [vmem:[%s7548 + $0x21a] sm:$0xff]
  %v8622 = vld [vmem:[%s7548 + $0x22a] sm:$0xff]
  %v8623 = vld [vmem:[%s7548 + $0x232] sm:$0xff]
  %v8624 = vld [vmem:[%s7548 + $0x242] sm:$0xff]
  %v8625 = vld [vmem:[%s7548 + $0x24a] sm:$0xff]
  %v8626 = vld [vmem:[%s7548 + $0x25a] sm:$0xff]
  %v8627 = vld [vmem:[%s7548 + $0x262] sm:$0xff]
  %v8628 = vld [vmem:[%s7548 + $0x272] sm:$0xff]
  %v8629 = vld [vmem:[%s7548 + $0x27a] sm:$0xff]
  %v8630 = vld [vmem:[%s7548 + $0x28a] sm:$0xff]
  %v8631 = vld [vmem:[%s7548 + $0x292] sm:$0xff]
  %v8632 = vld [vmem:[%s7548 + $0x2a2] sm:$0xff]
  %v8633 = vld [vmem:[%s7548 + $0x2aa] sm:$0xff]
  %v8634 = vld [vmem:[%s7548 + $0x2ba] sm:$0xff]
  %v8635 = vld [vmem:[%s7548 + $0x2c2] sm:$0xff]
  %v8636 = vld [vmem:[%s7548 + $0x2d2] sm:$0xff]
  %v8637 = vld [vmem:[%s7548 + $0x2da] sm:$0xff]
  %v8638 = vld [vmem:[%s7548 + $0x2ea] sm:$0xff]
  %v8639 = vld [vmem:[%s7548 + $0x2f2] sm:$0xff]
  %v8640 = vld [vmem:[%s7548 + $0x302] sm:$0xff]
  %v8641 = vld [vmem:[%s7548 + $0x30a] sm:$0xff]
  %v8642 = vld [vmem:[%s7548 + $0x31a] sm:$0xff]
  %v8643 = vld [vmem:[%s7548 + $0x322] sm:$0xff]
  %v8644 = vperm.slane %v7613, 5
  %v8645 = vmul.f32 %v8580, %v8644
  %v8646 = vmul.f32 %v8581, %v8644
  %v8647 = vmul.f32 %v8582, %v8644
  %v8648 = vmul.f32 %v8583, %v8644
  %v8649 = vmul.f32 %v8584, %v8644
  %v8650 = vmul.f32 %v8585, %v8644
  %v8651 = vmul.f32 %v8586, %v8644
  %v8652 = vmul.f32 %v8587, %v8644
  %v8653 = vmul.f32 %v8588, %v8644
  %v8654 = vmul.f32 %v8589, %v8644
  %v8655 = vmul.f32 %v8590, %v8644
  %v8656 = vmul.f32 %v8591, %v8644
  %v8657 = vmul.f32 %v8592, %v8644
  %v8658 = vmul.f32 %v8593, %v8644
  %v8659 = vmul.f32 %v8594, %v8644
  %v8660 = vmul.f32 %v8595, %v8644
  %v8661 = vmul.f32 %v8596, %v8644
  %v8662 = vmul.f32 %v8597, %v8644
  %v8663 = vmul.f32 %v8598, %v8644
  %v8664 = vmul.f32 %v8599, %v8644
  %v8665 = vmul.f32 %v8600, %v8644
  %v8666 = vmul.f32 %v8601, %v8644
  %v8667 = vmul.f32 %v8602, %v8644
  %v8668 = vmul.f32 %v8603, %v8644
  %v8669 = vmul.f32 %v8604, %v8644
  %v8670 = vmul.f32 %v8605, %v8644
  %v8671 = vmul.f32 %v8606, %v8644
  %v8672 = vmul.f32 %v8607, %v8644
  %v8673 = vmul.f32 %v8608, %v8644
  %v8674 = vmul.f32 %v8609, %v8644
  %v8675 = vmul.f32 %v8610, %v8644
  %v8676 = vmul.f32 %v8611, %v8644
  %v8677 = vmul.f32 %v8612, %v8644
  %v8678 = vmul.f32 %v8613, %v8644
  %v8679 = vmul.f32 %v8614, %v8644
  %v8680 = vmul.f32 %v8615, %v8644
  %v8681 = vmul.f32 %v8616, %v8644
  %v8682 = vmul.f32 %v8617, %v8644
  %v8683 = vmul.f32 %v8618, %v8644
  %v8684 = vmul.f32 %v8619, %v8644
  %v8685 = vmul.f32 %v8620, %v8644
  %v8686 = vmul.f32 %v8621, %v8644
  %v8687 = vmul.f32 %v8622, %v8644
  %v8688 = vmul.f32 %v8623, %v8644
  %v8689 = vmul.f32 %v8624, %v8644
  %v8690 = vmul.f32 %v8625, %v8644
  %v8691 = vmul.f32 %v8626, %v8644
  %v8692 = vmul.f32 %v8627, %v8644
  %v8693 = vmul.f32 %v8628, %v8644
  %v8694 = vmul.f32 %v8629, %v8644
  %v8695 = vmul.f32 %v8630, %v8644
  %v8696 = vmul.f32 %v8631, %v8644
  %v8697 = vmul.f32 %v8632, %v8644
  %v8698 = vmul.f32 %v8633, %v8644
  %v8699 = vmul.f32 %v8634, %v8644
  %v8700 = vmul.f32 %v8635, %v8644
  %v8701 = vmul.f32 %v8636, %v8644
  %v8702 = vmul.f32 %v8637, %v8644
  %v8703 = vmul.f32 %v8638, %v8644
  %v8704 = vmul.f32 %v8639, %v8644
  %v8705 = vmul.f32 %v8640, %v8644
  %v8706 = vmul.f32 %v8641, %v8644
  %v8707 = vmul.f32 %v8642, %v8644
  %v8708 = vmul.f32 %v8643, %v8644
  %v8709 = vadd.f32 %v8516, %v8645
  %v8710 = vadd.f32 %v8517, %v8646
  %v8711 = vadd.f32 %v8518, %v8647
  %v8712 = vadd.f32 %v8519, %v8648
  %v8713 = vadd.f32 %v8520, %v8649
  %v8714 = vadd.f32 %v8521, %v8650
  %v8715 = vadd.f32 %v8522, %v8651
  %v8716 = vadd.f32 %v8523, %v8652
  %v8717 = vadd.f32 %v8524, %v8653
  %v8718 = vadd.f32 %v8525, %v8654
  %v8719 = vadd.f32 %v8526, %v8655
  %v8720 = vadd.f32 %v8527, %v8656
  %v8721 = vadd.f32 %v8528, %v8657
  %v8722 = vadd.f32 %v8529, %v8658
  %v8723 = vadd.f32 %v8530, %v8659
  %v8724 = vadd.f32 %v8531, %v8660
  %v8725 = vadd.f32 %v8532, %v8661
  %v8726 = vadd.f32 %v8533, %v8662
  %v8727 = vadd.f32 %v8534, %v8663
  %v8728 = vadd.f32 %v8535, %v8664
  %v8729 = vadd.f32 %v8536, %v8665
  %v8730 = vadd.f32 %v8537, %v8666
  %v8731 = vadd.f32 %v8538, %v8667
  %v8732 = vadd.f32 %v8539, %v8668
  %v8733 = vadd.f32 %v8540, %v8669
  %v8734 = vadd.f32 %v8541, %v8670
  %v8735 = vadd.f32 %v8542, %v8671
  %v8736 = vadd.f32 %v8543, %v8672
  %v8737 = vadd.f32 %v8544, %v8673
  %v8738 = vadd.f32 %v8545, %v8674
  %v8739 = vadd.f32 %v8546, %v8675
  %v8740 = vadd.f32 %v8547, %v8676
  %v8741 = vadd.f32 %v8548, %v8677
  %v8742 = vadd.f32 %v8549, %v8678
  %v8743 = vadd.f32 %v8550, %v8679
  %v8744 = vadd.f32 %v8551, %v8680
  %v8745 = vadd.f32 %v8552, %v8681
  %v8746 = vadd.f32 %v8553, %v8682
  %v8747 = vadd.f32 %v8554, %v8683
  %v8748 = vadd.f32 %v8555, %v8684
  %v8749 = vadd.f32 %v8556, %v8685
  %v8750 = vadd.f32 %v8557, %v8686
  %v8751 = vadd.f32 %v8558, %v8687
  %v8752 = vadd.f32 %v8559, %v8688
  %v8753 = vadd.f32 %v8560, %v8689
  %v8754 = vadd.f32 %v8561, %v8690
  %v8755 = vadd.f32 %v8562, %v8691
  %v8756 = vadd.f32 %v8563, %v8692
  %v8757 = vadd.f32 %v8564, %v8693
  %v8758 = vadd.f32 %v8565, %v8694
  %v8759 = vadd.f32 %v8566, %v8695
  %v8760 = vadd.f32 %v8567, %v8696
  %v8761 = vadd.f32 %v8568, %v8697
  %v8762 = vadd.f32 %v8569, %v8698
  %v8763 = vadd.f32 %v8570, %v8699
  %v8764 = vadd.f32 %v8571, %v8700
  %v8765 = vadd.f32 %v8572, %v8701
  %v8766 = vadd.f32 %v8573, %v8702
  %v8767 = vadd.f32 %v8574, %v8703
  %v8768 = vadd.f32 %v8575, %v8704
  %v8769 = vadd.f32 %v8576, %v8705
  %v8770 = vadd.f32 %v8577, %v8706
  %v8771 = vadd.f32 %v8578, %v8707
  %v8772 = vadd.f32 %v8579, %v8708
  %s8773 = scalar_lea.vmem [#allocation5], 48
  %v8774 = vld [vmem:[%s8773] sm:$0xff]
  %v8775 = vld [vmem:[%s8773 + $0x8] sm:$0xff]
  %v8776 = vld [vmem:[%s8773 + $0x18] sm:$0xff]
  %v8777 = vld [vmem:[%s8773 + $0x20] sm:$0xff]
  %v8778 = vld [vmem:[%s8773 + $0x30] sm:$0xff]
  %v8779 = vld [vmem:[%s8773 + $0x38] sm:$0xff]
  %v8780 = vld [vmem:[%s8773 + $0x48] sm:$0xff]
  %v8781 = vld [vmem:[%s8773 + $0x50] sm:$0xff]
  %v8782 = vld [vmem:[%s8773 + $0x60] sm:$0xff]
  %v8783 = vld [vmem:[%s8773 + $0x68] sm:$0xff]
  %v8784 = vld [vmem:[%s8773 + $0x78] sm:$0xff]
  %v8785 = vld [vmem:[%s8773 + $0x80] sm:$0xff]
  %v8786 = vld [vmem:[%s8773 + $0x90] sm:$0xff]
  %v8787 = vld [vmem:[%s8773 + $0x98] sm:$0xff]
  %v8788 = vld [vmem:[%s8773 + $0xa8] sm:$0xff]
  %v8789 = vld [vmem:[%s8773 + $0xb0] sm:$0xff]
  %v8790 = vld [vmem:[%s8773 + $0xc0] sm:$0xff]
  %v8791 = vld [vmem:[%s8773 + $0xc8] sm:$0xff]
  %v8792 = vld [vmem:[%s8773 + $0xd8] sm:$0xff]
  %v8793 = vld [vmem:[%s8773 + $0xe0] sm:$0xff]
  %v8794 = vld [vmem:[%s8773 + $0xf0] sm:$0xff]
  %v8795 = vld [vmem:[%s8773 + $0xf8] sm:$0xff]
  %v8796 = vld [vmem:[%s8773 + $0x108] sm:$0xff]
  %v8797 = vld [vmem:[%s8773 + $0x110] sm:$0xff]
  %v8798 = vld [vmem:[%s8773 + $0x120] sm:$0xff]
  %v8799 = vld [vmem:[%s8773 + $0x128] sm:$0xff]
  %v8800 = vld [vmem:[%s8773 + $0x138] sm:$0xff]
  %v8801 = vld [vmem:[%s8773 + $0x140] sm:$0xff]
  %v8802 = vld [vmem:[%s8773 + $0x150] sm:$0xff]
  %v8803 = vld [vmem:[%s8773 + $0x158] sm:$0xff]
  %v8804 = vld [vmem:[%s8773 + $0x168] sm:$0xff]
  %v8805 = vld [vmem:[%s8773 + $0x170] sm:$0xff]
  %v8806 = vld [vmem:[%s8773 + $0x1b0] sm:$0xff]
  %v8807 = vld [vmem:[%s8773 + $0x1b8] sm:$0xff]
  %v8808 = vld [vmem:[%s8773 + $0x1c8] sm:$0xff]
  %v8809 = vld [vmem:[%s8773 + $0x1d0] sm:$0xff]
  %v8810 = vld [vmem:[%s8773 + $0x1e0] sm:$0xff]
  %v8811 = vld [vmem:[%s8773 + $0x1e8] sm:$0xff]
  %v8812 = vld [vmem:[%s8773 + $0x1f8] sm:$0xff]
  %v8813 = vld [vmem:[%s8773 + $0x200] sm:$0xff]
  %v8814 = vld [vmem:[%s8773 + $0x210] sm:$0xff]
  %v8815 = vld [vmem:[%s8773 + $0x218] sm:$0xff]
  %v8816 = vld [vmem:[%s8773 + $0x228] sm:$0xff]
  %v8817 = vld [vmem:[%s8773 + $0x230] sm:$0xff]
  %v8818 = vld [vmem:[%s8773 + $0x240] sm:$0xff]
  %v8819 = vld [vmem:[%s8773 + $0x248] sm:$0xff]
  %v8820 = vld [vmem:[%s8773 + $0x258] sm:$0xff]
  %v8821 = vld [vmem:[%s8773 + $0x260] sm:$0xff]
  %v8822 = vld [vmem:[%s8773 + $0x270] sm:$0xff]
  %v8823 = vld [vmem:[%s8773 + $0x278] sm:$0xff]
  %v8824 = vld [vmem:[%s8773 + $0x288] sm:$0xff]
  %v8825 = vld [vmem:[%s8773 + $0x290] sm:$0xff]
  %v8826 = vld [vmem:[%s8773 + $0x2a0] sm:$0xff]
  %v8827 = vld [vmem:[%s8773 + $0x2a8] sm:$0xff]
  %v8828 = vld [vmem:[%s8773 + $0x2b8] sm:$0xff]
  %v8829 = vld [vmem:[%s8773 + $0x2c0] sm:$0xff]
  %v8830 = vld [vmem:[%s8773 + $0x2d0] sm:$0xff]
  %v8831 = vld [vmem:[%s8773 + $0x2d8] sm:$0xff]
  %v8832 = vld [vmem:[%s8773 + $0x2e8] sm:$0xff]
  %v8833 = vld [vmem:[%s8773 + $0x2f0] sm:$0xff]
  %v8834 = vld [vmem:[%s8773 + $0x300] sm:$0xff]
  %v8835 = vld [vmem:[%s8773 + $0x308] sm:$0xff]
  %v8836 = vld [vmem:[%s8773 + $0x318] sm:$0xff]
  %v8837 = vld [vmem:[%s8773 + $0x320] sm:$0xff]
  %v8838 = vperm.slane %v7613, 6
  %v8839 = vmul.f32 %v8774, %v8838
  %v8840 = vmul.f32 %v8775, %v8838
  %v8841 = vmul.f32 %v8776, %v8838
  %v8842 = vmul.f32 %v8777, %v8838
  %v8843 = vmul.f32 %v8778, %v8838
  %v8844 = vmul.f32 %v8779, %v8838
  %v8845 = vmul.f32 %v8780, %v8838
  %v8846 = vmul.f32 %v8781, %v8838
  %v8847 = vmul.f32 %v8782, %v8838
  %v8848 = vmul.f32 %v8783, %v8838
  %v8849 = vmul.f32 %v8784, %v8838
  %v8850 = vmul.f32 %v8785, %v8838
  %v8851 = vmul.f32 %v8786, %v8838
  %v8852 = vmul.f32 %v8787, %v8838
  %v8853 = vmul.f32 %v8788, %v8838
  %v8854 = vmul.f32 %v8789, %v8838
  %v8855 = vmul.f32 %v8790, %v8838
  %v8856 = vmul.f32 %v8791, %v8838
  %v8857 = vmul.f32 %v8792, %v8838
  %v8858 = vmul.f32 %v8793, %v8838
  %v8859 = vmul.f32 %v8794, %v8838
  %v8860 = vmul.f32 %v8795, %v8838
  %v8861 = vmul.f32 %v8796, %v8838
  %v8862 = vmul.f32 %v8797, %v8838
  %v8863 = vmul.f32 %v8798, %v8838
  %v8864 = vmul.f32 %v8799, %v8838
  %v8865 = vmul.f32 %v8800, %v8838
  %v8866 = vmul.f32 %v8801, %v8838
  %v8867 = vmul.f32 %v8802, %v8838
  %v8868 = vmul.f32 %v8803, %v8838
  %v8869 = vmul.f32 %v8804, %v8838
  %v8870 = vmul.f32 %v8805, %v8838
  %v8871 = vmul.f32 %v8806, %v8838
  %v8872 = vmul.f32 %v8807, %v8838
  %v8873 = vmul.f32 %v8808, %v8838
  %v8874 = vmul.f32 %v8809, %v8838
  %v8875 = vmul.f32 %v8810, %v8838
  %v8876 = vmul.f32 %v8811, %v8838
  %v8877 = vmul.f32 %v8812, %v8838
  %v8878 = vmul.f32 %v8813, %v8838
  %v8879 = vmul.f32 %v8814, %v8838
  %v8880 = vmul.f32 %v8815, %v8838
  %v8881 = vmul.f32 %v8816, %v8838
  %v8882 = vmul.f32 %v8817, %v8838
  %v8883 = vmul.f32 %v8818, %v8838
  %v8884 = vmul.f32 %v8819, %v8838
  %v8885 = vmul.f32 %v8820, %v8838
  %v8886 = vmul.f32 %v8821, %v8838
  %v8887 = vmul.f32 %v8822, %v8838
  %v8888 = vmul.f32 %v8823, %v8838
  %v8889 = vmul.f32 %v8824, %v8838
  %v8890 = vmul.f32 %v8825, %v8838
  %v8891 = vmul.f32 %v8826, %v8838
  %v8892 = vmul.f32 %v8827, %v8838
  %v8893 = vmul.f32 %v8828, %v8838
  %v8894 = vmul.f32 %v8829, %v8838
  %v8895 = vmul.f32 %v8830, %v8838
  %v8896 = vmul.f32 %v8831, %v8838
  %v8897 = vmul.f32 %v8832, %v8838
  %v8898 = vmul.f32 %v8833, %v8838
  %v8899 = vmul.f32 %v8834, %v8838
  %v8900 = vmul.f32 %v8835, %v8838
  %v8901 = vmul.f32 %v8836, %v8838
  %v8902 = vmul.f32 %v8837, %v8838
  %v8903 = vadd.f32 %v8709, %v8839
  %v8904 = vadd.f32 %v8710, %v8840
  %v8905 = vadd.f32 %v8711, %v8841
  %v8906 = vadd.f32 %v8712, %v8842
  %v8907 = vadd.f32 %v8713, %v8843
  %v8908 = vadd.f32 %v8714, %v8844
  %v8909 = vadd.f32 %v8715, %v8845
  %v8910 = vadd.f32 %v8716, %v8846
  %v8911 = vadd.f32 %v8717, %v8847
  %v8912 = vadd.f32 %v8718, %v8848
  %v8913 = vadd.f32 %v8719, %v8849
  %v8914 = vadd.f32 %v8720, %v8850
  %v8915 = vadd.f32 %v8721, %v8851
  %v8916 = vadd.f32 %v8722, %v8852
  %v8917 = vadd.f32 %v8723, %v8853
  %v8918 = vadd.f32 %v8724, %v8854
  %v8919 = vadd.f32 %v8725, %v8855
  %v8920 = vadd.f32 %v8726, %v8856
  %v8921 = vadd.f32 %v8727, %v8857
  %v8922 = vadd.f32 %v8728, %v8858
  %v8923 = vadd.f32 %v8729, %v8859
  %v8924 = vadd.f32 %v8730, %v8860
  %v8925 = vadd.f32 %v8731, %v8861
  %v8926 = vadd.f32 %v8732, %v8862
  %v8927 = vadd.f32 %v8733, %v8863
  %v8928 = vadd.f32 %v8734, %v8864
  %v8929 = vadd.f32 %v8735, %v8865
  %v8930 = vadd.f32 %v8736, %v8866
  %v8931 = vadd.f32 %v8737, %v8867
  %v8932 = vadd.f32 %v8738, %v8868
  %v8933 = vadd.f32 %v8739, %v8869
  %v8934 = vadd.f32 %v8740, %v8870
  %v8935 = vadd.f32 %v8741, %v8871
  %v8936 = vadd.f32 %v8742, %v8872
  %v8937 = vadd.f32 %v8743, %v8873
  %v8938 = vadd.f32 %v8744, %v8874
  %v8939 = vadd.f32 %v8745, %v8875
  %v8940 = vadd.f32 %v8746, %v8876
  %v8941 = vadd.f32 %v8747, %v8877
  %v8942 = vadd.f32 %v8748, %v8878
  %v8943 = vadd.f32 %v8749, %v8879
  %v8944 = vadd.f32 %v8750, %v8880
  %v8945 = vadd.f32 %v8751, %v8881
  %v8946 = vadd.f32 %v8752, %v8882
  %v8947 = vadd.f32 %v8753, %v8883
  %v8948 = vadd.f32 %v8754, %v8884
  %v8949 = vadd.f32 %v8755, %v8885
  %v8950 = vadd.f32 %v8756, %v8886
  %v8951 = vadd.f32 %v8757, %v8887
  %v8952 = vadd.f32 %v8758, %v8888
  %v8953 = vadd.f32 %v8759, %v8889
  %v8954 = vadd.f32 %v8760, %v8890
  %v8955 = vadd.f32 %v8761, %v8891
  %v8956 = vadd.f32 %v8762, %v8892
  %v8957 = vadd.f32 %v8763, %v8893
  %v8958 = vadd.f32 %v8764, %v8894
  %v8959 = vadd.f32 %v8765, %v8895
  %v8960 = vadd.f32 %v8766, %v8896
  %v8961 = vadd.f32 %v8767, %v8897
  %v8962 = vadd.f32 %v8768, %v8898
  %v8963 = vadd.f32 %v8769, %v8899
  %v8964 = vadd.f32 %v8770, %v8900
  %v8965 = vadd.f32 %v8771, %v8901
  %v8966 = vadd.f32 %v8772, %v8902
  %v8967 = vld [vmem:[%s8773 + $0x1] sm:$0xff]
  %v8968 = vld [vmem:[%s8773 + $0x9] sm:$0xff]
  %v8969 = vld [vmem:[%s8773 + $0x19] sm:$0xff]
  %v8970 = vld [vmem:[%s8773 + $0x21] sm:$0xff]
  %v8971 = vld [vmem:[%s8773 + $0x31] sm:$0xff]
  %v8972 = vld [vmem:[%s8773 + $0x39] sm:$0xff]
  %v8973 = vld [vmem:[%s8773 + $0x49] sm:$0xff]
  %v8974 = vld [vmem:[%s8773 + $0x51] sm:$0xff]
  %v8975 = vld [vmem:[%s8773 + $0x61] sm:$0xff]
  %v8976 = vld [vmem:[%s8773 + $0x69] sm:$0xff]
  %v8977 = vld [vmem:[%s8773 + $0x79] sm:$0xff]
  %v8978 = vld [vmem:[%s8773 + $0x81] sm:$0xff]
  %v8979 = vld [vmem:[%s8773 + $0x91] sm:$0xff]
  %v8980 = vld [vmem:[%s8773 + $0x99] sm:$0xff]
  %v8981 = vld [vmem:[%s8773 + $0xa9] sm:$0xff]
  %v8982 = vld [vmem:[%s8773 + $0xb1] sm:$0xff]
  %v8983 = vld [vmem:[%s8773 + $0xc1] sm:$0xff]
  %v8984 = vld [vmem:[%s8773 + $0xc9] sm:$0xff]
  %v8985 = vld [vmem:[%s8773 + $0xd9] sm:$0xff]
  %v8986 = vld [vmem:[%s8773 + $0xe1] sm:$0xff]
  %v8987 = vld [vmem:[%s8773 + $0xf1] sm:$0xff]
  %v8988 = vld [vmem:[%s8773 + $0xf9] sm:$0xff]
  %v8989 = vld [vmem:[%s8773 + $0x109] sm:$0xff]
  %v8990 = vld [vmem:[%s8773 + $0x111] sm:$0xff]
  %v8991 = vld [vmem:[%s8773 + $0x121] sm:$0xff]
  %v8992 = vld [vmem:[%s8773 + $0x129] sm:$0xff]
  %v8993 = vld [vmem:[%s8773 + $0x139] sm:$0xff]
  %v8994 = vld [vmem:[%s8773 + $0x141] sm:$0xff]
  %v8995 = vld [vmem:[%s8773 + $0x151] sm:$0xff]
  %v8996 = vld [vmem:[%s8773 + $0x159] sm:$0xff]
  %v8997 = vld [vmem:[%s8773 + $0x169] sm:$0xff]
  %v8998 = vld [vmem:[%s8773 + $0x171] sm:$0xff]
  %v8999 = vld [vmem:[%s8773 + $0x1b1] sm:$0xff]
  %v9000 = vld [vmem:[%s8773 + $0x1b9] sm:$0xff]
  %v9001 = vld [vmem:[%s8773 + $0x1c9] sm:$0xff]
  %v9002 = vld [vmem:[%s8773 + $0x1d1] sm:$0xff]
  %v9003 = vld [vmem:[%s8773 + $0x1e1] sm:$0xff]
  %v9004 = vld [vmem:[%s8773 + $0x1e9] sm:$0xff]
  %v9005 = vld [vmem:[%s8773 + $0x1f9] sm:$0xff]
  %v9006 = vld [vmem:[%s8773 + $0x201] sm:$0xff]
  %v9007 = vld [vmem:[%s8773 + $0x211] sm:$0xff]
  %v9008 = vld [vmem:[%s8773 + $0x219] sm:$0xff]
  %v9009 = vld [vmem:[%s8773 + $0x229] sm:$0xff]
  %v9010 = vld [vmem:[%s8773 + $0x231] sm:$0xff]
  %v9011 = vld [vmem:[%s8773 + $0x241] sm:$0xff]
  %v9012 = vld [vmem:[%s8773 + $0x249] sm:$0xff]
  %v9013 = vld [vmem:[%s8773 + $0x259] sm:$0xff]
  %v9014 = vld [vmem:[%s8773 + $0x261] sm:$0xff]
  %v9015 = vld [vmem:[%s8773 + $0x271] sm:$0xff]
  %v9016 = vld [vmem:[%s8773 + $0x279] sm:$0xff]
  %v9017 = vld [vmem:[%s8773 + $0x289] sm:$0xff]
  %v9018 = vld [vmem:[%s8773 + $0x291] sm:$0xff]
  %v9019 = vld [vmem:[%s8773 + $0x2a1] sm:$0xff]
  %v9020 = vld [vmem:[%s8773 + $0x2a9] sm:$0xff]
  %v9021 = vld [vmem:[%s8773 + $0x2b9] sm:$0xff]
  %v9022 = vld [vmem:[%s8773 + $0x2c1] sm:$0xff]
  %v9023 = vld [vmem:[%s8773 + $0x2d1] sm:$0xff]
  %v9024 = vld [vmem:[%s8773 + $0x2d9] sm:$0xff]
  %v9025 = vld [vmem:[%s8773 + $0x2e9] sm:$0xff]
  %v9026 = vld [vmem:[%s8773 + $0x2f1] sm:$0xff]
  %v9027 = vld [vmem:[%s8773 + $0x301] sm:$0xff]
  %v9028 = vld [vmem:[%s8773 + $0x309] sm:$0xff]
  %v9029 = vld [vmem:[%s8773 + $0x319] sm:$0xff]
  %v9030 = vld [vmem:[%s8773 + $0x321] sm:$0xff]
  %v9031 = vperm.slane %v7613, 7
  %v9032 = vmul.f32 %v8967, %v9031
  %v9033 = vmul.f32 %v8968, %v9031
  %v9034 = vmul.f32 %v8969, %v9031
  %v9035 = vmul.f32 %v8970, %v9031
  %v9036 = vmul.f32 %v8971, %v9031
  %v9037 = vmul.f32 %v8972, %v9031
  %v9038 = vmul.f32 %v8973, %v9031
  %v9039 = vmul.f32 %v8974, %v9031
  %v9040 = vmul.f32 %v8975, %v9031
  %v9041 = vmul.f32 %v8976, %v9031
  %v9042 = vmul.f32 %v8977, %v9031
  %v9043 = vmul.f32 %v8978, %v9031
  %v9044 = vmul.f32 %v8979, %v9031
  %v9045 = vmul.f32 %v8980, %v9031
  %v9046 = vmul.f32 %v8981, %v9031
  %v9047 = vmul.f32 %v8982, %v9031
  %v9048 = vmul.f32 %v8983, %v9031
  %v9049 = vmul.f32 %v8984, %v9031
  %v9050 = vmul.f32 %v8985, %v9031
  %v9051 = vmul.f32 %v8986, %v9031
  %v9052 = vmul.f32 %v8987, %v9031
  %v9053 = vmul.f32 %v8988, %v9031
  %v9054 = vmul.f32 %v8989, %v9031
  %v9055 = vmul.f32 %v8990, %v9031
  %v9056 = vmul.f32 %v8991, %v9031
  %v9057 = vmul.f32 %v8992, %v9031
  %v9058 = vmul.f32 %v8993, %v9031
  %v9059 = vmul.f32 %v8994, %v9031
  %v9060 = vmul.f32 %v8995, %v9031
  %v9061 = vmul.f32 %v8996, %v9031
  %v9062 = vmul.f32 %v8997, %v9031
  %v9063 = vmul.f32 %v8998, %v9031
  %v9064 = vmul.f32 %v8999, %v9031
  %v9065 = vmul.f32 %v9000, %v9031
  %v9066 = vmul.f32 %v9001, %v9031
  %v9067 = vmul.f32 %v9002, %v9031
  %v9068 = vmul.f32 %v9003, %v9031
  %v9069 = vmul.f32 %v9004, %v9031
  %v9070 = vmul.f32 %v9005, %v9031
  %v9071 = vmul.f32 %v9006, %v9031
  %v9072 = vmul.f32 %v9007, %v9031
  %v9073 = vmul.f32 %v9008, %v9031
  %v9074 = vmul.f32 %v9009, %v9031
  %v9075 = vmul.f32 %v9010, %v9031
  %v9076 = vmul.f32 %v9011, %v9031
  %v9077 = vmul.f32 %v9012, %v9031
  %v9078 = vmul.f32 %v9013, %v9031
  %v9079 = vmul.f32 %v9014, %v9031
  %v9080 = vmul.f32 %v9015, %v9031
  %v9081 = vmul.f32 %v9016, %v9031
  %v9082 = vmul.f32 %v9017, %v9031
  %v9083 = vmul.f32 %v9018, %v9031
  %v9084 = vmul.f32 %v9019, %v9031
  %v9085 = vmul.f32 %v9020, %v9031
  %v9086 = vmul.f32 %v9021, %v9031
  %v9087 = vmul.f32 %v9022, %v9031
  %v9088 = vmul.f32 %v9023, %v9031
  %v9089 = vmul.f32 %v9024, %v9031
  %v9090 = vmul.f32 %v9025, %v9031
  %v9091 = vmul.f32 %v9026, %v9031
  %v9092 = vmul.f32 %v9027, %v9031
  %v9093 = vmul.f32 %v9028, %v9031
  %v9094 = vmul.f32 %v9029, %v9031
  %v9095 = vmul.f32 %v9030, %v9031
  %v9096 = vadd.f32 %v8903, %v9032
  %v9097 = vadd.f32 %v8904, %v9033
  %v9098 = vadd.f32 %v8905, %v9034
  %v9099 = vadd.f32 %v8906, %v9035
  %v9100 = vadd.f32 %v8907, %v9036
  %v9101 = vadd.f32 %v8908, %v9037
  %v9102 = vadd.f32 %v8909, %v9038
  %v9103 = vadd.f32 %v8910, %v9039
  %v9104 = vadd.f32 %v8911, %v9040
  %v9105 = vadd.f32 %v8912, %v9041
  %v9106 = vadd.f32 %v8913, %v9042
  %v9107 = vadd.f32 %v8914, %v9043
  %v9108 = vadd.f32 %v8915, %v9044
  %v9109 = vadd.f32 %v8916, %v9045
  %v9110 = vadd.f32 %v8917, %v9046
  %v9111 = vadd.f32 %v8918, %v9047
  %v9112 = vadd.f32 %v8919, %v9048
  %v9113 = vadd.f32 %v8920, %v9049
  %v9114 = vadd.f32 %v8921, %v9050
  %v9115 = vadd.f32 %v8922, %v9051
  %v9116 = vadd.f32 %v8923, %v9052
  %v9117 = vadd.f32 %v8924, %v9053
  %v9118 = vadd.f32 %v8925, %v9054
  %v9119 = vadd.f32 %v8926, %v9055
  %v9120 = vadd.f32 %v8927, %v9056
  %v9121 = vadd.f32 %v8928, %v9057
  %v9122 = vadd.f32 %v8929, %v9058
  %v9123 = vadd.f32 %v8930, %v9059
  %v9124 = vadd.f32 %v8931, %v9060
  %v9125 = vadd.f32 %v8932, %v9061
  %v9126 = vadd.f32 %v8933, %v9062
  %v9127 = vadd.f32 %v8934, %v9063
  %v9128 = vadd.f32 %v8935, %v9064
  %v9129 = vadd.f32 %v8936, %v9065
  %v9130 = vadd.f32 %v8937, %v9066
  %v9131 = vadd.f32 %v8938, %v9067
  %v9132 = vadd.f32 %v8939, %v9068
  %v9133 = vadd.f32 %v8940, %v9069
  %v9134 = vadd.f32 %v8941, %v9070
  %v9135 = vadd.f32 %v8942, %v9071
  %v9136 = vadd.f32 %v8943, %v9072
  %v9137 = vadd.f32 %v8944, %v9073
  %v9138 = vadd.f32 %v8945, %v9074
  %v9139 = vadd.f32 %v8946, %v9075
  %v9140 = vadd.f32 %v8947, %v9076
  %v9141 = vadd.f32 %v8948, %v9077
  %v9142 = vadd.f32 %v8949, %v9078
  %v9143 = vadd.f32 %v8950, %v9079
  %v9144 = vadd.f32 %v8951, %v9080
  %v9145 = vadd.f32 %v8952, %v9081
  %v9146 = vadd.f32 %v8953, %v9082
  %v9147 = vadd.f32 %v8954, %v9083
  %v9148 = vadd.f32 %v8955, %v9084
  %v9149 = vadd.f32 %v8956, %v9085
  %v9150 = vadd.f32 %v8957, %v9086
  %v9151 = vadd.f32 %v8958, %v9087
  %v9152 = vadd.f32 %v8959, %v9088
  %v9153 = vadd.f32 %v8960, %v9089
  %v9154 = vadd.f32 %v8961, %v9090
  %v9155 = vadd.f32 %v8962, %v9091
  %v9156 = vadd.f32 %v8963, %v9092
  %v9157 = vadd.f32 %v8964, %v9093
  %v9158 = vadd.f32 %v8965, %v9094
  %v9159 = vadd.f32 %v8966, %v9095
  %v9160 = vld [vmem:[%s8773 + $0x2] sm:$0xff]
  %v9161 = vld [vmem:[%s8773 + $0xa] sm:$0xff]
  %v9162 = vld [vmem:[%s8773 + $0x1a] sm:$0xff]
  %v9163 = vld [vmem:[%s8773 + $0x22] sm:$0xff]
  %v9164 = vld [vmem:[%s8773 + $0x32] sm:$0xff]
  %v9165 = vld [vmem:[%s8773 + $0x3a] sm:$0xff]
  %v9166 = vld [vmem:[%s8773 + $0x4a] sm:$0xff]
  %v9167 = vld [vmem:[%s8773 + $0x52] sm:$0xff]
  %v9168 = vld [vmem:[%s8773 + $0x62] sm:$0xff]
  %v9169 = vld [vmem:[%s8773 + $0x6a] sm:$0xff]
  %v9170 = vld [vmem:[%s8773 + $0x7a] sm:$0xff]
  %v9171 = vld [vmem:[%s8773 + $0x82] sm:$0xff]
  %v9172 = vld [vmem:[%s8773 + $0x92] sm:$0xff]
  %v9173 = vld [vmem:[%s8773 + $0x9a] sm:$0xff]
  %v9174 = vld [vmem:[%s8773 + $0xaa] sm:$0xff]
  %v9175 = vld [vmem:[%s8773 + $0xb2] sm:$0xff]
  %v9176 = vld [vmem:[%s8773 + $0xc2] sm:$0xff]
  %v9177 = vld [vmem:[%s8773 + $0xca] sm:$0xff]
  %v9178 = vld [vmem:[%s8773 + $0xda] sm:$0xff]
  %v9179 = vld [vmem:[%s8773 + $0xe2] sm:$0xff]
  %v9180 = vld [vmem:[%s8773 + $0xf2] sm:$0xff]
  %v9181 = vld [vmem:[%s8773 + $0xfa] sm:$0xff]
  %v9182 = vld [vmem:[%s8773 + $0x10a] sm:$0xff]
  %v9183 = vld [vmem:[%s8773 + $0x112] sm:$0xff]
  %v9184 = vld [vmem:[%s8773 + $0x122] sm:$0xff]
  %v9185 = vld [vmem:[%s8773 + $0x12a] sm:$0xff]
  %v9186 = vld [vmem:[%s8773 + $0x13a] sm:$0xff]
  %v9187 = vld [vmem:[%s8773 + $0x142] sm:$0xff]
  %v9188 = vld [vmem:[%s8773 + $0x152] sm:$0xff]
  %v9189 = vld [vmem:[%s8773 + $0x15a] sm:$0xff]
  %v9190 = vld [vmem:[%s8773 + $0x16a] sm:$0xff]
  %v9191 = vld [vmem:[%s8773 + $0x172] sm:$0xff]
  %v9192 = vld [vmem:[%s8773 + $0x1b2] sm:$0xff]
  %v9193 = vld [vmem:[%s8773 + $0x1ba] sm:$0xff]
  %v9194 = vld [vmem:[%s8773 + $0x1ca] sm:$0xff]
  %v9195 = vld [vmem:[%s8773 + $0x1d2] sm:$0xff]
  %v9196 = vld [vmem:[%s8773 + $0x1e2] sm:$0xff]
  %v9197 = vld [vmem:[%s8773 + $0x1ea] sm:$0xff]
  %v9198 = vld [vmem:[%s8773 + $0x1fa] sm:$0xff]
  %v9199 = vld [vmem:[%s8773 + $0x202] sm:$0xff]
  %v9200 = vld [vmem:[%s8773 + $0x212] sm:$0xff]
  %v9201 = vld [vmem:[%s8773 + $0x21a] sm:$0xff]
  %v9202 = vld [vmem:[%s8773 + $0x22a] sm:$0xff]
  %v9203 = vld [vmem:[%s8773 + $0x232] sm:$0xff]
  %v9204 = vld [vmem:[%s8773 + $0x242] sm:$0xff]
  %v9205 = vld [vmem:[%s8773 + $0x24a] sm:$0xff]
  %v9206 = vld [vmem:[%s8773 + $0x25a] sm:$0xff]
  %v9207 = vld [vmem:[%s8773 + $0x262] sm:$0xff]
  %v9208 = vld [vmem:[%s8773 + $0x272] sm:$0xff]
  %v9209 = vld [vmem:[%s8773 + $0x27a] sm:$0xff]
  %v9210 = vld [vmem:[%s8773 + $0x28a] sm:$0xff]
  %v9211 = vld [vmem:[%s8773 + $0x292] sm:$0xff]
  %v9212 = vld [vmem:[%s8773 + $0x2a2] sm:$0xff]
  %v9213 = vld [vmem:[%s8773 + $0x2aa] sm:$0xff]
  %v9214 = vld [vmem:[%s8773 + $0x2ba] sm:$0xff]
  %v9215 = vld [vmem:[%s8773 + $0x2c2] sm:$0xff]
  %v9216 = vld [vmem:[%s8773 + $0x2d2] sm:$0xff]
  %v9217 = vld [vmem:[%s8773 + $0x2da] sm:$0xff]
  %v9218 = vld [vmem:[%s8773 + $0x2ea] sm:$0xff]
  %v9219 = vld [vmem:[%s8773 + $0x2f2] sm:$0xff]
  %v9220 = vld [vmem:[%s8773 + $0x302] sm:$0xff]
  %v9221 = vld [vmem:[%s8773 + $0x30a] sm:$0xff]
  %v9222 = vld [vmem:[%s8773 + $0x31a] sm:$0xff]
  %v9223 = vld [vmem:[%s8773 + $0x322] sm:$0xff]
  %v9224 = vperm.slane %v7614, 0
  %v9225 = vmul.f32 %v9160, %v9224
  %v9226 = vmul.f32 %v9161, %v9224
  %v9227 = vmul.f32 %v9162, %v9224
  %v9228 = vmul.f32 %v9163, %v9224
  %v9229 = vmul.f32 %v9164, %v9224
  %v9230 = vmul.f32 %v9165, %v9224
  %v9231 = vmul.f32 %v9166, %v9224
  %v9232 = vmul.f32 %v9167, %v9224
  %v9233 = vmul.f32 %v9168, %v9224
  %v9234 = vmul.f32 %v9169, %v9224
  %v9235 = vmul.f32 %v9170, %v9224
  %v9236 = vmul.f32 %v9171, %v9224
  %v9237 = vmul.f32 %v9172, %v9224
  %v9238 = vmul.f32 %v9173, %v9224
  %v9239 = vmul.f32 %v9174, %v9224
  %v9240 = vmul.f32 %v9175, %v9224
  %v9241 = vmul.f32 %v9176, %v9224
  %v9242 = vmul.f32 %v9177, %v9224
  %v9243 = vmul.f32 %v9178, %v9224
  %v9244 = vmul.f32 %v9179, %v9224
  %v9245 = vmul.f32 %v9180, %v9224
  %v9246 = vmul.f32 %v9181, %v9224
  %v9247 = vmul.f32 %v9182, %v9224
  %v9248 = vmul.f32 %v9183, %v9224
  %v9249 = vmul.f32 %v9184, %v9224
  %v9250 = vmul.f32 %v9185, %v9224
  %v9251 = vmul.f32 %v9186, %v9224
  %v9252 = vmul.f32 %v9187, %v9224
  %v9253 = vmul.f32 %v9188, %v9224
  %v9254 = vmul.f32 %v9189, %v9224
  %v9255 = vmul.f32 %v9190, %v9224
  %v9256 = vmul.f32 %v9191, %v9224
  %v9257 = vmul.f32 %v9192, %v9224
  %v9258 = vmul.f32 %v9193, %v9224
  %v9259 = vmul.f32 %v9194, %v9224
  %v9260 = vmul.f32 %v9195, %v9224
  %v9261 = vmul.f32 %v9196, %v9224
  %v9262 = vmul.f32 %v9197, %v9224
  %v9263 = vmul.f32 %v9198, %v9224
  %v9264 = vmul.f32 %v9199, %v9224
  %v9265 = vmul.f32 %v9200, %v9224
  %v9266 = vmul.f32 %v9201, %v9224
  %v9267 = vmul.f32 %v9202, %v9224
  %v9268 = vmul.f32 %v9203, %v9224
  %v9269 = vmul.f32 %v9204, %v9224
  %v9270 = vmul.f32 %v9205, %v9224
  %v9271 = vmul.f32 %v9206, %v9224
  %v9272 = vmul.f32 %v9207, %v9224
  %v9273 = vmul.f32 %v9208, %v9224
  %v9274 = vmul.f32 %v9209, %v9224
  %v9275 = vmul.f32 %v9210, %v9224
  %v9276 = vmul.f32 %v9211, %v9224
  %v9277 = vmul.f32 %v9212, %v9224
  %v9278 = vmul.f32 %v9213, %v9224
  %v9279 = vmul.f32 %v9214, %v9224
  %v9280 = vmul.f32 %v9215, %v9224
  %v9281 = vmul.f32 %v9216, %v9224
  %v9282 = vmul.f32 %v9217, %v9224
  %v9283 = vmul.f32 %v9218, %v9224
  %v9284 = vmul.f32 %v9219, %v9224
  %v9285 = vmul.f32 %v9220, %v9224
  %v9286 = vmul.f32 %v9221, %v9224
  %v9287 = vmul.f32 %v9222, %v9224
  %v9288 = vmul.f32 %v9223, %v9224
  %v9289 = vadd.f32 %v9096, %v9225
  %v9290 = vadd.f32 %v9097, %v9226
  %v9291 = vadd.f32 %v9098, %v9227
  %v9292 = vadd.f32 %v9099, %v9228
  %v9293 = vadd.f32 %v9100, %v9229
  %v9294 = vadd.f32 %v9101, %v9230
  %v9295 = vadd.f32 %v9102, %v9231
  %v9296 = vadd.f32 %v9103, %v9232
  %v9297 = vadd.f32 %v9104, %v9233
  %v9298 = vadd.f32 %v9105, %v9234
  %v9299 = vadd.f32 %v9106, %v9235
  %v9300 = vadd.f32 %v9107, %v9236
  %v9301 = vadd.f32 %v9108, %v9237
  %v9302 = vadd.f32 %v9109, %v9238
  %v9303 = vadd.f32 %v9110, %v9239
  %v9304 = vadd.f32 %v9111, %v9240
  %v9305 = vadd.f32 %v9112, %v9241
  %v9306 = vadd.f32 %v9113, %v9242
  %v9307 = vadd.f32 %v9114, %v9243
  %v9308 = vadd.f32 %v9115, %v9244
  %v9309 = vadd.f32 %v9116, %v9245
  %v9310 = vadd.f32 %v9117, %v9246
  %v9311 = vadd.f32 %v9118, %v9247
  %v9312 = vadd.f32 %v9119, %v9248
  %v9313 = vadd.f32 %v9120, %v9249
  %v9314 = vadd.f32 %v9121, %v9250
  %v9315 = vadd.f32 %v9122, %v9251
  %v9316 = vadd.f32 %v9123, %v9252
  %v9317 = vadd.f32 %v9124, %v9253
  %v9318 = vadd.f32 %v9125, %v9254
  %v9319 = vadd.f32 %v9126, %v9255
  %v9320 = vadd.f32 %v9127, %v9256
  %v9321 = vadd.f32 %v9128, %v9257
  %v9322 = vadd.f32 %v9129, %v9258
  %v9323 = vadd.f32 %v9130, %v9259
  %v9324 = vadd.f32 %v9131, %v9260
  %v9325 = vadd.f32 %v9132, %v9261
  %v9326 = vadd.f32 %v9133, %v9262
  %v9327 = vadd.f32 %v9134, %v9263
  %v9328 = vadd.f32 %v9135, %v9264
  %v9329 = vadd.f32 %v9136, %v9265
  %v9330 = vadd.f32 %v9137, %v9266
  %v9331 = vadd.f32 %v9138, %v9267
  %v9332 = vadd.f32 %v9139, %v9268
  %v9333 = vadd.f32 %v9140, %v9269
  %v9334 = vadd.f32 %v9141, %v9270
  %v9335 = vadd.f32 %v9142, %v9271
  %v9336 = vadd.f32 %v9143, %v9272
  %v9337 = vadd.f32 %v9144, %v9273
  %v9338 = vadd.f32 %v9145, %v9274
  %v9339 = vadd.f32 %v9146, %v9275
  %v9340 = vadd.f32 %v9147, %v9276
  %v9341 = vadd.f32 %v9148, %v9277
  %v9342 = vadd.f32 %v9149, %v9278
  %v9343 = vadd.f32 %v9150, %v9279
  %v9344 = vadd.f32 %v9151, %v9280
  %v9345 = vadd.f32 %v9152, %v9281
  %v9346 = vadd.f32 %v9153, %v9282
  %v9347 = vadd.f32 %v9154, %v9283
  %v9348 = vadd.f32 %v9155, %v9284
  %v9349 = vadd.f32 %v9156, %v9285
  %v9350 = vadd.f32 %v9157, %v9286
  %v9351 = vadd.f32 %v9158, %v9287
  %v9352 = vadd.f32 %v9159, %v9288
  %v9353 = vsel %vm6656, %v9289, 0.0
  %9354 = vadd.xlane.f32.xlu0 %v9353
  %v9355 = vpop.xlane.xlu0 %9354
  %v9356 = vsel %vm6656, %v9290, 0.0
  %9357 = vadd.xlane.f32.xlu0 %v9356
  %v9358 = vpop.xlane.xlu0 %9357
  %v9359 = vsel %vm6656, %v9291, 0.0
  %9360 = vadd.xlane.f32.xlu0 %v9359
  %v9361 = vpop.xlane.xlu0 %9360
  %v9362 = vsel %vm6656, %v9292, 0.0
  %9363 = vadd.xlane.f32.xlu0 %v9362
  %v9364 = vpop.xlane.xlu0 %9363
  %v9365 = vsel %vm6656, %v9293, 0.0
  %9366 = vadd.xlane.f32.xlu0 %v9365
  %v9367 = vpop.xlane.xlu0 %9366
  %v9368 = vsel %vm6656, %v9294, 0.0
  %9369 = vadd.xlane.f32.xlu0 %v9368
  %v9370 = vpop.xlane.xlu0 %9369
  %v9371 = vsel %vm6656, %v9295, 0.0
  %9372 = vadd.xlane.f32.xlu0 %v9371
  %v9373 = vpop.xlane.xlu0 %9372
  %v9374 = vsel %vm6656, %v9296, 0.0
  %9375 = vadd.xlane.f32.xlu0 %v9374
  %v9376 = vpop.xlane.xlu0 %9375
  %v9377 = vsel %vm6656, %v9297, 0.0
  %9378 = vadd.xlane.f32.xlu0 %v9377
  %v9379 = vpop.xlane.xlu0 %9378
  %v9380 = vsel %vm6656, %v9298, 0.0
  %9381 = vadd.xlane.f32.xlu0 %v9380
  %v9382 = vpop.xlane.xlu0 %9381
  %v9383 = vsel %vm6656, %v9299, 0.0
  %9384 = vadd.xlane.f32.xlu0 %v9383
  %v9385 = vpop.xlane.xlu0 %9384
  %v9386 = vsel %vm6656, %v9300, 0.0
  %9387 = vadd.xlane.f32.xlu0 %v9386
  %v9388 = vpop.xlane.xlu0 %9387
  %v9389 = vsel %vm6656, %v9301, 0.0
  %9390 = vadd.xlane.f32.xlu0 %v9389
  %v9391 = vpop.xlane.xlu0 %9390
  %v9392 = vsel %vm6656, %v9302, 0.0
  %9393 = vadd.xlane.f32.xlu0 %v9392
  %v9394 = vpop.xlane.xlu0 %9393
  %v9395 = vsel %vm6656, %v9303, 0.0
  %9396 = vadd.xlane.f32.xlu0 %v9395
  %v9397 = vpop.xlane.xlu0 %9396
  %v9398 = vsel %vm6656, %v9304, 0.0
  %9399 = vadd.xlane.f32.xlu0 %v9398
  %v9400 = vpop.xlane.xlu0 %9399
  %v9401 = vsel %vm6656, %v9305, 0.0
  %9402 = vadd.xlane.f32.xlu0 %v9401
  %v9403 = vpop.xlane.xlu0 %9402
  %v9404 = vsel %vm6656, %v9306, 0.0
  %9405 = vadd.xlane.f32.xlu0 %v9404
  %v9406 = vpop.xlane.xlu0 %9405
  %v9407 = vsel %vm6656, %v9307, 0.0
  %9408 = vadd.xlane.f32.xlu0 %v9407
  %v9409 = vpop.xlane.xlu0 %9408
  %v9410 = vsel %vm6656, %v9308, 0.0
  %9411 = vadd.xlane.f32.xlu0 %v9410
  %v9412 = vpop.xlane.xlu0 %9411
  %v9413 = vsel %vm6656, %v9309, 0.0
  %9414 = vadd.xlane.f32.xlu0 %v9413
  %v9415 = vpop.xlane.xlu0 %9414
  %v9416 = vsel %vm6656, %v9310, 0.0
  %9417 = vadd.xlane.f32.xlu0 %v9416
  %v9418 = vpop.xlane.xlu0 %9417
  %v9419 = vsel %vm6656, %v9311, 0.0
  %9420 = vadd.xlane.f32.xlu0 %v9419
  %v9421 = vpop.xlane.xlu0 %9420
  %v9422 = vsel %vm6656, %v9312, 0.0
  %9423 = vadd.xlane.f32.xlu0 %v9422
  %v9424 = vpop.xlane.xlu0 %9423
  %v9425 = vsel %vm6656, %v9313, 0.0
  %9426 = vadd.xlane.f32.xlu0 %v9425
  %v9427 = vpop.xlane.xlu0 %9426
  %v9428 = vsel %vm6656, %v9314, 0.0
  %9429 = vadd.xlane.f32.xlu0 %v9428
  %v9430 = vpop.xlane.xlu0 %9429
  %v9431 = vsel %vm6656, %v9315, 0.0
  %9432 = vadd.xlane.f32.xlu0 %v9431
  %v9433 = vpop.xlane.xlu0 %9432
  %v9434 = vsel %vm6656, %v9316, 0.0
  %9435 = vadd.xlane.f32.xlu0 %v9434
  %v9436 = vpop.xlane.xlu0 %9435
  %v9437 = vsel %vm6656, %v9317, 0.0
  %9438 = vadd.xlane.f32.xlu0 %v9437
  %v9439 = vpop.xlane.xlu0 %9438
  %v9440 = vsel %vm6656, %v9318, 0.0
  %9441 = vadd.xlane.f32.xlu0 %v9440
  %v9442 = vpop.xlane.xlu0 %9441
  %v9443 = vsel %vm6656, %v9319, 0.0
  %9444 = vadd.xlane.f32.xlu0 %v9443
  %v9445 = vpop.xlane.xlu0 %9444
  %v9446 = vsel %vm6656, %v9320, 0.0
  %9447 = vadd.xlane.f32.xlu0 %v9446
  %v9448 = vpop.xlane.xlu0 %9447
  %v9449 = vsel %vm6656, %v9321, 0.0
  %9450 = vadd.xlane.f32.xlu0 %v9449
  %v9451 = vpop.xlane.xlu0 %9450
  %v9452 = vsel %vm6656, %v9322, 0.0
  %9453 = vadd.xlane.f32.xlu0 %v9452
  %v9454 = vpop.xlane.xlu0 %9453
  %v9455 = vsel %vm6656, %v9323, 0.0
  %9456 = vadd.xlane.f32.xlu0 %v9455
  %v9457 = vpop.xlane.xlu0 %9456
  %v9458 = vsel %vm6656, %v9324, 0.0
  %9459 = vadd.xlane.f32.xlu0 %v9458
  %v9460 = vpop.xlane.xlu0 %9459
  %v9461 = vsel %vm6656, %v9325, 0.0
  %9462 = vadd.xlane.f32.xlu0 %v9461
  %v9463 = vpop.xlane.xlu0 %9462
  %v9464 = vsel %vm6656, %v9326, 0.0
  %9465 = vadd.xlane.f32.xlu0 %v9464
  %v9466 = vpop.xlane.xlu0 %9465
  %v9467 = vsel %vm6656, %v9327, 0.0
  %9468 = vadd.xlane.f32.xlu0 %v9467
  %v9469 = vpop.xlane.xlu0 %9468
  %v9470 = vsel %vm6656, %v9328, 0.0
  %9471 = vadd.xlane.f32.xlu0 %v9470
  %v9472 = vpop.xlane.xlu0 %9471
  %v9473 = vsel %vm6656, %v9329, 0.0
  %9474 = vadd.xlane.f32.xlu0 %v9473
  %v9475 = vpop.xlane.xlu0 %9474
  %v9476 = vsel %vm6656, %v9330, 0.0
  %9477 = vadd.xlane.f32.xlu0 %v9476
  %v9478 = vpop.xlane.xlu0 %9477
  %v9479 = vsel %vm6656, %v9331, 0.0
  %9480 = vadd.xlane.f32.xlu0 %v9479
  %v9481 = vpop.xlane.xlu0 %9480
  %v9482 = vsel %vm6656, %v9332, 0.0
  %9483 = vadd.xlane.f32.xlu0 %v9482
  %v9484 = vpop.xlane.xlu0 %9483
  %v9485 = vsel %vm6656, %v9333, 0.0
  %9486 = vadd.xlane.f32.xlu0 %v9485
  %v9487 = vpop.xlane.xlu0 %9486
  %v9488 = vsel %vm6656, %v9334, 0.0
  %9489 = vadd.xlane.f32.xlu0 %v9488
  %v9490 = vpop.xlane.xlu0 %9489
  %v9491 = vsel %vm6656, %v9335, 0.0
  %9492 = vadd.xlane.f32.xlu0 %v9491
  %v9493 = vpop.xlane.xlu0 %9492
  %v9494 = vsel %vm6656, %v9336, 0.0
  %9495 = vadd.xlane.f32.xlu0 %v9494
  %v9496 = vpop.xlane.xlu0 %9495
  %v9497 = vsel %vm6656, %v9337, 0.0
  %9498 = vadd.xlane.f32.xlu0 %v9497
  %v9499 = vpop.xlane.xlu0 %9498
  %v9500 = vsel %vm6656, %v9338, 0.0
  %9501 = vadd.xlane.f32.xlu0 %v9500
  %v9502 = vpop.xlane.xlu0 %9501
  %v9503 = vsel %vm6656, %v9339, 0.0
  %9504 = vadd.xlane.f32.xlu0 %v9503
  %v9505 = vpop.xlane.xlu0 %9504
  %v9506 = vsel %vm6656, %v9340, 0.0
  %9507 = vadd.xlane.f32.xlu0 %v9506
  %v9508 = vpop.xlane.xlu0 %9507
  %v9509 = vsel %vm6656, %v9341, 0.0
  %9510 = vadd.xlane.f32.xlu0 %v9509
  %v9511 = vpop.xlane.xlu0 %9510
  %v9512 = vsel %vm6656, %v9342, 0.0
  %9513 = vadd.xlane.f32.xlu0 %v9512
  %v9514 = vpop.xlane.xlu0 %9513
  %v9515 = vsel %vm6656, %v9343, 0.0
  %9516 = vadd.xlane.f32.xlu0 %v9515
  %v9517 = vpop.xlane.xlu0 %9516
  %v9518 = vsel %vm6656, %v9344, 0.0
  %9519 = vadd.xlane.f32.xlu0 %v9518
  %v9520 = vpop.xlane.xlu0 %9519
  %v9521 = vsel %vm6656, %v9345, 0.0
  %9522 = vadd.xlane.f32.xlu0 %v9521
  %v9523 = vpop.xlane.xlu0 %9522
  %v9524 = vsel %vm6656, %v9346, 0.0
  %9525 = vadd.xlane.f32.xlu0 %v9524
  %v9526 = vpop.xlane.xlu0 %9525
  %v9527 = vsel %vm6656, %v9347, 0.0
  %9528 = vadd.xlane.f32.xlu0 %v9527
  %v9529 = vpop.xlane.xlu0 %9528
  %v9530 = vsel %vm6656, %v9348, 0.0
  %9531 = vadd.xlane.f32.xlu0 %v9530
  %v9532 = vpop.xlane.xlu0 %9531
  %v9533 = vsel %vm6656, %v9349, 0.0
  %9534 = vadd.xlane.f32.xlu0 %v9533
  %v9535 = vpop.xlane.xlu0 %9534
  %v9536 = vsel %vm6656, %v9350, 0.0
  %9537 = vadd.xlane.f32.xlu0 %v9536
  %v9538 = vpop.xlane.xlu0 %9537
  %v9539 = vsel %vm6656, %v9351, 0.0
  %9540 = vadd.xlane.f32.xlu0 %v9539
  %v9541 = vpop.xlane.xlu0 %9540
  %v9542 = vsel %vm6656, %v9352, 0.0
  %9543 = vadd.xlane.f32.xlu0 %v9542
  %v9544 = vpop.xlane.xlu0 %9543
  %v9545 = vld [vmem:[#allocation9] sm:$0x1]
  %v9547 = vperm.slane %v9545, 0
  %v9549 = vadd.f32 %v9355, %v9547
  %v9550 = vadd.f32 %v9358, %v9547
  %v9551 = vadd.f32 %v9361, %v9547
  %v9552 = vadd.f32 %v9364, %v9547
  %v9553 = vadd.f32 %v9367, %v9547
  %v9554 = vadd.f32 %v9370, %v9547
  %v9555 = vadd.f32 %v9373, %v9547
  %v9556 = vadd.f32 %v9376, %v9547
  %v9557 = vadd.f32 %v9379, %v9547
  %v9558 = vadd.f32 %v9382, %v9547
  %v9559 = vadd.f32 %v9385, %v9547
  %v9560 = vadd.f32 %v9388, %v9547
  %v9561 = vadd.f32 %v9391, %v9547
  %v9562 = vadd.f32 %v9394, %v9547
  %v9563 = vadd.f32 %v9397, %v9547
  %v9564 = vadd.f32 %v9400, %v9547
  %v9565 = vadd.f32 %v9403, %v9547
  %v9566 = vadd.f32 %v9406, %v9547
  %v9567 = vadd.f32 %v9409, %v9547
  %v9568 = vadd.f32 %v9412, %v9547
  %v9569 = vadd.f32 %v9415, %v9547
  %v9570 = vadd.f32 %v9418, %v9547
  %v9571 = vadd.f32 %v9421, %v9547
  %v9572 = vadd.f32 %v9424, %v9547
  %v9573 = vadd.f32 %v9427, %v9547
  %v9574 = vadd.f32 %v9430, %v9547
  %v9575 = vadd.f32 %v9433, %v9547
  %v9576 = vadd.f32 %v9436, %v9547
  %v9577 = vadd.f32 %v9439, %v9547
  %v9578 = vadd.f32 %v9442, %v9547
  %v9579 = vadd.f32 %v9445, %v9547
  %v9580 = vadd.f32 %v9448, %v9547
  %v9581 = vadd.f32 %v9451, %v9547
  %v9582 = vadd.f32 %v9454, %v9547
  %v9583 = vadd.f32 %v9457, %v9547
  %v9584 = vadd.f32 %v9460, %v9547
  %v9585 = vadd.f32 %v9463, %v9547
  %v9586 = vadd.f32 %v9466, %v9547
  %v9587 = vadd.f32 %v9469, %v9547
  %v9588 = vadd.f32 %v9472, %v9547
  %v9589 = vadd.f32 %v9475, %v9547
  %v9590 = vadd.f32 %v9478, %v9547
  %v9591 = vadd.f32 %v9481, %v9547
  %v9592 = vadd.f32 %v9484, %v9547
  %v9593 = vadd.f32 %v9487, %v9547
  %v9594 = vadd.f32 %v9490, %v9547
  %v9595 = vadd.f32 %v9493, %v9547
  %v9596 = vadd.f32 %v9496, %v9547
  %v9597 = vadd.f32 %v9499, %v9547
  %v9598 = vadd.f32 %v9502, %v9547
  %v9599 = vadd.f32 %v9505, %v9547
  %v9600 = vadd.f32 %v9508, %v9547
  %v9601 = vadd.f32 %v9511, %v9547
  %v9602 = vadd.f32 %v9514, %v9547
  %v9603 = vadd.f32 %v9517, %v9547
  %v9604 = vadd.f32 %v9520, %v9547
  %v9605 = vadd.f32 %v9523, %v9547
  %v9606 = vadd.f32 %v9526, %v9547
  %v9607 = vadd.f32 %v9529, %v9547
  %v9608 = vadd.f32 %v9532, %v9547
  %v9609 = vadd.f32 %v9535, %v9547
  %v9610 = vadd.f32 %v9538, %v9547
  %v9611 = vadd.f32 %v9541, %v9547
  %v9612 = vadd.f32 %v9544, %v9547
  %v9613 = vtanh.pop %v9549
  %v9614 = vtanh.pop %v9550
  %v9615 = vtanh.pop %v9551
  %v9616 = vtanh.pop %v9552
  %v9617 = vtanh.pop %v9553
  %v9618 = vtanh.pop %v9554
  %v9619 = vtanh.pop %v9555
  %v9620 = vtanh.pop %v9556
  %v9621 = vtanh.pop %v9557
  %v9622 = vtanh.pop %v9558
  %v9623 = vtanh.pop %v9559
  %v9624 = vtanh.pop %v9560
  %v9625 = vtanh.pop %v9561
  %v9626 = vtanh.pop %v9562
  %v9627 = vtanh.pop %v9563
  %v9628 = vtanh.pop %v9564
  %v9629 = vtanh.pop %v9565
  %v9630 = vtanh.pop %v9566
  %v9631 = vtanh.pop %v9567
  %v9632 = vtanh.pop %v9568
  %v9633 = vtanh.pop %v9569
  %v9634 = vtanh.pop %v9570
  %v9635 = vtanh.pop %v9571
  %v9636 = vtanh.pop %v9572
  %v9637 = vtanh.pop %v9573
  %v9638 = vtanh.pop %v9574
  %v9639 = vtanh.pop %v9575
  %v9640 = vtanh.pop %v9576
  %v9641 = vtanh.pop %v9577
  %v9642 = vtanh.pop %v9578
  %v9643 = vtanh.pop %v9579
  %v9644 = vtanh.pop %v9580
  %v9645 = vtanh.pop %v9581
  %v9646 = vtanh.pop %v9582
  %v9647 = vtanh.pop %v9583
  %v9648 = vtanh.pop %v9584
  %v9649 = vtanh.pop %v9585
  %v9650 = vtanh.pop %v9586
  %v9651 = vtanh.pop %v9587
  %v9652 = vtanh.pop %v9588
  %v9653 = vtanh.pop %v9589
  %v9654 = vtanh.pop %v9590
  %v9655 = vtanh.pop %v9591
  %v9656 = vtanh.pop %v9592
  %v9657 = vtanh.pop %v9593
  %v9658 = vtanh.pop %v9594
  %v9659 = vtanh.pop %v9595
  %v9660 = vtanh.pop %v9596
  %v9661 = vtanh.pop %v9597
  %v9662 = vtanh.pop %v9598
  %v9663 = vtanh.pop %v9599
  %v9664 = vtanh.pop %v9600
  %v9665 = vtanh.pop %v9601
  %v9666 = vtanh.pop %v9602
  %v9667 = vtanh.pop %v9603
  %v9668 = vtanh.pop %v9604
  %v9669 = vtanh.pop %v9605
  %v9670 = vtanh.pop %v9606
  %v9671 = vtanh.pop %v9607
  %v9672 = vtanh.pop %v9608
  %v9673 = vtanh.pop %v9609
  %v9674 = vtanh.pop %v9610
  %v9675 = vtanh.pop %v9611
  %v9676 = vtanh.pop %v9612
  %vm9677 = vcmask 7168
  %9678 = vst.msk [vmem:[%s15] sm:$0xff] %vm9677, %v9613
  %9679 = vst.msk [vmem:[%s15 + $0x8] sm:$0xff] %vm9677, %v9614
  %9680 = vst.msk [vmem:[%s15 + $0x10] sm:$0xff] %vm9677, %v9615
  %9681 = vst.msk [vmem:[%s15 + $0x18] sm:$0xff] %vm9677, %v9616
  %9682 = vst.msk [vmem:[%s15 + $0x20] sm:$0xff] %vm9677, %v9617
  %9683 = vst.msk [vmem:[%s15 + $0x28] sm:$0xff] %vm9677, %v9618
  %9684 = vst.msk [vmem:[%s15 + $0x30] sm:$0xff] %vm9677, %v9619
  %9685 = vst.msk [vmem:[%s15 + $0x38] sm:$0xff] %vm9677, %v9620
  %9686 = vst.msk [vmem:[%s15 + $0x40] sm:$0xff] %vm9677, %v9621
  %9687 = vst.msk [vmem:[%s15 + $0x48] sm:$0xff] %vm9677, %v9622
  %9688 = vst.msk [vmem:[%s15 + $0x50] sm:$0xff] %vm9677, %v9623
  %9689 = vst.msk [vmem:[%s15 + $0x58] sm:$0xff] %vm9677, %v9624
  %9690 = vst.msk [vmem:[%s15 + $0x60] sm:$0xff] %vm9677, %v9625
  %9691 = vst.msk [vmem:[%s15 + $0x68] sm:$0xff] %vm9677, %v9626
  %9692 = vst.msk [vmem:[%s15 + $0x70] sm:$0xff] %vm9677, %v9627
  %9693 = vst.msk [vmem:[%s15 + $0x78] sm:$0xff] %vm9677, %v9628
  %9694 = vst.msk [vmem:[%s15 + $0x80] sm:$0xff] %vm9677, %v9629
  %9695 = vst.msk [vmem:[%s15 + $0x88] sm:$0xff] %vm9677, %v9630
  %9696 = vst.msk [vmem:[%s15 + $0x90] sm:$0xff] %vm9677, %v9631
  %9697 = vst.msk [vmem:[%s15 + $0x98] sm:$0xff] %vm9677, %v9632
  %9698 = vst.msk [vmem:[%s15 + $0xa0] sm:$0xff] %vm9677, %v9633
  %9699 = vst.msk [vmem:[%s15 + $0xa8] sm:$0xff] %vm9677, %v9634
  %9700 = vst.msk [vmem:[%s15 + $0xb0] sm:$0xff] %vm9677, %v9635
  %9701 = vst.msk [vmem:[%s15 + $0xb8] sm:$0xff] %vm9677, %v9636
  %9702 = vst.msk [vmem:[%s15 + $0xc0] sm:$0xff] %vm9677, %v9637
  %9703 = vst.msk [vmem:[%s15 + $0xc8] sm:$0xff] %vm9677, %v9638
  %9704 = vst.msk [vmem:[%s15 + $0xd0] sm:$0xff] %vm9677, %v9639
  %9705 = vst.msk [vmem:[%s15 + $0xd8] sm:$0xff] %vm9677, %v9640
  %9706 = vst.msk [vmem:[%s15 + $0xe0] sm:$0xff] %vm9677, %v9641
  %9707 = vst.msk [vmem:[%s15 + $0xe8] sm:$0xff] %vm9677, %v9642
  %9708 = vst.msk [vmem:[%s15 + $0xf0] sm:$0xff] %vm9677, %v9643
  %9709 = vst.msk [vmem:[%s15 + $0xf8] sm:$0xff] %vm9677, %v9644
  %9710 = vst.msk [vmem:[%s15 + $0x100] sm:$0xff] %vm9677, %v9645
  %9711 = vst.msk [vmem:[%s15 + $0x108] sm:$0xff] %vm9677, %v9646
  %9712 = vst.msk [vmem:[%s15 + $0x110] sm:$0xff] %vm9677, %v9647
  %9713 = vst.msk [vmem:[%s15 + $0x118] sm:$0xff] %vm9677, %v9648
  %9714 = vst.msk [vmem:[%s15 + $0x120] sm:$0xff] %vm9677, %v9649
  %9715 = vst.msk [vmem:[%s15 + $0x128] sm:$0xff] %vm9677, %v9650
  %9716 = vst.msk [vmem:[%s15 + $0x130] sm:$0xff] %vm9677, %v9651
  %9717 = vst.msk [vmem:[%s15 + $0x138] sm:$0xff] %vm9677, %v9652
  %9718 = vst.msk [vmem:[%s15 + $0x140] sm:$0xff] %vm9677, %v9653
  %9719 = vst.msk [vmem:[%s15 + $0x148] sm:$0xff] %vm9677, %v9654
  %9720 = vst.msk [vmem:[%s15 + $0x150] sm:$0xff] %vm9677, %v9655
  %9721 = vst.msk [vmem:[%s15 + $0x158] sm:$0xff] %vm9677, %v9656
  %9722 = vst.msk [vmem:[%s15 + $0x160] sm:$0xff] %vm9677, %v9657
  %9723 = vst.msk [vmem:[%s15 + $0x168] sm:$0xff] %vm9677, %v9658
  %9724 = vst.msk [vmem:[%s15 + $0x170] sm:$0xff] %vm9677, %v9659
  %9725 = vst.msk [vmem:[%s15 + $0x178] sm:$0xff] %vm9677, %v9660
  %9726 = vst.msk [vmem:[%s15 + $0x180] sm:$0xff] %vm9677, %v9661
  %9727 = vst.msk [vmem:[%s15 + $0x188] sm:$0xff] %vm9677, %v9662
  %9728 = vst.msk [vmem:[%s15 + $0x190] sm:$0xff] %vm9677, %v9663
  %9729 = vst.msk [vmem:[%s15 + $0x198] sm:$0xff] %vm9677, %v9664
  %9730 = vst.msk [vmem:[%s15 + $0x1a0] sm:$0xff] %vm9677, %v9665
  %9731 = vst.msk [vmem:[%s15 + $0x1a8] sm:$0xff] %vm9677, %v9666
  %9732 = vst.msk [vmem:[%s15 + $0x1b0] sm:$0xff] %vm9677, %v9667
  %9733 = vst.msk [vmem:[%s15 + $0x1b8] sm:$0xff] %vm9677, %v9668
  %9734 = vst.msk [vmem:[%s15 + $0x1c0] sm:$0xff] %vm9677, %v9669
  %9735 = vst.msk [vmem:[%s15 + $0x1c8] sm:$0xff] %vm9677, %v9670
  %9736 = vst.msk [vmem:[%s15 + $0x1d0] sm:$0xff] %vm9677, %v9671
  %9737 = vst.msk [vmem:[%s15 + $0x1d8] sm:$0xff] %vm9677, %v9672
  %9738 = vst.msk [vmem:[%s15 + $0x1e0] sm:$0xff] %vm9677, %v9673
  %9739 = vst.msk [vmem:[%s15 + $0x1e8] sm:$0xff] %vm9677, %v9674
  %9740 = vst.msk [vmem:[%s15 + $0x1f0] sm:$0xff] %vm9677, %v9675
  %9741 = vst.msk [vmem:[%s15 + $0x1f8] sm:$0xff] %vm9677, %v9676
  // Predicated region
  $region92: #{generator_forward.1} parent=0 // pred_check
    _
  $region93: #{generator_forward.1} parent=0 // pred_check_branch
    %9743 = sbr.rel (0) target = $region95
  $region94: #{generator_forward.1} parent=0 // pred_region
    _
  $region95: #{generator_forward.1} parent=0 // pred_fallthru
    _
  // Predicated region
  $region96: #{generator_forward.1} parent=0 // pred_check
    _
  $region97: #{generator_forward.1} parent=0 // pred_check_branch
    %9745 = sbr.rel (0) target = $region99
  $region98: #{generator_forward.1} parent=0 // pred_region
    _
  $region99: #{generator_forward.1} parent=0 // pred_fallthru
    _
  %9746 = vsyncmov [#allocation8]
  %s9747 = vpop.sfrf %9746
  %p9748 = scmp.eq.s32.totalorder %s9747, 0
  %p9749 = pneg %p9748
  %9751 = shalt.err (%p9749)
  %s9752 = scalar_lea.sflag [#allocation8], 1
  %9753 = vsyncmov %s9752
  %s9754 = vpop.sfrf %9753
  %p9755 = scmp.eq.s32.totalorder %s9754, 0
  %p9756 = pneg %p9755
  %9758 = shalt.err (%p9756)

</llo_original>
